<compile_context>
chip_gen: v7x
topology: tpu7x:2x2x1
jax: 0.10.0
libtpu: 0.0.40
codegen_flags: <defaults>
</compile_context>

<pallas_src>
import math

import jax
import jax.numpy as jnp
import numpy as np
from jax.experimental import pallas as pl

# ---- small shapes consistent with the module's forward ---------------------
B = 2            # batch
S = 8            # sequence length (tokens)
D_MODEL = 32
D_FF = 64
N_HEADS = 4
HEAD_DIM = D_MODEL // N_HEADS
N_LAYERS = 2
VOCAB = 50
PAD_ID = 0
NEG = -1e30      # "-inf" for masked attention scores (exp underflows to exactly 0)


def _layernorm(x, g, b, eps=1e-5):
    mu = jnp.mean(x, axis=-1, keepdims=True)
    var = jnp.mean((x - mu) ** 2, axis=-1, keepdims=True)
    return (x - mu) * jax.lax.rsqrt(var + eps) * g + b


# --------------------------- fused Pallas kernel ----------------------------
def fused_forward_kernel(tok_ref, mask_ref, emb_ref,
                         wq_ref, bq_ref, wk_ref, bk_ref, wv_ref, bv_ref,
                         wo_ref, bo_ref, g1_ref, be1_ref,
                         w1_ref, b1_ref, w2_ref, b2_ref, g2_ref, be2_ref,
                         wp_ref, bp_ref, o_ref):
    """Embedding + N_LAYERS post-norm encoder layers + pooler, whole batch, one invocation."""
    # ---- embedding lookup as a one-hot matmul (in-kernel "gather") ----------
    tok = tok_ref[...]                                                     # (B*S, 1) int32
    vocab_iota = jax.lax.broadcasted_iota(jnp.int32, (B * S, VOCAB), 1)    # (B*S, VOCAB)
    onehot = (tok == vocab_iota).astype(jnp.float32)
    h = jnp.dot(onehot, emb_ref[...], preferred_element_type=jnp.float32)  # (B*S, D)

    # additive key-padding bias, computed ONCE and reused by every layer/head
    # (quirk reproduced: keys where attention_mask is True get masked out)
    neg_bias = jnp.where(mask_ref[...] > 0.5, NEG, 0.0)                    # (B, S)

    for l in range(N_LAYERS):                      # static unrolled layer loop
        wq, wk, wv = wq_ref[l], wk_ref[l], wv_ref[l]        # (H, D, hd); scale folded into wq
        bq, bk, bv = bq_ref[l], bk_ref[l], bv_ref[l]        # (H, 1, hd)
        wo = wo_ref[l]                                      # (H, hd, D)

        attn_rows = []
        for b in range(B):                         # static per-sequence attention
            x_b = h[b * S:(b + 1) * S, :]                                  # (S, D) sublane slice
            xh = jnp.broadcast_to(x_b[None, :, :], (N_HEADS, S, D_MODEL))  # (H, S, D)
            q = jnp.einsum('hsd,hde->hse', xh, wq,
                           preferred_element_type=jnp.float32) + bq        # (H, S, hd)
            k = jnp.einsum('hsd,hde->hse', xh, wk,
                           preferred_element_type=jnp.float32) + bk
            v = jnp.einsum('hsd,hde->hse', xh, wv,
                           preferred_element_type=jnp.float32) + bv
            s = jnp.einsum('hqd,hkd->hqk', q, k,
                           preferred_element_type=jnp.float32)             # (H, S, S)
            s = s + neg_bias[b:b + 1, :].reshape(1, 1, S)
            m = jnp.max(s, axis=-1, keepdims=True)
            e = jnp.exp(s - m)
            p = e * pl.reciprocal(jnp.sum(e, axis=-1, keepdims=True), approx=True)
            o_h = jnp.einsum('hqk,hkd->hqd', p, v,
                             preferred_element_type=jnp.float32)           # (H, S, hd)
            # output projection: sum over heads of o_h[h] @ Wo[h]  == concat(o_h) @ Wo
            attn_rows.append(
                jnp.einsum('hqd,hdc->hqc', o_h, wo,
                           preferred_element_type=jnp.float32).sum(axis=0))  # (S, D)

        attn = jnp.concatenate(attn_rows, axis=0) + bo_ref[l]              # (B*S, D)
        h1 = _layernorm(h + attn, g1_ref[l], be1_ref[l])

        # feed-forward (ReLU), dense over the whole batch
        ff = jnp.maximum(
            jnp.dot(h1, w1_ref[l], preferred_element_type=jnp.float32) + b1_ref[l], 0.0)
        ff = jnp.dot(ff, w2_ref[l], preferred_element_type=jnp.float32) + b2_ref[l]
        h = _layernorm(h1 + ff, g2_ref[l], be2_ref[l])

    # ---- pooler: Linear + Tanh (ClassifierModel returns this) --------------
    o_ref[...] = jnp.tanh(
        jnp.dot(h, wp_ref[...], preferred_element_type=jnp.float32) + bp_ref[...])


# --------------------------- wrapper -----------------------------------------
@jax.jit
def classifier_forward(x_tokens, attention_mask, kp):
    tok2d = x_tokens.reshape(B * S, 1).astype(jnp.int32)
    mask_f = attention_mask.astype(jnp.float32)            # (B, S)
    pooled = pl.pallas_call(
        fused_forward_kernel,
        out_shape=jax.ShapeDtypeStruct((B * S, D_MODEL), jnp.float32),
        # no grid / no BlockSpecs: single invocation, every operand fully resident in VMEM
    )(tok2d, mask_f, kp['emb'],
      kp['wq'], kp['bq'], kp['wk'], kp['bk'], kp['wv'], kp['bv'],
      kp['wo'], kp['bo'], kp['g1'], kp['be1'],
      kp['w1'], kp['b1'], kp['w2'], kp['b2'], kp['g2'], kp['be2'],
      kp['wp'], kp['bp'])
    return pooled.reshape(B, S, D_MODEL)                    # == pool_output of forward()


# --------------------------- deterministic params ----------------------------
def make_params(key):
    """PyTorch-layout parameters (Linear weights already transposed to x @ W_t + b form)."""
    keys = iter(jax.random.split(key, 64))

    def nrm(shape, scale=0.02):
        return (scale * jax.random.normal(next(keys), shape)).astype(jnp.float32)

    emb = nrm((VOCAB, D_MODEL), 1.0)
    layers = []
    for _ in range(N_LAYERS):
        layers.append((
            nrm((D_MODEL, 3 * D_MODEL)),            # in_proj_weight^T
            nrm((1, 3 * D_MODEL)),                  # in_proj_bias
            nrm((D_MODEL, D_MODEL)),                # out_proj.weight^T
            nrm((1, D_MODEL)),                      # out_proj.bias
            jnp.ones((1, D_MODEL), jnp.float32),    # norm1.weight
            jnp.zeros((1, D_MODEL), jnp.float32),   # norm1.bias
            nrm((D_MODEL, D_FF)),                   # linear1.weight^T
            nrm((1, D_FF)),                         # linear1.bias
            nrm((D_FF, D_MODEL)),                   # linear2.weight^T
            nrm((1, D_MODEL)),                      # linear2.bias
            jnp.ones((1, D_MODEL), jnp.float32),    # norm2.weight
            jnp.zeros((1, D_MODEL), jnp.float32),   # norm2.bias
        ))
    head = (nrm((D_MODEL, D_MODEL)),                # pooler Linear weight^T
            nrm((1, D_MODEL)))                      # pooler Linear bias
    return {'emb': emb, 'layers': layers, 'head': head}


def prep_params(params):
    """One-time host-side transform into kernel-ready, head-major, layer-stacked tensors.

    Folds the 1/sqrt(HEAD_DIM) attention scale into the Q projection weight & bias and
    reshapes per-head weights so the kernel never lane-slices at HEAD_DIM offsets.
    """
    scale = 1.0 / math.sqrt(HEAD_DIM)
    names = ('wq', 'bq', 'wk', 'bk', 'wv', 'bv', 'wo', 'bo',
             'g1', 'be1', 'w1', 'b1', 'w2', 'b2', 'g2', 'be2')
    acc = {n: [] for n in names}

    def heads_w(w):                                  # (D, D) -> (H, D, hd)
        return w.reshape(D_MODEL, N_HEADS, HEAD_DIM).transpose(1, 0, 2)

    def heads_b(bvec):                               # (D,) -> (H, 1, hd)
        return bvec.reshape(N_HEADS, 1, HEAD_DIM)

    for (wqkv_t, bqkv, wo_t, bo, g1, be1, w1_t, b1, w2_t, b2, g2, be2) in params['layers']:
        per_layer = dict(
            wq=heads_w(wqkv_t[:, :D_MODEL] * scale),
            wk=heads_w(wqkv_t[:, D_MODEL:2 * D_MODEL]),
            wv=heads_w(wqkv_t[:, 2 * D_MODEL:]),
            bq=heads_b(bqkv[0, :D_MODEL] * scale),
            bk=heads_b(bqkv[0, D_MODEL:2 * D_MODEL]),
            bv=heads_b(bqkv[0, 2 * D_MODEL:]),
            wo=wo_t.reshape(N_HEADS, HEAD_DIM, D_MODEL),
            bo=bo, g1=g1, be1=be1, w1=w1_t, b1=b1, w2=w2_t, b2=b2, g2=g2, be2=be2)
        for n in names:
            acc[n].append(per_layer[n])

    kp = {n: jnp.stack(v) for n, v in acc.items()}   # leading dim = N_LAYERS
    kp['emb'] = params['emb']
    kp['wp'], kp['bp'] = params['head']
    return kp


# --------------------------- pure-JAX reference ------------------------------
def ref_forward(x_tokens, attention_mask, params):
    h = params['emb'][x_tokens]
    for (wqkv_t, bqkv, wo_t, bo, g1, be1, w1_t, b1, w2_t, b2, g2, be2) in params['layers']:
        qkv = h @ wqkv_t + bqkv
        q, k, v = jnp.split(qkv, 3, axis=-1)
        split_heads = lambda t: t.reshape(B, S, N_HEADS, HEAD_DIM).transpose(0, 2, 1, 3)
        q, k, v = split_heads(q), split_heads(k), split_heads(v)
        s = jnp.einsum('bhqd,bhkd->bhqk', q, k) / math.sqrt(HEAD_DIM)
        s = jnp.where(attention_mask[:, None, None, :], NEG, s)
        p = jax.nn.softmax(s, axis=-1)
        a = jnp.einsum('bhqk,bhkd->bhqd', p, v).transpose(0, 2, 1, 3).reshape(B, S, D_MODEL)
        a = a @ wo_t + bo
        h1 = _layernorm(h + a, g1, be1)
        ff = jnp.maximum(h1 @ w1_t + b1, 0.0) @ w2_t + b2
        h = _layernorm(h1 + ff, g2, be2)
    wp, bp = params['head']
    return jnp.tanh(h @ wp + bp)


if __name__ == "__main__":
    key = jax.random.PRNGKey(0)
    k_params, kx = jax.random.split(key)
    params = make_params(k_params)
    kernel_params = prep_params(params)

    x_tokens = jax.random.randint(kx, (B, S), 1, VOCAB, dtype=jnp.int32)
    # Ensure pad tokens exist so at least one key survives the (faithfully reproduced)
    # `src_key_padding_mask = attention_mask == True` masking.
    x_tokens = x_tokens.at[:, -3:].set(PAD_ID)
    attention_mask = (x_tokens != PAD_ID)

    pooled = classifier_forward(x_tokens, attention_mask, kernel_params)
    pooled = jax.block_until_ready(pooled)

    ref = ref_forward(x_tokens, attention_mask, params)
    assert pooled.shape == (B, S, D_MODEL)
    assert np.all(np.isfinite(np.asarray(pooled)))
    # tolerance slightly loosened (vs 1e-4/1e-5) because the attention-softmax denominator
    # uses pl.reciprocal(approx=True) on the EUP, as suggested by the performance review.
    np.testing.assert_allclose(np.asarray(pooled), np.asarray(ref), rtol=5e-3, atol=5e-3)
    print("KERNEL_OK")
</pallas_src>

<mosaic_0001>
module attributes {stable_mosaic.version = 11 : i64} {
  func.func @fused_forward_kernel(%arg0: memref<16x1xi32, #tpu.memory_space<vmem>>, %arg1: memref<2x8xf32, #tpu.memory_space<vmem>>, %arg2: memref<50x32xf32, #tpu.memory_space<vmem>>, %arg3: memref<2x4x32x8xf32, #tpu.memory_space<vmem>>, %arg4: memref<2x4x1x8xf32, #tpu.memory_space<vmem>>, %arg5: memref<2x4x32x8xf32, #tpu.memory_space<vmem>>, %arg6: memref<2x4x1x8xf32, #tpu.memory_space<vmem>>, %arg7: memref<2x4x32x8xf32, #tpu.memory_space<vmem>>, %arg8: memref<2x4x1x8xf32, #tpu.memory_space<vmem>>, %arg9: memref<2x4x8x32xf32, #tpu.memory_space<vmem>>, %arg10: memref<2x1x32xf32, #tpu.memory_space<vmem>>, %arg11: memref<2x1x32xf32, #tpu.memory_space<vmem>>, %arg12: memref<2x1x32xf32, #tpu.memory_space<vmem>>, %arg13: memref<2x32x64xf32, #tpu.memory_space<vmem>>, %arg14: memref<2x1x64xf32, #tpu.memory_space<vmem>>, %arg15: memref<2x64x32xf32, #tpu.memory_space<vmem>>, %arg16: memref<2x1x32xf32, #tpu.memory_space<vmem>>, %arg17: memref<2x1x32xf32, #tpu.memory_space<vmem>>, %arg18: memref<2x1x32xf32, #tpu.memory_space<vmem>>, %arg19: memref<32x32xf32, #tpu.memory_space<vmem>>, %arg20: memref<1x32xf32, #tpu.memory_space<vmem>>, %arg21: memref<16x32xf32, #tpu.memory_space<vmem>>) attributes {dimension_semantics = [], scalar_prefetch = 0 : i64, scratch_operands = 0 : i64, tpu.core_type = #tpu.core_type<tc>} {
    %c0 = arith.constant 0 : index
    %c0_0 = arith.constant 0 : index
    %0 = vector.load %arg0[%c0, %c0_0] : memref<16x1xi32, #tpu.memory_space<vmem>>, vector<16x1xi32>
    %1 = tpu.iota {dimensions = array<i32: 1>} : vector<16x50xi32>
    %2 = vector.broadcast %0 : vector<16x1xi32> to vector<16x50xi32>
    %3 = arith.cmpi eq, %2, %1 : vector<16x50xi32>
    %4 = arith.extui %3 : vector<16x50xi1> to vector<16x50xi32>
    %5 = arith.sitofp %4 : vector<16x50xi32> to vector<16x50xf32>
    %c0_1 = arith.constant 0 : index
    %c0_2 = arith.constant 0 : index
    %6 = vector.load %arg2[%c0_1, %c0_2] : memref<50x32xf32, #tpu.memory_space<vmem>>, vector<50x32xf32>
    %cst = arith.constant dense<0.000000e+00> : vector<16x32xf32>
    %7 = tpu.matmul %5, %6, %cst {dimension_numbers = #tpu.dot_dimension_numbers<[1], [0], [0], [1], [0, 0, 1, 1], [], []>} : vector<16x50xf32>, vector<50x32xf32>, vector<16x32xf32> -> vector<16x32xf32>
    %c0_3 = arith.constant 0 : index
    %c0_4 = arith.constant 0 : index
    %8 = vector.load %arg1[%c0_3, %c0_4] : memref<2x8xf32, #tpu.memory_space<vmem>>, vector<2x8xf32>
    %cst_5 = arith.constant 5.000000e-01 : f32
    %9 = vector.broadcast %cst_5 : f32 to vector<2x8xf32>
    %10 = arith.cmpf ogt, %8, %9 : vector<2x8xf32>
    %cst_6 = arith.constant -1.000000e+30 : f32
    %cst_7 = arith.constant 0.000000e+00 : f32
    %11 = vector.broadcast %cst_6 : f32 to vector<2x8xf32>
    %12 = vector.broadcast %cst_7 : f32 to vector<2x8xf32>
    %13 = arith.select %10, %11, %12 : vector<2x8xi1>, vector<2x8xf32>
    %c0_8 = arith.constant 0 : index
    %c0_9 = arith.constant 0 : index
    %c0_10 = arith.constant 0 : index
    %c0_11 = arith.constant 0 : index
    %14 = vector.load %arg3[%c0_8, %c0_9, %c0_10, %c0_11] : memref<2x4x32x8xf32, #tpu.memory_space<vmem>>, vector<1x4x32x8xf32>
    %15 = vector.shape_cast %14 : vector<1x4x32x8xf32> to vector<4x32x8xf32>
    %c0_12 = arith.constant 0 : index
    %c0_13 = arith.constant 0 : index
    %c0_14 = arith.constant 0 : index
    %c0_15 = arith.constant 0 : index
    %16 = vector.load %arg5[%c0_12, %c0_13, %c0_14, %c0_15] : memref<2x4x32x8xf32, #tpu.memory_space<vmem>>, vector<1x4x32x8xf32>
    %17 = vector.shape_cast %16 : vector<1x4x32x8xf32> to vector<4x32x8xf32>
    %c0_16 = arith.constant 0 : index
    %c0_17 = arith.constant 0 : index
    %c0_18 = arith.constant 0 : index
    %c0_19 = arith.constant 0 : index
    %18 = vector.load %arg7[%c0_16, %c0_17, %c0_18, %c0_19] : memref<2x4x32x8xf32, #tpu.memory_space<vmem>>, vector<1x4x32x8xf32>
    %19 = vector.shape_cast %18 : vector<1x4x32x8xf32> to vector<4x32x8xf32>
    %c0_20 = arith.constant 0 : index
    %c0_21 = arith.constant 0 : index
    %c0_22 = arith.constant 0 : index
    %c0_23 = arith.constant 0 : index
    %20 = vector.load %arg4[%c0_20, %c0_21, %c0_22, %c0_23] : memref<2x4x1x8xf32, #tpu.memory_space<vmem>>, vector<1x4x1x8xf32>
    %21 = vector.shape_cast %20 : vector<1x4x1x8xf32> to vector<4x1x8xf32>
    %c0_24 = arith.constant 0 : index
    %c0_25 = arith.constant 0 : index
    %c0_26 = arith.constant 0 : index
    %c0_27 = arith.constant 0 : index
    %22 = vector.load %arg6[%c0_24, %c0_25, %c0_26, %c0_27] : memref<2x4x1x8xf32, #tpu.memory_space<vmem>>, vector<1x4x1x8xf32>
    %23 = vector.shape_cast %22 : vector<1x4x1x8xf32> to vector<4x1x8xf32>
    %c0_28 = arith.constant 0 : index
    %c0_29 = arith.constant 0 : index
    %c0_30 = arith.constant 0 : index
    %c0_31 = arith.constant 0 : index
    %24 = vector.load %arg8[%c0_28, %c0_29, %c0_30, %c0_31] : memref<2x4x1x8xf32, #tpu.memory_space<vmem>>, vector<1x4x1x8xf32>
    %25 = vector.shape_cast %24 : vector<1x4x1x8xf32> to vector<4x1x8xf32>
    %c0_32 = arith.constant 0 : index
    %c0_33 = arith.constant 0 : index
    %c0_34 = arith.constant 0 : index
    %c0_35 = arith.constant 0 : index
    %26 = vector.load %arg9[%c0_32, %c0_33, %c0_34, %c0_35] : memref<2x4x8x32xf32, #tpu.memory_space<vmem>>, vector<1x4x8x32xf32>
    %27 = vector.shape_cast %26 : vector<1x4x8x32xf32> to vector<4x8x32xf32>
    %28 = vector.extract_strided_slice %7 {offsets = [0, 0], sizes = [8, 32], strides = [1, 1]} : vector<16x32xf32> to vector<8x32xf32>
    %29 = vector.shape_cast %28 : vector<8x32xf32> to vector<1x8x32xf32>
    %30 = vector.shape_cast %29 : vector<1x8x32xf32> to vector<1x8x32xf32>
    %31 = vector.broadcast %30 : vector<1x8x32xf32> to vector<4x8x32xf32>
    "tpu.trace_start"() <{level = 10 : i32, message = "hsd,hde->hse"}> : () -> ()
    %cst_36 = arith.constant dense<0.000000e+00> : vector<4x8x8xf32>
    %32 = tpu.matmul %31, %15, %cst_36 {dimension_numbers = #tpu.dot_dimension_numbers<[2], [1], [1], [2], [0, 0, 0, 1, 1, 2], [0], [0]>} : vector<4x8x32xf32>, vector<4x32x8xf32>, vector<4x8x8xf32> -> vector<4x8x8xf32>
    "tpu.trace_stop"() : () -> ()
    %33 = vector.broadcast %21 : vector<4x1x8xf32> to vector<4x8x8xf32>
    %34 = arith.addf %32, %33 : vector<4x8x8xf32>
    "tpu.trace_start"() <{level = 10 : i32, message = "hsd,hde->hse"}> : () -> ()
    %cst_37 = arith.constant dense<0.000000e+00> : vector<4x8x8xf32>
    %35 = tpu.matmul %31, %17, %cst_37 {dimension_numbers = #tpu.dot_dimension_numbers<[2], [1], [1], [2], [0, 0, 0, 1, 1, 2], [0], [0]>} : vector<4x8x32xf32>, vector<4x32x8xf32>, vector<4x8x8xf32> -> vector<4x8x8xf32>
    "tpu.trace_stop"() : () -> ()
    %36 = vector.broadcast %23 : vector<4x1x8xf32> to vector<4x8x8xf32>
    %37 = arith.addf %35, %36 : vector<4x8x8xf32>
    "tpu.trace_start"() <{level = 10 : i32, message = "hsd,hde->hse"}> : () -> ()
    %cst_38 = arith.constant dense<0.000000e+00> : vector<4x8x8xf32>
    %38 = tpu.matmul %31, %19, %cst_38 {dimension_numbers = #tpu.dot_dimension_numbers<[2], [1], [1], [2], [0, 0, 0, 1, 1, 2], [0], [0]>} : vector<4x8x32xf32>, vector<4x32x8xf32>, vector<4x8x8xf32> -> vector<4x8x8xf32>
    "tpu.trace_stop"() : () -> ()
    %39 = vector.broadcast %25 : vector<4x1x8xf32> to vector<4x8x8xf32>
    %40 = arith.addf %38, %39 : vector<4x8x8xf32>
    "tpu.trace_start"() <{level = 10 : i32, message = "hqd,hkd->hqk"}> : () -> ()
    %cst_39 = arith.constant dense<0.000000e+00> : vector<4x8x8xf32>
    %41 = tpu.matmul %34, %37, %cst_39 {dimension_numbers = #tpu.dot_dimension_numbers<[2], [2], [1], [1], [0, 0, 0, 1, 1, 1], [0], [0]>} : vector<4x8x8xf32>, vector<4x8x8xf32>, vector<4x8x8xf32> -> vector<4x8x8xf32>
    "tpu.trace_stop"() : () -> ()
    %42 = vector.extract_strided_slice %13 {offsets = [0, 0], sizes = [1, 8], strides = [1, 1]} : vector<2x8xf32> to vector<1x8xf32>
    %43 = vector.shape_cast %42 : vector<1x8xf32> to vector<1x1x8xf32>
    %44 = vector.broadcast %43 : vector<1x1x8xf32> to vector<4x8x8xf32>
    %45 = arith.addf %41, %44 : vector<4x8x8xf32>
    %cst_40 = arith.constant dense<0xFF800000> : vector<4x8xf32>
    %46 = vector.multi_reduction <maximumf>, %45, %cst_40 [2] : vector<4x8x8xf32> to vector<4x8xf32>
    %47 = vector.shape_cast %46 : vector<4x8xf32> to vector<4x8x1xf32>
    %48 = vector.broadcast %47 : vector<4x8x1xf32> to vector<4x8x8xf32>
    %49 = arith.subf %45, %48 : vector<4x8x8xf32>
    %50 = math.exp %49 : vector<4x8x8xf32>
    %cst_41 = arith.constant dense<0.000000e+00> : vector<4x8xf32>
    %51 = vector.multi_reduction <add>, %50, %cst_41 [2] : vector<4x8x8xf32> to vector<4x8xf32>
    %52 = vector.shape_cast %51 : vector<4x8xf32> to vector<4x8x1xf32>
    %53 = tpu.reciprocal %52 {approx = true} : vector<4x8x1xf32> -> vector<4x8x1xf32>
    %54 = vector.broadcast %53 : vector<4x8x1xf32> to vector<4x8x8xf32>
    %55 = arith.mulf %50, %54 : vector<4x8x8xf32>
    "tpu.trace_start"() <{level = 10 : i32, message = "hqk,hkd->hqd"}> : () -> ()
    %cst_42 = arith.constant dense<0.000000e+00> : vector<4x8x8xf32>
    %56 = tpu.matmul %55, %40, %cst_42 {dimension_numbers = #tpu.dot_dimension_numbers<[2], [1], [1], [2], [0, 0, 0, 1, 1, 2], [0], [0]>} : vector<4x8x8xf32>, vector<4x8x8xf32>, vector<4x8x8xf32> -> vector<4x8x8xf32>
    "tpu.trace_stop"() : () -> ()
    "tpu.trace_start"() <{level = 10 : i32, message = "hqd,hdc->hqc"}> : () -> ()
    %cst_43 = arith.constant dense<0.000000e+00> : vector<4x8x32xf32>
    %57 = tpu.matmul %56, %27, %cst_43 {dimension_numbers = #tpu.dot_dimension_numbers<[2], [1], [1], [2], [0, 0, 0, 1, 1, 2], [0], [0]>} : vector<4x8x8xf32>, vector<4x8x32xf32>, vector<4x8x32xf32> -> vector<4x8x32xf32>
    "tpu.trace_stop"() : () -> ()
    %cst_44 = arith.constant dense<0.000000e+00> : vector<8x32xf32>
    %58 = vector.multi_reduction <add>, %57, %cst_44 [0] : vector<4x8x32xf32> to vector<8x32xf32>
    %59 = vector.extract_strided_slice %7 {offsets = [8, 0], sizes = [8, 32], strides = [1, 1]} : vector<16x32xf32> to vector<8x32xf32>
    %60 = vector.shape_cast %59 : vector<8x32xf32> to vector<1x8x32xf32>
    %61 = vector.shape_cast %60 : vector<1x8x32xf32> to vector<1x8x32xf32>
    %62 = vector.broadcast %61 : vector<1x8x32xf32> to vector<4x8x32xf32>
    "tpu.trace_start"() <{level = 10 : i32, message = "hsd,hde->hse"}> : () -> ()
    %cst_45 = arith.constant dense<0.000000e+00> : vector<4x8x8xf32>
    %63 = tpu.matmul %62, %15, %cst_45 {dimension_numbers = #tpu.dot_dimension_numbers<[2], [1], [1], [2], [0, 0, 0, 1, 1, 2], [0], [0]>} : vector<4x8x32xf32>, vector<4x32x8xf32>, vector<4x8x8xf32> -> vector<4x8x8xf32>
    "tpu.trace_stop"() : () -> ()
    %64 = vector.broadcast %21 : vector<4x1x8xf32> to vector<4x8x8xf32>
    %65 = arith.addf %63, %64 : vector<4x8x8xf32>
    "tpu.trace_start"() <{level = 10 : i32, message = "hsd,hde->hse"}> : () -> ()
    %cst_46 = arith.constant dense<0.000000e+00> : vector<4x8x8xf32>
    %66 = tpu.matmul %62, %17, %cst_46 {dimension_numbers = #tpu.dot_dimension_numbers<[2], [1], [1], [2], [0, 0, 0, 1, 1, 2], [0], [0]>} : vector<4x8x32xf32>, vector<4x32x8xf32>, vector<4x8x8xf32> -> vector<4x8x8xf32>
    "tpu.trace_stop"() : () -> ()
    %67 = vector.broadcast %23 : vector<4x1x8xf32> to vector<4x8x8xf32>
    %68 = arith.addf %66, %67 : vector<4x8x8xf32>
    "tpu.trace_start"() <{level = 10 : i32, message = "hsd,hde->hse"}> : () -> ()
    %cst_47 = arith.constant dense<0.000000e+00> : vector<4x8x8xf32>
    %69 = tpu.matmul %62, %19, %cst_47 {dimension_numbers = #tpu.dot_dimension_numbers<[2], [1], [1], [2], [0, 0, 0, 1, 1, 2], [0], [0]>} : vector<4x8x32xf32>, vector<4x32x8xf32>, vector<4x8x8xf32> -> vector<4x8x8xf32>
    "tpu.trace_stop"() : () -> ()
    %70 = vector.broadcast %25 : vector<4x1x8xf32> to vector<4x8x8xf32>
    %71 = arith.addf %69, %70 : vector<4x8x8xf32>
    "tpu.trace_start"() <{level = 10 : i32, message = "hqd,hkd->hqk"}> : () -> ()
    %cst_48 = arith.constant dense<0.000000e+00> : vector<4x8x8xf32>
    %72 = tpu.matmul %65, %68, %cst_48 {dimension_numbers = #tpu.dot_dimension_numbers<[2], [2], [1], [1], [0, 0, 0, 1, 1, 1], [0], [0]>} : vector<4x8x8xf32>, vector<4x8x8xf32>, vector<4x8x8xf32> -> vector<4x8x8xf32>
    "tpu.trace_stop"() : () -> ()
    %73 = vector.extract_strided_slice %13 {offsets = [1, 0], sizes = [1, 8], strides = [1, 1]} : vector<2x8xf32> to vector<1x8xf32>
    %74 = vector.shape_cast %73 : vector<1x8xf32> to vector<1x1x8xf32>
    %75 = vector.broadcast %74 : vector<1x1x8xf32> to vector<4x8x8xf32>
    %76 = arith.addf %72, %75 : vector<4x8x8xf32>
    %cst_49 = arith.constant dense<0xFF800000> : vector<4x8xf32>
    %77 = vector.multi_reduction <maximumf>, %76, %cst_49 [2] : vector<4x8x8xf32> to vector<4x8xf32>
    %78 = vector.shape_cast %77 : vector<4x8xf32> to vector<4x8x1xf32>
    %79 = vector.broadcast %78 : vector<4x8x1xf32> to vector<4x8x8xf32>
    %80 = arith.subf %76, %79 : vector<4x8x8xf32>
    %81 = math.exp %80 : vector<4x8x8xf32>
    %cst_50 = arith.constant dense<0.000000e+00> : vector<4x8xf32>
    %82 = vector.multi_reduction <add>, %81, %cst_50 [2] : vector<4x8x8xf32> to vector<4x8xf32>
    %83 = vector.shape_cast %82 : vector<4x8xf32> to vector<4x8x1xf32>
    %84 = tpu.reciprocal %83 {approx = true} : vector<4x8x1xf32> -> vector<4x8x1xf32>
    %85 = vector.broadcast %84 : vector<4x8x1xf32> to vector<4x8x8xf32>
    %86 = arith.mulf %81, %85 : vector<4x8x8xf32>
    "tpu.trace_start"() <{level = 10 : i32, message = "hqk,hkd->hqd"}> : () -> ()
    %cst_51 = arith.constant dense<0.000000e+00> : vector<4x8x8xf32>
    %87 = tpu.matmul %86, %71, %cst_51 {dimension_numbers = #tpu.dot_dimension_numbers<[2], [1], [1], [2], [0, 0, 0, 1, 1, 2], [0], [0]>} : vector<4x8x8xf32>, vector<4x8x8xf32>, vector<4x8x8xf32> -> vector<4x8x8xf32>
    "tpu.trace_stop"() : () -> ()
    "tpu.trace_start"() <{level = 10 : i32, message = "hqd,hdc->hqc"}> : () -> ()
    %cst_52 = arith.constant dense<0.000000e+00> : vector<4x8x32xf32>
    %88 = tpu.matmul %87, %27, %cst_52 {dimension_numbers = #tpu.dot_dimension_numbers<[2], [1], [1], [2], [0, 0, 0, 1, 1, 2], [0], [0]>} : vector<4x8x8xf32>, vector<4x8x32xf32>, vector<4x8x32xf32> -> vector<4x8x32xf32>
    "tpu.trace_stop"() : () -> ()
    %cst_53 = arith.constant dense<0.000000e+00> : vector<8x32xf32>
    %89 = vector.multi_reduction <add>, %88, %cst_53 [0] : vector<4x8x32xf32> to vector<8x32xf32>
    %90 = tpu.concatenate %58, %89 in 0 : vector<8x32xf32>, vector<8x32xf32> -> vector<16x32xf32>
    %c0_54 = arith.constant 0 : index
    %c0_55 = arith.constant 0 : index
    %c0_56 = arith.constant 0 : index
    %91 = vector.load %arg10[%c0_54, %c0_55, %c0_56] : memref<2x1x32xf32, #tpu.memory_space<vmem>>, vector<1x1x32xf32>
    %92 = vector.shape_cast %91 : vector<1x1x32xf32> to vector<1x32xf32>
    %93 = vector.broadcast %92 : vector<1x32xf32> to vector<16x32xf32>
    %94 = arith.addf %90, %93 : vector<16x32xf32>
    %95 = arith.addf %7, %94 : vector<16x32xf32>
    %c0_57 = arith.constant 0 : index
    %c0_58 = arith.constant 0 : index
    %c0_59 = arith.constant 0 : index
    %96 = vector.load %arg11[%c0_57, %c0_58, %c0_59] : memref<2x1x32xf32, #tpu.memory_space<vmem>>, vector<1x1x32xf32>
    %97 = vector.shape_cast %96 : vector<1x1x32xf32> to vector<1x32xf32>
    %c0_60 = arith.constant 0 : index
    %c0_61 = arith.constant 0 : index
    %c0_62 = arith.constant 0 : index
    %98 = vector.load %arg12[%c0_60, %c0_61, %c0_62] : memref<2x1x32xf32, #tpu.memory_space<vmem>>, vector<1x1x32xf32>
    %99 = vector.shape_cast %98 : vector<1x1x32xf32> to vector<1x32xf32>
    %cst_63 = arith.constant dense<0.000000e+00> : vector<16xf32>
    %100 = vector.multi_reduction <add>, %95, %cst_63 [1] : vector<16x32xf32> to vector<16xf32>
    %101 = vector.shape_cast %100 : vector<16xf32> to vector<16x1xf32>
    %cst_64 = arith.constant 3.200000e+01 : f32
    %102 = vector.broadcast %cst_64 : f32 to vector<16x1xf32>
    %103 = arith.divf %101, %102 : vector<16x1xf32>
    %104 = vector.broadcast %103 : vector<16x1xf32> to vector<16x32xf32>
    %105 = arith.subf %95, %104 : vector<16x32xf32>
    %106 = arith.mulf %105, %105 : vector<16x32xf32>
    %cst_65 = arith.constant dense<0.000000e+00> : vector<16xf32>
    %107 = vector.multi_reduction <add>, %106, %cst_65 [1] : vector<16x32xf32> to vector<16xf32>
    %108 = vector.shape_cast %107 : vector<16xf32> to vector<16x1xf32>
    %cst_66 = arith.constant 3.200000e+01 : f32
    %109 = vector.broadcast %cst_66 : f32 to vector<16x1xf32>
    %110 = arith.divf %108, %109 : vector<16x1xf32>
    %111 = vector.broadcast %103 : vector<16x1xf32> to vector<16x32xf32>
    %112 = arith.subf %95, %111 : vector<16x32xf32>
    %cst_67 = arith.constant 9.99999974E-6 : f32
    %113 = vector.broadcast %cst_67 : f32 to vector<16x1xf32>
    %114 = arith.addf %110, %113 : vector<16x1xf32>
    %115 = math.rsqrt %114 : vector<16x1xf32>
    %116 = vector.broadcast %115 : vector<16x1xf32> to vector<16x32xf32>
    %117 = arith.mulf %112, %116 : vector<16x32xf32>
    %118 = vector.broadcast %97 : vector<1x32xf32> to vector<16x32xf32>
    %119 = arith.mulf %117, %118 : vector<16x32xf32>
    %120 = vector.broadcast %99 : vector<1x32xf32> to vector<16x32xf32>
    %121 = arith.addf %119, %120 : vector<16x32xf32>
    %c0_68 = arith.constant 0 : index
    %c0_69 = arith.constant 0 : index
    %c0_70 = arith.constant 0 : index
    %122 = vector.load %arg13[%c0_68, %c0_69, %c0_70] : memref<2x32x64xf32, #tpu.memory_space<vmem>>, vector<1x32x64xf32>
    %123 = vector.shape_cast %122 : vector<1x32x64xf32> to vector<32x64xf32>
    %cst_71 = arith.constant dense<0.000000e+00> : vector<16x64xf32>
    %124 = tpu.matmul %121, %123, %cst_71 {dimension_numbers = #tpu.dot_dimension_numbers<[1], [0], [0], [1], [0, 0, 1, 1], [], []>} : vector<16x32xf32>, vector<32x64xf32>, vector<16x64xf32> -> vector<16x64xf32>
    %c0_72 = arith.constant 0 : index
    %c0_73 = arith.constant 0 : index
    %c0_74 = arith.constant 0 : index
    %125 = vector.load %arg14[%c0_72, %c0_73, %c0_74] : memref<2x1x64xf32, #tpu.memory_space<vmem>>, vector<1x1x64xf32>
    %126 = vector.shape_cast %125 : vector<1x1x64xf32> to vector<1x64xf32>
    %127 = vector.broadcast %126 : vector<1x64xf32> to vector<16x64xf32>
    %128 = arith.addf %124, %127 : vector<16x64xf32>
    %cst_75 = arith.constant 0.000000e+00 : f32
    %129 = vector.broadcast %cst_75 : f32 to vector<16x64xf32>
    %130 = arith.maximumf %128, %129 : vector<16x64xf32>
    %c0_76 = arith.constant 0 : index
    %c0_77 = arith.constant 0 : index
    %c0_78 = arith.constant 0 : index
    %131 = vector.load %arg15[%c0_76, %c0_77, %c0_78] : memref<2x64x32xf32, #tpu.memory_space<vmem>>, vector<1x64x32xf32>
    %132 = vector.shape_cast %131 : vector<1x64x32xf32> to vector<64x32xf32>
    %cst_79 = arith.constant dense<0.000000e+00> : vector<16x32xf32>
    %133 = tpu.matmul %130, %132, %cst_79 {dimension_numbers = #tpu.dot_dimension_numbers<[1], [0], [0], [1], [0, 0, 1, 1], [], []>} : vector<16x64xf32>, vector<64x32xf32>, vector<16x32xf32> -> vector<16x32xf32>
    %c0_80 = arith.constant 0 : index
    %c0_81 = arith.constant 0 : index
    %c0_82 = arith.constant 0 : index
    %134 = vector.load %arg16[%c0_80, %c0_81, %c0_82] : memref<2x1x32xf32, #tpu.memory_space<vmem>>, vector<1x1x32xf32>
    %135 = vector.shape_cast %134 : vector<1x1x32xf32> to vector<1x32xf32>
    %136 = vector.broadcast %135 : vector<1x32xf32> to vector<16x32xf32>
    %137 = arith.addf %133, %136 : vector<16x32xf32>
    %138 = arith.addf %121, %137 : vector<16x32xf32>
    %c0_83 = arith.constant 0 : index
    %c0_84 = arith.constant 0 : index
    %c0_85 = arith.constant 0 : index
    %139 = vector.load %arg17[%c0_83, %c0_84, %c0_85] : memref<2x1x32xf32, #tpu.memory_space<vmem>>, vector<1x1x32xf32>
    %140 = vector.shape_cast %139 : vector<1x1x32xf32> to vector<1x32xf32>
    %c0_86 = arith.constant 0 : index
    %c0_87 = arith.constant 0 : index
    %c0_88 = arith.constant 0 : index
    %141 = vector.load %arg18[%c0_86, %c0_87, %c0_88] : memref<2x1x32xf32, #tpu.memory_space<vmem>>, vector<1x1x32xf32>
    %142 = vector.shape_cast %141 : vector<1x1x32xf32> to vector<1x32xf32>
    %cst_89 = arith.constant dense<0.000000e+00> : vector<16xf32>
    %143 = vector.multi_reduction <add>, %138, %cst_89 [1] : vector<16x32xf32> to vector<16xf32>
    %144 = vector.shape_cast %143 : vector<16xf32> to vector<16x1xf32>
    %cst_90 = arith.constant 3.200000e+01 : f32
    %145 = vector.broadcast %cst_90 : f32 to vector<16x1xf32>
    %146 = arith.divf %144, %145 : vector<16x1xf32>
    %147 = vector.broadcast %146 : vector<16x1xf32> to vector<16x32xf32>
    %148 = arith.subf %138, %147 : vector<16x32xf32>
    %149 = arith.mulf %148, %148 : vector<16x32xf32>
    %cst_91 = arith.constant dense<0.000000e+00> : vector<16xf32>
    %150 = vector.multi_reduction <add>, %149, %cst_91 [1] : vector<16x32xf32> to vector<16xf32>
    %151 = vector.shape_cast %150 : vector<16xf32> to vector<16x1xf32>
    %cst_92 = arith.constant 3.200000e+01 : f32
    %152 = vector.broadcast %cst_92 : f32 to vector<16x1xf32>
    %153 = arith.divf %151, %152 : vector<16x1xf32>
    %154 = vector.broadcast %146 : vector<16x1xf32> to vector<16x32xf32>
    %155 = arith.subf %138, %154 : vector<16x32xf32>
    %cst_93 = arith.constant 9.99999974E-6 : f32
    %156 = vector.broadcast %cst_93 : f32 to vector<16x1xf32>
    %157 = arith.addf %153, %156 : vector<16x1xf32>
    %158 = math.rsqrt %157 : vector<16x1xf32>
    %159 = vector.broadcast %158 : vector<16x1xf32> to vector<16x32xf32>
    %160 = arith.mulf %155, %159 : vector<16x32xf32>
    %161 = vector.broadcast %140 : vector<1x32xf32> to vector<16x32xf32>
    %162 = arith.mulf %160, %161 : vector<16x32xf32>
    %163 = vector.broadcast %142 : vector<1x32xf32> to vector<16x32xf32>
    %164 = arith.addf %162, %163 : vector<16x32xf32>
    %c1 = arith.constant 1 : index
    %c0_94 = arith.constant 0 : index
    %c0_95 = arith.constant 0 : index
    %c0_96 = arith.constant 0 : index
    %165 = vector.load %arg3[%c1, %c0_94, %c0_95, %c0_96] : memref<2x4x32x8xf32, #tpu.memory_space<vmem>>, vector<1x4x32x8xf32>
    %166 = vector.shape_cast %165 : vector<1x4x32x8xf32> to vector<4x32x8xf32>
    %c1_97 = arith.constant 1 : index
    %c0_98 = arith.constant 0 : index
    %c0_99 = arith.constant 0 : index
    %c0_100 = arith.constant 0 : index
    %167 = vector.load %arg5[%c1_97, %c0_98, %c0_99, %c0_100] : memref<2x4x32x8xf32, #tpu.memory_space<vmem>>, vector<1x4x32x8xf32>
    %168 = vector.shape_cast %167 : vector<1x4x32x8xf32> to vector<4x32x8xf32>
    %c1_101 = arith.constant 1 : index
    %c0_102 = arith.constant 0 : index
    %c0_103 = arith.constant 0 : index
    %c0_104 = arith.constant 0 : index
    %169 = vector.load %arg7[%c1_101, %c0_102, %c0_103, %c0_104] : memref<2x4x32x8xf32, #tpu.memory_space<vmem>>, vector<1x4x32x8xf32>
    %170 = vector.shape_cast %169 : vector<1x4x32x8xf32> to vector<4x32x8xf32>
    %c1_105 = arith.constant 1 : index
    %c0_106 = arith.constant 0 : index
    %c0_107 = arith.constant 0 : index
    %c0_108 = arith.constant 0 : index
    %171 = vector.load %arg4[%c1_105, %c0_106, %c0_107, %c0_108] : memref<2x4x1x8xf32, #tpu.memory_space<vmem>>, vector<1x4x1x8xf32>
    %172 = vector.shape_cast %171 : vector<1x4x1x8xf32> to vector<4x1x8xf32>
    %c1_109 = arith.constant 1 : index
    %c0_110 = arith.constant 0 : index
    %c0_111 = arith.constant 0 : index
    %c0_112 = arith.constant 0 : index
    %173 = vector.load %arg6[%c1_109, %c0_110, %c0_111, %c0_112] : memref<2x4x1x8xf32, #tpu.memory_space<vmem>>, vector<1x4x1x8xf32>
    %174 = vector.shape_cast %173 : vector<1x4x1x8xf32> to vector<4x1x8xf32>
    %c1_113 = arith.constant 1 : index
    %c0_114 = arith.constant 0 : index
    %c0_115 = arith.constant 0 : index
    %c0_116 = arith.constant 0 : index
    %175 = vector.load %arg8[%c1_113, %c0_114, %c0_115, %c0_116] : memref<2x4x1x8xf32, #tpu.memory_space<vmem>>, vector<1x4x1x8xf32>
    %176 = vector.shape_cast %175 : vector<1x4x1x8xf32> to vector<4x1x8xf32>
    %c1_117 = arith.constant 1 : index
    %c0_118 = arith.constant 0 : index
    %c0_119 = arith.constant 0 : index
    %c0_120 = arith.constant 0 : index
    %177 = vector.load %arg9[%c1_117, %c0_118, %c0_119, %c0_120] : memref<2x4x8x32xf32, #tpu.memory_space<vmem>>, vector<1x4x8x32xf32>
    %178 = vector.shape_cast %177 : vector<1x4x8x32xf32> to vector<4x8x32xf32>
    %179 = vector.extract_strided_slice %164 {offsets = [0, 0], sizes = [8, 32], strides = [1, 1]} : vector<16x32xf32> to vector<8x32xf32>
    %180 = vector.shape_cast %179 : vector<8x32xf32> to vector<1x8x32xf32>
    %181 = vector.shape_cast %180 : vector<1x8x32xf32> to vector<1x8x32xf32>
    %182 = vector.broadcast %181 : vector<1x8x32xf32> to vector<4x8x32xf32>
    "tpu.trace_start"() <{level = 10 : i32, message = "hsd,hde->hse"}> : () -> ()
    %cst_121 = arith.constant dense<0.000000e+00> : vector<4x8x8xf32>
    %183 = tpu.matmul %182, %166, %cst_121 {dimension_numbers = #tpu.dot_dimension_numbers<[2], [1], [1], [2], [0, 0, 0, 1, 1, 2], [0], [0]>} : vector<4x8x32xf32>, vector<4x32x8xf32>, vector<4x8x8xf32> -> vector<4x8x8xf32>
    "tpu.trace_stop"() : () -> ()
    %184 = vector.broadcast %172 : vector<4x1x8xf32> to vector<4x8x8xf32>
    %185 = arith.addf %183, %184 : vector<4x8x8xf32>
    "tpu.trace_start"() <{level = 10 : i32, message = "hsd,hde->hse"}> : () -> ()
    %cst_122 = arith.constant dense<0.000000e+00> : vector<4x8x8xf32>
    %186 = tpu.matmul %182, %168, %cst_122 {dimension_numbers = #tpu.dot_dimension_numbers<[2], [1], [1], [2], [0, 0, 0, 1, 1, 2], [0], [0]>} : vector<4x8x32xf32>, vector<4x32x8xf32>, vector<4x8x8xf32> -> vector<4x8x8xf32>
    "tpu.trace_stop"() : () -> ()
    %187 = vector.broadcast %174 : vector<4x1x8xf32> to vector<4x8x8xf32>
    %188 = arith.addf %186, %187 : vector<4x8x8xf32>
    "tpu.trace_start"() <{level = 10 : i32, message = "hsd,hde->hse"}> : () -> ()
    %cst_123 = arith.constant dense<0.000000e+00> : vector<4x8x8xf32>
    %189 = tpu.matmul %182, %170, %cst_123 {dimension_numbers = #tpu.dot_dimension_numbers<[2], [1], [1], [2], [0, 0, 0, 1, 1, 2], [0], [0]>} : vector<4x8x32xf32>, vector<4x32x8xf32>, vector<4x8x8xf32> -> vector<4x8x8xf32>
    "tpu.trace_stop"() : () -> ()
    %190 = vector.broadcast %176 : vector<4x1x8xf32> to vector<4x8x8xf32>
    %191 = arith.addf %189, %190 : vector<4x8x8xf32>
    "tpu.trace_start"() <{level = 10 : i32, message = "hqd,hkd->hqk"}> : () -> ()
    %cst_124 = arith.constant dense<0.000000e+00> : vector<4x8x8xf32>
    %192 = tpu.matmul %185, %188, %cst_124 {dimension_numbers = #tpu.dot_dimension_numbers<[2], [2], [1], [1], [0, 0, 0, 1, 1, 1], [0], [0]>} : vector<4x8x8xf32>, vector<4x8x8xf32>, vector<4x8x8xf32> -> vector<4x8x8xf32>
    "tpu.trace_stop"() : () -> ()
    %193 = vector.extract_strided_slice %13 {offsets = [0, 0], sizes = [1, 8], strides = [1, 1]} : vector<2x8xf32> to vector<1x8xf32>
    %194 = vector.shape_cast %193 : vector<1x8xf32> to vector<1x1x8xf32>
    %195 = vector.broadcast %194 : vector<1x1x8xf32> to vector<4x8x8xf32>
    %196 = arith.addf %192, %195 : vector<4x8x8xf32>
    %cst_125 = arith.constant dense<0xFF800000> : vector<4x8xf32>
    %197 = vector.multi_reduction <maximumf>, %196, %cst_125 [2] : vector<4x8x8xf32> to vector<4x8xf32>
    %198 = vector.shape_cast %197 : vector<4x8xf32> to vector<4x8x1xf32>
    %199 = vector.broadcast %198 : vector<4x8x1xf32> to vector<4x8x8xf32>
    %200 = arith.subf %196, %199 : vector<4x8x8xf32>
    %201 = math.exp %200 : vector<4x8x8xf32>
    %cst_126 = arith.constant dense<0.000000e+00> : vector<4x8xf32>
    %202 = vector.multi_reduction <add>, %201, %cst_126 [2] : vector<4x8x8xf32> to vector<4x8xf32>
    %203 = vector.shape_cast %202 : vector<4x8xf32> to vector<4x8x1xf32>
    %204 = tpu.reciprocal %203 {approx = true} : vector<4x8x1xf32> -> vector<4x8x1xf32>
    %205 = vector.broadcast %204 : vector<4x8x1xf32> to vector<4x8x8xf32>
    %206 = arith.mulf %201, %205 : vector<4x8x8xf32>
    "tpu.trace_start"() <{level = 10 : i32, message = "hqk,hkd->hqd"}> : () -> ()
    %cst_127 = arith.constant dense<0.000000e+00> : vector<4x8x8xf32>
    %207 = tpu.matmul %206, %191, %cst_127 {dimension_numbers = #tpu.dot_dimension_numbers<[2], [1], [1], [2], [0, 0, 0, 1, 1, 2], [0], [0]>} : vector<4x8x8xf32>, vector<4x8x8xf32>, vector<4x8x8xf32> -> vector<4x8x8xf32>
    "tpu.trace_stop"() : () -> ()
    "tpu.trace_start"() <{level = 10 : i32, message = "hqd,hdc->hqc"}> : () -> ()
    %cst_128 = arith.constant dense<0.000000e+00> : vector<4x8x32xf32>
    %208 = tpu.matmul %207, %178, %cst_128 {dimension_numbers = #tpu.dot_dimension_numbers<[2], [1], [1], [2], [0, 0, 0, 1, 1, 2], [0], [0]>} : vector<4x8x8xf32>, vector<4x8x32xf32>, vector<4x8x32xf32> -> vector<4x8x32xf32>
    "tpu.trace_stop"() : () -> ()
    %cst_129 = arith.constant dense<0.000000e+00> : vector<8x32xf32>
    %209 = vector.multi_reduction <add>, %208, %cst_129 [0] : vector<4x8x32xf32> to vector<8x32xf32>
    %210 = vector.extract_strided_slice %164 {offsets = [8, 0], sizes = [8, 32], strides = [1, 1]} : vector<16x32xf32> to vector<8x32xf32>
    %211 = vector.shape_cast %210 : vector<8x32xf32> to vector<1x8x32xf32>
    %212 = vector.shape_cast %211 : vector<1x8x32xf32> to vector<1x8x32xf32>
    %213 = vector.broadcast %212 : vector<1x8x32xf32> to vector<4x8x32xf32>
    "tpu.trace_start"() <{level = 10 : i32, message = "hsd,hde->hse"}> : () -> ()
    %cst_130 = arith.constant dense<0.000000e+00> : vector<4x8x8xf32>
    %214 = tpu.matmul %213, %166, %cst_130 {dimension_numbers = #tpu.dot_dimension_numbers<[2], [1], [1], [2], [0, 0, 0, 1, 1, 2], [0], [0]>} : vector<4x8x32xf32>, vector<4x32x8xf32>, vector<4x8x8xf32> -> vector<4x8x8xf32>
    "tpu.trace_stop"() : () -> ()
    %215 = vector.broadcast %172 : vector<4x1x8xf32> to vector<4x8x8xf32>
    %216 = arith.addf %214, %215 : vector<4x8x8xf32>
    "tpu.trace_start"() <{level = 10 : i32, message = "hsd,hde->hse"}> : () -> ()
    %cst_131 = arith.constant dense<0.000000e+00> : vector<4x8x8xf32>
    %217 = tpu.matmul %213, %168, %cst_131 {dimension_numbers = #tpu.dot_dimension_numbers<[2], [1], [1], [2], [0, 0, 0, 1, 1, 2], [0], [0]>} : vector<4x8x32xf32>, vector<4x32x8xf32>, vector<4x8x8xf32> -> vector<4x8x8xf32>
    "tpu.trace_stop"() : () -> ()
    %218 = vector.broadcast %174 : vector<4x1x8xf32> to vector<4x8x8xf32>
    %219 = arith.addf %217, %218 : vector<4x8x8xf32>
    "tpu.trace_start"() <{level = 10 : i32, message = "hsd,hde->hse"}> : () -> ()
    %cst_132 = arith.constant dense<0.000000e+00> : vector<4x8x8xf32>
    %220 = tpu.matmul %213, %170, %cst_132 {dimension_numbers = #tpu.dot_dimension_numbers<[2], [1], [1], [2], [0, 0, 0, 1, 1, 2], [0], [0]>} : vector<4x8x32xf32>, vector<4x32x8xf32>, vector<4x8x8xf32> -> vector<4x8x8xf32>
    "tpu.trace_stop"() : () -> ()
    %221 = vector.broadcast %176 : vector<4x1x8xf32> to vector<4x8x8xf32>
    %222 = arith.addf %220, %221 : vector<4x8x8xf32>
    "tpu.trace_start"() <{level = 10 : i32, message = "hqd,hkd->hqk"}> : () -> ()
    %cst_133 = arith.constant dense<0.000000e+00> : vector<4x8x8xf32>
    %223 = tpu.matmul %216, %219, %cst_133 {dimension_numbers = #tpu.dot_dimension_numbers<[2], [2], [1], [1], [0, 0, 0, 1, 1, 1], [0], [0]>} : vector<4x8x8xf32>, vector<4x8x8xf32>, vector<4x8x8xf32> -> vector<4x8x8xf32>
    "tpu.trace_stop"() : () -> ()
    %224 = vector.extract_strided_slice %13 {offsets = [1, 0], sizes = [1, 8], strides = [1, 1]} : vector<2x8xf32> to vector<1x8xf32>
    %225 = vector.shape_cast %224 : vector<1x8xf32> to vector<1x1x8xf32>
    %226 = vector.broadcast %225 : vector<1x1x8xf32> to vector<4x8x8xf32>
    %227 = arith.addf %223, %226 : vector<4x8x8xf32>
    %cst_134 = arith.constant dense<0xFF800000> : vector<4x8xf32>
    %228 = vector.multi_reduction <maximumf>, %227, %cst_134 [2] : vector<4x8x8xf32> to vector<4x8xf32>
    %229 = vector.shape_cast %228 : vector<4x8xf32> to vector<4x8x1xf32>
    %230 = vector.broadcast %229 : vector<4x8x1xf32> to vector<4x8x8xf32>
    %231 = arith.subf %227, %230 : vector<4x8x8xf32>
    %232 = math.exp %231 : vector<4x8x8xf32>
    %cst_135 = arith.constant dense<0.000000e+00> : vector<4x8xf32>
    %233 = vector.multi_reduction <add>, %232, %cst_135 [2] : vector<4x8x8xf32> to vector<4x8xf32>
    %234 = vector.shape_cast %233 : vector<4x8xf32> to vector<4x8x1xf32>
    %235 = tpu.reciprocal %234 {approx = true} : vector<4x8x1xf32> -> vector<4x8x1xf32>
    %236 = vector.broadcast %235 : vector<4x8x1xf32> to vector<4x8x8xf32>
    %237 = arith.mulf %232, %236 : vector<4x8x8xf32>
    "tpu.trace_start"() <{level = 10 : i32, message = "hqk,hkd->hqd"}> : () -> ()
    %cst_136 = arith.constant dense<0.000000e+00> : vector<4x8x8xf32>
    %238 = tpu.matmul %237, %222, %cst_136 {dimension_numbers = #tpu.dot_dimension_numbers<[2], [1], [1], [2], [0, 0, 0, 1, 1, 2], [0], [0]>} : vector<4x8x8xf32>, vector<4x8x8xf32>, vector<4x8x8xf32> -> vector<4x8x8xf32>
    "tpu.trace_stop"() : () -> ()
    "tpu.trace_start"() <{level = 10 : i32, message = "hqd,hdc->hqc"}> : () -> ()
    %cst_137 = arith.constant dense<0.000000e+00> : vector<4x8x32xf32>
    %239 = tpu.matmul %238, %178, %cst_137 {dimension_numbers = #tpu.dot_dimension_numbers<[2], [1], [1], [2], [0, 0, 0, 1, 1, 2], [0], [0]>} : vector<4x8x8xf32>, vector<4x8x32xf32>, vector<4x8x32xf32> -> vector<4x8x32xf32>
    "tpu.trace_stop"() : () -> ()
    %cst_138 = arith.constant dense<0.000000e+00> : vector<8x32xf32>
    %240 = vector.multi_reduction <add>, %239, %cst_138 [0] : vector<4x8x32xf32> to vector<8x32xf32>
    %241 = tpu.concatenate %209, %240 in 0 : vector<8x32xf32>, vector<8x32xf32> -> vector<16x32xf32>
    %c1_139 = arith.constant 1 : index
    %c0_140 = arith.constant 0 : index
    %c0_141 = arith.constant 0 : index
    %242 = vector.load %arg10[%c1_139, %c0_140, %c0_141] : memref<2x1x32xf32, #tpu.memory_space<vmem>>, vector<1x1x32xf32>
    %243 = vector.shape_cast %242 : vector<1x1x32xf32> to vector<1x32xf32>
    %244 = vector.broadcast %243 : vector<1x32xf32> to vector<16x32xf32>
    %245 = arith.addf %241, %244 : vector<16x32xf32>
    %246 = arith.addf %164, %245 : vector<16x32xf32>
    %c1_142 = arith.constant 1 : index
    %c0_143 = arith.constant 0 : index
    %c0_144 = arith.constant 0 : index
    %247 = vector.load %arg11[%c1_142, %c0_143, %c0_144] : memref<2x1x32xf32, #tpu.memory_space<vmem>>, vector<1x1x32xf32>
    %248 = vector.shape_cast %247 : vector<1x1x32xf32> to vector<1x32xf32>
    %c1_145 = arith.constant 1 : index
    %c0_146 = arith.constant 0 : index
    %c0_147 = arith.constant 0 : index
    %249 = vector.load %arg12[%c1_145, %c0_146, %c0_147] : memref<2x1x32xf32, #tpu.memory_space<vmem>>, vector<1x1x32xf32>
    %250 = vector.shape_cast %249 : vector<1x1x32xf32> to vector<1x32xf32>
    %cst_148 = arith.constant dense<0.000000e+00> : vector<16xf32>
    %251 = vector.multi_reduction <add>, %246, %cst_148 [1] : vector<16x32xf32> to vector<16xf32>
    %252 = vector.shape_cast %251 : vector<16xf32> to vector<16x1xf32>
    %cst_149 = arith.constant 3.200000e+01 : f32
    %253 = vector.broadcast %cst_149 : f32 to vector<16x1xf32>
    %254 = arith.divf %252, %253 : vector<16x1xf32>
    %255 = vector.broadcast %254 : vector<16x1xf32> to vector<16x32xf32>
    %256 = arith.subf %246, %255 : vector<16x32xf32>
    %257 = arith.mulf %256, %256 : vector<16x32xf32>
    %cst_150 = arith.constant dense<0.000000e+00> : vector<16xf32>
    %258 = vector.multi_reduction <add>, %257, %cst_150 [1] : vector<16x32xf32> to vector<16xf32>
    %259 = vector.shape_cast %258 : vector<16xf32> to vector<16x1xf32>
    %cst_151 = arith.constant 3.200000e+01 : f32
    %260 = vector.broadcast %cst_151 : f32 to vector<16x1xf32>
    %261 = arith.divf %259, %260 : vector<16x1xf32>
    %262 = vector.broadcast %254 : vector<16x1xf32> to vector<16x32xf32>
    %263 = arith.subf %246, %262 : vector<16x32xf32>
    %cst_152 = arith.constant 9.99999974E-6 : f32
    %264 = vector.broadcast %cst_152 : f32 to vector<16x1xf32>
    %265 = arith.addf %261, %264 : vector<16x1xf32>
    %266 = math.rsqrt %265 : vector<16x1xf32>
    %267 = vector.broadcast %266 : vector<16x1xf32> to vector<16x32xf32>
    %268 = arith.mulf %263, %267 : vector<16x32xf32>
    %269 = vector.broadcast %248 : vector<1x32xf32> to vector<16x32xf32>
    %270 = arith.mulf %268, %269 : vector<16x32xf32>
    %271 = vector.broadcast %250 : vector<1x32xf32> to vector<16x32xf32>
    %272 = arith.addf %270, %271 : vector<16x32xf32>
    %c1_153 = arith.constant 1 : index
    %c0_154 = arith.constant 0 : index
    %c0_155 = arith.constant 0 : index
    %273 = vector.load %arg13[%c1_153, %c0_154, %c0_155] : memref<2x32x64xf32, #tpu.memory_space<vmem>>, vector<1x32x64xf32>
    %274 = vector.shape_cast %273 : vector<1x32x64xf32> to vector<32x64xf32>
    %cst_156 = arith.constant dense<0.000000e+00> : vector<16x64xf32>
    %275 = tpu.matmul %272, %274, %cst_156 {dimension_numbers = #tpu.dot_dimension_numbers<[1], [0], [0], [1], [0, 0, 1, 1], [], []>} : vector<16x32xf32>, vector<32x64xf32>, vector<16x64xf32> -> vector<16x64xf32>
    %c1_157 = arith.constant 1 : index
    %c0_158 = arith.constant 0 : index
    %c0_159 = arith.constant 0 : index
    %276 = vector.load %arg14[%c1_157, %c0_158, %c0_159] : memref<2x1x64xf32, #tpu.memory_space<vmem>>, vector<1x1x64xf32>
    %277 = vector.shape_cast %276 : vector<1x1x64xf32> to vector<1x64xf32>
    %278 = vector.broadcast %277 : vector<1x64xf32> to vector<16x64xf32>
    %279 = arith.addf %275, %278 : vector<16x64xf32>
    %cst_160 = arith.constant 0.000000e+00 : f32
    %280 = vector.broadcast %cst_160 : f32 to vector<16x64xf32>
    %281 = arith.maximumf %279, %280 : vector<16x64xf32>
    %c1_161 = arith.constant 1 : index
    %c0_162 = arith.constant 0 : index
    %c0_163 = arith.constant 0 : index
    %282 = vector.load %arg15[%c1_161, %c0_162, %c0_163] : memref<2x64x32xf32, #tpu.memory_space<vmem>>, vector<1x64x32xf32>
    %283 = vector.shape_cast %282 : vector<1x64x32xf32> to vector<64x32xf32>
    %cst_164 = arith.constant dense<0.000000e+00> : vector<16x32xf32>
    %284 = tpu.matmul %281, %283, %cst_164 {dimension_numbers = #tpu.dot_dimension_numbers<[1], [0], [0], [1], [0, 0, 1, 1], [], []>} : vector<16x64xf32>, vector<64x32xf32>, vector<16x32xf32> -> vector<16x32xf32>
    %c1_165 = arith.constant 1 : index
    %c0_166 = arith.constant 0 : index
    %c0_167 = arith.constant 0 : index
    %285 = vector.load %arg16[%c1_165, %c0_166, %c0_167] : memref<2x1x32xf32, #tpu.memory_space<vmem>>, vector<1x1x32xf32>
    %286 = vector.shape_cast %285 : vector<1x1x32xf32> to vector<1x32xf32>
    %287 = vector.broadcast %286 : vector<1x32xf32> to vector<16x32xf32>
    %288 = arith.addf %284, %287 : vector<16x32xf32>
    %289 = arith.addf %272, %288 : vector<16x32xf32>
    %c1_168 = arith.constant 1 : index
    %c0_169 = arith.constant 0 : index
    %c0_170 = arith.constant 0 : index
    %290 = vector.load %arg17[%c1_168, %c0_169, %c0_170] : memref<2x1x32xf32, #tpu.memory_space<vmem>>, vector<1x1x32xf32>
    %291 = vector.shape_cast %290 : vector<1x1x32xf32> to vector<1x32xf32>
    %c1_171 = arith.constant 1 : index
    %c0_172 = arith.constant 0 : index
    %c0_173 = arith.constant 0 : index
    %292 = vector.load %arg18[%c1_171, %c0_172, %c0_173] : memref<2x1x32xf32, #tpu.memory_space<vmem>>, vector<1x1x32xf32>
    %293 = vector.shape_cast %292 : vector<1x1x32xf32> to vector<1x32xf32>
    %cst_174 = arith.constant dense<0.000000e+00> : vector<16xf32>
    %294 = vector.multi_reduction <add>, %289, %cst_174 [1] : vector<16x32xf32> to vector<16xf32>
    %295 = vector.shape_cast %294 : vector<16xf32> to vector<16x1xf32>
    %cst_175 = arith.constant 3.200000e+01 : f32
    %296 = vector.broadcast %cst_175 : f32 to vector<16x1xf32>
    %297 = arith.divf %295, %296 : vector<16x1xf32>
    %298 = vector.broadcast %297 : vector<16x1xf32> to vector<16x32xf32>
    %299 = arith.subf %289, %298 : vector<16x32xf32>
    %300 = arith.mulf %299, %299 : vector<16x32xf32>
    %cst_176 = arith.constant dense<0.000000e+00> : vector<16xf32>
    %301 = vector.multi_reduction <add>, %300, %cst_176 [1] : vector<16x32xf32> to vector<16xf32>
    %302 = vector.shape_cast %301 : vector<16xf32> to vector<16x1xf32>
    %cst_177 = arith.constant 3.200000e+01 : f32
    %303 = vector.broadcast %cst_177 : f32 to vector<16x1xf32>
    %304 = arith.divf %302, %303 : vector<16x1xf32>
    %305 = vector.broadcast %297 : vector<16x1xf32> to vector<16x32xf32>
    %306 = arith.subf %289, %305 : vector<16x32xf32>
    %cst_178 = arith.constant 9.99999974E-6 : f32
    %307 = vector.broadcast %cst_178 : f32 to vector<16x1xf32>
    %308 = arith.addf %304, %307 : vector<16x1xf32>
    %309 = math.rsqrt %308 : vector<16x1xf32>
    %310 = vector.broadcast %309 : vector<16x1xf32> to vector<16x32xf32>
    %311 = arith.mulf %306, %310 : vector<16x32xf32>
    %312 = vector.broadcast %291 : vector<1x32xf32> to vector<16x32xf32>
    %313 = arith.mulf %311, %312 : vector<16x32xf32>
    %314 = vector.broadcast %293 : vector<1x32xf32> to vector<16x32xf32>
    %315 = arith.addf %313, %314 : vector<16x32xf32>
    %c0_179 = arith.constant 0 : index
    %c0_180 = arith.constant 0 : index
    %316 = vector.load %arg19[%c0_179, %c0_180] : memref<32x32xf32, #tpu.memory_space<vmem>>, vector<32x32xf32>
    %cst_181 = arith.constant dense<0.000000e+00> : vector<16x32xf32>
    %317 = tpu.matmul %315, %316, %cst_181 {dimension_numbers = #tpu.dot_dimension_numbers<[1], [0], [0], [1], [0, 0, 1, 1], [], []>} : vector<16x32xf32>, vector<32x32xf32>, vector<16x32xf32> -> vector<16x32xf32>
    %c0_182 = arith.constant 0 : index
    %c0_183 = arith.constant 0 : index
    %318 = vector.load %arg20[%c0_182, %c0_183] : memref<1x32xf32, #tpu.memory_space<vmem>>, vector<1x32xf32>
    %319 = vector.broadcast %318 : vector<1x32xf32> to vector<16x32xf32>
    %320 = arith.addf %317, %319 : vector<16x32xf32>
    %321 = math.tanh %320 : vector<16x32xf32>
    %c0_184 = arith.constant 0 : index
    %c0_185 = arith.constant 0 : index
    %322 = vector.load %arg21[%c0_184, %c0_185] : memref<16x32xf32, #tpu.memory_space<vmem>>, vector<16x32xf32>
    tpu.vector_store %arg21[%c0_184, %c0_185], %321 {strides = array<i32>} : memref<16x32xf32, #tpu.memory_space<vmem>>, vector<16x32xf32>,
    return
  }
}

</mosaic_0001>

<llo_original>
// kernel: classifier_forward.1
$region0: #{classifier_forward.1}
  #allocation0 [shape = 'u32[]', space=smem, size = 0x4, offset = 0x4, fixed_abs, tag = 'smem constant byte address 0x4 - core index']
  #allocation1 [shape = 'u32[144,128]{1,0:T(1,128)}', space=vmem, size = 0x12000, scoped, tag = 'internal scratch']
  %s0 = inlined_call_operand.vmem [shape: s32[16,1], index: 0, kind: input, shape index: {}]
  %s1 = inlined_call_operand.vmem [shape: f32[2,8], index: 1, kind: input, shape index: {}]
  %s2 = inlined_call_operand.vmem [shape: f32[50,32], index: 2, kind: input, shape index: {}]
  %s3 = inlined_call_operand.vmem [shape: f32[2,4,32,8], index: 3, kind: input, shape index: {}]
  %s4 = inlined_call_operand.vmem [shape: f32[2,4,1,8], index: 4, kind: input, shape index: {}]
  %s5 = inlined_call_operand.vmem [shape: f32[2,4,32,8], index: 5, kind: input, shape index: {}]
  %s6 = inlined_call_operand.vmem [shape: f32[2,4,1,8], index: 6, kind: input, shape index: {}]
  %s7 = inlined_call_operand.vmem [shape: f32[2,4,32,8], index: 7, kind: input, shape index: {}]
  %s8 = inlined_call_operand.vmem [shape: f32[2,4,1,8], index: 8, kind: input, shape index: {}]
  %s9 = inlined_call_operand.vmem [shape: f32[2,4,8,32], index: 9, kind: input, shape index: {}]
  %s10 = inlined_call_operand.vmem [shape: f32[2,1,32], index: 10, kind: input, shape index: {}]
  %s11 = inlined_call_operand.vmem [shape: f32[2,1,32], index: 11, kind: input, shape index: {}]
  %s12 = inlined_call_operand.vmem [shape: f32[2,1,32], index: 12, kind: input, shape index: {}]
  %s13 = inlined_call_operand.vmem [shape: f32[2,32,64], index: 13, kind: input, shape index: {}]
  %s14 = inlined_call_operand.vmem [shape: f32[2,1,64], index: 14, kind: input, shape index: {}]
  %s15 = inlined_call_operand.vmem [shape: f32[2,64,32], index: 15, kind: input, shape index: {}]
  %s16 = inlined_call_operand.vmem [shape: f32[2,1,32], index: 16, kind: input, shape index: {}]
  %s17 = inlined_call_operand.vmem [shape: f32[2,1,32], index: 17, kind: input, shape index: {}]
  %s18 = inlined_call_operand.vmem [shape: f32[2,1,32], index: 18, kind: input, shape index: {}]
  %s19 = inlined_call_operand.vmem [shape: f32[32,32], index: 19, kind: input, shape index: {}]
  %s20 = inlined_call_operand.vmem [shape: f32[1,32], index: 20, kind: input, shape index: {}]
  %s21 = inlined_call_operand.hbm [shape: f32[16,32], index: 21, kind: output, shape index: {}]
  %s22 = sld [smem:[#allocation0]]
  $region94: #{classifier_forward.1} parent=0
    _
  %s24 = ssub.s32 1, %s22
  %s25 = scalar_select 0, %s24, %s22
  $region1: #{classifier_forward.1} parent=0
    #allocation2 [shape = 'u8[8192]{0}', space=vmem, size = 0x2000, scoped, tag = 'output window, operand 0, single buffered']
    #allocation3 [shape = 's32[1]{0}', space=sflag, size = 0x4, scoped, tag = 'scoped memory for classifier_forward.1']
    %26 = vsyncpa [#allocation3], 0
    // Predicated region
    $region2: #{classifier_forward.1} parent=1 // pred_check
      _
    $region3: #{classifier_forward.1} parent=1 // pred_check_branch
      %28 = sbr.rel (0) target = $region5
    $region4: #{classifier_forward.1} parent=1 // pred_region
      _
    $region5: #{classifier_forward.1} parent=1 // pred_fallthru
      _
    // Predicated region
    $region6: #{classifier_forward.1} parent=1 // pred_check
      _
    $region7: #{classifier_forward.1} parent=1 // pred_check_branch
      %30 = sbr.rel (0) target = $region9
    $region8: #{classifier_forward.1} parent=1 // pred_region
      _
    $region9: #{classifier_forward.1} parent=1 // pred_fallthru
      _
    // Predicated region
    $region10: #{classifier_forward.1} parent=1 // pred_check
      _
    $region11: #{classifier_forward.1} parent=1 // pred_check_branch
      %32 = sbr.rel (0) target = $region13
    $region12: #{classifier_forward.1} parent=1 // pred_region
      _
    $region13: #{classifier_forward.1} parent=1 // pred_fallthru
      _
    // Predicated region
    $region14: #{classifier_forward.1} parent=1 // pred_check
      _
    $region15: #{classifier_forward.1} parent=1 // pred_check_branch
      %34 = sbr.rel (0) target = $region17
    $region16: #{classifier_forward.1} parent=1 // pred_region
      _
    $region17: #{classifier_forward.1} parent=1 // pred_fallthru
      _
    // Predicated region
    $region18: #{classifier_forward.1} parent=1 // pred_check
      _
    $region19: #{classifier_forward.1} parent=1 // pred_check_branch
      %36 = sbr.rel (0) target = $region21
    $region20: #{classifier_forward.1} parent=1 // pred_region
      _
    $region21: #{classifier_forward.1} parent=1 // pred_fallthru
      _
    // Predicated region
    $region22: #{classifier_forward.1} parent=1 // pred_check
      _
    $region23: #{classifier_forward.1} parent=1 // pred_check_branch
      %38 = sbr.rel (0) target = $region25
    $region24: #{classifier_forward.1} parent=1 // pred_region
      _
    $region25: #{classifier_forward.1} parent=1 // pred_fallthru
      _
    // Predicated region
    $region26: #{classifier_forward.1} parent=1 // pred_check
      _
    $region27: #{classifier_forward.1} parent=1 // pred_check_branch
      %40 = sbr.rel (0) target = $region29
    $region28: #{classifier_forward.1} parent=1 // pred_region
      _
    $region29: #{classifier_forward.1} parent=1 // pred_fallthru
      _
    // Predicated region
    $region30: #{classifier_forward.1} parent=1 // pred_check
      _
    $region31: #{classifier_forward.1} parent=1 // pred_check_branch
      %42 = sbr.rel (0) target = $region33
    $region32: #{classifier_forward.1} parent=1 // pred_region
      _
    $region33: #{classifier_forward.1} parent=1 // pred_fallthru
      _
    // Predicated region
    $region34: #{classifier_forward.1} parent=1 // pred_check
      _
    $region35: #{classifier_forward.1} parent=1 // pred_check_branch
      %44 = sbr.rel (0) target = $region37
    $region36: #{classifier_forward.1} parent=1 // pred_region
      _
    $region37: #{classifier_forward.1} parent=1 // pred_fallthru
      _
    // Predicated region
    $region38: #{classifier_forward.1} parent=1 // pred_check
      _
    $region39: #{classifier_forward.1} parent=1 // pred_check_branch
      %46 = sbr.rel (0) target = $region41
    $region40: #{classifier_forward.1} parent=1 // pred_region
      _
    $region41: #{classifier_forward.1} parent=1 // pred_fallthru
      _
    // Predicated region
    $region42: #{classifier_forward.1} parent=1 // pred_check
      _
    $region43: #{classifier_forward.1} parent=1 // pred_check_branch
      %48 = sbr.rel (0) target = $region45
    $region44: #{classifier_forward.1} parent=1 // pred_region
      _
    $region45: #{classifier_forward.1} parent=1 // pred_fallthru
      _
    // Predicated region
    $region46: #{classifier_forward.1} parent=1 // pred_check
      _
    $region47: #{classifier_forward.1} parent=1 // pred_check_branch
      %50 = sbr.rel (0) target = $region49
    $region48: #{classifier_forward.1} parent=1 // pred_region
      _
    $region49: #{classifier_forward.1} parent=1 // pred_fallthru
      _
    // Predicated region
    $region50: #{classifier_forward.1} parent=1 // pred_check
      _
    $region51: #{classifier_forward.1} parent=1 // pred_check_branch
      %52 = sbr.rel (0) target = $region53
    $region52: #{classifier_forward.1} parent=1 // pred_region
      _
    $region53: #{classifier_forward.1} parent=1 // pred_fallthru
      _
    // Predicated region
    $region54: #{classifier_forward.1} parent=1 // pred_check
      _
    $region55: #{classifier_forward.1} parent=1 // pred_check_branch
      %54 = sbr.rel (0) target = $region57
    $region56: #{classifier_forward.1} parent=1 // pred_region
      _
    $region57: #{classifier_forward.1} parent=1 // pred_fallthru
      _
    // Predicated region
    $region58: #{classifier_forward.1} parent=1 // pred_check
      _
    $region59: #{classifier_forward.1} parent=1 // pred_check_branch
      %56 = sbr.rel (0) target = $region61
    $region60: #{classifier_forward.1} parent=1 // pred_region
      _
    $region61: #{classifier_forward.1} parent=1 // pred_fallthru
      _
    // Predicated region
    $region62: #{classifier_forward.1} parent=1 // pred_check
      _
    $region63: #{classifier_forward.1} parent=1 // pred_check_branch
      %58 = sbr.rel (0) target = $region65
    $region64: #{classifier_forward.1} parent=1 // pred_region
      _
    $region65: #{classifier_forward.1} parent=1 // pred_fallthru
      _
    // Predicated region
    $region66: #{classifier_forward.1} parent=1 // pred_check
      _
    $region67: #{classifier_forward.1} parent=1 // pred_check_branch
      %60 = sbr.rel (0) target = $region69
    $region68: #{classifier_forward.1} parent=1 // pred_region
      _
    $region69: #{classifier_forward.1} parent=1 // pred_fallthru
      _
    // Predicated region
    $region70: #{classifier_forward.1} parent=1 // pred_check
      _
    $region71: #{classifier_forward.1} parent=1 // pred_check_branch
      %62 = sbr.rel (0) target = $region73
    $region72: #{classifier_forward.1} parent=1 // pred_region
      _
    $region73: #{classifier_forward.1} parent=1 // pred_fallthru
      _
    // Predicated region
    $region74: #{classifier_forward.1} parent=1 // pred_check
      _
    $region75: #{classifier_forward.1} parent=1 // pred_check_branch
      %64 = sbr.rel (0) target = $region77
    $region76: #{classifier_forward.1} parent=1 // pred_region
      _
    $region77: #{classifier_forward.1} parent=1 // pred_fallthru
      _
    // Predicated region
    $region78: #{classifier_forward.1} parent=1 // pred_check
      _
    $region79: #{classifier_forward.1} parent=1 // pred_check_branch
      %66 = sbr.rel (0) target = $region81
    $region80: #{classifier_forward.1} parent=1 // pred_region
      _
    $region81: #{classifier_forward.1} parent=1 // pred_fallthru
      _
    // Predicated region
    $region82: #{classifier_forward.1} parent=1 // pred_check
      _
    $region83: #{classifier_forward.1} parent=1 // pred_check_branch
      %68 = sbr.rel (0) target = $region85
    $region84: #{classifier_forward.1} parent=1 // pred_region
      _
    $region85: #{classifier_forward.1} parent=1 // pred_fallthru
      _
    %v69 = vld [vmem:[%s0] sm:$0xff]
    %v70 = vld [vmem:[%s0 + $0x8] sm:$0xff]
    %v71 = vlaneseq
    %v72 = vand.u32 %v71, 127
    %73 = vset.pattern.permute.xlu0 0
    %74 = vperm.xlu0 %73, %v69
    %v75 = vpop.permute.xlu0 %74
    %76 = vset.pattern.permute.xlu0 0
    %77 = vperm.xlu0 %76, %v70
    %v78 = vpop.permute.xlu0 %77
    %vm79 = vcmp.eq.s32.totalorder %v75, %v72
    %vm80 = vcmp.eq.s32.totalorder %v78, %v72
    %v81 = vsel %vm79, 1, 0
    %v82 = vsel %vm80, 1, 0
    %v83 = vcvt.s32.f32 %v81
    %v84 = vcvt.s32.f32 %v82
    %v85 = vld [vmem:[%s2] sm:$0xff]
    %v86 = vld [vmem:[%s2 + $0x8] sm:$0xff]
    %v87 = vld [vmem:[%s2 + $0x10] sm:$0xff]
    %v88 = vld [vmem:[%s2 + $0x18] sm:$0xff]
    %v89 = vld [vmem:[%s2 + $0x20] sm:$0xff]
    %v90 = vld [vmem:[%s2 + $0x28] sm:$0xff]
    %v91 = vld [vmem:[%s2 + $0x30] sm:$0x3]
    %vm92 = vcmask 408576
    %v94 = vsel %vm92, %v83, 0
    %v97 = vsel %vm92, %v84, 0
    %vm99 = vcmask 1041408
    %v101 = vsel %vm99, %v91, 0
    %103 = vmatprep.subr.mxu0 0.0
    %104 = vmatpush1.msra.mxu0 %v85
    %105 = vmatprep.subr.mxu0 0.0
    %106 = vmatpush1.msra.mxu0 %v86
    %107 = vmatprep.subr.mxu0 0.0
    %108 = vmatpush1.msra.mxu0 %v87
    %109 = vmatprep.subr.mxu0 0.0
    %110 = vmatpush1.msra.mxu0 %v88
    %111 = vmatprep.subr.mxu0 0.0
    %112 = vmatpush1.msra.mxu0 %v89
    %113 = vmatprep.subr.mxu0 0.0
    %114 = vmatpush1.msra.mxu0 %v90
    %115 = vmatprep.subr.mxu0 0.0
    %116 = vmatpush1.msra.mxu0 %v101
    %117 = vmatprep.subr.mxu0 0.0
    %118 = vmatpush1.msra.mxu0 0.0
    %119 = vmatprep.subr.mxu0 0.0
    %120 = vmatpush1.msra.mxu0 0.0
    %121 = vmatprep.subr.mxu0 0.0
    %122 = vmatpush1.msra.mxu0 0.0
    %123 = vmatprep.subr.mxu0 0.0
    %124 = vmatpush1.msra.mxu0 0.0
    %125 = vmatprep.subr.mxu0 0.0
    %126 = vmatpush1.msra.mxu0 0.0
    %127 = vmatprep.subr.mxu0 0.0
    %128 = vmatpush1.msra.mxu0 0.0
    %129 = vmatprep.subr.mxu0 0.0
    %130 = vmatpush1.msra.mxu0 0.0
    %131 = vmatprep.subr.mxu0 0.0
    %132 = vmatpush1.msra.mxu0 0.0
    %133 = vmatprep.subr.mxu0 0.0
    %134 = vmatpush1.msra.mxu0 0.0
    %135 = vmatprep.subr.mxu0 0.0
    %136 = vmatpush1.msra.mxu0 0.0
    %137 = vmatprep.subr.mxu0 0.0
    %138 = vmatpush1.msra.mxu0 0.0
    %139 = vmatprep.subr.mxu0 0.0
    %140 = vmatpush1.msra.mxu0 0.0
    %141 = vmatprep.subr.mxu0 0.0
    %142 = vmatpush1.msra.mxu0 0.0
    %143 = vmatprep.subr.mxu0 0.0
    %144 = vmatpush1.msra.mxu0 0.0
    %145 = vmatprep.subr.mxu0 0.0
    %146 = vmatpush1.msra.mxu0 0.0
    %147 = vmatprep.subr.mxu0 0.0
    %148 = vmatpush1.msra.mxu0 0.0
    %149 = vmatprep.subr.mxu0 0.0
    %150 = vmatpush1.msra.mxu0 0.0
    %151 = vmatprep.subr.mxu0 0.0
    %152 = vmatpush1.msra.mxu0 0.0
    %153 = vmatprep.subr.mxu0 0.0
    %154 = vmatpush1.msra.mxu0 0.0
    %155 = vmatprep.subr.mxu0 0.0
    %156 = vmatpush1.msra.mxu0 0.0
    %157 = vmatprep.subr.mxu0 0.0
    %158 = vmatpush1.msra.mxu0 0.0
    %159 = vmatprep.subr.mxu0 0.0
    %160 = vmatpush1.msra.mxu0 0.0
    %161 = vmatprep.subr.mxu0 0.0
    %162 = vmatpush1.msra.mxu0 0.0
    %163 = vmatprep.subr.mxu0 0.0
    %164 = vmatpush1.msra.mxu0 0.0
    %165 = vmatprep.subr.mxu0 0.0
    %166 = vmatpush1.msra.mxu0 0.0
    %167 = vmatprep.mubr.f32.mxu0 0.0
    %168 = vmatmul.mubr.f32.gmra.mrb[0].mxu0 %v94
    %v169 = vpop.f32.mrb[0].mxu0
    %v170 = vadd.f32 0.0, %v169
    %v171 = vpop.f32.mrb[0].mxu0
    %172 = vmatprep.mubr.f32.mxu0 0.0
    %173 = vmatmul.mubr.f32.gmra.mrb[0].mxu0 %v97
    %v174 = vpop.f32.mrb[0].mxu0
    %v175 = vadd.f32 0.0, %v174
    %v176 = vpop.f32.mrb[0].mxu0
    %177 = vdwg.mxu0
    %v178 = vld [vmem:[%s1] sm:$0x3]
    %vm179 = vcmp.gt.f32.partialorder %v178, 0.5
    %v180 = vsel %vm179, -1e+30, 0.0
    %v181 = vld [vmem:[%s3] sm:$0xff]
    %v182 = vld [vmem:[%s3 + $0x8] sm:$0xff]
    %v183 = vld [vmem:[%s3 + $0x10] sm:$0xff]
    %v184 = vld [vmem:[%s3 + $0x18] sm:$0xff]
    %v185 = vld [vmem:[%s3 + $0x20] sm:$0xff]
    %v186 = vld [vmem:[%s3 + $0x28] sm:$0xff]
    %v187 = vld [vmem:[%s3 + $0x30] sm:$0xff]
    %v188 = vld [vmem:[%s3 + $0x38] sm:$0xff]
    %v189 = vld [vmem:[%s3 + $0x40] sm:$0xff]
    %v190 = vld [vmem:[%s3 + $0x48] sm:$0xff]
    %v191 = vld [vmem:[%s3 + $0x50] sm:$0xff]
    %v192 = vld [vmem:[%s3 + $0x58] sm:$0xff]
    %v193 = vld [vmem:[%s3 + $0x60] sm:$0xff]
    %v194 = vld [vmem:[%s3 + $0x68] sm:$0xff]
    %v195 = vld [vmem:[%s3 + $0x70] sm:$0xff]
    %v196 = vld [vmem:[%s3 + $0x78] sm:$0xff]
    %v197 = vld [vmem:[%s5] sm:$0xff]
    %v198 = vld [vmem:[%s5 + $0x8] sm:$0xff]
    %v199 = vld [vmem:[%s5 + $0x10] sm:$0xff]
    %v200 = vld [vmem:[%s5 + $0x18] sm:$0xff]
    %v201 = vld [vmem:[%s5 + $0x20] sm:$0xff]
    %v202 = vld [vmem:[%s5 + $0x28] sm:$0xff]
    %v203 = vld [vmem:[%s5 + $0x30] sm:$0xff]
    %v204 = vld [vmem:[%s5 + $0x38] sm:$0xff]
    %v205 = vld [vmem:[%s5 + $0x40] sm:$0xff]
    %v206 = vld [vmem:[%s5 + $0x48] sm:$0xff]
    %v207 = vld [vmem:[%s5 + $0x50] sm:$0xff]
    %v208 = vld [vmem:[%s5 + $0x58] sm:$0xff]
    %v209 = vld [vmem:[%s5 + $0x60] sm:$0xff]
    %v210 = vld [vmem:[%s5 + $0x68] sm:$0xff]
    %v211 = vld [vmem:[%s5 + $0x70] sm:$0xff]
    %v212 = vld [vmem:[%s5 + $0x78] sm:$0xff]
    %v213 = vld [vmem:[%s7] sm:$0xff]
    %v214 = vld [vmem:[%s7 + $0x8] sm:$0xff]
    %v215 = vld [vmem:[%s7 + $0x10] sm:$0xff]
    %v216 = vld [vmem:[%s7 + $0x18] sm:$0xff]
    %v217 = vld [vmem:[%s7 + $0x20] sm:$0xff]
    %v218 = vld [vmem:[%s7 + $0x28] sm:$0xff]
    %v219 = vld [vmem:[%s7 + $0x30] sm:$0xff]
    %v220 = vld [vmem:[%s7 + $0x38] sm:$0xff]
    %v221 = vld [vmem:[%s7 + $0x40] sm:$0xff]
    %v222 = vld [vmem:[%s7 + $0x48] sm:$0xff]
    %v223 = vld [vmem:[%s7 + $0x50] sm:$0xff]
    %v224 = vld [vmem:[%s7 + $0x58] sm:$0xff]
    %v225 = vld [vmem:[%s7 + $0x60] sm:$0xff]
    %v226 = vld [vmem:[%s7 + $0x68] sm:$0xff]
    %v227 = vld [vmem:[%s7 + $0x70] sm:$0xff]
    %v228 = vld [vmem:[%s7 + $0x78] sm:$0xff]
    %v229 = vld [vmem:[%s4] sm:$0x1]
    %v230 = vld [vmem:[%s4 + $0x1] sm:$0x1]
    %v231 = vld [vmem:[%s4 + $0x2] sm:$0x1]
    %v232 = vld [vmem:[%s4 + $0x3] sm:$0x1]
    %v233 = vld [vmem:[%s6] sm:$0x1]
    %v234 = vld [vmem:[%s6 + $0x1] sm:$0x1]
    %v235 = vld [vmem:[%s6 + $0x2] sm:$0x1]
    %v236 = vld [vmem:[%s6 + $0x3] sm:$0x1]
    %v237 = vld [vmem:[%s8] sm:$0x1]
    %v238 = vld [vmem:[%s8 + $0x1] sm:$0x1]
    %v239 = vld [vmem:[%s8 + $0x2] sm:$0x1]
    %v240 = vld [vmem:[%s8 + $0x3] sm:$0x1]
    %v241 = vld [vmem:[%s9] sm:$0xff]
    %v242 = vld [vmem:[%s9 + $0x8] sm:$0xff]
    %v243 = vld [vmem:[%s9 + $0x10] sm:$0xff]
    %v244 = vld [vmem:[%s9 + $0x18] sm:$0xff]
    %v249 = vlaneseq
    %v250 = vshrl.u32 %v249, 7
    %v251 = vsub.s32 0, %v250
    %v252 = vrot.slane %v229, %v251
    %v253 = vlaneseq
    %v254 = vshrl.u32 %v253, 7
    %v255 = vsub.s32 0, %v254
    %v256 = vrot.slane %v230, %v255
    %v257 = vlaneseq
    %v258 = vshrl.u32 %v257, 7
    %v259 = vsub.s32 0, %v258
    %v260 = vrot.slane %v231, %v259
    %v261 = vlaneseq
    %v262 = vshrl.u32 %v261, 7
    %v263 = vsub.s32 0, %v262
    %v264 = vrot.slane %v232, %v263
    %vm269 = vcmask 261120
    %v271 = vsel %vm269, %v170, 0
    %273 = vmatprep.subr.mxu0 0.0
    %274 = vmatpush1.msra.mxu0 %v181
    %275 = vmatprep.subr.mxu0 0.0
    %276 = vmatpush1.msra.mxu0 %v182
    %277 = vmatprep.subr.mxu0 0.0
    %278 = vmatpush1.msra.mxu0 %v183
    %279 = vmatprep.subr.mxu0 0.0
    %280 = vmatpush1.msra.mxu0 %v184
    %281 = vmatprep.subr.mxu0 0.0
    %282 = vmatpush1.msra.mxu0 0.0
    %283 = vmatprep.subr.mxu0 0.0
    %284 = vmatpush1.msra.mxu0 0.0
    %285 = vmatprep.subr.mxu0 0.0
    %286 = vmatpush1.msra.mxu0 0.0
    %287 = vmatprep.subr.mxu0 0.0
    %288 = vmatpush1.msra.mxu0 0.0
    %289 = vmatprep.subr.mxu0 0.0
    %290 = vmatpush1.msra.mxu0 0.0
    %291 = vmatprep.subr.mxu0 0.0
    %292 = vmatpush1.msra.mxu0 0.0
    %293 = vmatprep.subr.mxu0 0.0
    %294 = vmatpush1.msra.mxu0 0.0
    %295 = vmatprep.subr.mxu0 0.0
    %296 = vmatpush1.msra.mxu0 0.0
    %297 = vmatprep.subr.mxu0 0.0
    %298 = vmatpush1.msra.mxu0 0.0
    %299 = vmatprep.subr.mxu0 0.0
    %300 = vmatpush1.msra.mxu0 0.0
    %301 = vmatprep.subr.mxu0 0.0
    %302 = vmatpush1.msra.mxu0 0.0
    %303 = vmatprep.subr.mxu0 0.0
    %304 = vmatpush1.msra.mxu0 0.0
    %305 = vmatprep.subr.mxu0 0.0
    %306 = vmatpush1.msra.mxu0 0.0
    %307 = vmatprep.subr.mxu0 0.0
    %308 = vmatpush1.msra.mxu0 0.0
    %309 = vmatprep.subr.mxu0 0.0
    %310 = vmatpush1.msra.mxu0 0.0
    %311 = vmatprep.subr.mxu0 0.0
    %312 = vmatpush1.msra.mxu0 0.0
    %313 = vmatprep.subr.mxu0 0.0
    %314 = vmatpush1.msra.mxu0 0.0
    %315 = vmatprep.subr.mxu0 0.0
    %316 = vmatpush1.msra.mxu0 0.0
    %317 = vmatprep.subr.mxu0 0.0
    %318 = vmatpush1.msra.mxu0 0.0
    %319 = vmatprep.subr.mxu0 0.0
    %320 = vmatpush1.msra.mxu0 0.0
    %321 = vmatprep.subr.mxu0 0.0
    %322 = vmatpush1.msra.mxu0 0.0
    %323 = vmatprep.subr.mxu0 0.0
    %324 = vmatpush1.msra.mxu0 0.0
    %325 = vmatprep.subr.mxu0 0.0
    %326 = vmatpush1.msra.mxu0 0.0
    %327 = vmatprep.subr.mxu0 0.0
    %328 = vmatpush1.msra.mxu0 0.0
    %329 = vmatprep.subr.mxu0 0.0
    %330 = vmatpush1.msra.mxu0 0.0
    %331 = vmatprep.subr.mxu0 0.0
    %332 = vmatpush1.msra.mxu0 0.0
    %333 = vmatprep.subr.mxu0 0.0
    %334 = vmatpush1.msra.mxu0 0.0
    %335 = vmatprep.subr.mxu0 0.0
    %336 = vmatpush1.msra.mxu0 0.0
    %337 = vmatprep.mubr.f32.mxu0 0.0
    %338 = vmatmul.mubr.f32.gmra.mrb[0].mxu0 %v271
    %v339 = vpop.f32.mrb[0].mxu0
    %v340 = vadd.f32 %v252, %v339
    %v341 = vpop.f32.mrb[0].mxu0
    %342 = vdwg.mxu0
    %343 = vmatprep.subr.mxu0 0.0
    %344 = vmatpush1.msra.mxu0 %v185
    %345 = vmatprep.subr.mxu0 0.0
    %346 = vmatpush1.msra.mxu0 %v186
    %347 = vmatprep.subr.mxu0 0.0
    %348 = vmatpush1.msra.mxu0 %v187
    %349 = vmatprep.subr.mxu0 0.0
    %350 = vmatpush1.msra.mxu0 %v188
    %351 = vmatprep.subr.mxu0 0.0
    %352 = vmatpush1.msra.mxu0 0.0
    %353 = vmatprep.subr.mxu0 0.0
    %354 = vmatpush1.msra.mxu0 0.0
    %355 = vmatprep.subr.mxu0 0.0
    %356 = vmatpush1.msra.mxu0 0.0
    %357 = vmatprep.subr.mxu0 0.0
    %358 = vmatpush1.msra.mxu0 0.0
    %359 = vmatprep.subr.mxu0 0.0
    %360 = vmatpush1.msra.mxu0 0.0
    %361 = vmatprep.subr.mxu0 0.0
    %362 = vmatpush1.msra.mxu0 0.0
    %363 = vmatprep.subr.mxu0 0.0
    %364 = vmatpush1.msra.mxu0 0.0
    %365 = vmatprep.subr.mxu0 0.0
    %366 = vmatpush1.msra.mxu0 0.0
    %367 = vmatprep.subr.mxu0 0.0
    %368 = vmatpush1.msra.mxu0 0.0
    %369 = vmatprep.subr.mxu0 0.0
    %370 = vmatpush1.msra.mxu0 0.0
    %371 = vmatprep.subr.mxu0 0.0
    %372 = vmatpush1.msra.mxu0 0.0
    %373 = vmatprep.subr.mxu0 0.0
    %374 = vmatpush1.msra.mxu0 0.0
    %375 = vmatprep.subr.mxu0 0.0
    %376 = vmatpush1.msra.mxu0 0.0
    %377 = vmatprep.subr.mxu0 0.0
    %378 = vmatpush1.msra.mxu0 0.0
    %379 = vmatprep.subr.mxu0 0.0
    %380 = vmatpush1.msra.mxu0 0.0
    %381 = vmatprep.subr.mxu0 0.0
    %382 = vmatpush1.msra.mxu0 0.0
    %383 = vmatprep.subr.mxu0 0.0
    %384 = vmatpush1.msra.mxu0 0.0
    %385 = vmatprep.subr.mxu0 0.0
    %386 = vmatpush1.msra.mxu0 0.0
    %387 = vmatprep.subr.mxu0 0.0
    %388 = vmatpush1.msra.mxu0 0.0
    %389 = vmatprep.subr.mxu0 0.0
    %390 = vmatpush1.msra.mxu0 0.0
    %391 = vmatprep.subr.mxu0 0.0
    %392 = vmatpush1.msra.mxu0 0.0
    %393 = vmatprep.subr.mxu0 0.0
    %394 = vmatpush1.msra.mxu0 0.0
    %395 = vmatprep.subr.mxu0 0.0
    %396 = vmatpush1.msra.mxu0 0.0
    %397 = vmatprep.subr.mxu0 0.0
    %398 = vmatpush1.msra.mxu0 0.0
    %399 = vmatprep.subr.mxu0 0.0
    %400 = vmatpush1.msra.mxu0 0.0
    %401 = vmatprep.subr.mxu0 0.0
    %402 = vmatpush1.msra.mxu0 0.0
    %403 = vmatprep.subr.mxu0 0.0
    %404 = vmatpush1.msra.mxu0 0.0
    %405 = vmatprep.subr.mxu0 0.0
    %406 = vmatpush1.msra.mxu0 0.0
    %407 = vmatprep.mubr.f32.mxu0 0.0
    %408 = vmatmul.mubr.f32.gmra.mrb[0].mxu0 %v271
    %v409 = vpop.f32.mrb[0].mxu0
    %v410 = vadd.f32 %v256, %v409
    %v411 = vpop.f32.mrb[0].mxu0
    %412 = vdwg.mxu0
    %413 = vmatprep.subr.mxu0 0.0
    %414 = vmatpush1.msra.mxu0 %v189
    %415 = vmatprep.subr.mxu0 0.0
    %416 = vmatpush1.msra.mxu0 %v190
    %417 = vmatprep.subr.mxu0 0.0
    %418 = vmatpush1.msra.mxu0 %v191
    %419 = vmatprep.subr.mxu0 0.0
    %420 = vmatpush1.msra.mxu0 %v192
    %421 = vmatprep.subr.mxu0 0.0
    %422 = vmatpush1.msra.mxu0 0.0
    %423 = vmatprep.subr.mxu0 0.0
    %424 = vmatpush1.msra.mxu0 0.0
    %425 = vmatprep.subr.mxu0 0.0
    %426 = vmatpush1.msra.mxu0 0.0
    %427 = vmatprep.subr.mxu0 0.0
    %428 = vmatpush1.msra.mxu0 0.0
    %429 = vmatprep.subr.mxu0 0.0
    %430 = vmatpush1.msra.mxu0 0.0
    %431 = vmatprep.subr.mxu0 0.0
    %432 = vmatpush1.msra.mxu0 0.0
    %433 = vmatprep.subr.mxu0 0.0
    %434 = vmatpush1.msra.mxu0 0.0
    %435 = vmatprep.subr.mxu0 0.0
    %436 = vmatpush1.msra.mxu0 0.0
    %437 = vmatprep.subr.mxu0 0.0
    %438 = vmatpush1.msra.mxu0 0.0
    %439 = vmatprep.subr.mxu0 0.0
    %440 = vmatpush1.msra.mxu0 0.0
    %441 = vmatprep.subr.mxu0 0.0
    %442 = vmatpush1.msra.mxu0 0.0
    %443 = vmatprep.subr.mxu0 0.0
    %444 = vmatpush1.msra.mxu0 0.0
    %445 = vmatprep.subr.mxu0 0.0
    %446 = vmatpush1.msra.mxu0 0.0
    %447 = vmatprep.subr.mxu0 0.0
    %448 = vmatpush1.msra.mxu0 0.0
    %449 = vmatprep.subr.mxu0 0.0
    %450 = vmatpush1.msra.mxu0 0.0
    %451 = vmatprep.subr.mxu0 0.0
    %452 = vmatpush1.msra.mxu0 0.0
    %453 = vmatprep.subr.mxu0 0.0
    %454 = vmatpush1.msra.mxu0 0.0
    %455 = vmatprep.subr.mxu0 0.0
    %456 = vmatpush1.msra.mxu0 0.0
    %457 = vmatprep.subr.mxu0 0.0
    %458 = vmatpush1.msra.mxu0 0.0
    %459 = vmatprep.subr.mxu0 0.0
    %460 = vmatpush1.msra.mxu0 0.0
    %461 = vmatprep.subr.mxu0 0.0
    %462 = vmatpush1.msra.mxu0 0.0
    %463 = vmatprep.subr.mxu0 0.0
    %464 = vmatpush1.msra.mxu0 0.0
    %465 = vmatprep.subr.mxu0 0.0
    %466 = vmatpush1.msra.mxu0 0.0
    %467 = vmatprep.subr.mxu0 0.0
    %468 = vmatpush1.msra.mxu0 0.0
    %469 = vmatprep.subr.mxu0 0.0
    %470 = vmatpush1.msra.mxu0 0.0
    %471 = vmatprep.subr.mxu0 0.0
    %472 = vmatpush1.msra.mxu0 0.0
    %473 = vmatprep.subr.mxu0 0.0
    %474 = vmatpush1.msra.mxu0 0.0
    %475 = vmatprep.subr.mxu0 0.0
    %476 = vmatpush1.msra.mxu0 0.0
    %477 = vmatprep.mubr.f32.mxu0 0.0
    %478 = vmatmul.mubr.f32.gmra.mrb[0].mxu0 %v271
    %v479 = vpop.f32.mrb[0].mxu0
    %v480 = vadd.f32 %v260, %v479
    %v481 = vpop.f32.mrb[0].mxu0
    %482 = vdwg.mxu0
    %483 = vmatprep.subr.mxu0 0.0
    %484 = vmatpush1.msra.mxu0 %v193
    %485 = vmatprep.subr.mxu0 0.0
    %486 = vmatpush1.msra.mxu0 %v194
    %487 = vmatprep.subr.mxu0 0.0
    %488 = vmatpush1.msra.mxu0 %v195
    %489 = vmatprep.subr.mxu0 0.0
    %490 = vmatpush1.msra.mxu0 %v196
    %491 = vmatprep.subr.mxu0 0.0
    %492 = vmatpush1.msra.mxu0 0.0
    %493 = vmatprep.subr.mxu0 0.0
    %494 = vmatpush1.msra.mxu0 0.0
    %495 = vmatprep.subr.mxu0 0.0
    %496 = vmatpush1.msra.mxu0 0.0
    %497 = vmatprep.subr.mxu0 0.0
    %498 = vmatpush1.msra.mxu0 0.0
    %499 = vmatprep.subr.mxu0 0.0
    %500 = vmatpush1.msra.mxu0 0.0
    %501 = vmatprep.subr.mxu0 0.0
    %502 = vmatpush1.msra.mxu0 0.0
    %503 = vmatprep.subr.mxu0 0.0
    %504 = vmatpush1.msra.mxu0 0.0
    %505 = vmatprep.subr.mxu0 0.0
    %506 = vmatpush1.msra.mxu0 0.0
    %507 = vmatprep.subr.mxu0 0.0
    %508 = vmatpush1.msra.mxu0 0.0
    %509 = vmatprep.subr.mxu0 0.0
    %510 = vmatpush1.msra.mxu0 0.0
    %511 = vmatprep.subr.mxu0 0.0
    %512 = vmatpush1.msra.mxu0 0.0
    %513 = vmatprep.subr.mxu0 0.0
    %514 = vmatpush1.msra.mxu0 0.0
    %515 = vmatprep.subr.mxu0 0.0
    %516 = vmatpush1.msra.mxu0 0.0
    %517 = vmatprep.subr.mxu0 0.0
    %518 = vmatpush1.msra.mxu0 0.0
    %519 = vmatprep.subr.mxu0 0.0
    %520 = vmatpush1.msra.mxu0 0.0
    %521 = vmatprep.subr.mxu0 0.0
    %522 = vmatpush1.msra.mxu0 0.0
    %523 = vmatprep.subr.mxu0 0.0
    %524 = vmatpush1.msra.mxu0 0.0
    %525 = vmatprep.subr.mxu0 0.0
    %526 = vmatpush1.msra.mxu0 0.0
    %527 = vmatprep.subr.mxu0 0.0
    %528 = vmatpush1.msra.mxu0 0.0
    %529 = vmatprep.subr.mxu0 0.0
    %530 = vmatpush1.msra.mxu0 0.0
    %531 = vmatprep.subr.mxu0 0.0
    %532 = vmatpush1.msra.mxu0 0.0
    %533 = vmatprep.subr.mxu0 0.0
    %534 = vmatpush1.msra.mxu0 0.0
    %535 = vmatprep.subr.mxu0 0.0
    %536 = vmatpush1.msra.mxu0 0.0
    %537 = vmatprep.subr.mxu0 0.0
    %538 = vmatpush1.msra.mxu0 0.0
    %539 = vmatprep.subr.mxu0 0.0
    %540 = vmatpush1.msra.mxu0 0.0
    %541 = vmatprep.subr.mxu0 0.0
    %542 = vmatpush1.msra.mxu0 0.0
    %543 = vmatprep.subr.mxu0 0.0
    %544 = vmatpush1.msra.mxu0 0.0
    %545 = vmatprep.subr.mxu0 0.0
    %546 = vmatpush1.msra.mxu0 0.0
    %547 = vmatprep.mubr.f32.mxu0 0.0
    %548 = vmatmul.mubr.f32.gmra.mrb[0].mxu0 %v271
    %v549 = vpop.f32.mrb[0].mxu0
    %v550 = vadd.f32 %v264, %v549
    %v551 = vpop.f32.mrb[0].mxu0
    %552 = vdwg.mxu0
    %v557 = vlaneseq
    %v558 = vshrl.u32 %v557, 7
    %v559 = vsub.s32 0, %v558
    %v560 = vrot.slane %v233, %v559
    %v561 = vlaneseq
    %v562 = vshrl.u32 %v561, 7
    %v563 = vsub.s32 0, %v562
    %v564 = vrot.slane %v234, %v563
    %v565 = vlaneseq
    %v566 = vshrl.u32 %v565, 7
    %v567 = vsub.s32 0, %v566
    %v568 = vrot.slane %v235, %v567
    %v569 = vlaneseq
    %v570 = vshrl.u32 %v569, 7
    %v571 = vsub.s32 0, %v570
    %v572 = vrot.slane %v236, %v571
    %577 = vmatprep.subr.mxu0 0.0
    %578 = vmatpush1.msra.mxu0 %v197
    %579 = vmatprep.subr.mxu0 0.0
    %580 = vmatpush1.msra.mxu0 %v198
    %581 = vmatprep.subr.mxu0 0.0
    %582 = vmatpush1.msra.mxu0 %v199
    %583 = vmatprep.subr.mxu0 0.0
    %584 = vmatpush1.msra.mxu0 %v200
    %585 = vmatprep.subr.mxu0 0.0
    %586 = vmatpush1.msra.mxu0 0.0
    %587 = vmatprep.subr.mxu0 0.0
    %588 = vmatpush1.msra.mxu0 0.0
    %589 = vmatprep.subr.mxu0 0.0
    %590 = vmatpush1.msra.mxu0 0.0
    %591 = vmatprep.subr.mxu0 0.0
    %592 = vmatpush1.msra.mxu0 0.0
    %593 = vmatprep.subr.mxu0 0.0
    %594 = vmatpush1.msra.mxu0 0.0
    %595 = vmatprep.subr.mxu0 0.0
    %596 = vmatpush1.msra.mxu0 0.0
    %597 = vmatprep.subr.mxu0 0.0
    %598 = vmatpush1.msra.mxu0 0.0
    %599 = vmatprep.subr.mxu0 0.0
    %600 = vmatpush1.msra.mxu0 0.0
    %601 = vmatprep.subr.mxu0 0.0
    %602 = vmatpush1.msra.mxu0 0.0
    %603 = vmatprep.subr.mxu0 0.0
    %604 = vmatpush1.msra.mxu0 0.0
    %605 = vmatprep.subr.mxu0 0.0
    %606 = vmatpush1.msra.mxu0 0.0
    %607 = vmatprep.subr.mxu0 0.0
    %608 = vmatpush1.msra.mxu0 0.0
    %609 = vmatprep.subr.mxu0 0.0
    %610 = vmatpush1.msra.mxu0 0.0
    %611 = vmatprep.subr.mxu0 0.0
    %612 = vmatpush1.msra.mxu0 0.0
    %613 = vmatprep.subr.mxu0 0.0
    %614 = vmatpush1.msra.mxu0 0.0
    %615 = vmatprep.subr.mxu0 0.0
    %616 = vmatpush1.msra.mxu0 0.0
    %617 = vmatprep.subr.mxu0 0.0
    %618 = vmatpush1.msra.mxu0 0.0
    %619 = vmatprep.subr.mxu0 0.0
    %620 = vmatpush1.msra.mxu0 0.0
    %621 = vmatprep.subr.mxu0 0.0
    %622 = vmatpush1.msra.mxu0 0.0
    %623 = vmatprep.subr.mxu0 0.0
    %624 = vmatpush1.msra.mxu0 0.0
    %625 = vmatprep.subr.mxu0 0.0
    %626 = vmatpush1.msra.mxu0 0.0
    %627 = vmatprep.subr.mxu0 0.0
    %628 = vmatpush1.msra.mxu0 0.0
    %629 = vmatprep.subr.mxu0 0.0
    %630 = vmatpush1.msra.mxu0 0.0
    %631 = vmatprep.subr.mxu0 0.0
    %632 = vmatpush1.msra.mxu0 0.0
    %633 = vmatprep.subr.mxu0 0.0
    %634 = vmatpush1.msra.mxu0 0.0
    %635 = vmatprep.subr.mxu0 0.0
    %636 = vmatpush1.msra.mxu0 0.0
    %637 = vmatprep.subr.mxu0 0.0
    %638 = vmatpush1.msra.mxu0 0.0
    %639 = vmatprep.subr.mxu0 0.0
    %640 = vmatpush1.msra.mxu0 0.0
    %641 = vmatprep.mubr.f32.mxu0 0.0
    %642 = vmatmul.mubr.f32.gmra.mrb[0].mxu0 %v271
    %v643 = vpop.f32.mrb[0].mxu0
    %v644 = vadd.f32 %v560, %v643
    %v645 = vpop.f32.mrb[0].mxu0
    %646 = vdwg.mxu0
    %647 = vmatprep.subr.mxu0 0.0
    %648 = vmatpush1.msra.mxu0 %v201
    %649 = vmatprep.subr.mxu0 0.0
    %650 = vmatpush1.msra.mxu0 %v202
    %651 = vmatprep.subr.mxu0 0.0
    %652 = vmatpush1.msra.mxu0 %v203
    %653 = vmatprep.subr.mxu0 0.0
    %654 = vmatpush1.msra.mxu0 %v204
    %655 = vmatprep.subr.mxu0 0.0
    %656 = vmatpush1.msra.mxu0 0.0
    %657 = vmatprep.subr.mxu0 0.0
    %658 = vmatpush1.msra.mxu0 0.0
    %659 = vmatprep.subr.mxu0 0.0
    %660 = vmatpush1.msra.mxu0 0.0
    %661 = vmatprep.subr.mxu0 0.0
    %662 = vmatpush1.msra.mxu0 0.0
    %663 = vmatprep.subr.mxu0 0.0
    %664 = vmatpush1.msra.mxu0 0.0
    %665 = vmatprep.subr.mxu0 0.0
    %666 = vmatpush1.msra.mxu0 0.0
    %667 = vmatprep.subr.mxu0 0.0
    %668 = vmatpush1.msra.mxu0 0.0
    %669 = vmatprep.subr.mxu0 0.0
    %670 = vmatpush1.msra.mxu0 0.0
    %671 = vmatprep.subr.mxu0 0.0
    %672 = vmatpush1.msra.mxu0 0.0
    %673 = vmatprep.subr.mxu0 0.0
    %674 = vmatpush1.msra.mxu0 0.0
    %675 = vmatprep.subr.mxu0 0.0
    %676 = vmatpush1.msra.mxu0 0.0
    %677 = vmatprep.subr.mxu0 0.0
    %678 = vmatpush1.msra.mxu0 0.0
    %679 = vmatprep.subr.mxu0 0.0
    %680 = vmatpush1.msra.mxu0 0.0
    %681 = vmatprep.subr.mxu0 0.0
    %682 = vmatpush1.msra.mxu0 0.0
    %683 = vmatprep.subr.mxu0 0.0
    %684 = vmatpush1.msra.mxu0 0.0
    %685 = vmatprep.subr.mxu0 0.0
    %686 = vmatpush1.msra.mxu0 0.0
    %687 = vmatprep.subr.mxu0 0.0
    %688 = vmatpush1.msra.mxu0 0.0
    %689 = vmatprep.subr.mxu0 0.0
    %690 = vmatpush1.msra.mxu0 0.0
    %691 = vmatprep.subr.mxu0 0.0
    %692 = vmatpush1.msra.mxu0 0.0
    %693 = vmatprep.subr.mxu0 0.0
    %694 = vmatpush1.msra.mxu0 0.0
    %695 = vmatprep.subr.mxu0 0.0
    %696 = vmatpush1.msra.mxu0 0.0
    %697 = vmatprep.subr.mxu0 0.0
    %698 = vmatpush1.msra.mxu0 0.0
    %699 = vmatprep.subr.mxu0 0.0
    %700 = vmatpush1.msra.mxu0 0.0
    %701 = vmatprep.subr.mxu0 0.0
    %702 = vmatpush1.msra.mxu0 0.0
    %703 = vmatprep.subr.mxu0 0.0
    %704 = vmatpush1.msra.mxu0 0.0
    %705 = vmatprep.subr.mxu0 0.0
    %706 = vmatpush1.msra.mxu0 0.0
    %707 = vmatprep.subr.mxu0 0.0
    %708 = vmatpush1.msra.mxu0 0.0
    %709 = vmatprep.subr.mxu0 0.0
    %710 = vmatpush1.msra.mxu0 0.0
    %711 = vmatprep.mubr.f32.mxu0 0.0
    %712 = vmatmul.mubr.f32.gmra.mrb[0].mxu0 %v271
    %v713 = vpop.f32.mrb[0].mxu0
    %v714 = vadd.f32 %v564, %v713
    %v715 = vpop.f32.mrb[0].mxu0
    %716 = vdwg.mxu0
    %717 = vmatprep.subr.mxu0 0.0
    %718 = vmatpush1.msra.mxu0 %v205
    %719 = vmatprep.subr.mxu0 0.0
    %720 = vmatpush1.msra.mxu0 %v206
    %721 = vmatprep.subr.mxu0 0.0
    %722 = vmatpush1.msra.mxu0 %v207
    %723 = vmatprep.subr.mxu0 0.0
    %724 = vmatpush1.msra.mxu0 %v208
    %725 = vmatprep.subr.mxu0 0.0
    %726 = vmatpush1.msra.mxu0 0.0
    %727 = vmatprep.subr.mxu0 0.0
    %728 = vmatpush1.msra.mxu0 0.0
    %729 = vmatprep.subr.mxu0 0.0
    %730 = vmatpush1.msra.mxu0 0.0
    %731 = vmatprep.subr.mxu0 0.0
    %732 = vmatpush1.msra.mxu0 0.0
    %733 = vmatprep.subr.mxu0 0.0
    %734 = vmatpush1.msra.mxu0 0.0
    %735 = vmatprep.subr.mxu0 0.0
    %736 = vmatpush1.msra.mxu0 0.0
    %737 = vmatprep.subr.mxu0 0.0
    %738 = vmatpush1.msra.mxu0 0.0
    %739 = vmatprep.subr.mxu0 0.0
    %740 = vmatpush1.msra.mxu0 0.0
    %741 = vmatprep.subr.mxu0 0.0
    %742 = vmatpush1.msra.mxu0 0.0
    %743 = vmatprep.subr.mxu0 0.0
    %744 = vmatpush1.msra.mxu0 0.0
    %745 = vmatprep.subr.mxu0 0.0
    %746 = vmatpush1.msra.mxu0 0.0
    %747 = vmatprep.subr.mxu0 0.0
    %748 = vmatpush1.msra.mxu0 0.0
    %749 = vmatprep.subr.mxu0 0.0
    %750 = vmatpush1.msra.mxu0 0.0
    %751 = vmatprep.subr.mxu0 0.0
    %752 = vmatpush1.msra.mxu0 0.0
    %753 = vmatprep.subr.mxu0 0.0
    %754 = vmatpush1.msra.mxu0 0.0
    %755 = vmatprep.subr.mxu0 0.0
    %756 = vmatpush1.msra.mxu0 0.0
    %757 = vmatprep.subr.mxu0 0.0
    %758 = vmatpush1.msra.mxu0 0.0
    %759 = vmatprep.subr.mxu0 0.0
    %760 = vmatpush1.msra.mxu0 0.0
    %761 = vmatprep.subr.mxu0 0.0
    %762 = vmatpush1.msra.mxu0 0.0
    %763 = vmatprep.subr.mxu0 0.0
    %764 = vmatpush1.msra.mxu0 0.0
    %765 = vmatprep.subr.mxu0 0.0
    %766 = vmatpush1.msra.mxu0 0.0
    %767 = vmatprep.subr.mxu0 0.0
    %768 = vmatpush1.msra.mxu0 0.0
    %769 = vmatprep.subr.mxu0 0.0
    %770 = vmatpush1.msra.mxu0 0.0
    %771 = vmatprep.subr.mxu0 0.0
    %772 = vmatpush1.msra.mxu0 0.0
    %773 = vmatprep.subr.mxu0 0.0
    %774 = vmatpush1.msra.mxu0 0.0
    %775 = vmatprep.subr.mxu0 0.0
    %776 = vmatpush1.msra.mxu0 0.0
    %777 = vmatprep.subr.mxu0 0.0
    %778 = vmatpush1.msra.mxu0 0.0
    %779 = vmatprep.subr.mxu0 0.0
    %780 = vmatpush1.msra.mxu0 0.0
    %781 = vmatprep.mubr.f32.mxu0 0.0
    %782 = vmatmul.mubr.f32.gmra.mrb[0].mxu0 %v271
    %v783 = vpop.f32.mrb[0].mxu0
    %v784 = vadd.f32 %v568, %v783
    %v785 = vpop.f32.mrb[0].mxu0
    %786 = vdwg.mxu0
    %787 = vmatprep.subr.mxu0 0.0
    %788 = vmatpush1.msra.mxu0 %v209
    %789 = vmatprep.subr.mxu0 0.0
    %790 = vmatpush1.msra.mxu0 %v210
    %791 = vmatprep.subr.mxu0 0.0
    %792 = vmatpush1.msra.mxu0 %v211
    %793 = vmatprep.subr.mxu0 0.0
    %794 = vmatpush1.msra.mxu0 %v212
    %795 = vmatprep.subr.mxu0 0.0
    %796 = vmatpush1.msra.mxu0 0.0
    %797 = vmatprep.subr.mxu0 0.0
    %798 = vmatpush1.msra.mxu0 0.0
    %799 = vmatprep.subr.mxu0 0.0
    %800 = vmatpush1.msra.mxu0 0.0
    %801 = vmatprep.subr.mxu0 0.0
    %802 = vmatpush1.msra.mxu0 0.0
    %803 = vmatprep.subr.mxu0 0.0
    %804 = vmatpush1.msra.mxu0 0.0
    %805 = vmatprep.subr.mxu0 0.0
    %806 = vmatpush1.msra.mxu0 0.0
    %807 = vmatprep.subr.mxu0 0.0
    %808 = vmatpush1.msra.mxu0 0.0
    %809 = vmatprep.subr.mxu0 0.0
    %810 = vmatpush1.msra.mxu0 0.0
    %811 = vmatprep.subr.mxu0 0.0
    %812 = vmatpush1.msra.mxu0 0.0
    %813 = vmatprep.subr.mxu0 0.0
    %814 = vmatpush1.msra.mxu0 0.0
    %815 = vmatprep.subr.mxu0 0.0
    %816 = vmatpush1.msra.mxu0 0.0
    %817 = vmatprep.subr.mxu0 0.0
    %818 = vmatpush1.msra.mxu0 0.0
    %819 = vmatprep.subr.mxu0 0.0
    %820 = vmatpush1.msra.mxu0 0.0
    %821 = vmatprep.subr.mxu0 0.0
    %822 = vmatpush1.msra.mxu0 0.0
    %823 = vmatprep.subr.mxu0 0.0
    %824 = vmatpush1.msra.mxu0 0.0
    %825 = vmatprep.subr.mxu0 0.0
    %826 = vmatpush1.msra.mxu0 0.0
    %827 = vmatprep.subr.mxu0 0.0
    %828 = vmatpush1.msra.mxu0 0.0
    %829 = vmatprep.subr.mxu0 0.0
    %830 = vmatpush1.msra.mxu0 0.0
    %831 = vmatprep.subr.mxu0 0.0
    %832 = vmatpush1.msra.mxu0 0.0
    %833 = vmatprep.subr.mxu0 0.0
    %834 = vmatpush1.msra.mxu0 0.0
    %835 = vmatprep.subr.mxu0 0.0
    %836 = vmatpush1.msra.mxu0 0.0
    %837 = vmatprep.subr.mxu0 0.0
    %838 = vmatpush1.msra.mxu0 0.0
    %839 = vmatprep.subr.mxu0 0.0
    %840 = vmatpush1.msra.mxu0 0.0
    %841 = vmatprep.subr.mxu0 0.0
    %842 = vmatpush1.msra.mxu0 0.0
    %843 = vmatprep.subr.mxu0 0.0
    %844 = vmatpush1.msra.mxu0 0.0
    %845 = vmatprep.subr.mxu0 0.0
    %846 = vmatpush1.msra.mxu0 0.0
    %847 = vmatprep.subr.mxu0 0.0
    %848 = vmatpush1.msra.mxu0 0.0
    %849 = vmatprep.subr.mxu0 0.0
    %850 = vmatpush1.msra.mxu0 0.0
    %851 = vmatprep.mubr.f32.mxu0 0.0
    %852 = vmatmul.mubr.f32.gmra.mrb[0].mxu0 %v271
    %v853 = vpop.f32.mrb[0].mxu0
    %v854 = vadd.f32 %v572, %v853
    %v855 = vpop.f32.mrb[0].mxu0
    %856 = vdwg.mxu0
    %v861 = vlaneseq
    %v862 = vshrl.u32 %v861, 7
    %v863 = vsub.s32 0, %v862
    %v864 = vrot.slane %v237, %v863
    %v865 = vlaneseq
    %v866 = vshrl.u32 %v865, 7
    %v867 = vsub.s32 0, %v866
    %v868 = vrot.slane %v238, %v867
    %v869 = vlaneseq
    %v870 = vshrl.u32 %v869, 7
    %v871 = vsub.s32 0, %v870
    %v872 = vrot.slane %v239, %v871
    %v873 = vlaneseq
    %v874 = vshrl.u32 %v873, 7
    %v875 = vsub.s32 0, %v874
    %v876 = vrot.slane %v240, %v875
    %881 = vmatprep.subr.mxu0 0.0
    %882 = vmatpush1.msra.mxu0 %v213
    %883 = vmatprep.subr.mxu0 0.0
    %884 = vmatpush1.msra.mxu0 %v214
    %885 = vmatprep.subr.mxu0 0.0
    %886 = vmatpush1.msra.mxu0 %v215
    %887 = vmatprep.subr.mxu0 0.0
    %888 = vmatpush1.msra.mxu0 %v216
    %889 = vmatprep.subr.mxu0 0.0
    %890 = vmatpush1.msra.mxu0 0.0
    %891 = vmatprep.subr.mxu0 0.0
    %892 = vmatpush1.msra.mxu0 0.0
    %893 = vmatprep.subr.mxu0 0.0
    %894 = vmatpush1.msra.mxu0 0.0
    %895 = vmatprep.subr.mxu0 0.0
    %896 = vmatpush1.msra.mxu0 0.0
    %897 = vmatprep.subr.mxu0 0.0
    %898 = vmatpush1.msra.mxu0 0.0
    %899 = vmatprep.subr.mxu0 0.0
    %900 = vmatpush1.msra.mxu0 0.0
    %901 = vmatprep.subr.mxu0 0.0
    %902 = vmatpush1.msra.mxu0 0.0
    %903 = vmatprep.subr.mxu0 0.0
    %904 = vmatpush1.msra.mxu0 0.0
    %905 = vmatprep.subr.mxu0 0.0
    %906 = vmatpush1.msra.mxu0 0.0
    %907 = vmatprep.subr.mxu0 0.0
    %908 = vmatpush1.msra.mxu0 0.0
    %909 = vmatprep.subr.mxu0 0.0
    %910 = vmatpush1.msra.mxu0 0.0
    %911 = vmatprep.subr.mxu0 0.0
    %912 = vmatpush1.msra.mxu0 0.0
    %913 = vmatprep.subr.mxu0 0.0
    %914 = vmatpush1.msra.mxu0 0.0
    %915 = vmatprep.subr.mxu0 0.0
    %916 = vmatpush1.msra.mxu0 0.0
    %917 = vmatprep.subr.mxu0 0.0
    %918 = vmatpush1.msra.mxu0 0.0
    %919 = vmatprep.subr.mxu0 0.0
    %920 = vmatpush1.msra.mxu0 0.0
    %921 = vmatprep.subr.mxu0 0.0
    %922 = vmatpush1.msra.mxu0 0.0
    %923 = vmatprep.subr.mxu0 0.0
    %924 = vmatpush1.msra.mxu0 0.0
    %925 = vmatprep.subr.mxu0 0.0
    %926 = vmatpush1.msra.mxu0 0.0
    %927 = vmatprep.subr.mxu0 0.0
    %928 = vmatpush1.msra.mxu0 0.0
    %929 = vmatprep.subr.mxu0 0.0
    %930 = vmatpush1.msra.mxu0 0.0
    %931 = vmatprep.subr.mxu0 0.0
    %932 = vmatpush1.msra.mxu0 0.0
    %933 = vmatprep.subr.mxu0 0.0
    %934 = vmatpush1.msra.mxu0 0.0
    %935 = vmatprep.subr.mxu0 0.0
    %936 = vmatpush1.msra.mxu0 0.0
    %937 = vmatprep.subr.mxu0 0.0
    %938 = vmatpush1.msra.mxu0 0.0
    %939 = vmatprep.subr.mxu0 0.0
    %940 = vmatpush1.msra.mxu0 0.0
    %941 = vmatprep.subr.mxu0 0.0
    %942 = vmatpush1.msra.mxu0 0.0
    %943 = vmatprep.subr.mxu0 0.0
    %944 = vmatpush1.msra.mxu0 0.0
    %945 = vmatprep.mubr.f32.mxu0 0.0
    %946 = vmatmul.mubr.f32.gmra.mrb[0].mxu0 %v271
    %v947 = vpop.f32.mrb[0].mxu0
    %v948 = vadd.f32 %v864, %v947
    %v949 = vpop.f32.mrb[0].mxu0
    %950 = vdwg.mxu0
    %951 = vmatprep.subr.mxu0 0.0
    %952 = vmatpush1.msra.mxu0 %v217
    %953 = vmatprep.subr.mxu0 0.0
    %954 = vmatpush1.msra.mxu0 %v218
    %955 = vmatprep.subr.mxu0 0.0
    %956 = vmatpush1.msra.mxu0 %v219
    %957 = vmatprep.subr.mxu0 0.0
    %958 = vmatpush1.msra.mxu0 %v220
    %959 = vmatprep.subr.mxu0 0.0
    %960 = vmatpush1.msra.mxu0 0.0
    %961 = vmatprep.subr.mxu0 0.0
    %962 = vmatpush1.msra.mxu0 0.0
    %963 = vmatprep.subr.mxu0 0.0
    %964 = vmatpush1.msra.mxu0 0.0
    %965 = vmatprep.subr.mxu0 0.0
    %966 = vmatpush1.msra.mxu0 0.0
    %967 = vmatprep.subr.mxu0 0.0
    %968 = vmatpush1.msra.mxu0 0.0
    %969 = vmatprep.subr.mxu0 0.0
    %970 = vmatpush1.msra.mxu0 0.0
    %971 = vmatprep.subr.mxu0 0.0
    %972 = vmatpush1.msra.mxu0 0.0
    %973 = vmatprep.subr.mxu0 0.0
    %974 = vmatpush1.msra.mxu0 0.0
    %975 = vmatprep.subr.mxu0 0.0
    %976 = vmatpush1.msra.mxu0 0.0
    %977 = vmatprep.subr.mxu0 0.0
    %978 = vmatpush1.msra.mxu0 0.0
    %979 = vmatprep.subr.mxu0 0.0
    %980 = vmatpush1.msra.mxu0 0.0
    %981 = vmatprep.subr.mxu0 0.0
    %982 = vmatpush1.msra.mxu0 0.0
    %983 = vmatprep.subr.mxu0 0.0
    %984 = vmatpush1.msra.mxu0 0.0
    %985 = vmatprep.subr.mxu0 0.0
    %986 = vmatpush1.msra.mxu0 0.0
    %987 = vmatprep.subr.mxu0 0.0
    %988 = vmatpush1.msra.mxu0 0.0
    %989 = vmatprep.subr.mxu0 0.0
    %990 = vmatpush1.msra.mxu0 0.0
    %991 = vmatprep.subr.mxu0 0.0
    %992 = vmatpush1.msra.mxu0 0.0
    %993 = vmatprep.subr.mxu0 0.0
    %994 = vmatpush1.msra.mxu0 0.0
    %995 = vmatprep.subr.mxu0 0.0
    %996 = vmatpush1.msra.mxu0 0.0
    %997 = vmatprep.subr.mxu0 0.0
    %998 = vmatpush1.msra.mxu0 0.0
    %999 = vmatprep.subr.mxu0 0.0
    %1000 = vmatpush1.msra.mxu0 0.0
    %1001 = vmatprep.subr.mxu0 0.0
    %1002 = vmatpush1.msra.mxu0 0.0
    %1003 = vmatprep.subr.mxu0 0.0
    %1004 = vmatpush1.msra.mxu0 0.0
    %1005 = vmatprep.subr.mxu0 0.0
    %1006 = vmatpush1.msra.mxu0 0.0
    %1007 = vmatprep.subr.mxu0 0.0
    %1008 = vmatpush1.msra.mxu0 0.0
    %1009 = vmatprep.subr.mxu0 0.0
    %1010 = vmatpush1.msra.mxu0 0.0
    %1011 = vmatprep.subr.mxu0 0.0
    %1012 = vmatpush1.msra.mxu0 0.0
    %1013 = vmatprep.subr.mxu0 0.0
    %1014 = vmatpush1.msra.mxu0 0.0
    %1015 = vmatprep.mubr.f32.mxu0 0.0
    %1016 = vmatmul.mubr.f32.gmra.mrb[0].mxu0 %v271
    %v1017 = vpop.f32.mrb[0].mxu0
    %v1018 = vadd.f32 %v868, %v1017
    %v1019 = vpop.f32.mrb[0].mxu0
    %1020 = vdwg.mxu0
    %1021 = vmatprep.subr.mxu0 0.0
    %1022 = vmatpush1.msra.mxu0 %v221
    %1023 = vmatprep.subr.mxu0 0.0
    %1024 = vmatpush1.msra.mxu0 %v222
    %1025 = vmatprep.subr.mxu0 0.0
    %1026 = vmatpush1.msra.mxu0 %v223
    %1027 = vmatprep.subr.mxu0 0.0
    %1028 = vmatpush1.msra.mxu0 %v224
    %1029 = vmatprep.subr.mxu0 0.0
    %1030 = vmatpush1.msra.mxu0 0.0
    %1031 = vmatprep.subr.mxu0 0.0
    %1032 = vmatpush1.msra.mxu0 0.0
    %1033 = vmatprep.subr.mxu0 0.0
    %1034 = vmatpush1.msra.mxu0 0.0
    %1035 = vmatprep.subr.mxu0 0.0
    %1036 = vmatpush1.msra.mxu0 0.0
    %1037 = vmatprep.subr.mxu0 0.0
    %1038 = vmatpush1.msra.mxu0 0.0
    %1039 = vmatprep.subr.mxu0 0.0
    %1040 = vmatpush1.msra.mxu0 0.0
    %1041 = vmatprep.subr.mxu0 0.0
    %1042 = vmatpush1.msra.mxu0 0.0
    %1043 = vmatprep.subr.mxu0 0.0
    %1044 = vmatpush1.msra.mxu0 0.0
    %1045 = vmatprep.subr.mxu0 0.0
    %1046 = vmatpush1.msra.mxu0 0.0
    %1047 = vmatprep.subr.mxu0 0.0
    %1048 = vmatpush1.msra.mxu0 0.0
    %1049 = vmatprep.subr.mxu0 0.0
    %1050 = vmatpush1.msra.mxu0 0.0
    %1051 = vmatprep.subr.mxu0 0.0
    %1052 = vmatpush1.msra.mxu0 0.0
    %1053 = vmatprep.subr.mxu0 0.0
    %1054 = vmatpush1.msra.mxu0 0.0
    %1055 = vmatprep.subr.mxu0 0.0
    %1056 = vmatpush1.msra.mxu0 0.0
    %1057 = vmatprep.subr.mxu0 0.0
    %1058 = vmatpush1.msra.mxu0 0.0
    %1059 = vmatprep.subr.mxu0 0.0
    %1060 = vmatpush1.msra.mxu0 0.0
    %1061 = vmatprep.subr.mxu0 0.0
    %1062 = vmatpush1.msra.mxu0 0.0
    %1063 = vmatprep.subr.mxu0 0.0
    %1064 = vmatpush1.msra.mxu0 0.0
    %1065 = vmatprep.subr.mxu0 0.0
    %1066 = vmatpush1.msra.mxu0 0.0
    %1067 = vmatprep.subr.mxu0 0.0
    %1068 = vmatpush1.msra.mxu0 0.0
    %1069 = vmatprep.subr.mxu0 0.0
    %1070 = vmatpush1.msra.mxu0 0.0
    %1071 = vmatprep.subr.mxu0 0.0
    %1072 = vmatpush1.msra.mxu0 0.0
    %1073 = vmatprep.subr.mxu0 0.0
    %1074 = vmatpush1.msra.mxu0 0.0
    %1075 = vmatprep.subr.mxu0 0.0
    %1076 = vmatpush1.msra.mxu0 0.0
    %1077 = vmatprep.subr.mxu0 0.0
    %1078 = vmatpush1.msra.mxu0 0.0
    %1079 = vmatprep.subr.mxu0 0.0
    %1080 = vmatpush1.msra.mxu0 0.0
    %1081 = vmatprep.subr.mxu0 0.0
    %1082 = vmatpush1.msra.mxu0 0.0
    %1083 = vmatprep.subr.mxu0 0.0
    %1084 = vmatpush1.msra.mxu0 0.0
    %1085 = vmatprep.mubr.f32.mxu0 0.0
    %1086 = vmatmul.mubr.f32.gmra.mrb[0].mxu0 %v271
    %v1087 = vpop.f32.mrb[0].mxu0
    %v1088 = vadd.f32 %v872, %v1087
    %v1089 = vpop.f32.mrb[0].mxu0
    %1090 = vdwg.mxu0
    %1091 = vmatprep.subr.mxu0 0.0
    %1092 = vmatpush1.msra.mxu0 %v225
    %1093 = vmatprep.subr.mxu0 0.0
    %1094 = vmatpush1.msra.mxu0 %v226
    %1095 = vmatprep.subr.mxu0 0.0
    %1096 = vmatpush1.msra.mxu0 %v227
    %1097 = vmatprep.subr.mxu0 0.0
    %1098 = vmatpush1.msra.mxu0 %v228
    %1099 = vmatprep.subr.mxu0 0.0
    %1100 = vmatpush1.msra.mxu0 0.0
    %1101 = vmatprep.subr.mxu0 0.0
    %1102 = vmatpush1.msra.mxu0 0.0
    %1103 = vmatprep.subr.mxu0 0.0
    %1104 = vmatpush1.msra.mxu0 0.0
    %1105 = vmatprep.subr.mxu0 0.0
    %1106 = vmatpush1.msra.mxu0 0.0
    %1107 = vmatprep.subr.mxu0 0.0
    %1108 = vmatpush1.msra.mxu0 0.0
    %1109 = vmatprep.subr.mxu0 0.0
    %1110 = vmatpush1.msra.mxu0 0.0
    %1111 = vmatprep.subr.mxu0 0.0
    %1112 = vmatpush1.msra.mxu0 0.0
    %1113 = vmatprep.subr.mxu0 0.0
    %1114 = vmatpush1.msra.mxu0 0.0
    %1115 = vmatprep.subr.mxu0 0.0
    %1116 = vmatpush1.msra.mxu0 0.0
    %1117 = vmatprep.subr.mxu0 0.0
    %1118 = vmatpush1.msra.mxu0 0.0
    %1119 = vmatprep.subr.mxu0 0.0
    %1120 = vmatpush1.msra.mxu0 0.0
    %1121 = vmatprep.subr.mxu0 0.0
    %1122 = vmatpush1.msra.mxu0 0.0
    %1123 = vmatprep.subr.mxu0 0.0
    %1124 = vmatpush1.msra.mxu0 0.0
    %1125 = vmatprep.subr.mxu0 0.0
    %1126 = vmatpush1.msra.mxu0 0.0
    %1127 = vmatprep.subr.mxu0 0.0
    %1128 = vmatpush1.msra.mxu0 0.0
    %1129 = vmatprep.subr.mxu0 0.0
    %1130 = vmatpush1.msra.mxu0 0.0
    %1131 = vmatprep.subr.mxu0 0.0
    %1132 = vmatpush1.msra.mxu0 0.0
    %1133 = vmatprep.subr.mxu0 0.0
    %1134 = vmatpush1.msra.mxu0 0.0
    %1135 = vmatprep.subr.mxu0 0.0
    %1136 = vmatpush1.msra.mxu0 0.0
    %1137 = vmatprep.subr.mxu0 0.0
    %1138 = vmatpush1.msra.mxu0 0.0
    %1139 = vmatprep.subr.mxu0 0.0
    %1140 = vmatpush1.msra.mxu0 0.0
    %1141 = vmatprep.subr.mxu0 0.0
    %1142 = vmatpush1.msra.mxu0 0.0
    %1143 = vmatprep.subr.mxu0 0.0
    %1144 = vmatpush1.msra.mxu0 0.0
    %1145 = vmatprep.subr.mxu0 0.0
    %1146 = vmatpush1.msra.mxu0 0.0
    %1147 = vmatprep.subr.mxu0 0.0
    %1148 = vmatpush1.msra.mxu0 0.0
    %1149 = vmatprep.subr.mxu0 0.0
    %1150 = vmatpush1.msra.mxu0 0.0
    %1151 = vmatprep.subr.mxu0 0.0
    %1152 = vmatpush1.msra.mxu0 0.0
    %1153 = vmatprep.subr.mxu0 0.0
    %1154 = vmatpush1.msra.mxu0 0.0
    %1155 = vmatprep.mubr.f32.mxu0 0.0
    %1156 = vmatmul.mubr.f32.gmra.mrb[0].mxu0 %v271
    %v1157 = vpop.f32.mrb[0].mxu0
    %v1158 = vadd.f32 %v876, %v1157
    %v1159 = vpop.f32.mrb[0].mxu0
    %1160 = vdwg.mxu0
    %v1161 = vlaneseq
    %v1162 = vshrl.u32 %v1161, 7
    %v1163 = vsub.s32 0, %v1162
    %v1164 = vrot.slane %v180, %v1163
    %vm1165 = vcmask 64512
    %v1167 = vsel %vm1165, %v340, 0
    %v1170 = vsel %vm1165, %v644, 0
    %1172 = vmatprep.subr.mxu0 0.0
    %1173 = vmatpush1.xpose.msra.mxu0 %v1170
    %1174 = vmatprep.subr.mxu0 0.0
    %1175 = vmatpush1.xpose.msra.mxu0 0.0
    %1176 = vmatprep.subr.mxu0 0.0
    %1177 = vmatpush1.xpose.msra.mxu0 0.0
    %1178 = vmatprep.subr.mxu0 0.0
    %1179 = vmatpush1.xpose.msra.mxu0 0.0
    %1180 = vmatprep.subr.mxu0 0.0
    %1181 = vmatpush1.xpose.msra.mxu0 0.0
    %1182 = vmatprep.subr.mxu0 0.0
    %1183 = vmatpush1.xpose.msra.mxu0 0.0
    %1184 = vmatprep.subr.mxu0 0.0
    %1185 = vmatpush1.xpose.msra.mxu0 0.0
    %1186 = vmatprep.subr.mxu0 0.0
    %1187 = vmatpush1.xpose.msra.mxu0 0.0
    %1188 = vmatprep.subr.mxu0 0.0
    %1189 = vmatpush1.xpose.msra.mxu0 0.0
    %1190 = vmatprep.subr.mxu0 0.0
    %1191 = vmatpush1.xpose.msra.mxu0 0.0
    %1192 = vmatprep.subr.mxu0 0.0
    %1193 = vmatpush1.xpose.msra.mxu0 0.0
    %1194 = vmatprep.subr.mxu0 0.0
    %1195 = vmatpush1.xpose.msra.mxu0 0.0
    %1196 = vmatprep.subr.mxu0 0.0
    %1197 = vmatpush1.xpose.msra.mxu0 0.0
    %1198 = vmatprep.subr.mxu0 0.0
    %1199 = vmatpush1.xpose.msra.mxu0 0.0
    %1200 = vmatprep.subr.mxu0 0.0
    %1201 = vmatpush1.xpose.msra.mxu0 0.0
    %1202 = vmatprep.subr.mxu0 0.0
    %1203 = vmatpush1.xpose.msra.mxu0 0.0
    %1204 = vmatprep.subr.mxu0 0.0
    %1205 = vmatpush1.xpose.msra.mxu0 0.0
    %1206 = vmatprep.subr.mxu0 0.0
    %1207 = vmatpush1.xpose.msra.mxu0 0.0
    %1208 = vmatprep.subr.mxu0 0.0
    %1209 = vmatpush1.xpose.msra.mxu0 0.0
    %1210 = vmatprep.subr.mxu0 0.0
    %1211 = vmatpush1.xpose.msra.mxu0 0.0
    %1212 = vmatprep.subr.mxu0 0.0
    %1213 = vmatpush1.xpose.msra.mxu0 0.0
    %1214 = vmatprep.subr.mxu0 0.0
    %1215 = vmatpush1.xpose.msra.mxu0 0.0
    %1216 = vmatprep.subr.mxu0 0.0
    %1217 = vmatpush1.xpose.msra.mxu0 0.0
    %1218 = vmatprep.subr.mxu0 0.0
    %1219 = vmatpush1.xpose.msra.mxu0 0.0
    %1220 = vmatprep.subr.mxu0 0.0
    %1221 = vmatpush1.xpose.msra.mxu0 0.0
    %1222 = vmatprep.subr.mxu0 0.0
    %1223 = vmatpush1.xpose.msra.mxu0 0.0
    %1224 = vmatprep.subr.mxu0 0.0
    %1225 = vmatpush1.xpose.msra.mxu0 0.0
    %1226 = vmatprep.subr.mxu0 0.0
    %1227 = vmatpush1.xpose.msra.mxu0 0.0
    %1228 = vmatprep.subr.mxu0 0.0
    %1229 = vmatpush1.xpose.msra.mxu0 0.0
    %1230 = vmatprep.subr.mxu0 0.0
    %1231 = vmatpush1.xpose.msra.mxu0 0.0
    %1232 = vmatprep.subr.mxu0 0.0
    %1233 = vmatpush1.xpose.msra.mxu0 0.0
    %1234 = vmatprep.subr.mxu0 0.0
    %1235 = vmatpush1.xpose.msra.mxu0 0.0
    %1236 = vmatprep.mubr.f32.mxu0 0.0
    %1237 = vmatmul.mubr.f32.gmra.mrb[0].mxu0 %v1167
    %v1238 = vpop.f32.mrb[0].mxu0
    %v1239 = vadd.f32 %v1164, %v1238
    %v1240 = vpop.f32.mrb[0].mxu0
    %1241 = vdwg.mxu0
    %v1243 = vsel %vm1165, %v410, 0
    %v1246 = vsel %vm1165, %v714, 0
    %1248 = vmatprep.subr.mxu0 0.0
    %1249 = vmatpush1.xpose.msra.mxu0 %v1246
    %1250 = vmatprep.subr.mxu0 0.0
    %1251 = vmatpush1.xpose.msra.mxu0 0.0
    %1252 = vmatprep.subr.mxu0 0.0
    %1253 = vmatpush1.xpose.msra.mxu0 0.0
    %1254 = vmatprep.subr.mxu0 0.0
    %1255 = vmatpush1.xpose.msra.mxu0 0.0
    %1256 = vmatprep.subr.mxu0 0.0
    %1257 = vmatpush1.xpose.msra.mxu0 0.0
    %1258 = vmatprep.subr.mxu0 0.0
    %1259 = vmatpush1.xpose.msra.mxu0 0.0
    %1260 = vmatprep.subr.mxu0 0.0
    %1261 = vmatpush1.xpose.msra.mxu0 0.0
    %1262 = vmatprep.subr.mxu0 0.0
    %1263 = vmatpush1.xpose.msra.mxu0 0.0
    %1264 = vmatprep.subr.mxu0 0.0
    %1265 = vmatpush1.xpose.msra.mxu0 0.0
    %1266 = vmatprep.subr.mxu0 0.0
    %1267 = vmatpush1.xpose.msra.mxu0 0.0
    %1268 = vmatprep.subr.mxu0 0.0
    %1269 = vmatpush1.xpose.msra.mxu0 0.0
    %1270 = vmatprep.subr.mxu0 0.0
    %1271 = vmatpush1.xpose.msra.mxu0 0.0
    %1272 = vmatprep.subr.mxu0 0.0
    %1273 = vmatpush1.xpose.msra.mxu0 0.0
    %1274 = vmatprep.subr.mxu0 0.0
    %1275 = vmatpush1.xpose.msra.mxu0 0.0
    %1276 = vmatprep.subr.mxu0 0.0
    %1277 = vmatpush1.xpose.msra.mxu0 0.0
    %1278 = vmatprep.subr.mxu0 0.0
    %1279 = vmatpush1.xpose.msra.mxu0 0.0
    %1280 = vmatprep.subr.mxu0 0.0
    %1281 = vmatpush1.xpose.msra.mxu0 0.0
    %1282 = vmatprep.subr.mxu0 0.0
    %1283 = vmatpush1.xpose.msra.mxu0 0.0
    %1284 = vmatprep.subr.mxu0 0.0
    %1285 = vmatpush1.xpose.msra.mxu0 0.0
    %1286 = vmatprep.subr.mxu0 0.0
    %1287 = vmatpush1.xpose.msra.mxu0 0.0
    %1288 = vmatprep.subr.mxu0 0.0
    %1289 = vmatpush1.xpose.msra.mxu0 0.0
    %1290 = vmatprep.subr.mxu0 0.0
    %1291 = vmatpush1.xpose.msra.mxu0 0.0
    %1292 = vmatprep.subr.mxu0 0.0
    %1293 = vmatpush1.xpose.msra.mxu0 0.0
    %1294 = vmatprep.subr.mxu0 0.0
    %1295 = vmatpush1.xpose.msra.mxu0 0.0
    %1296 = vmatprep.subr.mxu0 0.0
    %1297 = vmatpush1.xpose.msra.mxu0 0.0
    %1298 = vmatprep.subr.mxu0 0.0
    %1299 = vmatpush1.xpose.msra.mxu0 0.0
    %1300 = vmatprep.subr.mxu0 0.0
    %1301 = vmatpush1.xpose.msra.mxu0 0.0
    %1302 = vmatprep.subr.mxu0 0.0
    %1303 = vmatpush1.xpose.msra.mxu0 0.0
    %1304 = vmatprep.subr.mxu0 0.0
    %1305 = vmatpush1.xpose.msra.mxu0 0.0
    %1306 = vmatprep.subr.mxu0 0.0
    %1307 = vmatpush1.xpose.msra.mxu0 0.0
    %1308 = vmatprep.subr.mxu0 0.0
    %1309 = vmatpush1.xpose.msra.mxu0 0.0
    %1310 = vmatprep.subr.mxu0 0.0
    %1311 = vmatpush1.xpose.msra.mxu0 0.0
    %1312 = vmatprep.mubr.f32.mxu0 0.0
    %1313 = vmatmul.mubr.f32.gmra.mrb[0].mxu0 %v1243
    %v1314 = vpop.f32.mrb[0].mxu0
    %v1315 = vadd.f32 %v1164, %v1314
    %v1316 = vpop.f32.mrb[0].mxu0
    %1317 = vdwg.mxu0
    %v1319 = vsel %vm1165, %v480, 0
    %v1322 = vsel %vm1165, %v784, 0
    %1324 = vmatprep.subr.mxu0 0.0
    %1325 = vmatpush1.xpose.msra.mxu0 %v1322
    %1326 = vmatprep.subr.mxu0 0.0
    %1327 = vmatpush1.xpose.msra.mxu0 0.0
    %1328 = vmatprep.subr.mxu0 0.0
    %1329 = vmatpush1.xpose.msra.mxu0 0.0
    %1330 = vmatprep.subr.mxu0 0.0
    %1331 = vmatpush1.xpose.msra.mxu0 0.0
    %1332 = vmatprep.subr.mxu0 0.0
    %1333 = vmatpush1.xpose.msra.mxu0 0.0
    %1334 = vmatprep.subr.mxu0 0.0
    %1335 = vmatpush1.xpose.msra.mxu0 0.0
    %1336 = vmatprep.subr.mxu0 0.0
    %1337 = vmatpush1.xpose.msra.mxu0 0.0
    %1338 = vmatprep.subr.mxu0 0.0
    %1339 = vmatpush1.xpose.msra.mxu0 0.0
    %1340 = vmatprep.subr.mxu0 0.0
    %1341 = vmatpush1.xpose.msra.mxu0 0.0
    %1342 = vmatprep.subr.mxu0 0.0
    %1343 = vmatpush1.xpose.msra.mxu0 0.0
    %1344 = vmatprep.subr.mxu0 0.0
    %1345 = vmatpush1.xpose.msra.mxu0 0.0
    %1346 = vmatprep.subr.mxu0 0.0
    %1347 = vmatpush1.xpose.msra.mxu0 0.0
    %1348 = vmatprep.subr.mxu0 0.0
    %1349 = vmatpush1.xpose.msra.mxu0 0.0
    %1350 = vmatprep.subr.mxu0 0.0
    %1351 = vmatpush1.xpose.msra.mxu0 0.0
    %1352 = vmatprep.subr.mxu0 0.0
    %1353 = vmatpush1.xpose.msra.mxu0 0.0
    %1354 = vmatprep.subr.mxu0 0.0
    %1355 = vmatpush1.xpose.msra.mxu0 0.0
    %1356 = vmatprep.subr.mxu0 0.0
    %1357 = vmatpush1.xpose.msra.mxu0 0.0
    %1358 = vmatprep.subr.mxu0 0.0
    %1359 = vmatpush1.xpose.msra.mxu0 0.0
    %1360 = vmatprep.subr.mxu0 0.0
    %1361 = vmatpush1.xpose.msra.mxu0 0.0
    %1362 = vmatprep.subr.mxu0 0.0
    %1363 = vmatpush1.xpose.msra.mxu0 0.0
    %1364 = vmatprep.subr.mxu0 0.0
    %1365 = vmatpush1.xpose.msra.mxu0 0.0
    %1366 = vmatprep.subr.mxu0 0.0
    %1367 = vmatpush1.xpose.msra.mxu0 0.0
    %1368 = vmatprep.subr.mxu0 0.0
    %1369 = vmatpush1.xpose.msra.mxu0 0.0
    %1370 = vmatprep.subr.mxu0 0.0
    %1371 = vmatpush1.xpose.msra.mxu0 0.0
    %1372 = vmatprep.subr.mxu0 0.0
    %1373 = vmatpush1.xpose.msra.mxu0 0.0
    %1374 = vmatprep.subr.mxu0 0.0
    %1375 = vmatpush1.xpose.msra.mxu0 0.0
    %1376 = vmatprep.subr.mxu0 0.0
    %1377 = vmatpush1.xpose.msra.mxu0 0.0
    %1378 = vmatprep.subr.mxu0 0.0
    %1379 = vmatpush1.xpose.msra.mxu0 0.0
    %1380 = vmatprep.subr.mxu0 0.0
    %1381 = vmatpush1.xpose.msra.mxu0 0.0
    %1382 = vmatprep.subr.mxu0 0.0
    %1383 = vmatpush1.xpose.msra.mxu0 0.0
    %1384 = vmatprep.subr.mxu0 0.0
    %1385 = vmatpush1.xpose.msra.mxu0 0.0
    %1386 = vmatprep.subr.mxu0 0.0
    %1387 = vmatpush1.xpose.msra.mxu0 0.0
    %1388 = vmatprep.mubr.f32.mxu0 0.0
    %1389 = vmatmul.mubr.f32.gmra.mrb[0].mxu0 %v1319
    %v1390 = vpop.f32.mrb[0].mxu0
    %v1391 = vadd.f32 %v1164, %v1390
    %v1392 = vpop.f32.mrb[0].mxu0
    %1393 = vdwg.mxu0
    %v1395 = vsel %vm1165, %v550, 0
    %v1398 = vsel %vm1165, %v854, 0
    %1400 = vmatprep.subr.mxu0 0.0
    %1401 = vmatpush1.xpose.msra.mxu0 %v1398
    %1402 = vmatprep.subr.mxu0 0.0
    %1403 = vmatpush1.xpose.msra.mxu0 0.0
    %1404 = vmatprep.subr.mxu0 0.0
    %1405 = vmatpush1.xpose.msra.mxu0 0.0
    %1406 = vmatprep.subr.mxu0 0.0
    %1407 = vmatpush1.xpose.msra.mxu0 0.0
    %1408 = vmatprep.subr.mxu0 0.0
    %1409 = vmatpush1.xpose.msra.mxu0 0.0
    %1410 = vmatprep.subr.mxu0 0.0
    %1411 = vmatpush1.xpose.msra.mxu0 0.0
    %1412 = vmatprep.subr.mxu0 0.0
    %1413 = vmatpush1.xpose.msra.mxu0 0.0
    %1414 = vmatprep.subr.mxu0 0.0
    %1415 = vmatpush1.xpose.msra.mxu0 0.0
    %1416 = vmatprep.subr.mxu0 0.0
    %1417 = vmatpush1.xpose.msra.mxu0 0.0
    %1418 = vmatprep.subr.mxu0 0.0
    %1419 = vmatpush1.xpose.msra.mxu0 0.0
    %1420 = vmatprep.subr.mxu0 0.0
    %1421 = vmatpush1.xpose.msra.mxu0 0.0
    %1422 = vmatprep.subr.mxu0 0.0
    %1423 = vmatpush1.xpose.msra.mxu0 0.0
    %1424 = vmatprep.subr.mxu0 0.0
    %1425 = vmatpush1.xpose.msra.mxu0 0.0
    %1426 = vmatprep.subr.mxu0 0.0
    %1427 = vmatpush1.xpose.msra.mxu0 0.0
    %1428 = vmatprep.subr.mxu0 0.0
    %1429 = vmatpush1.xpose.msra.mxu0 0.0
    %1430 = vmatprep.subr.mxu0 0.0
    %1431 = vmatpush1.xpose.msra.mxu0 0.0
    %1432 = vmatprep.subr.mxu0 0.0
    %1433 = vmatpush1.xpose.msra.mxu0 0.0
    %1434 = vmatprep.subr.mxu0 0.0
    %1435 = vmatpush1.xpose.msra.mxu0 0.0
    %1436 = vmatprep.subr.mxu0 0.0
    %1437 = vmatpush1.xpose.msra.mxu0 0.0
    %1438 = vmatprep.subr.mxu0 0.0
    %1439 = vmatpush1.xpose.msra.mxu0 0.0
    %1440 = vmatprep.subr.mxu0 0.0
    %1441 = vmatpush1.xpose.msra.mxu0 0.0
    %1442 = vmatprep.subr.mxu0 0.0
    %1443 = vmatpush1.xpose.msra.mxu0 0.0
    %1444 = vmatprep.subr.mxu0 0.0
    %1445 = vmatpush1.xpose.msra.mxu0 0.0
    %1446 = vmatprep.subr.mxu0 0.0
    %1447 = vmatpush1.xpose.msra.mxu0 0.0
    %1448 = vmatprep.subr.mxu0 0.0
    %1449 = vmatpush1.xpose.msra.mxu0 0.0
    %1450 = vmatprep.subr.mxu0 0.0
    %1451 = vmatpush1.xpose.msra.mxu0 0.0
    %1452 = vmatprep.subr.mxu0 0.0
    %1453 = vmatpush1.xpose.msra.mxu0 0.0
    %1454 = vmatprep.subr.mxu0 0.0
    %1455 = vmatpush1.xpose.msra.mxu0 0.0
    %1456 = vmatprep.subr.mxu0 0.0
    %1457 = vmatpush1.xpose.msra.mxu0 0.0
    %1458 = vmatprep.subr.mxu0 0.0
    %1459 = vmatpush1.xpose.msra.mxu0 0.0
    %1460 = vmatprep.subr.mxu0 0.0
    %1461 = vmatpush1.xpose.msra.mxu0 0.0
    %1462 = vmatprep.subr.mxu0 0.0
    %1463 = vmatpush1.xpose.msra.mxu0 0.0
    %1464 = vmatprep.mubr.f32.mxu0 0.0
    %1465 = vmatmul.mubr.f32.gmra.mrb[0].mxu0 %v1395
    %v1466 = vpop.f32.mrb[0].mxu0
    %v1467 = vadd.f32 %v1164, %v1466
    %v1468 = vpop.f32.mrb[0].mxu0
    %1469 = vdwg.mxu0
    %v1470 = vsel %vm1165, %v1239, -inf
    %1471 = vmax.xlane.f32.xlu0 %v1470
    %v1472 = vpop.xlane.xlu0 %1471
    %v1473 = vsel %vm1165, %v1315, -inf
    %1474 = vmax.xlane.f32.xlu0 %v1473
    %v1475 = vpop.xlane.xlu0 %1474
    %v1476 = vsel %vm1165, %v1391, -inf
    %1477 = vmax.xlane.f32.xlu0 %v1476
    %v1478 = vpop.xlane.xlu0 %1477
    %v1479 = vsel %vm1165, %v1467, -inf
    %1480 = vmax.xlane.f32.xlu0 %v1479
    %v1481 = vpop.xlane.xlu0 %1480
    %v1482 = vsub.f32 %v1239, %v1472
    %v1483 = vsub.f32 %v1315, %v1475
    %v1484 = vsub.f32 %v1391, %v1478
    %v1485 = vsub.f32 %v1467, %v1481
    %v1486 = vmul.f32 %v1482, 1.442695
    %v1487 = vpow.pop %v1486
    %v1488 = vmul.f32 %v1483, 1.442695
    %v1489 = vpow.pop %v1488
    %v1490 = vmul.f32 %v1484, 1.442695
    %v1491 = vpow.pop %v1490
    %v1492 = vmul.f32 %v1485, 1.442695
    %v1493 = vpow.pop %v1492
    %v1494 = vsel %vm1165, %v1487, 0.0
    %1495 = vadd.xlane.f32.xlu0 %v1494
    %v1496 = vpop.xlane.xlu0 %1495
    %v1497 = vsel %vm1165, %v1489, 0.0
    %1498 = vadd.xlane.f32.xlu0 %v1497
    %v1499 = vpop.xlane.xlu0 %1498
    %v1500 = vsel %vm1165, %v1491, 0.0
    %1501 = vadd.xlane.f32.xlu0 %v1500
    %v1502 = vpop.xlane.xlu0 %1501
    %v1503 = vsel %vm1165, %v1493, 0.0
    %1504 = vadd.xlane.f32.xlu0 %v1503
    %v1505 = vpop.xlane.xlu0 %1504
    %v1506 = vrcp.pop %v1496
    %v1507 = vrcp.pop %v1499
    %v1508 = vrcp.pop %v1502
    %v1509 = vrcp.pop %v1505
    %v1510 = vmul.f32 %v1487, %v1506
    %v1511 = vmul.f32 %v1489, %v1507
    %v1512 = vmul.f32 %v1491, %v1508
    %v1513 = vmul.f32 %v1493, %v1509
    %v1515 = vsel %vm1165, %v1510, 0
    %1517 = vmatprep.subr.mxu0 0.0
    %1518 = vmatpush1.msra.mxu0 %v948
    %1519 = vmatprep.subr.mxu0 0.0
    %1520 = vmatpush1.msra.mxu0 0.0
    %1521 = vmatprep.subr.mxu0 0.0
    %1522 = vmatpush1.msra.mxu0 0.0
    %1523 = vmatprep.subr.mxu0 0.0
    %1524 = vmatpush1.msra.mxu0 0.0
    %1525 = vmatprep.subr.mxu0 0.0
    %1526 = vmatpush1.msra.mxu0 0.0
    %1527 = vmatprep.subr.mxu0 0.0
    %1528 = vmatpush1.msra.mxu0 0.0
    %1529 = vmatprep.subr.mxu0 0.0
    %1530 = vmatpush1.msra.mxu0 0.0
    %1531 = vmatprep.subr.mxu0 0.0
    %1532 = vmatpush1.msra.mxu0 0.0
    %1533 = vmatprep.subr.mxu0 0.0
    %1534 = vmatpush1.msra.mxu0 0.0
    %1535 = vmatprep.subr.mxu0 0.0
    %1536 = vmatpush1.msra.mxu0 0.0
    %1537 = vmatprep.subr.mxu0 0.0
    %1538 = vmatpush1.msra.mxu0 0.0
    %1539 = vmatprep.subr.mxu0 0.0
    %1540 = vmatpush1.msra.mxu0 0.0
    %1541 = vmatprep.subr.mxu0 0.0
    %1542 = vmatpush1.msra.mxu0 0.0
    %1543 = vmatprep.subr.mxu0 0.0
    %1544 = vmatpush1.msra.mxu0 0.0
    %1545 = vmatprep.subr.mxu0 0.0
    %1546 = vmatpush1.msra.mxu0 0.0
    %1547 = vmatprep.subr.mxu0 0.0
    %1548 = vmatpush1.msra.mxu0 0.0
    %1549 = vmatprep.subr.mxu0 0.0
    %1550 = vmatpush1.msra.mxu0 0.0
    %1551 = vmatprep.subr.mxu0 0.0
    %1552 = vmatpush1.msra.mxu0 0.0
    %1553 = vmatprep.subr.mxu0 0.0
    %1554 = vmatpush1.msra.mxu0 0.0
    %1555 = vmatprep.subr.mxu0 0.0
    %1556 = vmatpush1.msra.mxu0 0.0
    %1557 = vmatprep.subr.mxu0 0.0
    %1558 = vmatpush1.msra.mxu0 0.0
    %1559 = vmatprep.subr.mxu0 0.0
    %1560 = vmatpush1.msra.mxu0 0.0
    %1561 = vmatprep.subr.mxu0 0.0
    %1562 = vmatpush1.msra.mxu0 0.0
    %1563 = vmatprep.subr.mxu0 0.0
    %1564 = vmatpush1.msra.mxu0 0.0
    %1565 = vmatprep.subr.mxu0 0.0
    %1566 = vmatpush1.msra.mxu0 0.0
    %1567 = vmatprep.subr.mxu0 0.0
    %1568 = vmatpush1.msra.mxu0 0.0
    %1569 = vmatprep.subr.mxu0 0.0
    %1570 = vmatpush1.msra.mxu0 0.0
    %1571 = vmatprep.subr.mxu0 0.0
    %1572 = vmatpush1.msra.mxu0 0.0
    %1573 = vmatprep.subr.mxu0 0.0
    %1574 = vmatpush1.msra.mxu0 0.0
    %1575 = vmatprep.subr.mxu0 0.0
    %1576 = vmatpush1.msra.mxu0 0.0
    %1577 = vmatprep.subr.mxu0 0.0
    %1578 = vmatpush1.msra.mxu0 0.0
    %1579 = vmatprep.subr.mxu0 0.0
    %1580 = vmatpush1.msra.mxu0 0.0
    %1581 = vmatprep.mubr.f32.mxu0 0.0
    %1582 = vmatmul.mubr.f32.gmra.mrb[0].mxu0 %v1515
    %v1583 = vpop.f32.mrb[0].mxu0
    %v1584 = vadd.f32 0.0, %v1583
    %v1585 = vpop.f32.mrb[0].mxu0
    %1586 = vdwg.mxu0
    %v1588 = vsel %vm1165, %v1511, 0
    %1590 = vmatprep.subr.mxu0 0.0
    %1591 = vmatpush1.msra.mxu0 %v1018
    %1592 = vmatprep.subr.mxu0 0.0
    %1593 = vmatpush1.msra.mxu0 0.0
    %1594 = vmatprep.subr.mxu0 0.0
    %1595 = vmatpush1.msra.mxu0 0.0
    %1596 = vmatprep.subr.mxu0 0.0
    %1597 = vmatpush1.msra.mxu0 0.0
    %1598 = vmatprep.subr.mxu0 0.0
    %1599 = vmatpush1.msra.mxu0 0.0
    %1600 = vmatprep.subr.mxu0 0.0
    %1601 = vmatpush1.msra.mxu0 0.0
    %1602 = vmatprep.subr.mxu0 0.0
    %1603 = vmatpush1.msra.mxu0 0.0
    %1604 = vmatprep.subr.mxu0 0.0
    %1605 = vmatpush1.msra.mxu0 0.0
    %1606 = vmatprep.subr.mxu0 0.0
    %1607 = vmatpush1.msra.mxu0 0.0
    %1608 = vmatprep.subr.mxu0 0.0
    %1609 = vmatpush1.msra.mxu0 0.0
    %1610 = vmatprep.subr.mxu0 0.0
    %1611 = vmatpush1.msra.mxu0 0.0
    %1612 = vmatprep.subr.mxu0 0.0
    %1613 = vmatpush1.msra.mxu0 0.0
    %1614 = vmatprep.subr.mxu0 0.0
    %1615 = vmatpush1.msra.mxu0 0.0
    %1616 = vmatprep.subr.mxu0 0.0
    %1617 = vmatpush1.msra.mxu0 0.0
    %1618 = vmatprep.subr.mxu0 0.0
    %1619 = vmatpush1.msra.mxu0 0.0
    %1620 = vmatprep.subr.mxu0 0.0
    %1621 = vmatpush1.msra.mxu0 0.0
    %1622 = vmatprep.subr.mxu0 0.0
    %1623 = vmatpush1.msra.mxu0 0.0
    %1624 = vmatprep.subr.mxu0 0.0
    %1625 = vmatpush1.msra.mxu0 0.0
    %1626 = vmatprep.subr.mxu0 0.0
    %1627 = vmatpush1.msra.mxu0 0.0
    %1628 = vmatprep.subr.mxu0 0.0
    %1629 = vmatpush1.msra.mxu0 0.0
    %1630 = vmatprep.subr.mxu0 0.0
    %1631 = vmatpush1.msra.mxu0 0.0
    %1632 = vmatprep.subr.mxu0 0.0
    %1633 = vmatpush1.msra.mxu0 0.0
    %1634 = vmatprep.subr.mxu0 0.0
    %1635 = vmatpush1.msra.mxu0 0.0
    %1636 = vmatprep.subr.mxu0 0.0
    %1637 = vmatpush1.msra.mxu0 0.0
    %1638 = vmatprep.subr.mxu0 0.0
    %1639 = vmatpush1.msra.mxu0 0.0
    %1640 = vmatprep.subr.mxu0 0.0
    %1641 = vmatpush1.msra.mxu0 0.0
    %1642 = vmatprep.subr.mxu0 0.0
    %1643 = vmatpush1.msra.mxu0 0.0
    %1644 = vmatprep.subr.mxu0 0.0
    %1645 = vmatpush1.msra.mxu0 0.0
    %1646 = vmatprep.subr.mxu0 0.0
    %1647 = vmatpush1.msra.mxu0 0.0
    %1648 = vmatprep.subr.mxu0 0.0
    %1649 = vmatpush1.msra.mxu0 0.0
    %1650 = vmatprep.subr.mxu0 0.0
    %1651 = vmatpush1.msra.mxu0 0.0
    %1652 = vmatprep.subr.mxu0 0.0
    %1653 = vmatpush1.msra.mxu0 0.0
    %1654 = vmatprep.mubr.f32.mxu0 0.0
    %1655 = vmatmul.mubr.f32.gmra.mrb[0].mxu0 %v1588
    %v1656 = vpop.f32.mrb[0].mxu0
    %v1657 = vadd.f32 0.0, %v1656
    %v1658 = vpop.f32.mrb[0].mxu0
    %1659 = vdwg.mxu0
    %v1661 = vsel %vm1165, %v1512, 0
    %1663 = vmatprep.subr.mxu0 0.0
    %1664 = vmatpush1.msra.mxu0 %v1088
    %1665 = vmatprep.subr.mxu0 0.0
    %1666 = vmatpush1.msra.mxu0 0.0
    %1667 = vmatprep.subr.mxu0 0.0
    %1668 = vmatpush1.msra.mxu0 0.0
    %1669 = vmatprep.subr.mxu0 0.0
    %1670 = vmatpush1.msra.mxu0 0.0
    %1671 = vmatprep.subr.mxu0 0.0
    %1672 = vmatpush1.msra.mxu0 0.0
    %1673 = vmatprep.subr.mxu0 0.0
    %1674 = vmatpush1.msra.mxu0 0.0
    %1675 = vmatprep.subr.mxu0 0.0
    %1676 = vmatpush1.msra.mxu0 0.0
    %1677 = vmatprep.subr.mxu0 0.0
    %1678 = vmatpush1.msra.mxu0 0.0
    %1679 = vmatprep.subr.mxu0 0.0
    %1680 = vmatpush1.msra.mxu0 0.0
    %1681 = vmatprep.subr.mxu0 0.0
    %1682 = vmatpush1.msra.mxu0 0.0
    %1683 = vmatprep.subr.mxu0 0.0
    %1684 = vmatpush1.msra.mxu0 0.0
    %1685 = vmatprep.subr.mxu0 0.0
    %1686 = vmatpush1.msra.mxu0 0.0
    %1687 = vmatprep.subr.mxu0 0.0
    %1688 = vmatpush1.msra.mxu0 0.0
    %1689 = vmatprep.subr.mxu0 0.0
    %1690 = vmatpush1.msra.mxu0 0.0
    %1691 = vmatprep.subr.mxu0 0.0
    %1692 = vmatpush1.msra.mxu0 0.0
    %1693 = vmatprep.subr.mxu0 0.0
    %1694 = vmatpush1.msra.mxu0 0.0
    %1695 = vmatprep.subr.mxu0 0.0
    %1696 = vmatpush1.msra.mxu0 0.0
    %1697 = vmatprep.subr.mxu0 0.0
    %1698 = vmatpush1.msra.mxu0 0.0
    %1699 = vmatprep.subr.mxu0 0.0
    %1700 = vmatpush1.msra.mxu0 0.0
    %1701 = vmatprep.subr.mxu0 0.0
    %1702 = vmatpush1.msra.mxu0 0.0
    %1703 = vmatprep.subr.mxu0 0.0
    %1704 = vmatpush1.msra.mxu0 0.0
    %1705 = vmatprep.subr.mxu0 0.0
    %1706 = vmatpush1.msra.mxu0 0.0
    %1707 = vmatprep.subr.mxu0 0.0
    %1708 = vmatpush1.msra.mxu0 0.0
    %1709 = vmatprep.subr.mxu0 0.0
    %1710 = vmatpush1.msra.mxu0 0.0
    %1711 = vmatprep.subr.mxu0 0.0
    %1712 = vmatpush1.msra.mxu0 0.0
    %1713 = vmatprep.subr.mxu0 0.0
    %1714 = vmatpush1.msra.mxu0 0.0
    %1715 = vmatprep.subr.mxu0 0.0
    %1716 = vmatpush1.msra.mxu0 0.0
    %1717 = vmatprep.subr.mxu0 0.0
    %1718 = vmatpush1.msra.mxu0 0.0
    %1719 = vmatprep.subr.mxu0 0.0
    %1720 = vmatpush1.msra.mxu0 0.0
    %1721 = vmatprep.subr.mxu0 0.0
    %1722 = vmatpush1.msra.mxu0 0.0
    %1723 = vmatprep.subr.mxu0 0.0
    %1724 = vmatpush1.msra.mxu0 0.0
    %1725 = vmatprep.subr.mxu0 0.0
    %1726 = vmatpush1.msra.mxu0 0.0
    %1727 = vmatprep.mubr.f32.mxu0 0.0
    %1728 = vmatmul.mubr.f32.gmra.mrb[0].mxu0 %v1661
    %v1729 = vpop.f32.mrb[0].mxu0
    %v1730 = vadd.f32 0.0, %v1729
    %v1731 = vpop.f32.mrb[0].mxu0
    %1732 = vdwg.mxu0
    %v1734 = vsel %vm1165, %v1513, 0
    %1736 = vmatprep.subr.mxu0 0.0
    %1737 = vmatpush1.msra.mxu0 %v1158
    %1738 = vmatprep.subr.mxu0 0.0
    %1739 = vmatpush1.msra.mxu0 0.0
    %1740 = vmatprep.subr.mxu0 0.0
    %1741 = vmatpush1.msra.mxu0 0.0
    %1742 = vmatprep.subr.mxu0 0.0
    %1743 = vmatpush1.msra.mxu0 0.0
    %1744 = vmatprep.subr.mxu0 0.0
    %1745 = vmatpush1.msra.mxu0 0.0
    %1746 = vmatprep.subr.mxu0 0.0
    %1747 = vmatpush1.msra.mxu0 0.0
    %1748 = vmatprep.subr.mxu0 0.0
    %1749 = vmatpush1.msra.mxu0 0.0
    %1750 = vmatprep.subr.mxu0 0.0
    %1751 = vmatpush1.msra.mxu0 0.0
    %1752 = vmatprep.subr.mxu0 0.0
    %1753 = vmatpush1.msra.mxu0 0.0
    %1754 = vmatprep.subr.mxu0 0.0
    %1755 = vmatpush1.msra.mxu0 0.0
    %1756 = vmatprep.subr.mxu0 0.0
    %1757 = vmatpush1.msra.mxu0 0.0
    %1758 = vmatprep.subr.mxu0 0.0
    %1759 = vmatpush1.msra.mxu0 0.0
    %1760 = vmatprep.subr.mxu0 0.0
    %1761 = vmatpush1.msra.mxu0 0.0
    %1762 = vmatprep.subr.mxu0 0.0
    %1763 = vmatpush1.msra.mxu0 0.0
    %1764 = vmatprep.subr.mxu0 0.0
    %1765 = vmatpush1.msra.mxu0 0.0
    %1766 = vmatprep.subr.mxu0 0.0
    %1767 = vmatpush1.msra.mxu0 0.0
    %1768 = vmatprep.subr.mxu0 0.0
    %1769 = vmatpush1.msra.mxu0 0.0
    %1770 = vmatprep.subr.mxu0 0.0
    %1771 = vmatpush1.msra.mxu0 0.0
    %1772 = vmatprep.subr.mxu0 0.0
    %1773 = vmatpush1.msra.mxu0 0.0
    %1774 = vmatprep.subr.mxu0 0.0
    %1775 = vmatpush1.msra.mxu0 0.0
    %1776 = vmatprep.subr.mxu0 0.0
    %1777 = vmatpush1.msra.mxu0 0.0
    %1778 = vmatprep.subr.mxu0 0.0
    %1779 = vmatpush1.msra.mxu0 0.0
    %1780 = vmatprep.subr.mxu0 0.0
    %1781 = vmatpush1.msra.mxu0 0.0
    %1782 = vmatprep.subr.mxu0 0.0
    %1783 = vmatpush1.msra.mxu0 0.0
    %1784 = vmatprep.subr.mxu0 0.0
    %1785 = vmatpush1.msra.mxu0 0.0
    %1786 = vmatprep.subr.mxu0 0.0
    %1787 = vmatpush1.msra.mxu0 0.0
    %1788 = vmatprep.subr.mxu0 0.0
    %1789 = vmatpush1.msra.mxu0 0.0
    %1790 = vmatprep.subr.mxu0 0.0
    %1791 = vmatpush1.msra.mxu0 0.0
    %1792 = vmatprep.subr.mxu0 0.0
    %1793 = vmatpush1.msra.mxu0 0.0
    %1794 = vmatprep.subr.mxu0 0.0
    %1795 = vmatpush1.msra.mxu0 0.0
    %1796 = vmatprep.subr.mxu0 0.0
    %1797 = vmatpush1.msra.mxu0 0.0
    %1798 = vmatprep.subr.mxu0 0.0
    %1799 = vmatpush1.msra.mxu0 0.0
    %1800 = vmatprep.mubr.f32.mxu0 0.0
    %1801 = vmatmul.mubr.f32.gmra.mrb[0].mxu0 %v1734
    %v1802 = vpop.f32.mrb[0].mxu0
    %v1803 = vadd.f32 0.0, %v1802
    %v1804 = vpop.f32.mrb[0].mxu0
    %1805 = vdwg.mxu0
    %v1807 = vsel %vm1165, %v1584, 0
    %1809 = vmatprep.subr.mxu0 0.0
    %1810 = vmatpush1.msra.mxu0 %v241
    %1811 = vmatprep.subr.mxu0 0.0
    %1812 = vmatpush1.msra.mxu0 0.0
    %1813 = vmatprep.subr.mxu0 0.0
    %1814 = vmatpush1.msra.mxu0 0.0
    %1815 = vmatprep.subr.mxu0 0.0
    %1816 = vmatpush1.msra.mxu0 0.0
    %1817 = vmatprep.subr.mxu0 0.0
    %1818 = vmatpush1.msra.mxu0 0.0
    %1819 = vmatprep.subr.mxu0 0.0
    %1820 = vmatpush1.msra.mxu0 0.0
    %1821 = vmatprep.subr.mxu0 0.0
    %1822 = vmatpush1.msra.mxu0 0.0
    %1823 = vmatprep.subr.mxu0 0.0
    %1824 = vmatpush1.msra.mxu0 0.0
    %1825 = vmatprep.subr.mxu0 0.0
    %1826 = vmatpush1.msra.mxu0 0.0
    %1827 = vmatprep.subr.mxu0 0.0
    %1828 = vmatpush1.msra.mxu0 0.0
    %1829 = vmatprep.subr.mxu0 0.0
    %1830 = vmatpush1.msra.mxu0 0.0
    %1831 = vmatprep.subr.mxu0 0.0
    %1832 = vmatpush1.msra.mxu0 0.0
    %1833 = vmatprep.subr.mxu0 0.0
    %1834 = vmatpush1.msra.mxu0 0.0
    %1835 = vmatprep.subr.mxu0 0.0
    %1836 = vmatpush1.msra.mxu0 0.0
    %1837 = vmatprep.subr.mxu0 0.0
    %1838 = vmatpush1.msra.mxu0 0.0
    %1839 = vmatprep.subr.mxu0 0.0
    %1840 = vmatpush1.msra.mxu0 0.0
    %1841 = vmatprep.subr.mxu0 0.0
    %1842 = vmatpush1.msra.mxu0 0.0
    %1843 = vmatprep.subr.mxu0 0.0
    %1844 = vmatpush1.msra.mxu0 0.0
    %1845 = vmatprep.subr.mxu0 0.0
    %1846 = vmatpush1.msra.mxu0 0.0
    %1847 = vmatprep.subr.mxu0 0.0
    %1848 = vmatpush1.msra.mxu0 0.0
    %1849 = vmatprep.subr.mxu0 0.0
    %1850 = vmatpush1.msra.mxu0 0.0
    %1851 = vmatprep.subr.mxu0 0.0
    %1852 = vmatpush1.msra.mxu0 0.0
    %1853 = vmatprep.subr.mxu0 0.0
    %1854 = vmatpush1.msra.mxu0 0.0
    %1855 = vmatprep.subr.mxu0 0.0
    %1856 = vmatpush1.msra.mxu0 0.0
    %1857 = vmatprep.subr.mxu0 0.0
    %1858 = vmatpush1.msra.mxu0 0.0
    %1859 = vmatprep.subr.mxu0 0.0
    %1860 = vmatpush1.msra.mxu0 0.0
    %1861 = vmatprep.subr.mxu0 0.0
    %1862 = vmatpush1.msra.mxu0 0.0
    %1863 = vmatprep.subr.mxu0 0.0
    %1864 = vmatpush1.msra.mxu0 0.0
    %1865 = vmatprep.subr.mxu0 0.0
    %1866 = vmatpush1.msra.mxu0 0.0
    %1867 = vmatprep.subr.mxu0 0.0
    %1868 = vmatpush1.msra.mxu0 0.0
    %1869 = vmatprep.subr.mxu0 0.0
    %1870 = vmatpush1.msra.mxu0 0.0
    %1871 = vmatprep.subr.mxu0 0.0
    %1872 = vmatpush1.msra.mxu0 0.0
    %1873 = vmatprep.mubr.f32.mxu0 0.0
    %1874 = vmatmul.mubr.f32.gmra.mrb[0].mxu0 %v1807
    %v1875 = vpop.f32.mrb[0].mxu0
    %v1876 = vadd.f32 0.0, %v1875
    %v1877 = vpop.f32.mrb[0].mxu0
    %1878 = vdwg.mxu0
    %v1880 = vsel %vm1165, %v1657, 0
    %1882 = vmatprep.subr.mxu0 0.0
    %1883 = vmatpush1.msra.mxu0 %v242
    %1884 = vmatprep.subr.mxu0 0.0
    %1885 = vmatpush1.msra.mxu0 0.0
    %1886 = vmatprep.subr.mxu0 0.0
    %1887 = vmatpush1.msra.mxu0 0.0
    %1888 = vmatprep.subr.mxu0 0.0
    %1889 = vmatpush1.msra.mxu0 0.0
    %1890 = vmatprep.subr.mxu0 0.0
    %1891 = vmatpush1.msra.mxu0 0.0
    %1892 = vmatprep.subr.mxu0 0.0
    %1893 = vmatpush1.msra.mxu0 0.0
    %1894 = vmatprep.subr.mxu0 0.0
    %1895 = vmatpush1.msra.mxu0 0.0
    %1896 = vmatprep.subr.mxu0 0.0
    %1897 = vmatpush1.msra.mxu0 0.0
    %1898 = vmatprep.subr.mxu0 0.0
    %1899 = vmatpush1.msra.mxu0 0.0
    %1900 = vmatprep.subr.mxu0 0.0
    %1901 = vmatpush1.msra.mxu0 0.0
    %1902 = vmatprep.subr.mxu0 0.0
    %1903 = vmatpush1.msra.mxu0 0.0
    %1904 = vmatprep.subr.mxu0 0.0
    %1905 = vmatpush1.msra.mxu0 0.0
    %1906 = vmatprep.subr.mxu0 0.0
    %1907 = vmatpush1.msra.mxu0 0.0
    %1908 = vmatprep.subr.mxu0 0.0
    %1909 = vmatpush1.msra.mxu0 0.0
    %1910 = vmatprep.subr.mxu0 0.0
    %1911 = vmatpush1.msra.mxu0 0.0
    %1912 = vmatprep.subr.mxu0 0.0
    %1913 = vmatpush1.msra.mxu0 0.0
    %1914 = vmatprep.subr.mxu0 0.0
    %1915 = vmatpush1.msra.mxu0 0.0
    %1916 = vmatprep.subr.mxu0 0.0
    %1917 = vmatpush1.msra.mxu0 0.0
    %1918 = vmatprep.subr.mxu0 0.0
    %1919 = vmatpush1.msra.mxu0 0.0
    %1920 = vmatprep.subr.mxu0 0.0
    %1921 = vmatpush1.msra.mxu0 0.0
    %1922 = vmatprep.subr.mxu0 0.0
    %1923 = vmatpush1.msra.mxu0 0.0
    %1924 = vmatprep.subr.mxu0 0.0
    %1925 = vmatpush1.msra.mxu0 0.0
    %1926 = vmatprep.subr.mxu0 0.0
    %1927 = vmatpush1.msra.mxu0 0.0
    %1928 = vmatprep.subr.mxu0 0.0
    %1929 = vmatpush1.msra.mxu0 0.0
    %1930 = vmatprep.subr.mxu0 0.0
    %1931 = vmatpush1.msra.mxu0 0.0
    %1932 = vmatprep.subr.mxu0 0.0
    %1933 = vmatpush1.msra.mxu0 0.0
    %1934 = vmatprep.subr.mxu0 0.0
    %1935 = vmatpush1.msra.mxu0 0.0
    %1936 = vmatprep.subr.mxu0 0.0
    %1937 = vmatpush1.msra.mxu0 0.0
    %1938 = vmatprep.subr.mxu0 0.0
    %1939 = vmatpush1.msra.mxu0 0.0
    %1940 = vmatprep.subr.mxu0 0.0
    %1941 = vmatpush1.msra.mxu0 0.0
    %1942 = vmatprep.subr.mxu0 0.0
    %1943 = vmatpush1.msra.mxu0 0.0
    %1944 = vmatprep.subr.mxu0 0.0
    %1945 = vmatpush1.msra.mxu0 0.0
    %1946 = vmatprep.mubr.f32.mxu0 0.0
    %1947 = vmatmul.mubr.f32.gmra.mrb[0].mxu0 %v1880
    %v1948 = vpop.f32.mrb[0].mxu0
    %v1949 = vadd.f32 0.0, %v1948
    %v1950 = vpop.f32.mrb[0].mxu0
    %1951 = vdwg.mxu0
    %v1953 = vsel %vm1165, %v1730, 0
    %1955 = vmatprep.subr.mxu0 0.0
    %1956 = vmatpush1.msra.mxu0 %v243
    %1957 = vmatprep.subr.mxu0 0.0
    %1958 = vmatpush1.msra.mxu0 0.0
    %1959 = vmatprep.subr.mxu0 0.0
    %1960 = vmatpush1.msra.mxu0 0.0
    %1961 = vmatprep.subr.mxu0 0.0
    %1962 = vmatpush1.msra.mxu0 0.0
    %1963 = vmatprep.subr.mxu0 0.0
    %1964 = vmatpush1.msra.mxu0 0.0
    %1965 = vmatprep.subr.mxu0 0.0
    %1966 = vmatpush1.msra.mxu0 0.0
    %1967 = vmatprep.subr.mxu0 0.0
    %1968 = vmatpush1.msra.mxu0 0.0
    %1969 = vmatprep.subr.mxu0 0.0
    %1970 = vmatpush1.msra.mxu0 0.0
    %1971 = vmatprep.subr.mxu0 0.0
    %1972 = vmatpush1.msra.mxu0 0.0
    %1973 = vmatprep.subr.mxu0 0.0
    %1974 = vmatpush1.msra.mxu0 0.0
    %1975 = vmatprep.subr.mxu0 0.0
    %1976 = vmatpush1.msra.mxu0 0.0
    %1977 = vmatprep.subr.mxu0 0.0
    %1978 = vmatpush1.msra.mxu0 0.0
    %1979 = vmatprep.subr.mxu0 0.0
    %1980 = vmatpush1.msra.mxu0 0.0
    %1981 = vmatprep.subr.mxu0 0.0
    %1982 = vmatpush1.msra.mxu0 0.0
    %1983 = vmatprep.subr.mxu0 0.0
    %1984 = vmatpush1.msra.mxu0 0.0
    %1985 = vmatprep.subr.mxu0 0.0
    %1986 = vmatpush1.msra.mxu0 0.0
    %1987 = vmatprep.subr.mxu0 0.0
    %1988 = vmatpush1.msra.mxu0 0.0
    %1989 = vmatprep.subr.mxu0 0.0
    %1990 = vmatpush1.msra.mxu0 0.0
    %1991 = vmatprep.subr.mxu0 0.0
    %1992 = vmatpush1.msra.mxu0 0.0
    %1993 = vmatprep.subr.mxu0 0.0
    %1994 = vmatpush1.msra.mxu0 0.0
    %1995 = vmatprep.subr.mxu0 0.0
    %1996 = vmatpush1.msra.mxu0 0.0
    %1997 = vmatprep.subr.mxu0 0.0
    %1998 = vmatpush1.msra.mxu0 0.0
    %1999 = vmatprep.subr.mxu0 0.0
    %2000 = vmatpush1.msra.mxu0 0.0
    %2001 = vmatprep.subr.mxu0 0.0
    %2002 = vmatpush1.msra.mxu0 0.0
    %2003 = vmatprep.subr.mxu0 0.0
    %2004 = vmatpush1.msra.mxu0 0.0
    %2005 = vmatprep.subr.mxu0 0.0
    %2006 = vmatpush1.msra.mxu0 0.0
    %2007 = vmatprep.subr.mxu0 0.0
    %2008 = vmatpush1.msra.mxu0 0.0
    %2009 = vmatprep.subr.mxu0 0.0
    %2010 = vmatpush1.msra.mxu0 0.0
    %2011 = vmatprep.subr.mxu0 0.0
    %2012 = vmatpush1.msra.mxu0 0.0
    %2013 = vmatprep.subr.mxu0 0.0
    %2014 = vmatpush1.msra.mxu0 0.0
    %2015 = vmatprep.subr.mxu0 0.0
    %2016 = vmatpush1.msra.mxu0 0.0
    %2017 = vmatprep.subr.mxu0 0.0
    %2018 = vmatpush1.msra.mxu0 0.0
    %2019 = vmatprep.mubr.f32.mxu0 0.0
    %2020 = vmatmul.mubr.f32.gmra.mrb[0].mxu0 %v1953
    %v2021 = vpop.f32.mrb[0].mxu0
    %v2022 = vadd.f32 0.0, %v2021
    %v2023 = vpop.f32.mrb[0].mxu0
    %2024 = vdwg.mxu0
    %v2026 = vsel %vm1165, %v1803, 0
    %2028 = vmatprep.subr.mxu0 0.0
    %2029 = vmatpush1.msra.mxu0 %v244
    %2030 = vmatprep.subr.mxu0 0.0
    %2031 = vmatpush1.msra.mxu0 0.0
    %2032 = vmatprep.subr.mxu0 0.0
    %2033 = vmatpush1.msra.mxu0 0.0
    %2034 = vmatprep.subr.mxu0 0.0
    %2035 = vmatpush1.msra.mxu0 0.0
    %2036 = vmatprep.subr.mxu0 0.0
    %2037 = vmatpush1.msra.mxu0 0.0
    %2038 = vmatprep.subr.mxu0 0.0
    %2039 = vmatpush1.msra.mxu0 0.0
    %2040 = vmatprep.subr.mxu0 0.0
    %2041 = vmatpush1.msra.mxu0 0.0
    %2042 = vmatprep.subr.mxu0 0.0
    %2043 = vmatpush1.msra.mxu0 0.0
    %2044 = vmatprep.subr.mxu0 0.0
    %2045 = vmatpush1.msra.mxu0 0.0
    %2046 = vmatprep.subr.mxu0 0.0
    %2047 = vmatpush1.msra.mxu0 0.0
    %2048 = vmatprep.subr.mxu0 0.0
    %2049 = vmatpush1.msra.mxu0 0.0
    %2050 = vmatprep.subr.mxu0 0.0
    %2051 = vmatpush1.msra.mxu0 0.0
    %2052 = vmatprep.subr.mxu0 0.0
    %2053 = vmatpush1.msra.mxu0 0.0
    %2054 = vmatprep.subr.mxu0 0.0
    %2055 = vmatpush1.msra.mxu0 0.0
    %2056 = vmatprep.subr.mxu0 0.0
    %2057 = vmatpush1.msra.mxu0 0.0
    %2058 = vmatprep.subr.mxu0 0.0
    %2059 = vmatpush1.msra.mxu0 0.0
    %2060 = vmatprep.subr.mxu0 0.0
    %2061 = vmatpush1.msra.mxu0 0.0
    %2062 = vmatprep.subr.mxu0 0.0
    %2063 = vmatpush1.msra.mxu0 0.0
    %2064 = vmatprep.subr.mxu0 0.0
    %2065 = vmatpush1.msra.mxu0 0.0
    %2066 = vmatprep.subr.mxu0 0.0
    %2067 = vmatpush1.msra.mxu0 0.0
    %2068 = vmatprep.subr.mxu0 0.0
    %2069 = vmatpush1.msra.mxu0 0.0
    %2070 = vmatprep.subr.mxu0 0.0
    %2071 = vmatpush1.msra.mxu0 0.0
    %2072 = vmatprep.subr.mxu0 0.0
    %2073 = vmatpush1.msra.mxu0 0.0
    %2074 = vmatprep.subr.mxu0 0.0
    %2075 = vmatpush1.msra.mxu0 0.0
    %2076 = vmatprep.subr.mxu0 0.0
    %2077 = vmatpush1.msra.mxu0 0.0
    %2078 = vmatprep.subr.mxu0 0.0
    %2079 = vmatpush1.msra.mxu0 0.0
    %2080 = vmatprep.subr.mxu0 0.0
    %2081 = vmatpush1.msra.mxu0 0.0
    %2082 = vmatprep.subr.mxu0 0.0
    %2083 = vmatpush1.msra.mxu0 0.0
    %2084 = vmatprep.subr.mxu0 0.0
    %2085 = vmatpush1.msra.mxu0 0.0
    %2086 = vmatprep.subr.mxu0 0.0
    %2087 = vmatpush1.msra.mxu0 0.0
    %2088 = vmatprep.subr.mxu0 0.0
    %2089 = vmatpush1.msra.mxu0 0.0
    %2090 = vmatprep.subr.mxu0 0.0
    %2091 = vmatpush1.msra.mxu0 0.0
    %2092 = vmatprep.mubr.f32.mxu0 0.0
    %2093 = vmatmul.mubr.f32.gmra.mrb[0].mxu0 %v2026
    %v2094 = vpop.f32.mrb[0].mxu0
    %v2095 = vadd.f32 0.0, %v2094
    %v2096 = vpop.f32.mrb[0].mxu0
    %2097 = vdwg.mxu0
    %v2098 = vsel %vm269, %v1876, 0.0
    %v2099 = vsel %vm269, %v1949, 0.0
    %v2100 = vadd.f32 %v2098, %v2099
    %v2101 = vsel %vm269, %v2022, 0.0
    %v2102 = vadd.f32 %v2100, %v2101
    %v2103 = vsel %vm269, %v2095, 0.0
    %v2104 = vadd.f32 %v2102, %v2103
    %v2106 = vsel %vm269, %v175, 0
    %2108 = vmatprep.subr.mxu0 0.0
    %2109 = vmatpush1.msra.mxu0 %v181
    %2110 = vmatprep.subr.mxu0 0.0
    %2111 = vmatpush1.msra.mxu0 %v182
    %2112 = vmatprep.subr.mxu0 0.0
    %2113 = vmatpush1.msra.mxu0 %v183
    %2114 = vmatprep.subr.mxu0 0.0
    %2115 = vmatpush1.msra.mxu0 %v184
    %2116 = vmatprep.subr.mxu0 0.0
    %2117 = vmatpush1.msra.mxu0 0.0
    %2118 = vmatprep.subr.mxu0 0.0
    %2119 = vmatpush1.msra.mxu0 0.0
    %2120 = vmatprep.subr.mxu0 0.0
    %2121 = vmatpush1.msra.mxu0 0.0
    %2122 = vmatprep.subr.mxu0 0.0
    %2123 = vmatpush1.msra.mxu0 0.0
    %2124 = vmatprep.subr.mxu0 0.0
    %2125 = vmatpush1.msra.mxu0 0.0
    %2126 = vmatprep.subr.mxu0 0.0
    %2127 = vmatpush1.msra.mxu0 0.0
    %2128 = vmatprep.subr.mxu0 0.0
    %2129 = vmatpush1.msra.mxu0 0.0
    %2130 = vmatprep.subr.mxu0 0.0
    %2131 = vmatpush1.msra.mxu0 0.0
    %2132 = vmatprep.subr.mxu0 0.0
    %2133 = vmatpush1.msra.mxu0 0.0
    %2134 = vmatprep.subr.mxu0 0.0
    %2135 = vmatpush1.msra.mxu0 0.0
    %2136 = vmatprep.subr.mxu0 0.0
    %2137 = vmatpush1.msra.mxu0 0.0
    %2138 = vmatprep.subr.mxu0 0.0
    %2139 = vmatpush1.msra.mxu0 0.0
    %2140 = vmatprep.subr.mxu0 0.0
    %2141 = vmatpush1.msra.mxu0 0.0
    %2142 = vmatprep.subr.mxu0 0.0
    %2143 = vmatpush1.msra.mxu0 0.0
    %2144 = vmatprep.subr.mxu0 0.0
    %2145 = vmatpush1.msra.mxu0 0.0
    %2146 = vmatprep.subr.mxu0 0.0
    %2147 = vmatpush1.msra.mxu0 0.0
    %2148 = vmatprep.subr.mxu0 0.0
    %2149 = vmatpush1.msra.mxu0 0.0
    %2150 = vmatprep.subr.mxu0 0.0
    %2151 = vmatpush1.msra.mxu0 0.0
    %2152 = vmatprep.subr.mxu0 0.0
    %2153 = vmatpush1.msra.mxu0 0.0
    %2154 = vmatprep.subr.mxu0 0.0
    %2155 = vmatpush1.msra.mxu0 0.0
    %2156 = vmatprep.subr.mxu0 0.0
    %2157 = vmatpush1.msra.mxu0 0.0
    %2158 = vmatprep.subr.mxu0 0.0
    %2159 = vmatpush1.msra.mxu0 0.0
    %2160 = vmatprep.subr.mxu0 0.0
    %2161 = vmatpush1.msra.mxu0 0.0
    %2162 = vmatprep.subr.mxu0 0.0
    %2163 = vmatpush1.msra.mxu0 0.0
    %2164 = vmatprep.subr.mxu0 0.0
    %2165 = vmatpush1.msra.mxu0 0.0
    %2166 = vmatprep.subr.mxu0 0.0
    %2167 = vmatpush1.msra.mxu0 0.0
    %2168 = vmatprep.subr.mxu0 0.0
    %2169 = vmatpush1.msra.mxu0 0.0
    %2170 = vmatprep.subr.mxu0 0.0
    %2171 = vmatpush1.msra.mxu0 0.0
    %2172 = vmatprep.mubr.f32.mxu0 0.0
    %2173 = vmatmul.mubr.f32.gmra.mrb[0].mxu0 %v2106
    %v2174 = vpop.f32.mrb[0].mxu0
    %v2175 = vadd.f32 %v252, %v2174
    %v2176 = vpop.f32.mrb[0].mxu0
    %2177 = vdwg.mxu0
    %2178 = vmatprep.subr.mxu0 0.0
    %2179 = vmatpush1.msra.mxu0 %v185
    %2180 = vmatprep.subr.mxu0 0.0
    %2181 = vmatpush1.msra.mxu0 %v186
    %2182 = vmatprep.subr.mxu0 0.0
    %2183 = vmatpush1.msra.mxu0 %v187
    %2184 = vmatprep.subr.mxu0 0.0
    %2185 = vmatpush1.msra.mxu0 %v188
    %2186 = vmatprep.subr.mxu0 0.0
    %2187 = vmatpush1.msra.mxu0 0.0
    %2188 = vmatprep.subr.mxu0 0.0
    %2189 = vmatpush1.msra.mxu0 0.0
    %2190 = vmatprep.subr.mxu0 0.0
    %2191 = vmatpush1.msra.mxu0 0.0
    %2192 = vmatprep.subr.mxu0 0.0
    %2193 = vmatpush1.msra.mxu0 0.0
    %2194 = vmatprep.subr.mxu0 0.0
    %2195 = vmatpush1.msra.mxu0 0.0
    %2196 = vmatprep.subr.mxu0 0.0
    %2197 = vmatpush1.msra.mxu0 0.0
    %2198 = vmatprep.subr.mxu0 0.0
    %2199 = vmatpush1.msra.mxu0 0.0
    %2200 = vmatprep.subr.mxu0 0.0
    %2201 = vmatpush1.msra.mxu0 0.0
    %2202 = vmatprep.subr.mxu0 0.0
    %2203 = vmatpush1.msra.mxu0 0.0
    %2204 = vmatprep.subr.mxu0 0.0
    %2205 = vmatpush1.msra.mxu0 0.0
    %2206 = vmatprep.subr.mxu0 0.0
    %2207 = vmatpush1.msra.mxu0 0.0
    %2208 = vmatprep.subr.mxu0 0.0
    %2209 = vmatpush1.msra.mxu0 0.0
    %2210 = vmatprep.subr.mxu0 0.0
    %2211 = vmatpush1.msra.mxu0 0.0
    %2212 = vmatprep.subr.mxu0 0.0
    %2213 = vmatpush1.msra.mxu0 0.0
    %2214 = vmatprep.subr.mxu0 0.0
    %2215 = vmatpush1.msra.mxu0 0.0
    %2216 = vmatprep.subr.mxu0 0.0
    %2217 = vmatpush1.msra.mxu0 0.0
    %2218 = vmatprep.subr.mxu0 0.0
    %2219 = vmatpush1.msra.mxu0 0.0
    %2220 = vmatprep.subr.mxu0 0.0
    %2221 = vmatpush1.msra.mxu0 0.0
    %2222 = vmatprep.subr.mxu0 0.0
    %2223 = vmatpush1.msra.mxu0 0.0
    %2224 = vmatprep.subr.mxu0 0.0
    %2225 = vmatpush1.msra.mxu0 0.0
    %2226 = vmatprep.subr.mxu0 0.0
    %2227 = vmatpush1.msra.mxu0 0.0
    %2228 = vmatprep.subr.mxu0 0.0
    %2229 = vmatpush1.msra.mxu0 0.0
    %2230 = vmatprep.subr.mxu0 0.0
    %2231 = vmatpush1.msra.mxu0 0.0
    %2232 = vmatprep.subr.mxu0 0.0
    %2233 = vmatpush1.msra.mxu0 0.0
    %2234 = vmatprep.subr.mxu0 0.0
    %2235 = vmatpush1.msra.mxu0 0.0
    %2236 = vmatprep.subr.mxu0 0.0
    %2237 = vmatpush1.msra.mxu0 0.0
    %2238 = vmatprep.subr.mxu0 0.0
    %2239 = vmatpush1.msra.mxu0 0.0
    %2240 = vmatprep.subr.mxu0 0.0
    %2241 = vmatpush1.msra.mxu0 0.0
    %2242 = vmatprep.mubr.f32.mxu0 0.0
    %2243 = vmatmul.mubr.f32.gmra.mrb[0].mxu0 %v2106
    %v2244 = vpop.f32.mrb[0].mxu0
    %v2245 = vadd.f32 %v256, %v2244
    %v2246 = vpop.f32.mrb[0].mxu0
    %2247 = vdwg.mxu0
    %2248 = vmatprep.subr.mxu0 0.0
    %2249 = vmatpush1.msra.mxu0 %v189
    %2250 = vmatprep.subr.mxu0 0.0
    %2251 = vmatpush1.msra.mxu0 %v190
    %2252 = vmatprep.subr.mxu0 0.0
    %2253 = vmatpush1.msra.mxu0 %v191
    %2254 = vmatprep.subr.mxu0 0.0
    %2255 = vmatpush1.msra.mxu0 %v192
    %2256 = vmatprep.subr.mxu0 0.0
    %2257 = vmatpush1.msra.mxu0 0.0
    %2258 = vmatprep.subr.mxu0 0.0
    %2259 = vmatpush1.msra.mxu0 0.0
    %2260 = vmatprep.subr.mxu0 0.0
    %2261 = vmatpush1.msra.mxu0 0.0
    %2262 = vmatprep.subr.mxu0 0.0
    %2263 = vmatpush1.msra.mxu0 0.0
    %2264 = vmatprep.subr.mxu0 0.0
    %2265 = vmatpush1.msra.mxu0 0.0
    %2266 = vmatprep.subr.mxu0 0.0
    %2267 = vmatpush1.msra.mxu0 0.0
    %2268 = vmatprep.subr.mxu0 0.0
    %2269 = vmatpush1.msra.mxu0 0.0
    %2270 = vmatprep.subr.mxu0 0.0
    %2271 = vmatpush1.msra.mxu0 0.0
    %2272 = vmatprep.subr.mxu0 0.0
    %2273 = vmatpush1.msra.mxu0 0.0
    %2274 = vmatprep.subr.mxu0 0.0
    %2275 = vmatpush1.msra.mxu0 0.0
    %2276 = vmatprep.subr.mxu0 0.0
    %2277 = vmatpush1.msra.mxu0 0.0
    %2278 = vmatprep.subr.mxu0 0.0
    %2279 = vmatpush1.msra.mxu0 0.0
    %2280 = vmatprep.subr.mxu0 0.0
    %2281 = vmatpush1.msra.mxu0 0.0
    %2282 = vmatprep.subr.mxu0 0.0
    %2283 = vmatpush1.msra.mxu0 0.0
    %2284 = vmatprep.subr.mxu0 0.0
    %2285 = vmatpush1.msra.mxu0 0.0
    %2286 = vmatprep.subr.mxu0 0.0
    %2287 = vmatpush1.msra.mxu0 0.0
    %2288 = vmatprep.subr.mxu0 0.0
    %2289 = vmatpush1.msra.mxu0 0.0
    %2290 = vmatprep.subr.mxu0 0.0
    %2291 = vmatpush1.msra.mxu0 0.0
    %2292 = vmatprep.subr.mxu0 0.0
    %2293 = vmatpush1.msra.mxu0 0.0
    %2294 = vmatprep.subr.mxu0 0.0
    %2295 = vmatpush1.msra.mxu0 0.0
    %2296 = vmatprep.subr.mxu0 0.0
    %2297 = vmatpush1.msra.mxu0 0.0
    %2298 = vmatprep.subr.mxu0 0.0
    %2299 = vmatpush1.msra.mxu0 0.0
    %2300 = vmatprep.subr.mxu0 0.0
    %2301 = vmatpush1.msra.mxu0 0.0
    %2302 = vmatprep.subr.mxu0 0.0
    %2303 = vmatpush1.msra.mxu0 0.0
    %2304 = vmatprep.subr.mxu0 0.0
    %2305 = vmatpush1.msra.mxu0 0.0
    %2306 = vmatprep.subr.mxu0 0.0
    %2307 = vmatpush1.msra.mxu0 0.0
    %2308 = vmatprep.subr.mxu0 0.0
    %2309 = vmatpush1.msra.mxu0 0.0
    %2310 = vmatprep.subr.mxu0 0.0
    %2311 = vmatpush1.msra.mxu0 0.0
    %2312 = vmatprep.mubr.f32.mxu0 0.0
    %2313 = vmatmul.mubr.f32.gmra.mrb[0].mxu0 %v2106
    %v2314 = vpop.f32.mrb[0].mxu0
    %v2315 = vadd.f32 %v260, %v2314
    %v2316 = vpop.f32.mrb[0].mxu0
    %2317 = vdwg.mxu0
    %2318 = vmatprep.subr.mxu0 0.0
    %2319 = vmatpush1.msra.mxu0 %v193
    %2320 = vmatprep.subr.mxu0 0.0
    %2321 = vmatpush1.msra.mxu0 %v194
    %2322 = vmatprep.subr.mxu0 0.0
    %2323 = vmatpush1.msra.mxu0 %v195
    %2324 = vmatprep.subr.mxu0 0.0
    %2325 = vmatpush1.msra.mxu0 %v196
    %2326 = vmatprep.subr.mxu0 0.0
    %2327 = vmatpush1.msra.mxu0 0.0
    %2328 = vmatprep.subr.mxu0 0.0
    %2329 = vmatpush1.msra.mxu0 0.0
    %2330 = vmatprep.subr.mxu0 0.0
    %2331 = vmatpush1.msra.mxu0 0.0
    %2332 = vmatprep.subr.mxu0 0.0
    %2333 = vmatpush1.msra.mxu0 0.0
    %2334 = vmatprep.subr.mxu0 0.0
    %2335 = vmatpush1.msra.mxu0 0.0
    %2336 = vmatprep.subr.mxu0 0.0
    %2337 = vmatpush1.msra.mxu0 0.0
    %2338 = vmatprep.subr.mxu0 0.0
    %2339 = vmatpush1.msra.mxu0 0.0
    %2340 = vmatprep.subr.mxu0 0.0
    %2341 = vmatpush1.msra.mxu0 0.0
    %2342 = vmatprep.subr.mxu0 0.0
    %2343 = vmatpush1.msra.mxu0 0.0
    %2344 = vmatprep.subr.mxu0 0.0
    %2345 = vmatpush1.msra.mxu0 0.0
    %2346 = vmatprep.subr.mxu0 0.0
    %2347 = vmatpush1.msra.mxu0 0.0
    %2348 = vmatprep.subr.mxu0 0.0
    %2349 = vmatpush1.msra.mxu0 0.0
    %2350 = vmatprep.subr.mxu0 0.0
    %2351 = vmatpush1.msra.mxu0 0.0
    %2352 = vmatprep.subr.mxu0 0.0
    %2353 = vmatpush1.msra.mxu0 0.0
    %2354 = vmatprep.subr.mxu0 0.0
    %2355 = vmatpush1.msra.mxu0 0.0
    %2356 = vmatprep.subr.mxu0 0.0
    %2357 = vmatpush1.msra.mxu0 0.0
    %2358 = vmatprep.subr.mxu0 0.0
    %2359 = vmatpush1.msra.mxu0 0.0
    %2360 = vmatprep.subr.mxu0 0.0
    %2361 = vmatpush1.msra.mxu0 0.0
    %2362 = vmatprep.subr.mxu0 0.0
    %2363 = vmatpush1.msra.mxu0 0.0
    %2364 = vmatprep.subr.mxu0 0.0
    %2365 = vmatpush1.msra.mxu0 0.0
    %2366 = vmatprep.subr.mxu0 0.0
    %2367 = vmatpush1.msra.mxu0 0.0
    %2368 = vmatprep.subr.mxu0 0.0
    %2369 = vmatpush1.msra.mxu0 0.0
    %2370 = vmatprep.subr.mxu0 0.0
    %2371 = vmatpush1.msra.mxu0 0.0
    %2372 = vmatprep.subr.mxu0 0.0
    %2373 = vmatpush1.msra.mxu0 0.0
    %2374 = vmatprep.subr.mxu0 0.0
    %2375 = vmatpush1.msra.mxu0 0.0
    %2376 = vmatprep.subr.mxu0 0.0
    %2377 = vmatpush1.msra.mxu0 0.0
    %2378 = vmatprep.subr.mxu0 0.0
    %2379 = vmatpush1.msra.mxu0 0.0
    %2380 = vmatprep.subr.mxu0 0.0
    %2381 = vmatpush1.msra.mxu0 0.0
    %2382 = vmatprep.mubr.f32.mxu0 0.0
    %2383 = vmatmul.mubr.f32.gmra.mrb[0].mxu0 %v2106
    %v2384 = vpop.f32.mrb[0].mxu0
    %v2385 = vadd.f32 %v264, %v2384
    %v2386 = vpop.f32.mrb[0].mxu0
    %2387 = vdwg.mxu0
    %2388 = vmatprep.subr.mxu0 0.0
    %2389 = vmatpush1.msra.mxu0 %v197
    %2390 = vmatprep.subr.mxu0 0.0
    %2391 = vmatpush1.msra.mxu0 %v198
    %2392 = vmatprep.subr.mxu0 0.0
    %2393 = vmatpush1.msra.mxu0 %v199
    %2394 = vmatprep.subr.mxu0 0.0
    %2395 = vmatpush1.msra.mxu0 %v200
    %2396 = vmatprep.subr.mxu0 0.0
    %2397 = vmatpush1.msra.mxu0 0.0
    %2398 = vmatprep.subr.mxu0 0.0
    %2399 = vmatpush1.msra.mxu0 0.0
    %2400 = vmatprep.subr.mxu0 0.0
    %2401 = vmatpush1.msra.mxu0 0.0
    %2402 = vmatprep.subr.mxu0 0.0
    %2403 = vmatpush1.msra.mxu0 0.0
    %2404 = vmatprep.subr.mxu0 0.0
    %2405 = vmatpush1.msra.mxu0 0.0
    %2406 = vmatprep.subr.mxu0 0.0
    %2407 = vmatpush1.msra.mxu0 0.0
    %2408 = vmatprep.subr.mxu0 0.0
    %2409 = vmatpush1.msra.mxu0 0.0
    %2410 = vmatprep.subr.mxu0 0.0
    %2411 = vmatpush1.msra.mxu0 0.0
    %2412 = vmatprep.subr.mxu0 0.0
    %2413 = vmatpush1.msra.mxu0 0.0
    %2414 = vmatprep.subr.mxu0 0.0
    %2415 = vmatpush1.msra.mxu0 0.0
    %2416 = vmatprep.subr.mxu0 0.0
    %2417 = vmatpush1.msra.mxu0 0.0
    %2418 = vmatprep.subr.mxu0 0.0
    %2419 = vmatpush1.msra.mxu0 0.0
    %2420 = vmatprep.subr.mxu0 0.0
    %2421 = vmatpush1.msra.mxu0 0.0
    %2422 = vmatprep.subr.mxu0 0.0
    %2423 = vmatpush1.msra.mxu0 0.0
    %2424 = vmatprep.subr.mxu0 0.0
    %2425 = vmatpush1.msra.mxu0 0.0
    %2426 = vmatprep.subr.mxu0 0.0
    %2427 = vmatpush1.msra.mxu0 0.0
    %2428 = vmatprep.subr.mxu0 0.0
    %2429 = vmatpush1.msra.mxu0 0.0
    %2430 = vmatprep.subr.mxu0 0.0
    %2431 = vmatpush1.msra.mxu0 0.0
    %2432 = vmatprep.subr.mxu0 0.0
    %2433 = vmatpush1.msra.mxu0 0.0
    %2434 = vmatprep.subr.mxu0 0.0
    %2435 = vmatpush1.msra.mxu0 0.0
    %2436 = vmatprep.subr.mxu0 0.0
    %2437 = vmatpush1.msra.mxu0 0.0
    %2438 = vmatprep.subr.mxu0 0.0
    %2439 = vmatpush1.msra.mxu0 0.0
    %2440 = vmatprep.subr.mxu0 0.0
    %2441 = vmatpush1.msra.mxu0 0.0
    %2442 = vmatprep.subr.mxu0 0.0
    %2443 = vmatpush1.msra.mxu0 0.0
    %2444 = vmatprep.subr.mxu0 0.0
    %2445 = vmatpush1.msra.mxu0 0.0
    %2446 = vmatprep.subr.mxu0 0.0
    %2447 = vmatpush1.msra.mxu0 0.0
    %2448 = vmatprep.subr.mxu0 0.0
    %2449 = vmatpush1.msra.mxu0 0.0
    %2450 = vmatprep.subr.mxu0 0.0
    %2451 = vmatpush1.msra.mxu0 0.0
    %2452 = vmatprep.mubr.f32.mxu0 0.0
    %2453 = vmatmul.mubr.f32.gmra.mrb[0].mxu0 %v2106
    %v2454 = vpop.f32.mrb[0].mxu0
    %v2455 = vadd.f32 %v560, %v2454
    %v2456 = vpop.f32.mrb[0].mxu0
    %2457 = vdwg.mxu0
    %2458 = vmatprep.subr.mxu0 0.0
    %2459 = vmatpush1.msra.mxu0 %v201
    %2460 = vmatprep.subr.mxu0 0.0
    %2461 = vmatpush1.msra.mxu0 %v202
    %2462 = vmatprep.subr.mxu0 0.0
    %2463 = vmatpush1.msra.mxu0 %v203
    %2464 = vmatprep.subr.mxu0 0.0
    %2465 = vmatpush1.msra.mxu0 %v204
    %2466 = vmatprep.subr.mxu0 0.0
    %2467 = vmatpush1.msra.mxu0 0.0
    %2468 = vmatprep.subr.mxu0 0.0
    %2469 = vmatpush1.msra.mxu0 0.0
    %2470 = vmatprep.subr.mxu0 0.0
    %2471 = vmatpush1.msra.mxu0 0.0
    %2472 = vmatprep.subr.mxu0 0.0
    %2473 = vmatpush1.msra.mxu0 0.0
    %2474 = vmatprep.subr.mxu0 0.0
    %2475 = vmatpush1.msra.mxu0 0.0
    %2476 = vmatprep.subr.mxu0 0.0
    %2477 = vmatpush1.msra.mxu0 0.0
    %2478 = vmatprep.subr.mxu0 0.0
    %2479 = vmatpush1.msra.mxu0 0.0
    %2480 = vmatprep.subr.mxu0 0.0
    %2481 = vmatpush1.msra.mxu0 0.0
    %2482 = vmatprep.subr.mxu0 0.0
    %2483 = vmatpush1.msra.mxu0 0.0
    %2484 = vmatprep.subr.mxu0 0.0
    %2485 = vmatpush1.msra.mxu0 0.0
    %2486 = vmatprep.subr.mxu0 0.0
    %2487 = vmatpush1.msra.mxu0 0.0
    %2488 = vmatprep.subr.mxu0 0.0
    %2489 = vmatpush1.msra.mxu0 0.0
    %2490 = vmatprep.subr.mxu0 0.0
    %2491 = vmatpush1.msra.mxu0 0.0
    %2492 = vmatprep.subr.mxu0 0.0
    %2493 = vmatpush1.msra.mxu0 0.0
    %2494 = vmatprep.subr.mxu0 0.0
    %2495 = vmatpush1.msra.mxu0 0.0
    %2496 = vmatprep.subr.mxu0 0.0
    %2497 = vmatpush1.msra.mxu0 0.0
    %2498 = vmatprep.subr.mxu0 0.0
    %2499 = vmatpush1.msra.mxu0 0.0
    %2500 = vmatprep.subr.mxu0 0.0
    %2501 = vmatpush1.msra.mxu0 0.0
    %2502 = vmatprep.subr.mxu0 0.0
    %2503 = vmatpush1.msra.mxu0 0.0
    %2504 = vmatprep.subr.mxu0 0.0
    %2505 = vmatpush1.msra.mxu0 0.0
    %2506 = vmatprep.subr.mxu0 0.0
    %2507 = vmatpush1.msra.mxu0 0.0
    %2508 = vmatprep.subr.mxu0 0.0
    %2509 = vmatpush1.msra.mxu0 0.0
    %2510 = vmatprep.subr.mxu0 0.0
    %2511 = vmatpush1.msra.mxu0 0.0
    %2512 = vmatprep.subr.mxu0 0.0
    %2513 = vmatpush1.msra.mxu0 0.0
    %2514 = vmatprep.subr.mxu0 0.0
    %2515 = vmatpush1.msra.mxu0 0.0
    %2516 = vmatprep.subr.mxu0 0.0
    %2517 = vmatpush1.msra.mxu0 0.0
    %2518 = vmatprep.subr.mxu0 0.0
    %2519 = vmatpush1.msra.mxu0 0.0
    %2520 = vmatprep.subr.mxu0 0.0
    %2521 = vmatpush1.msra.mxu0 0.0
    %2522 = vmatprep.mubr.f32.mxu0 0.0
    %2523 = vmatmul.mubr.f32.gmra.mrb[0].mxu0 %v2106
    %v2524 = vpop.f32.mrb[0].mxu0
    %v2525 = vadd.f32 %v564, %v2524
    %v2526 = vpop.f32.mrb[0].mxu0
    %2527 = vdwg.mxu0
    %2528 = vmatprep.subr.mxu0 0.0
    %2529 = vmatpush1.msra.mxu0 %v205
    %2530 = vmatprep.subr.mxu0 0.0
    %2531 = vmatpush1.msra.mxu0 %v206
    %2532 = vmatprep.subr.mxu0 0.0
    %2533 = vmatpush1.msra.mxu0 %v207
    %2534 = vmatprep.subr.mxu0 0.0
    %2535 = vmatpush1.msra.mxu0 %v208
    %2536 = vmatprep.subr.mxu0 0.0
    %2537 = vmatpush1.msra.mxu0 0.0
    %2538 = vmatprep.subr.mxu0 0.0
    %2539 = vmatpush1.msra.mxu0 0.0
    %2540 = vmatprep.subr.mxu0 0.0
    %2541 = vmatpush1.msra.mxu0 0.0
    %2542 = vmatprep.subr.mxu0 0.0
    %2543 = vmatpush1.msra.mxu0 0.0
    %2544 = vmatprep.subr.mxu0 0.0
    %2545 = vmatpush1.msra.mxu0 0.0
    %2546 = vmatprep.subr.mxu0 0.0
    %2547 = vmatpush1.msra.mxu0 0.0
    %2548 = vmatprep.subr.mxu0 0.0
    %2549 = vmatpush1.msra.mxu0 0.0
    %2550 = vmatprep.subr.mxu0 0.0
    %2551 = vmatpush1.msra.mxu0 0.0
    %2552 = vmatprep.subr.mxu0 0.0
    %2553 = vmatpush1.msra.mxu0 0.0
    %2554 = vmatprep.subr.mxu0 0.0
    %2555 = vmatpush1.msra.mxu0 0.0
    %2556 = vmatprep.subr.mxu0 0.0
    %2557 = vmatpush1.msra.mxu0 0.0
    %2558 = vmatprep.subr.mxu0 0.0
    %2559 = vmatpush1.msra.mxu0 0.0
    %2560 = vmatprep.subr.mxu0 0.0
    %2561 = vmatpush1.msra.mxu0 0.0
    %2562 = vmatprep.subr.mxu0 0.0
    %2563 = vmatpush1.msra.mxu0 0.0
    %2564 = vmatprep.subr.mxu0 0.0
    %2565 = vmatpush1.msra.mxu0 0.0
    %2566 = vmatprep.subr.mxu0 0.0
    %2567 = vmatpush1.msra.mxu0 0.0
    %2568 = vmatprep.subr.mxu0 0.0
    %2569 = vmatpush1.msra.mxu0 0.0
    %2570 = vmatprep.subr.mxu0 0.0
    %2571 = vmatpush1.msra.mxu0 0.0
    %2572 = vmatprep.subr.mxu0 0.0
    %2573 = vmatpush1.msra.mxu0 0.0
    %2574 = vmatprep.subr.mxu0 0.0
    %2575 = vmatpush1.msra.mxu0 0.0
    %2576 = vmatprep.subr.mxu0 0.0
    %2577 = vmatpush1.msra.mxu0 0.0
    %2578 = vmatprep.subr.mxu0 0.0
    %2579 = vmatpush1.msra.mxu0 0.0
    %2580 = vmatprep.subr.mxu0 0.0
    %2581 = vmatpush1.msra.mxu0 0.0
    %2582 = vmatprep.subr.mxu0 0.0
    %2583 = vmatpush1.msra.mxu0 0.0
    %2584 = vmatprep.subr.mxu0 0.0
    %2585 = vmatpush1.msra.mxu0 0.0
    %2586 = vmatprep.subr.mxu0 0.0
    %2587 = vmatpush1.msra.mxu0 0.0
    %2588 = vmatprep.subr.mxu0 0.0
    %2589 = vmatpush1.msra.mxu0 0.0
    %2590 = vmatprep.subr.mxu0 0.0
    %2591 = vmatpush1.msra.mxu0 0.0
    %2592 = vmatprep.mubr.f32.mxu0 0.0
    %2593 = vmatmul.mubr.f32.gmra.mrb[0].mxu0 %v2106
    %v2594 = vpop.f32.mrb[0].mxu0
    %v2595 = vadd.f32 %v568, %v2594
    %v2596 = vpop.f32.mrb[0].mxu0
    %2597 = vdwg.mxu0
    %2598 = vmatprep.subr.mxu0 0.0
    %2599 = vmatpush1.msra.mxu0 %v209
    %2600 = vmatprep.subr.mxu0 0.0
    %2601 = vmatpush1.msra.mxu0 %v210
    %2602 = vmatprep.subr.mxu0 0.0
    %2603 = vmatpush1.msra.mxu0 %v211
    %2604 = vmatprep.subr.mxu0 0.0
    %2605 = vmatpush1.msra.mxu0 %v212
    %2606 = vmatprep.subr.mxu0 0.0
    %2607 = vmatpush1.msra.mxu0 0.0
    %2608 = vmatprep.subr.mxu0 0.0
    %2609 = vmatpush1.msra.mxu0 0.0
    %2610 = vmatprep.subr.mxu0 0.0
    %2611 = vmatpush1.msra.mxu0 0.0
    %2612 = vmatprep.subr.mxu0 0.0
    %2613 = vmatpush1.msra.mxu0 0.0
    %2614 = vmatprep.subr.mxu0 0.0
    %2615 = vmatpush1.msra.mxu0 0.0
    %2616 = vmatprep.subr.mxu0 0.0
    %2617 = vmatpush1.msra.mxu0 0.0
    %2618 = vmatprep.subr.mxu0 0.0
    %2619 = vmatpush1.msra.mxu0 0.0
    %2620 = vmatprep.subr.mxu0 0.0
    %2621 = vmatpush1.msra.mxu0 0.0
    %2622 = vmatprep.subr.mxu0 0.0
    %2623 = vmatpush1.msra.mxu0 0.0
    %2624 = vmatprep.subr.mxu0 0.0
    %2625 = vmatpush1.msra.mxu0 0.0
    %2626 = vmatprep.subr.mxu0 0.0
    %2627 = vmatpush1.msra.mxu0 0.0
    %2628 = vmatprep.subr.mxu0 0.0
    %2629 = vmatpush1.msra.mxu0 0.0
    %2630 = vmatprep.subr.mxu0 0.0
    %2631 = vmatpush1.msra.mxu0 0.0
    %2632 = vmatprep.subr.mxu0 0.0
    %2633 = vmatpush1.msra.mxu0 0.0
    %2634 = vmatprep.subr.mxu0 0.0
    %2635 = vmatpush1.msra.mxu0 0.0
    %2636 = vmatprep.subr.mxu0 0.0
    %2637 = vmatpush1.msra.mxu0 0.0
    %2638 = vmatprep.subr.mxu0 0.0
    %2639 = vmatpush1.msra.mxu0 0.0
    %2640 = vmatprep.subr.mxu0 0.0
    %2641 = vmatpush1.msra.mxu0 0.0
    %2642 = vmatprep.subr.mxu0 0.0
    %2643 = vmatpush1.msra.mxu0 0.0
    %2644 = vmatprep.subr.mxu0 0.0
    %2645 = vmatpush1.msra.mxu0 0.0
    %2646 = vmatprep.subr.mxu0 0.0
    %2647 = vmatpush1.msra.mxu0 0.0
    %2648 = vmatprep.subr.mxu0 0.0
    %2649 = vmatpush1.msra.mxu0 0.0
    %2650 = vmatprep.subr.mxu0 0.0
    %2651 = vmatpush1.msra.mxu0 0.0
    %2652 = vmatprep.subr.mxu0 0.0
    %2653 = vmatpush1.msra.mxu0 0.0
    %2654 = vmatprep.subr.mxu0 0.0
    %2655 = vmatpush1.msra.mxu0 0.0
    %2656 = vmatprep.subr.mxu0 0.0
    %2657 = vmatpush1.msra.mxu0 0.0
    %2658 = vmatprep.subr.mxu0 0.0
    %2659 = vmatpush1.msra.mxu0 0.0
    %2660 = vmatprep.subr.mxu0 0.0
    %2661 = vmatpush1.msra.mxu0 0.0
    %2662 = vmatprep.mubr.f32.mxu0 0.0
    %2663 = vmatmul.mubr.f32.gmra.mrb[0].mxu0 %v2106
    %v2664 = vpop.f32.mrb[0].mxu0
    %v2665 = vadd.f32 %v572, %v2664
    %v2666 = vpop.f32.mrb[0].mxu0
    %2667 = vdwg.mxu0
    %2668 = vmatprep.subr.mxu0 0.0
    %2669 = vmatpush1.msra.mxu0 %v213
    %2670 = vmatprep.subr.mxu0 0.0
    %2671 = vmatpush1.msra.mxu0 %v214
    %2672 = vmatprep.subr.mxu0 0.0
    %2673 = vmatpush1.msra.mxu0 %v215
    %2674 = vmatprep.subr.mxu0 0.0
    %2675 = vmatpush1.msra.mxu0 %v216
    %2676 = vmatprep.subr.mxu0 0.0
    %2677 = vmatpush1.msra.mxu0 0.0
    %2678 = vmatprep.subr.mxu0 0.0
    %2679 = vmatpush1.msra.mxu0 0.0
    %2680 = vmatprep.subr.mxu0 0.0
    %2681 = vmatpush1.msra.mxu0 0.0
    %2682 = vmatprep.subr.mxu0 0.0
    %2683 = vmatpush1.msra.mxu0 0.0
    %2684 = vmatprep.subr.mxu0 0.0
    %2685 = vmatpush1.msra.mxu0 0.0
    %2686 = vmatprep.subr.mxu0 0.0
    %2687 = vmatpush1.msra.mxu0 0.0
    %2688 = vmatprep.subr.mxu0 0.0
    %2689 = vmatpush1.msra.mxu0 0.0
    %2690 = vmatprep.subr.mxu0 0.0
    %2691 = vmatpush1.msra.mxu0 0.0
    %2692 = vmatprep.subr.mxu0 0.0
    %2693 = vmatpush1.msra.mxu0 0.0
    %2694 = vmatprep.subr.mxu0 0.0
    %2695 = vmatpush1.msra.mxu0 0.0
    %2696 = vmatprep.subr.mxu0 0.0
    %2697 = vmatpush1.msra.mxu0 0.0
    %2698 = vmatprep.subr.mxu0 0.0
    %2699 = vmatpush1.msra.mxu0 0.0
    %2700 = vmatprep.subr.mxu0 0.0
    %2701 = vmatpush1.msra.mxu0 0.0
    %2702 = vmatprep.subr.mxu0 0.0
    %2703 = vmatpush1.msra.mxu0 0.0
    %2704 = vmatprep.subr.mxu0 0.0
    %2705 = vmatpush1.msra.mxu0 0.0
    %2706 = vmatprep.subr.mxu0 0.0
    %2707 = vmatpush1.msra.mxu0 0.0
    %2708 = vmatprep.subr.mxu0 0.0
    %2709 = vmatpush1.msra.mxu0 0.0
    %2710 = vmatprep.subr.mxu0 0.0
    %2711 = vmatpush1.msra.mxu0 0.0
    %2712 = vmatprep.subr.mxu0 0.0
    %2713 = vmatpush1.msra.mxu0 0.0
    %2714 = vmatprep.subr.mxu0 0.0
    %2715 = vmatpush1.msra.mxu0 0.0
    %2716 = vmatprep.subr.mxu0 0.0
    %2717 = vmatpush1.msra.mxu0 0.0
    %2718 = vmatprep.subr.mxu0 0.0
    %2719 = vmatpush1.msra.mxu0 0.0
    %2720 = vmatprep.subr.mxu0 0.0
    %2721 = vmatpush1.msra.mxu0 0.0
    %2722 = vmatprep.subr.mxu0 0.0
    %2723 = vmatpush1.msra.mxu0 0.0
    %2724 = vmatprep.subr.mxu0 0.0
    %2725 = vmatpush1.msra.mxu0 0.0
    %2726 = vmatprep.subr.mxu0 0.0
    %2727 = vmatpush1.msra.mxu0 0.0
    %2728 = vmatprep.subr.mxu0 0.0
    %2729 = vmatpush1.msra.mxu0 0.0
    %2730 = vmatprep.subr.mxu0 0.0
    %2731 = vmatpush1.msra.mxu0 0.0
    %2732 = vmatprep.mubr.f32.mxu0 0.0
    %2733 = vmatmul.mubr.f32.gmra.mrb[0].mxu0 %v2106
    %v2734 = vpop.f32.mrb[0].mxu0
    %v2735 = vadd.f32 %v864, %v2734
    %v2736 = vpop.f32.mrb[0].mxu0
    %2737 = vdwg.mxu0
    %2738 = vmatprep.subr.mxu0 0.0
    %2739 = vmatpush1.msra.mxu0 %v217
    %2740 = vmatprep.subr.mxu0 0.0
    %2741 = vmatpush1.msra.mxu0 %v218
    %2742 = vmatprep.subr.mxu0 0.0
    %2743 = vmatpush1.msra.mxu0 %v219
    %2744 = vmatprep.subr.mxu0 0.0
    %2745 = vmatpush1.msra.mxu0 %v220
    %2746 = vmatprep.subr.mxu0 0.0
    %2747 = vmatpush1.msra.mxu0 0.0
    %2748 = vmatprep.subr.mxu0 0.0
    %2749 = vmatpush1.msra.mxu0 0.0
    %2750 = vmatprep.subr.mxu0 0.0
    %2751 = vmatpush1.msra.mxu0 0.0
    %2752 = vmatprep.subr.mxu0 0.0
    %2753 = vmatpush1.msra.mxu0 0.0
    %2754 = vmatprep.subr.mxu0 0.0
    %2755 = vmatpush1.msra.mxu0 0.0
    %2756 = vmatprep.subr.mxu0 0.0
    %2757 = vmatpush1.msra.mxu0 0.0
    %2758 = vmatprep.subr.mxu0 0.0
    %2759 = vmatpush1.msra.mxu0 0.0
    %2760 = vmatprep.subr.mxu0 0.0
    %2761 = vmatpush1.msra.mxu0 0.0
    %2762 = vmatprep.subr.mxu0 0.0
    %2763 = vmatpush1.msra.mxu0 0.0
    %2764 = vmatprep.subr.mxu0 0.0
    %2765 = vmatpush1.msra.mxu0 0.0
    %2766 = vmatprep.subr.mxu0 0.0
    %2767 = vmatpush1.msra.mxu0 0.0
    %2768 = vmatprep.subr.mxu0 0.0
    %2769 = vmatpush1.msra.mxu0 0.0
    %2770 = vmatprep.subr.mxu0 0.0
    %2771 = vmatpush1.msra.mxu0 0.0
    %2772 = vmatprep.subr.mxu0 0.0
    %2773 = vmatpush1.msra.mxu0 0.0
    %2774 = vmatprep.subr.mxu0 0.0
    %2775 = vmatpush1.msra.mxu0 0.0
    %2776 = vmatprep.subr.mxu0 0.0
    %2777 = vmatpush1.msra.mxu0 0.0
    %2778 = vmatprep.subr.mxu0 0.0
    %2779 = vmatpush1.msra.mxu0 0.0
    %2780 = vmatprep.subr.mxu0 0.0
    %2781 = vmatpush1.msra.mxu0 0.0
    %2782 = vmatprep.subr.mxu0 0.0
    %2783 = vmatpush1.msra.mxu0 0.0
    %2784 = vmatprep.subr.mxu0 0.0
    %2785 = vmatpush1.msra.mxu0 0.0
    %2786 = vmatprep.subr.mxu0 0.0
    %2787 = vmatpush1.msra.mxu0 0.0
    %2788 = vmatprep.subr.mxu0 0.0
    %2789 = vmatpush1.msra.mxu0 0.0
    %2790 = vmatprep.subr.mxu0 0.0
    %2791 = vmatpush1.msra.mxu0 0.0
    %2792 = vmatprep.subr.mxu0 0.0
    %2793 = vmatpush1.msra.mxu0 0.0
    %2794 = vmatprep.subr.mxu0 0.0
    %2795 = vmatpush1.msra.mxu0 0.0
    %2796 = vmatprep.subr.mxu0 0.0
    %2797 = vmatpush1.msra.mxu0 0.0
    %2798 = vmatprep.subr.mxu0 0.0
    %2799 = vmatpush1.msra.mxu0 0.0
    %2800 = vmatprep.subr.mxu0 0.0
    %2801 = vmatpush1.msra.mxu0 0.0
    %2802 = vmatprep.mubr.f32.mxu0 0.0
    %2803 = vmatmul.mubr.f32.gmra.mrb[0].mxu0 %v2106
    %v2804 = vpop.f32.mrb[0].mxu0
    %v2805 = vadd.f32 %v868, %v2804
    %v2806 = vpop.f32.mrb[0].mxu0
    %2807 = vdwg.mxu0
    %2808 = vmatprep.subr.mxu0 0.0
    %2809 = vmatpush1.msra.mxu0 %v221
    %2810 = vmatprep.subr.mxu0 0.0
    %2811 = vmatpush1.msra.mxu0 %v222
    %2812 = vmatprep.subr.mxu0 0.0
    %2813 = vmatpush1.msra.mxu0 %v223
    %2814 = vmatprep.subr.mxu0 0.0
    %2815 = vmatpush1.msra.mxu0 %v224
    %2816 = vmatprep.subr.mxu0 0.0
    %2817 = vmatpush1.msra.mxu0 0.0
    %2818 = vmatprep.subr.mxu0 0.0
    %2819 = vmatpush1.msra.mxu0 0.0
    %2820 = vmatprep.subr.mxu0 0.0
    %2821 = vmatpush1.msra.mxu0 0.0
    %2822 = vmatprep.subr.mxu0 0.0
    %2823 = vmatpush1.msra.mxu0 0.0
    %2824 = vmatprep.subr.mxu0 0.0
    %2825 = vmatpush1.msra.mxu0 0.0
    %2826 = vmatprep.subr.mxu0 0.0
    %2827 = vmatpush1.msra.mxu0 0.0
    %2828 = vmatprep.subr.mxu0 0.0
    %2829 = vmatpush1.msra.mxu0 0.0
    %2830 = vmatprep.subr.mxu0 0.0
    %2831 = vmatpush1.msra.mxu0 0.0
    %2832 = vmatprep.subr.mxu0 0.0
    %2833 = vmatpush1.msra.mxu0 0.0
    %2834 = vmatprep.subr.mxu0 0.0
    %2835 = vmatpush1.msra.mxu0 0.0
    %2836 = vmatprep.subr.mxu0 0.0
    %2837 = vmatpush1.msra.mxu0 0.0
    %2838 = vmatprep.subr.mxu0 0.0
    %2839 = vmatpush1.msra.mxu0 0.0
    %2840 = vmatprep.subr.mxu0 0.0
    %2841 = vmatpush1.msra.mxu0 0.0
    %2842 = vmatprep.subr.mxu0 0.0
    %2843 = vmatpush1.msra.mxu0 0.0
    %2844 = vmatprep.subr.mxu0 0.0
    %2845 = vmatpush1.msra.mxu0 0.0
    %2846 = vmatprep.subr.mxu0 0.0
    %2847 = vmatpush1.msra.mxu0 0.0
    %2848 = vmatprep.subr.mxu0 0.0
    %2849 = vmatpush1.msra.mxu0 0.0
    %2850 = vmatprep.subr.mxu0 0.0
    %2851 = vmatpush1.msra.mxu0 0.0
    %2852 = vmatprep.subr.mxu0 0.0
    %2853 = vmatpush1.msra.mxu0 0.0
    %2854 = vmatprep.subr.mxu0 0.0
    %2855 = vmatpush1.msra.mxu0 0.0
    %2856 = vmatprep.subr.mxu0 0.0
    %2857 = vmatpush1.msra.mxu0 0.0
    %2858 = vmatprep.subr.mxu0 0.0
    %2859 = vmatpush1.msra.mxu0 0.0
    %2860 = vmatprep.subr.mxu0 0.0
    %2861 = vmatpush1.msra.mxu0 0.0
    %2862 = vmatprep.subr.mxu0 0.0
    %2863 = vmatpush1.msra.mxu0 0.0
    %2864 = vmatprep.subr.mxu0 0.0
    %2865 = vmatpush1.msra.mxu0 0.0
    %2866 = vmatprep.subr.mxu0 0.0
    %2867 = vmatpush1.msra.mxu0 0.0
    %2868 = vmatprep.subr.mxu0 0.0
    %2869 = vmatpush1.msra.mxu0 0.0
    %2870 = vmatprep.subr.mxu0 0.0
    %2871 = vmatpush1.msra.mxu0 0.0
    %2872 = vmatprep.mubr.f32.mxu0 0.0
    %2873 = vmatmul.mubr.f32.gmra.mrb[0].mxu0 %v2106
    %v2874 = vpop.f32.mrb[0].mxu0
    %v2875 = vadd.f32 %v872, %v2874
    %v2876 = vpop.f32.mrb[0].mxu0
    %2877 = vdwg.mxu0
    %2878 = vmatprep.subr.mxu0 0.0
    %2879 = vmatpush1.msra.mxu0 %v225
    %2880 = vmatprep.subr.mxu0 0.0
    %2881 = vmatpush1.msra.mxu0 %v226
    %2882 = vmatprep.subr.mxu0 0.0
    %2883 = vmatpush1.msra.mxu0 %v227
    %2884 = vmatprep.subr.mxu0 0.0
    %2885 = vmatpush1.msra.mxu0 %v228
    %2886 = vmatprep.subr.mxu0 0.0
    %2887 = vmatpush1.msra.mxu0 0.0
    %2888 = vmatprep.subr.mxu0 0.0
    %2889 = vmatpush1.msra.mxu0 0.0
    %2890 = vmatprep.subr.mxu0 0.0
    %2891 = vmatpush1.msra.mxu0 0.0
    %2892 = vmatprep.subr.mxu0 0.0
    %2893 = vmatpush1.msra.mxu0 0.0
    %2894 = vmatprep.subr.mxu0 0.0
    %2895 = vmatpush1.msra.mxu0 0.0
    %2896 = vmatprep.subr.mxu0 0.0
    %2897 = vmatpush1.msra.mxu0 0.0
    %2898 = vmatprep.subr.mxu0 0.0
    %2899 = vmatpush1.msra.mxu0 0.0
    %2900 = vmatprep.subr.mxu0 0.0
    %2901 = vmatpush1.msra.mxu0 0.0
    %2902 = vmatprep.subr.mxu0 0.0
    %2903 = vmatpush1.msra.mxu0 0.0
    %2904 = vmatprep.subr.mxu0 0.0
    %2905 = vmatpush1.msra.mxu0 0.0
    %2906 = vmatprep.subr.mxu0 0.0
    %2907 = vmatpush1.msra.mxu0 0.0
    %2908 = vmatprep.subr.mxu0 0.0
    %2909 = vmatpush1.msra.mxu0 0.0
    %2910 = vmatprep.subr.mxu0 0.0
    %2911 = vmatpush1.msra.mxu0 0.0
    %2912 = vmatprep.subr.mxu0 0.0
    %2913 = vmatpush1.msra.mxu0 0.0
    %2914 = vmatprep.subr.mxu0 0.0
    %2915 = vmatpush1.msra.mxu0 0.0
    %2916 = vmatprep.subr.mxu0 0.0
    %2917 = vmatpush1.msra.mxu0 0.0
    %2918 = vmatprep.subr.mxu0 0.0
    %2919 = vmatpush1.msra.mxu0 0.0
    %2920 = vmatprep.subr.mxu0 0.0
    %2921 = vmatpush1.msra.mxu0 0.0
    %2922 = vmatprep.subr.mxu0 0.0
    %2923 = vmatpush1.msra.mxu0 0.0
    %2924 = vmatprep.subr.mxu0 0.0
    %2925 = vmatpush1.msra.mxu0 0.0
    %2926 = vmatprep.subr.mxu0 0.0
    %2927 = vmatpush1.msra.mxu0 0.0
    %2928 = vmatprep.subr.mxu0 0.0
    %2929 = vmatpush1.msra.mxu0 0.0
    %2930 = vmatprep.subr.mxu0 0.0
    %2931 = vmatpush1.msra.mxu0 0.0
    %2932 = vmatprep.subr.mxu0 0.0
    %2933 = vmatpush1.msra.mxu0 0.0
    %2934 = vmatprep.subr.mxu0 0.0
    %2935 = vmatpush1.msra.mxu0 0.0
    %2936 = vmatprep.subr.mxu0 0.0
    %2937 = vmatpush1.msra.mxu0 0.0
    %2938 = vmatprep.subr.mxu0 0.0
    %2939 = vmatpush1.msra.mxu0 0.0
    %2940 = vmatprep.subr.mxu0 0.0
    %2941 = vmatpush1.msra.mxu0 0.0
    %2942 = vmatprep.mubr.f32.mxu0 0.0
    %2943 = vmatmul.mubr.f32.gmra.mrb[0].mxu0 %v2106
    %v2944 = vpop.f32.mrb[0].mxu0
    %v2945 = vadd.f32 %v876, %v2944
    %v2946 = vpop.f32.mrb[0].mxu0
    %2947 = vdwg.mxu0
    %v2948 = vlaneseq
    %v2949 = vshrl.u32 %v2948, 7
    %v2950 = vsub.s32 1, %v2949
    %v2951 = vrot.slane %v180, %v2950
    %v2953 = vsel %vm1165, %v2175, 0
    %v2956 = vsel %vm1165, %v2455, 0
    %2958 = vmatprep.subr.mxu0 0.0
    %2959 = vmatpush1.xpose.msra.mxu0 %v2956
    %2960 = vmatprep.subr.mxu0 0.0
    %2961 = vmatpush1.xpose.msra.mxu0 0.0
    %2962 = vmatprep.subr.mxu0 0.0
    %2963 = vmatpush1.xpose.msra.mxu0 0.0
    %2964 = vmatprep.subr.mxu0 0.0
    %2965 = vmatpush1.xpose.msra.mxu0 0.0
    %2966 = vmatprep.subr.mxu0 0.0
    %2967 = vmatpush1.xpose.msra.mxu0 0.0
    %2968 = vmatprep.subr.mxu0 0.0
    %2969 = vmatpush1.xpose.msra.mxu0 0.0
    %2970 = vmatprep.subr.mxu0 0.0
    %2971 = vmatpush1.xpose.msra.mxu0 0.0
    %2972 = vmatprep.subr.mxu0 0.0
    %2973 = vmatpush1.xpose.msra.mxu0 0.0
    %2974 = vmatprep.subr.mxu0 0.0
    %2975 = vmatpush1.xpose.msra.mxu0 0.0
    %2976 = vmatprep.subr.mxu0 0.0
    %2977 = vmatpush1.xpose.msra.mxu0 0.0
    %2978 = vmatprep.subr.mxu0 0.0
    %2979 = vmatpush1.xpose.msra.mxu0 0.0
    %2980 = vmatprep.subr.mxu0 0.0
    %2981 = vmatpush1.xpose.msra.mxu0 0.0
    %2982 = vmatprep.subr.mxu0 0.0
    %2983 = vmatpush1.xpose.msra.mxu0 0.0
    %2984 = vmatprep.subr.mxu0 0.0
    %2985 = vmatpush1.xpose.msra.mxu0 0.0
    %2986 = vmatprep.subr.mxu0 0.0
    %2987 = vmatpush1.xpose.msra.mxu0 0.0
    %2988 = vmatprep.subr.mxu0 0.0
    %2989 = vmatpush1.xpose.msra.mxu0 0.0
    %2990 = vmatprep.subr.mxu0 0.0
    %2991 = vmatpush1.xpose.msra.mxu0 0.0
    %2992 = vmatprep.subr.mxu0 0.0
    %2993 = vmatpush1.xpose.msra.mxu0 0.0
    %2994 = vmatprep.subr.mxu0 0.0
    %2995 = vmatpush1.xpose.msra.mxu0 0.0
    %2996 = vmatprep.subr.mxu0 0.0
    %2997 = vmatpush1.xpose.msra.mxu0 0.0
    %2998 = vmatprep.subr.mxu0 0.0
    %2999 = vmatpush1.xpose.msra.mxu0 0.0
    %3000 = vmatprep.subr.mxu0 0.0
    %3001 = vmatpush1.xpose.msra.mxu0 0.0
    %3002 = vmatprep.subr.mxu0 0.0
    %3003 = vmatpush1.xpose.msra.mxu0 0.0
    %3004 = vmatprep.subr.mxu0 0.0
    %3005 = vmatpush1.xpose.msra.mxu0 0.0
    %3006 = vmatprep.subr.mxu0 0.0
    %3007 = vmatpush1.xpose.msra.mxu0 0.0
    %3008 = vmatprep.subr.mxu0 0.0
    %3009 = vmatpush1.xpose.msra.mxu0 0.0
    %3010 = vmatprep.subr.mxu0 0.0
    %3011 = vmatpush1.xpose.msra.mxu0 0.0
    %3012 = vmatprep.subr.mxu0 0.0
    %3013 = vmatpush1.xpose.msra.mxu0 0.0
    %3014 = vmatprep.subr.mxu0 0.0
    %3015 = vmatpush1.xpose.msra.mxu0 0.0
    %3016 = vmatprep.subr.mxu0 0.0
    %3017 = vmatpush1.xpose.msra.mxu0 0.0
    %3018 = vmatprep.subr.mxu0 0.0
    %3019 = vmatpush1.xpose.msra.mxu0 0.0
    %3020 = vmatprep.subr.mxu0 0.0
    %3021 = vmatpush1.xpose.msra.mxu0 0.0
    %3022 = vmatprep.mubr.f32.mxu0 0.0
    %3023 = vmatmul.mubr.f32.gmra.mrb[0].mxu0 %v2953
    %v3024 = vpop.f32.mrb[0].mxu0
    %v3025 = vadd.f32 %v2951, %v3024
    %v3026 = vpop.f32.mrb[0].mxu0
    %3027 = vdwg.mxu0
    %v3029 = vsel %vm1165, %v2245, 0
    %v3032 = vsel %vm1165, %v2525, 0
    %3034 = vmatprep.subr.mxu0 0.0
    %3035 = vmatpush1.xpose.msra.mxu0 %v3032
    %3036 = vmatprep.subr.mxu0 0.0
    %3037 = vmatpush1.xpose.msra.mxu0 0.0
    %3038 = vmatprep.subr.mxu0 0.0
    %3039 = vmatpush1.xpose.msra.mxu0 0.0
    %3040 = vmatprep.subr.mxu0 0.0
    %3041 = vmatpush1.xpose.msra.mxu0 0.0
    %3042 = vmatprep.subr.mxu0 0.0
    %3043 = vmatpush1.xpose.msra.mxu0 0.0
    %3044 = vmatprep.subr.mxu0 0.0
    %3045 = vmatpush1.xpose.msra.mxu0 0.0
    %3046 = vmatprep.subr.mxu0 0.0
    %3047 = vmatpush1.xpose.msra.mxu0 0.0
    %3048 = vmatprep.subr.mxu0 0.0
    %3049 = vmatpush1.xpose.msra.mxu0 0.0
    %3050 = vmatprep.subr.mxu0 0.0
    %3051 = vmatpush1.xpose.msra.mxu0 0.0
    %3052 = vmatprep.subr.mxu0 0.0
    %3053 = vmatpush1.xpose.msra.mxu0 0.0
    %3054 = vmatprep.subr.mxu0 0.0
    %3055 = vmatpush1.xpose.msra.mxu0 0.0
    %3056 = vmatprep.subr.mxu0 0.0
    %3057 = vmatpush1.xpose.msra.mxu0 0.0
    %3058 = vmatprep.subr.mxu0 0.0
    %3059 = vmatpush1.xpose.msra.mxu0 0.0
    %3060 = vmatprep.subr.mxu0 0.0
    %3061 = vmatpush1.xpose.msra.mxu0 0.0
    %3062 = vmatprep.subr.mxu0 0.0
    %3063 = vmatpush1.xpose.msra.mxu0 0.0
    %3064 = vmatprep.subr.mxu0 0.0
    %3065 = vmatpush1.xpose.msra.mxu0 0.0
    %3066 = vmatprep.subr.mxu0 0.0
    %3067 = vmatpush1.xpose.msra.mxu0 0.0
    %3068 = vmatprep.subr.mxu0 0.0
    %3069 = vmatpush1.xpose.msra.mxu0 0.0
    %3070 = vmatprep.subr.mxu0 0.0
    %3071 = vmatpush1.xpose.msra.mxu0 0.0
    %3072 = vmatprep.subr.mxu0 0.0
    %3073 = vmatpush1.xpose.msra.mxu0 0.0
    %3074 = vmatprep.subr.mxu0 0.0
    %3075 = vmatpush1.xpose.msra.mxu0 0.0
    %3076 = vmatprep.subr.mxu0 0.0
    %3077 = vmatpush1.xpose.msra.mxu0 0.0
    %3078 = vmatprep.subr.mxu0 0.0
    %3079 = vmatpush1.xpose.msra.mxu0 0.0
    %3080 = vmatprep.subr.mxu0 0.0
    %3081 = vmatpush1.xpose.msra.mxu0 0.0
    %3082 = vmatprep.subr.mxu0 0.0
    %3083 = vmatpush1.xpose.msra.mxu0 0.0
    %3084 = vmatprep.subr.mxu0 0.0
    %3085 = vmatpush1.xpose.msra.mxu0 0.0
    %3086 = vmatprep.subr.mxu0 0.0
    %3087 = vmatpush1.xpose.msra.mxu0 0.0
    %3088 = vmatprep.subr.mxu0 0.0
    %3089 = vmatpush1.xpose.msra.mxu0 0.0
    %3090 = vmatprep.subr.mxu0 0.0
    %3091 = vmatpush1.xpose.msra.mxu0 0.0
    %3092 = vmatprep.subr.mxu0 0.0
    %3093 = vmatpush1.xpose.msra.mxu0 0.0
    %3094 = vmatprep.subr.mxu0 0.0
    %3095 = vmatpush1.xpose.msra.mxu0 0.0
    %3096 = vmatprep.subr.mxu0 0.0
    %3097 = vmatpush1.xpose.msra.mxu0 0.0
    %3098 = vmatprep.mubr.f32.mxu0 0.0
    %3099 = vmatmul.mubr.f32.gmra.mrb[0].mxu0 %v3029
    %v3100 = vpop.f32.mrb[0].mxu0
    %v3101 = vadd.f32 %v2951, %v3100
    %v3102 = vpop.f32.mrb[0].mxu0
    %3103 = vdwg.mxu0
    %v3105 = vsel %vm1165, %v2315, 0
    %v3108 = vsel %vm1165, %v2595, 0
    %3110 = vmatprep.subr.mxu0 0.0
    %3111 = vmatpush1.xpose.msra.mxu0 %v3108
    %3112 = vmatprep.subr.mxu0 0.0
    %3113 = vmatpush1.xpose.msra.mxu0 0.0
    %3114 = vmatprep.subr.mxu0 0.0
    %3115 = vmatpush1.xpose.msra.mxu0 0.0
    %3116 = vmatprep.subr.mxu0 0.0
    %3117 = vmatpush1.xpose.msra.mxu0 0.0
    %3118 = vmatprep.subr.mxu0 0.0
    %3119 = vmatpush1.xpose.msra.mxu0 0.0
    %3120 = vmatprep.subr.mxu0 0.0
    %3121 = vmatpush1.xpose.msra.mxu0 0.0
    %3122 = vmatprep.subr.mxu0 0.0
    %3123 = vmatpush1.xpose.msra.mxu0 0.0
    %3124 = vmatprep.subr.mxu0 0.0
    %3125 = vmatpush1.xpose.msra.mxu0 0.0
    %3126 = vmatprep.subr.mxu0 0.0
    %3127 = vmatpush1.xpose.msra.mxu0 0.0
    %3128 = vmatprep.subr.mxu0 0.0
    %3129 = vmatpush1.xpose.msra.mxu0 0.0
    %3130 = vmatprep.subr.mxu0 0.0
    %3131 = vmatpush1.xpose.msra.mxu0 0.0
    %3132 = vmatprep.subr.mxu0 0.0
    %3133 = vmatpush1.xpose.msra.mxu0 0.0
    %3134 = vmatprep.subr.mxu0 0.0
    %3135 = vmatpush1.xpose.msra.mxu0 0.0
    %3136 = vmatprep.subr.mxu0 0.0
    %3137 = vmatpush1.xpose.msra.mxu0 0.0
    %3138 = vmatprep.subr.mxu0 0.0
    %3139 = vmatpush1.xpose.msra.mxu0 0.0
    %3140 = vmatprep.subr.mxu0 0.0
    %3141 = vmatpush1.xpose.msra.mxu0 0.0
    %3142 = vmatprep.subr.mxu0 0.0
    %3143 = vmatpush1.xpose.msra.mxu0 0.0
    %3144 = vmatprep.subr.mxu0 0.0
    %3145 = vmatpush1.xpose.msra.mxu0 0.0
    %3146 = vmatprep.subr.mxu0 0.0
    %3147 = vmatpush1.xpose.msra.mxu0 0.0
    %3148 = vmatprep.subr.mxu0 0.0
    %3149 = vmatpush1.xpose.msra.mxu0 0.0
    %3150 = vmatprep.subr.mxu0 0.0
    %3151 = vmatpush1.xpose.msra.mxu0 0.0
    %3152 = vmatprep.subr.mxu0 0.0
    %3153 = vmatpush1.xpose.msra.mxu0 0.0
    %3154 = vmatprep.subr.mxu0 0.0
    %3155 = vmatpush1.xpose.msra.mxu0 0.0
    %3156 = vmatprep.subr.mxu0 0.0
    %3157 = vmatpush1.xpose.msra.mxu0 0.0
    %3158 = vmatprep.subr.mxu0 0.0
    %3159 = vmatpush1.xpose.msra.mxu0 0.0
    %3160 = vmatprep.subr.mxu0 0.0
    %3161 = vmatpush1.xpose.msra.mxu0 0.0
    %3162 = vmatprep.subr.mxu0 0.0
    %3163 = vmatpush1.xpose.msra.mxu0 0.0
    %3164 = vmatprep.subr.mxu0 0.0
    %3165 = vmatpush1.xpose.msra.mxu0 0.0
    %3166 = vmatprep.subr.mxu0 0.0
    %3167 = vmatpush1.xpose.msra.mxu0 0.0
    %3168 = vmatprep.subr.mxu0 0.0
    %3169 = vmatpush1.xpose.msra.mxu0 0.0
    %3170 = vmatprep.subr.mxu0 0.0
    %3171 = vmatpush1.xpose.msra.mxu0 0.0
    %3172 = vmatprep.subr.mxu0 0.0
    %3173 = vmatpush1.xpose.msra.mxu0 0.0
    %3174 = vmatprep.mubr.f32.mxu0 0.0
    %3175 = vmatmul.mubr.f32.gmra.mrb[0].mxu0 %v3105
    %v3176 = vpop.f32.mrb[0].mxu0
    %v3177 = vadd.f32 %v2951, %v3176
    %v3178 = vpop.f32.mrb[0].mxu0
    %3179 = vdwg.mxu0
    %v3181 = vsel %vm1165, %v2385, 0
    %v3184 = vsel %vm1165, %v2665, 0
    %3186 = vmatprep.subr.mxu0 0.0
    %3187 = vmatpush1.xpose.msra.mxu0 %v3184
    %3188 = vmatprep.subr.mxu0 0.0
    %3189 = vmatpush1.xpose.msra.mxu0 0.0
    %3190 = vmatprep.subr.mxu0 0.0
    %3191 = vmatpush1.xpose.msra.mxu0 0.0
    %3192 = vmatprep.subr.mxu0 0.0
    %3193 = vmatpush1.xpose.msra.mxu0 0.0
    %3194 = vmatprep.subr.mxu0 0.0
    %3195 = vmatpush1.xpose.msra.mxu0 0.0
    %3196 = vmatprep.subr.mxu0 0.0
    %3197 = vmatpush1.xpose.msra.mxu0 0.0
    %3198 = vmatprep.subr.mxu0 0.0
    %3199 = vmatpush1.xpose.msra.mxu0 0.0
    %3200 = vmatprep.subr.mxu0 0.0
    %3201 = vmatpush1.xpose.msra.mxu0 0.0
    %3202 = vmatprep.subr.mxu0 0.0
    %3203 = vmatpush1.xpose.msra.mxu0 0.0
    %3204 = vmatprep.subr.mxu0 0.0
    %3205 = vmatpush1.xpose.msra.mxu0 0.0
    %3206 = vmatprep.subr.mxu0 0.0
    %3207 = vmatpush1.xpose.msra.mxu0 0.0
    %3208 = vmatprep.subr.mxu0 0.0
    %3209 = vmatpush1.xpose.msra.mxu0 0.0
    %3210 = vmatprep.subr.mxu0 0.0
    %3211 = vmatpush1.xpose.msra.mxu0 0.0
    %3212 = vmatprep.subr.mxu0 0.0
    %3213 = vmatpush1.xpose.msra.mxu0 0.0
    %3214 = vmatprep.subr.mxu0 0.0
    %3215 = vmatpush1.xpose.msra.mxu0 0.0
    %3216 = vmatprep.subr.mxu0 0.0
    %3217 = vmatpush1.xpose.msra.mxu0 0.0
    %3218 = vmatprep.subr.mxu0 0.0
    %3219 = vmatpush1.xpose.msra.mxu0 0.0
    %3220 = vmatprep.subr.mxu0 0.0
    %3221 = vmatpush1.xpose.msra.mxu0 0.0
    %3222 = vmatprep.subr.mxu0 0.0
    %3223 = vmatpush1.xpose.msra.mxu0 0.0
    %3224 = vmatprep.subr.mxu0 0.0
    %3225 = vmatpush1.xpose.msra.mxu0 0.0
    %3226 = vmatprep.subr.mxu0 0.0
    %3227 = vmatpush1.xpose.msra.mxu0 0.0
    %3228 = vmatprep.subr.mxu0 0.0
    %3229 = vmatpush1.xpose.msra.mxu0 0.0
    %3230 = vmatprep.subr.mxu0 0.0
    %3231 = vmatpush1.xpose.msra.mxu0 0.0
    %3232 = vmatprep.subr.mxu0 0.0
    %3233 = vmatpush1.xpose.msra.mxu0 0.0
    %3234 = vmatprep.subr.mxu0 0.0
    %3235 = vmatpush1.xpose.msra.mxu0 0.0
    %3236 = vmatprep.subr.mxu0 0.0
    %3237 = vmatpush1.xpose.msra.mxu0 0.0
    %3238 = vmatprep.subr.mxu0 0.0
    %3239 = vmatpush1.xpose.msra.mxu0 0.0
    %3240 = vmatprep.subr.mxu0 0.0
    %3241 = vmatpush1.xpose.msra.mxu0 0.0
    %3242 = vmatprep.subr.mxu0 0.0
    %3243 = vmatpush1.xpose.msra.mxu0 0.0
    %3244 = vmatprep.subr.mxu0 0.0
    %3245 = vmatpush1.xpose.msra.mxu0 0.0
    %3246 = vmatprep.subr.mxu0 0.0
    %3247 = vmatpush1.xpose.msra.mxu0 0.0
    %3248 = vmatprep.subr.mxu0 0.0
    %3249 = vmatpush1.xpose.msra.mxu0 0.0
    %3250 = vmatprep.mubr.f32.mxu0 0.0
    %3251 = vmatmul.mubr.f32.gmra.mrb[0].mxu0 %v3181
    %v3252 = vpop.f32.mrb[0].mxu0
    %v3253 = vadd.f32 %v2951, %v3252
    %v3254 = vpop.f32.mrb[0].mxu0
    %3255 = vdwg.mxu0
    %v3256 = vsel %vm1165, %v3025, -inf
    %3257 = vmax.xlane.f32.xlu0 %v3256
    %v3258 = vpop.xlane.xlu0 %3257
    %v3259 = vsel %vm1165, %v3101, -inf
    %3260 = vmax.xlane.f32.xlu0 %v3259
    %v3261 = vpop.xlane.xlu0 %3260
    %v3262 = vsel %vm1165, %v3177, -inf
    %3263 = vmax.xlane.f32.xlu0 %v3262
    %v3264 = vpop.xlane.xlu0 %3263
    %v3265 = vsel %vm1165, %v3253, -inf
    %3266 = vmax.xlane.f32.xlu0 %v3265
    %v3267 = vpop.xlane.xlu0 %3266
    %v3268 = vsub.f32 %v3025, %v3258
    %v3269 = vsub.f32 %v3101, %v3261
    %v3270 = vsub.f32 %v3177, %v3264
    %v3271 = vsub.f32 %v3253, %v3267
    %v3272 = vmul.f32 %v3268, 1.442695
    %v3273 = vpow.pop %v3272
    %v3274 = vmul.f32 %v3269, 1.442695
    %v3275 = vpow.pop %v3274
    %v3276 = vmul.f32 %v3270, 1.442695
    %v3277 = vpow.pop %v3276
    %v3278 = vmul.f32 %v3271, 1.442695
    %v3279 = vpow.pop %v3278
    %v3280 = vsel %vm1165, %v3273, 0.0
    %3281 = vadd.xlane.f32.xlu0 %v3280
    %v3282 = vpop.xlane.xlu0 %3281
    %v3283 = vsel %vm1165, %v3275, 0.0
    %3284 = vadd.xlane.f32.xlu0 %v3283
    %v3285 = vpop.xlane.xlu0 %3284
    %v3286 = vsel %vm1165, %v3277, 0.0
    %3287 = vadd.xlane.f32.xlu0 %v3286
    %v3288 = vpop.xlane.xlu0 %3287
    %v3289 = vsel %vm1165, %v3279, 0.0
    %3290 = vadd.xlane.f32.xlu0 %v3289
    %v3291 = vpop.xlane.xlu0 %3290
    %v3292 = vrcp.pop %v3282
    %v3293 = vrcp.pop %v3285
    %v3294 = vrcp.pop %v3288
    %v3295 = vrcp.pop %v3291
    %v3296 = vmul.f32 %v3273, %v3292
    %v3297 = vmul.f32 %v3275, %v3293
    %v3298 = vmul.f32 %v3277, %v3294
    %v3299 = vmul.f32 %v3279, %v3295
    %v3301 = vsel %vm1165, %v3296, 0
    %3303 = vmatprep.subr.mxu0 0.0
    %3304 = vmatpush1.msra.mxu0 %v2735
    %3305 = vmatprep.subr.mxu0 0.0
    %3306 = vmatpush1.msra.mxu0 0.0
    %3307 = vmatprep.subr.mxu0 0.0
    %3308 = vmatpush1.msra.mxu0 0.0
    %3309 = vmatprep.subr.mxu0 0.0
    %3310 = vmatpush1.msra.mxu0 0.0
    %3311 = vmatprep.subr.mxu0 0.0
    %3312 = vmatpush1.msra.mxu0 0.0
    %3313 = vmatprep.subr.mxu0 0.0
    %3314 = vmatpush1.msra.mxu0 0.0
    %3315 = vmatprep.subr.mxu0 0.0
    %3316 = vmatpush1.msra.mxu0 0.0
    %3317 = vmatprep.subr.mxu0 0.0
    %3318 = vmatpush1.msra.mxu0 0.0
    %3319 = vmatprep.subr.mxu0 0.0
    %3320 = vmatpush1.msra.mxu0 0.0
    %3321 = vmatprep.subr.mxu0 0.0
    %3322 = vmatpush1.msra.mxu0 0.0
    %3323 = vmatprep.subr.mxu0 0.0
    %3324 = vmatpush1.msra.mxu0 0.0
    %3325 = vmatprep.subr.mxu0 0.0
    %3326 = vmatpush1.msra.mxu0 0.0
    %3327 = vmatprep.subr.mxu0 0.0
    %3328 = vmatpush1.msra.mxu0 0.0
    %3329 = vmatprep.subr.mxu0 0.0
    %3330 = vmatpush1.msra.mxu0 0.0
    %3331 = vmatprep.subr.mxu0 0.0
    %3332 = vmatpush1.msra.mxu0 0.0
    %3333 = vmatprep.subr.mxu0 0.0
    %3334 = vmatpush1.msra.mxu0 0.0
    %3335 = vmatprep.subr.mxu0 0.0
    %3336 = vmatpush1.msra.mxu0 0.0
    %3337 = vmatprep.subr.mxu0 0.0
    %3338 = vmatpush1.msra.mxu0 0.0
    %3339 = vmatprep.subr.mxu0 0.0
    %3340 = vmatpush1.msra.mxu0 0.0
    %3341 = vmatprep.subr.mxu0 0.0
    %3342 = vmatpush1.msra.mxu0 0.0
    %3343 = vmatprep.subr.mxu0 0.0
    %3344 = vmatpush1.msra.mxu0 0.0
    %3345 = vmatprep.subr.mxu0 0.0
    %3346 = vmatpush1.msra.mxu0 0.0
    %3347 = vmatprep.subr.mxu0 0.0
    %3348 = vmatpush1.msra.mxu0 0.0
    %3349 = vmatprep.subr.mxu0 0.0
    %3350 = vmatpush1.msra.mxu0 0.0
    %3351 = vmatprep.subr.mxu0 0.0
    %3352 = vmatpush1.msra.mxu0 0.0
    %3353 = vmatprep.subr.mxu0 0.0
    %3354 = vmatpush1.msra.mxu0 0.0
    %3355 = vmatprep.subr.mxu0 0.0
    %3356 = vmatpush1.msra.mxu0 0.0
    %3357 = vmatprep.subr.mxu0 0.0
    %3358 = vmatpush1.msra.mxu0 0.0
    %3359 = vmatprep.subr.mxu0 0.0
    %3360 = vmatpush1.msra.mxu0 0.0
    %3361 = vmatprep.subr.mxu0 0.0
    %3362 = vmatpush1.msra.mxu0 0.0
    %3363 = vmatprep.subr.mxu0 0.0
    %3364 = vmatpush1.msra.mxu0 0.0
    %3365 = vmatprep.subr.mxu0 0.0
    %3366 = vmatpush1.msra.mxu0 0.0
    %3367 = vmatprep.mubr.f32.mxu0 0.0
    %3368 = vmatmul.mubr.f32.gmra.mrb[0].mxu0 %v3301
    %v3369 = vpop.f32.mrb[0].mxu0
    %v3370 = vadd.f32 0.0, %v3369
    %v3371 = vpop.f32.mrb[0].mxu0
    %3372 = vdwg.mxu0
    %v3374 = vsel %vm1165, %v3297, 0
    %3376 = vmatprep.subr.mxu0 0.0
    %3377 = vmatpush1.msra.mxu0 %v2805
    %3378 = vmatprep.subr.mxu0 0.0
    %3379 = vmatpush1.msra.mxu0 0.0
    %3380 = vmatprep.subr.mxu0 0.0
    %3381 = vmatpush1.msra.mxu0 0.0
    %3382 = vmatprep.subr.mxu0 0.0
    %3383 = vmatpush1.msra.mxu0 0.0
    %3384 = vmatprep.subr.mxu0 0.0
    %3385 = vmatpush1.msra.mxu0 0.0
    %3386 = vmatprep.subr.mxu0 0.0
    %3387 = vmatpush1.msra.mxu0 0.0
    %3388 = vmatprep.subr.mxu0 0.0
    %3389 = vmatpush1.msra.mxu0 0.0
    %3390 = vmatprep.subr.mxu0 0.0
    %3391 = vmatpush1.msra.mxu0 0.0
    %3392 = vmatprep.subr.mxu0 0.0
    %3393 = vmatpush1.msra.mxu0 0.0
    %3394 = vmatprep.subr.mxu0 0.0
    %3395 = vmatpush1.msra.mxu0 0.0
    %3396 = vmatprep.subr.mxu0 0.0
    %3397 = vmatpush1.msra.mxu0 0.0
    %3398 = vmatprep.subr.mxu0 0.0
    %3399 = vmatpush1.msra.mxu0 0.0
    %3400 = vmatprep.subr.mxu0 0.0
    %3401 = vmatpush1.msra.mxu0 0.0
    %3402 = vmatprep.subr.mxu0 0.0
    %3403 = vmatpush1.msra.mxu0 0.0
    %3404 = vmatprep.subr.mxu0 0.0
    %3405 = vmatpush1.msra.mxu0 0.0
    %3406 = vmatprep.subr.mxu0 0.0
    %3407 = vmatpush1.msra.mxu0 0.0
    %3408 = vmatprep.subr.mxu0 0.0
    %3409 = vmatpush1.msra.mxu0 0.0
    %3410 = vmatprep.subr.mxu0 0.0
    %3411 = vmatpush1.msra.mxu0 0.0
    %3412 = vmatprep.subr.mxu0 0.0
    %3413 = vmatpush1.msra.mxu0 0.0
    %3414 = vmatprep.subr.mxu0 0.0
    %3415 = vmatpush1.msra.mxu0 0.0
    %3416 = vmatprep.subr.mxu0 0.0
    %3417 = vmatpush1.msra.mxu0 0.0
    %3418 = vmatprep.subr.mxu0 0.0
    %3419 = vmatpush1.msra.mxu0 0.0
    %3420 = vmatprep.subr.mxu0 0.0
    %3421 = vmatpush1.msra.mxu0 0.0
    %3422 = vmatprep.subr.mxu0 0.0
    %3423 = vmatpush1.msra.mxu0 0.0
    %3424 = vmatprep.subr.mxu0 0.0
    %3425 = vmatpush1.msra.mxu0 0.0
    %3426 = vmatprep.subr.mxu0 0.0
    %3427 = vmatpush1.msra.mxu0 0.0
    %3428 = vmatprep.subr.mxu0 0.0
    %3429 = vmatpush1.msra.mxu0 0.0
    %3430 = vmatprep.subr.mxu0 0.0
    %3431 = vmatpush1.msra.mxu0 0.0
    %3432 = vmatprep.subr.mxu0 0.0
    %3433 = vmatpush1.msra.mxu0 0.0
    %3434 = vmatprep.subr.mxu0 0.0
    %3435 = vmatpush1.msra.mxu0 0.0
    %3436 = vmatprep.subr.mxu0 0.0
    %3437 = vmatpush1.msra.mxu0 0.0
    %3438 = vmatprep.subr.mxu0 0.0
    %3439 = vmatpush1.msra.mxu0 0.0
    %3440 = vmatprep.mubr.f32.mxu0 0.0
    %3441 = vmatmul.mubr.f32.gmra.mrb[0].mxu0 %v3374
    %v3442 = vpop.f32.mrb[0].mxu0
    %v3443 = vadd.f32 0.0, %v3442
    %v3444 = vpop.f32.mrb[0].mxu0
    %3445 = vdwg.mxu0
    %v3447 = vsel %vm1165, %v3298, 0
    %3449 = vmatprep.subr.mxu0 0.0
    %3450 = vmatpush1.msra.mxu0 %v2875
    %3451 = vmatprep.subr.mxu0 0.0
    %3452 = vmatpush1.msra.mxu0 0.0
    %3453 = vmatprep.subr.mxu0 0.0
    %3454 = vmatpush1.msra.mxu0 0.0
    %3455 = vmatprep.subr.mxu0 0.0
    %3456 = vmatpush1.msra.mxu0 0.0
    %3457 = vmatprep.subr.mxu0 0.0
    %3458 = vmatpush1.msra.mxu0 0.0
    %3459 = vmatprep.subr.mxu0 0.0
    %3460 = vmatpush1.msra.mxu0 0.0
    %3461 = vmatprep.subr.mxu0 0.0
    %3462 = vmatpush1.msra.mxu0 0.0
    %3463 = vmatprep.subr.mxu0 0.0
    %3464 = vmatpush1.msra.mxu0 0.0
    %3465 = vmatprep.subr.mxu0 0.0
    %3466 = vmatpush1.msra.mxu0 0.0
    %3467 = vmatprep.subr.mxu0 0.0
    %3468 = vmatpush1.msra.mxu0 0.0
    %3469 = vmatprep.subr.mxu0 0.0
    %3470 = vmatpush1.msra.mxu0 0.0
    %3471 = vmatprep.subr.mxu0 0.0
    %3472 = vmatpush1.msra.mxu0 0.0
    %3473 = vmatprep.subr.mxu0 0.0
    %3474 = vmatpush1.msra.mxu0 0.0
    %3475 = vmatprep.subr.mxu0 0.0
    %3476 = vmatpush1.msra.mxu0 0.0
    %3477 = vmatprep.subr.mxu0 0.0
    %3478 = vmatpush1.msra.mxu0 0.0
    %3479 = vmatprep.subr.mxu0 0.0
    %3480 = vmatpush1.msra.mxu0 0.0
    %3481 = vmatprep.subr.mxu0 0.0
    %3482 = vmatpush1.msra.mxu0 0.0
    %3483 = vmatprep.subr.mxu0 0.0
    %3484 = vmatpush1.msra.mxu0 0.0
    %3485 = vmatprep.subr.mxu0 0.0
    %3486 = vmatpush1.msra.mxu0 0.0
    %3487 = vmatprep.subr.mxu0 0.0
    %3488 = vmatpush1.msra.mxu0 0.0
    %3489 = vmatprep.subr.mxu0 0.0
    %3490 = vmatpush1.msra.mxu0 0.0
    %3491 = vmatprep.subr.mxu0 0.0
    %3492 = vmatpush1.msra.mxu0 0.0
    %3493 = vmatprep.subr.mxu0 0.0
    %3494 = vmatpush1.msra.mxu0 0.0
    %3495 = vmatprep.subr.mxu0 0.0
    %3496 = vmatpush1.msra.mxu0 0.0
    %3497 = vmatprep.subr.mxu0 0.0
    %3498 = vmatpush1.msra.mxu0 0.0
    %3499 = vmatprep.subr.mxu0 0.0
    %3500 = vmatpush1.msra.mxu0 0.0
    %3501 = vmatprep.subr.mxu0 0.0
    %3502 = vmatpush1.msra.mxu0 0.0
    %3503 = vmatprep.subr.mxu0 0.0
    %3504 = vmatpush1.msra.mxu0 0.0
    %3505 = vmatprep.subr.mxu0 0.0
    %3506 = vmatpush1.msra.mxu0 0.0
    %3507 = vmatprep.subr.mxu0 0.0
    %3508 = vmatpush1.msra.mxu0 0.0
    %3509 = vmatprep.subr.mxu0 0.0
    %3510 = vmatpush1.msra.mxu0 0.0
    %3511 = vmatprep.subr.mxu0 0.0
    %3512 = vmatpush1.msra.mxu0 0.0
    %3513 = vmatprep.mubr.f32.mxu0 0.0
    %3514 = vmatmul.mubr.f32.gmra.mrb[0].mxu0 %v3447
    %v3515 = vpop.f32.mrb[0].mxu0
    %v3516 = vadd.f32 0.0, %v3515
    %v3517 = vpop.f32.mrb[0].mxu0
    %3518 = vdwg.mxu0
    %v3520 = vsel %vm1165, %v3299, 0
    %3522 = vmatprep.subr.mxu0 0.0
    %3523 = vmatpush1.msra.mxu0 %v2945
    %3524 = vmatprep.subr.mxu0 0.0
    %3525 = vmatpush1.msra.mxu0 0.0
    %3526 = vmatprep.subr.mxu0 0.0
    %3527 = vmatpush1.msra.mxu0 0.0
    %3528 = vmatprep.subr.mxu0 0.0
    %3529 = vmatpush1.msra.mxu0 0.0
    %3530 = vmatprep.subr.mxu0 0.0
    %3531 = vmatpush1.msra.mxu0 0.0
    %3532 = vmatprep.subr.mxu0 0.0
    %3533 = vmatpush1.msra.mxu0 0.0
    %3534 = vmatprep.subr.mxu0 0.0
    %3535 = vmatpush1.msra.mxu0 0.0
    %3536 = vmatprep.subr.mxu0 0.0
    %3537 = vmatpush1.msra.mxu0 0.0
    %3538 = vmatprep.subr.mxu0 0.0
    %3539 = vmatpush1.msra.mxu0 0.0
    %3540 = vmatprep.subr.mxu0 0.0
    %3541 = vmatpush1.msra.mxu0 0.0
    %3542 = vmatprep.subr.mxu0 0.0
    %3543 = vmatpush1.msra.mxu0 0.0
    %3544 = vmatprep.subr.mxu0 0.0
    %3545 = vmatpush1.msra.mxu0 0.0
    %3546 = vmatprep.subr.mxu0 0.0
    %3547 = vmatpush1.msra.mxu0 0.0
    %3548 = vmatprep.subr.mxu0 0.0
    %3549 = vmatpush1.msra.mxu0 0.0
    %3550 = vmatprep.subr.mxu0 0.0
    %3551 = vmatpush1.msra.mxu0 0.0
    %3552 = vmatprep.subr.mxu0 0.0
    %3553 = vmatpush1.msra.mxu0 0.0
    %3554 = vmatprep.subr.mxu0 0.0
    %3555 = vmatpush1.msra.mxu0 0.0
    %3556 = vmatprep.subr.mxu0 0.0
    %3557 = vmatpush1.msra.mxu0 0.0
    %3558 = vmatprep.subr.mxu0 0.0
    %3559 = vmatpush1.msra.mxu0 0.0
    %3560 = vmatprep.subr.mxu0 0.0
    %3561 = vmatpush1.msra.mxu0 0.0
    %3562 = vmatprep.subr.mxu0 0.0
    %3563 = vmatpush1.msra.mxu0 0.0
    %3564 = vmatprep.subr.mxu0 0.0
    %3565 = vmatpush1.msra.mxu0 0.0
    %3566 = vmatprep.subr.mxu0 0.0
    %3567 = vmatpush1.msra.mxu0 0.0
    %3568 = vmatprep.subr.mxu0 0.0
    %3569 = vmatpush1.msra.mxu0 0.0
    %3570 = vmatprep.subr.mxu0 0.0
    %3571 = vmatpush1.msra.mxu0 0.0
    %3572 = vmatprep.subr.mxu0 0.0
    %3573 = vmatpush1.msra.mxu0 0.0
    %3574 = vmatprep.subr.mxu0 0.0
    %3575 = vmatpush1.msra.mxu0 0.0
    %3576 = vmatprep.subr.mxu0 0.0
    %3577 = vmatpush1.msra.mxu0 0.0
    %3578 = vmatprep.subr.mxu0 0.0
    %3579 = vmatpush1.msra.mxu0 0.0
    %3580 = vmatprep.subr.mxu0 0.0
    %3581 = vmatpush1.msra.mxu0 0.0
    %3582 = vmatprep.subr.mxu0 0.0
    %3583 = vmatpush1.msra.mxu0 0.0
    %3584 = vmatprep.subr.mxu0 0.0
    %3585 = vmatpush1.msra.mxu0 0.0
    %3586 = vmatprep.mubr.f32.mxu0 0.0
    %3587 = vmatmul.mubr.f32.gmra.mrb[0].mxu0 %v3520
    %v3588 = vpop.f32.mrb[0].mxu0
    %v3589 = vadd.f32 0.0, %v3588
    %v3590 = vpop.f32.mrb[0].mxu0
    %3591 = vdwg.mxu0
    %v3593 = vsel %vm1165, %v3370, 0
    %3595 = vmatprep.subr.mxu0 0.0
    %3596 = vmatpush1.msra.mxu0 %v241
    %3597 = vmatprep.subr.mxu0 0.0
    %3598 = vmatpush1.msra.mxu0 0.0
    %3599 = vmatprep.subr.mxu0 0.0
    %3600 = vmatpush1.msra.mxu0 0.0
    %3601 = vmatprep.subr.mxu0 0.0
    %3602 = vmatpush1.msra.mxu0 0.0
    %3603 = vmatprep.subr.mxu0 0.0
    %3604 = vmatpush1.msra.mxu0 0.0
    %3605 = vmatprep.subr.mxu0 0.0
    %3606 = vmatpush1.msra.mxu0 0.0
    %3607 = vmatprep.subr.mxu0 0.0
    %3608 = vmatpush1.msra.mxu0 0.0
    %3609 = vmatprep.subr.mxu0 0.0
    %3610 = vmatpush1.msra.mxu0 0.0
    %3611 = vmatprep.subr.mxu0 0.0
    %3612 = vmatpush1.msra.mxu0 0.0
    %3613 = vmatprep.subr.mxu0 0.0
    %3614 = vmatpush1.msra.mxu0 0.0
    %3615 = vmatprep.subr.mxu0 0.0
    %3616 = vmatpush1.msra.mxu0 0.0
    %3617 = vmatprep.subr.mxu0 0.0
    %3618 = vmatpush1.msra.mxu0 0.0
    %3619 = vmatprep.subr.mxu0 0.0
    %3620 = vmatpush1.msra.mxu0 0.0
    %3621 = vmatprep.subr.mxu0 0.0
    %3622 = vmatpush1.msra.mxu0 0.0
    %3623 = vmatprep.subr.mxu0 0.0
    %3624 = vmatpush1.msra.mxu0 0.0
    %3625 = vmatprep.subr.mxu0 0.0
    %3626 = vmatpush1.msra.mxu0 0.0
    %3627 = vmatprep.subr.mxu0 0.0
    %3628 = vmatpush1.msra.mxu0 0.0
    %3629 = vmatprep.subr.mxu0 0.0
    %3630 = vmatpush1.msra.mxu0 0.0
    %3631 = vmatprep.subr.mxu0 0.0
    %3632 = vmatpush1.msra.mxu0 0.0
    %3633 = vmatprep.subr.mxu0 0.0
    %3634 = vmatpush1.msra.mxu0 0.0
    %3635 = vmatprep.subr.mxu0 0.0
    %3636 = vmatpush1.msra.mxu0 0.0
    %3637 = vmatprep.subr.mxu0 0.0
    %3638 = vmatpush1.msra.mxu0 0.0
    %3639 = vmatprep.subr.mxu0 0.0
    %3640 = vmatpush1.msra.mxu0 0.0
    %3641 = vmatprep.subr.mxu0 0.0
    %3642 = vmatpush1.msra.mxu0 0.0
    %3643 = vmatprep.subr.mxu0 0.0
    %3644 = vmatpush1.msra.mxu0 0.0
    %3645 = vmatprep.subr.mxu0 0.0
    %3646 = vmatpush1.msra.mxu0 0.0
    %3647 = vmatprep.subr.mxu0 0.0
    %3648 = vmatpush1.msra.mxu0 0.0
    %3649 = vmatprep.subr.mxu0 0.0
    %3650 = vmatpush1.msra.mxu0 0.0
    %3651 = vmatprep.subr.mxu0 0.0
    %3652 = vmatpush1.msra.mxu0 0.0
    %3653 = vmatprep.subr.mxu0 0.0
    %3654 = vmatpush1.msra.mxu0 0.0
    %3655 = vmatprep.subr.mxu0 0.0
    %3656 = vmatpush1.msra.mxu0 0.0
    %3657 = vmatprep.subr.mxu0 0.0
    %3658 = vmatpush1.msra.mxu0 0.0
    %3659 = vmatprep.mubr.f32.mxu0 0.0
    %3660 = vmatmul.mubr.f32.gmra.mrb[0].mxu0 %v3593
    %v3661 = vpop.f32.mrb[0].mxu0
    %v3662 = vadd.f32 0.0, %v3661
    %v3663 = vpop.f32.mrb[0].mxu0
    %3664 = vdwg.mxu0
    %v3666 = vsel %vm1165, %v3443, 0
    %3668 = vmatprep.subr.mxu0 0.0
    %3669 = vmatpush1.msra.mxu0 %v242
    %3670 = vmatprep.subr.mxu0 0.0
    %3671 = vmatpush1.msra.mxu0 0.0
    %3672 = vmatprep.subr.mxu0 0.0
    %3673 = vmatpush1.msra.mxu0 0.0
    %3674 = vmatprep.subr.mxu0 0.0
    %3675 = vmatpush1.msra.mxu0 0.0
    %3676 = vmatprep.subr.mxu0 0.0
    %3677 = vmatpush1.msra.mxu0 0.0
    %3678 = vmatprep.subr.mxu0 0.0
    %3679 = vmatpush1.msra.mxu0 0.0
    %3680 = vmatprep.subr.mxu0 0.0
    %3681 = vmatpush1.msra.mxu0 0.0
    %3682 = vmatprep.subr.mxu0 0.0
    %3683 = vmatpush1.msra.mxu0 0.0
    %3684 = vmatprep.subr.mxu0 0.0
    %3685 = vmatpush1.msra.mxu0 0.0
    %3686 = vmatprep.subr.mxu0 0.0
    %3687 = vmatpush1.msra.mxu0 0.0
    %3688 = vmatprep.subr.mxu0 0.0
    %3689 = vmatpush1.msra.mxu0 0.0
    %3690 = vmatprep.subr.mxu0 0.0
    %3691 = vmatpush1.msra.mxu0 0.0
    %3692 = vmatprep.subr.mxu0 0.0
    %3693 = vmatpush1.msra.mxu0 0.0
    %3694 = vmatprep.subr.mxu0 0.0
    %3695 = vmatpush1.msra.mxu0 0.0
    %3696 = vmatprep.subr.mxu0 0.0
    %3697 = vmatpush1.msra.mxu0 0.0
    %3698 = vmatprep.subr.mxu0 0.0
    %3699 = vmatpush1.msra.mxu0 0.0
    %3700 = vmatprep.subr.mxu0 0.0
    %3701 = vmatpush1.msra.mxu0 0.0
    %3702 = vmatprep.subr.mxu0 0.0
    %3703 = vmatpush1.msra.mxu0 0.0
    %3704 = vmatprep.subr.mxu0 0.0
    %3705 = vmatpush1.msra.mxu0 0.0
    %3706 = vmatprep.subr.mxu0 0.0
    %3707 = vmatpush1.msra.mxu0 0.0
    %3708 = vmatprep.subr.mxu0 0.0
    %3709 = vmatpush1.msra.mxu0 0.0
    %3710 = vmatprep.subr.mxu0 0.0
    %3711 = vmatpush1.msra.mxu0 0.0
    %3712 = vmatprep.subr.mxu0 0.0
    %3713 = vmatpush1.msra.mxu0 0.0
    %3714 = vmatprep.subr.mxu0 0.0
    %3715 = vmatpush1.msra.mxu0 0.0
    %3716 = vmatprep.subr.mxu0 0.0
    %3717 = vmatpush1.msra.mxu0 0.0
    %3718 = vmatprep.subr.mxu0 0.0
    %3719 = vmatpush1.msra.mxu0 0.0
    %3720 = vmatprep.subr.mxu0 0.0
    %3721 = vmatpush1.msra.mxu0 0.0
    %3722 = vmatprep.subr.mxu0 0.0
    %3723 = vmatpush1.msra.mxu0 0.0
    %3724 = vmatprep.subr.mxu0 0.0
    %3725 = vmatpush1.msra.mxu0 0.0
    %3726 = vmatprep.subr.mxu0 0.0
    %3727 = vmatpush1.msra.mxu0 0.0
    %3728 = vmatprep.subr.mxu0 0.0
    %3729 = vmatpush1.msra.mxu0 0.0
    %3730 = vmatprep.subr.mxu0 0.0
    %3731 = vmatpush1.msra.mxu0 0.0
    %3732 = vmatprep.mubr.f32.mxu0 0.0
    %3733 = vmatmul.mubr.f32.gmra.mrb[0].mxu0 %v3666
    %v3734 = vpop.f32.mrb[0].mxu0
    %v3735 = vadd.f32 0.0, %v3734
    %v3736 = vpop.f32.mrb[0].mxu0
    %3737 = vdwg.mxu0
    %v3739 = vsel %vm1165, %v3516, 0
    %3741 = vmatprep.subr.mxu0 0.0
    %3742 = vmatpush1.msra.mxu0 %v243
    %3743 = vmatprep.subr.mxu0 0.0
    %3744 = vmatpush1.msra.mxu0 0.0
    %3745 = vmatprep.subr.mxu0 0.0
    %3746 = vmatpush1.msra.mxu0 0.0
    %3747 = vmatprep.subr.mxu0 0.0
    %3748 = vmatpush1.msra.mxu0 0.0
    %3749 = vmatprep.subr.mxu0 0.0
    %3750 = vmatpush1.msra.mxu0 0.0
    %3751 = vmatprep.subr.mxu0 0.0
    %3752 = vmatpush1.msra.mxu0 0.0
    %3753 = vmatprep.subr.mxu0 0.0
    %3754 = vmatpush1.msra.mxu0 0.0
    %3755 = vmatprep.subr.mxu0 0.0
    %3756 = vmatpush1.msra.mxu0 0.0
    %3757 = vmatprep.subr.mxu0 0.0
    %3758 = vmatpush1.msra.mxu0 0.0
    %3759 = vmatprep.subr.mxu0 0.0
    %3760 = vmatpush1.msra.mxu0 0.0
    %3761 = vmatprep.subr.mxu0 0.0
    %3762 = vmatpush1.msra.mxu0 0.0
    %3763 = vmatprep.subr.mxu0 0.0
    %3764 = vmatpush1.msra.mxu0 0.0
    %3765 = vmatprep.subr.mxu0 0.0
    %3766 = vmatpush1.msra.mxu0 0.0
    %3767 = vmatprep.subr.mxu0 0.0
    %3768 = vmatpush1.msra.mxu0 0.0
    %3769 = vmatprep.subr.mxu0 0.0
    %3770 = vmatpush1.msra.mxu0 0.0
    %3771 = vmatprep.subr.mxu0 0.0
    %3772 = vmatpush1.msra.mxu0 0.0
    %3773 = vmatprep.subr.mxu0 0.0
    %3774 = vmatpush1.msra.mxu0 0.0
    %3775 = vmatprep.subr.mxu0 0.0
    %3776 = vmatpush1.msra.mxu0 0.0
    %3777 = vmatprep.subr.mxu0 0.0
    %3778 = vmatpush1.msra.mxu0 0.0
    %3779 = vmatprep.subr.mxu0 0.0
    %3780 = vmatpush1.msra.mxu0 0.0
    %3781 = vmatprep.subr.mxu0 0.0
    %3782 = vmatpush1.msra.mxu0 0.0
    %3783 = vmatprep.subr.mxu0 0.0
    %3784 = vmatpush1.msra.mxu0 0.0
    %3785 = vmatprep.subr.mxu0 0.0
    %3786 = vmatpush1.msra.mxu0 0.0
    %3787 = vmatprep.subr.mxu0 0.0
    %3788 = vmatpush1.msra.mxu0 0.0
    %3789 = vmatprep.subr.mxu0 0.0
    %3790 = vmatpush1.msra.mxu0 0.0
    %3791 = vmatprep.subr.mxu0 0.0
    %3792 = vmatpush1.msra.mxu0 0.0
    %3793 = vmatprep.subr.mxu0 0.0
    %3794 = vmatpush1.msra.mxu0 0.0
    %3795 = vmatprep.subr.mxu0 0.0
    %3796 = vmatpush1.msra.mxu0 0.0
    %3797 = vmatprep.subr.mxu0 0.0
    %3798 = vmatpush1.msra.mxu0 0.0
    %3799 = vmatprep.subr.mxu0 0.0
    %3800 = vmatpush1.msra.mxu0 0.0
    %3801 = vmatprep.subr.mxu0 0.0
    %3802 = vmatpush1.msra.mxu0 0.0
    %3803 = vmatprep.subr.mxu0 0.0
    %3804 = vmatpush1.msra.mxu0 0.0
    %3805 = vmatprep.mubr.f32.mxu0 0.0
    %3806 = vmatmul.mubr.f32.gmra.mrb[0].mxu0 %v3739
    %v3807 = vpop.f32.mrb[0].mxu0
    %v3808 = vadd.f32 0.0, %v3807
    %v3809 = vpop.f32.mrb[0].mxu0
    %3810 = vdwg.mxu0
    %v3812 = vsel %vm1165, %v3589, 0
    %3814 = vmatprep.subr.mxu0 0.0
    %3815 = vmatpush1.msra.mxu0 %v244
    %3816 = vmatprep.subr.mxu0 0.0
    %3817 = vmatpush1.msra.mxu0 0.0
    %3818 = vmatprep.subr.mxu0 0.0
    %3819 = vmatpush1.msra.mxu0 0.0
    %3820 = vmatprep.subr.mxu0 0.0
    %3821 = vmatpush1.msra.mxu0 0.0
    %3822 = vmatprep.subr.mxu0 0.0
    %3823 = vmatpush1.msra.mxu0 0.0
    %3824 = vmatprep.subr.mxu0 0.0
    %3825 = vmatpush1.msra.mxu0 0.0
    %3826 = vmatprep.subr.mxu0 0.0
    %3827 = vmatpush1.msra.mxu0 0.0
    %3828 = vmatprep.subr.mxu0 0.0
    %3829 = vmatpush1.msra.mxu0 0.0
    %3830 = vmatprep.subr.mxu0 0.0
    %3831 = vmatpush1.msra.mxu0 0.0
    %3832 = vmatprep.subr.mxu0 0.0
    %3833 = vmatpush1.msra.mxu0 0.0
    %3834 = vmatprep.subr.mxu0 0.0
    %3835 = vmatpush1.msra.mxu0 0.0
    %3836 = vmatprep.subr.mxu0 0.0
    %3837 = vmatpush1.msra.mxu0 0.0
    %3838 = vmatprep.subr.mxu0 0.0
    %3839 = vmatpush1.msra.mxu0 0.0
    %3840 = vmatprep.subr.mxu0 0.0
    %3841 = vmatpush1.msra.mxu0 0.0
    %3842 = vmatprep.subr.mxu0 0.0
    %3843 = vmatpush1.msra.mxu0 0.0
    %3844 = vmatprep.subr.mxu0 0.0
    %3845 = vmatpush1.msra.mxu0 0.0
    %3846 = vmatprep.subr.mxu0 0.0
    %3847 = vmatpush1.msra.mxu0 0.0
    %3848 = vmatprep.subr.mxu0 0.0
    %3849 = vmatpush1.msra.mxu0 0.0
    %3850 = vmatprep.subr.mxu0 0.0
    %3851 = vmatpush1.msra.mxu0 0.0
    %3852 = vmatprep.subr.mxu0 0.0
    %3853 = vmatpush1.msra.mxu0 0.0
    %3854 = vmatprep.subr.mxu0 0.0
    %3855 = vmatpush1.msra.mxu0 0.0
    %3856 = vmatprep.subr.mxu0 0.0
    %3857 = vmatpush1.msra.mxu0 0.0
    %3858 = vmatprep.subr.mxu0 0.0
    %3859 = vmatpush1.msra.mxu0 0.0
    %3860 = vmatprep.subr.mxu0 0.0
    %3861 = vmatpush1.msra.mxu0 0.0
    %3862 = vmatprep.subr.mxu0 0.0
    %3863 = vmatpush1.msra.mxu0 0.0
    %3864 = vmatprep.subr.mxu0 0.0
    %3865 = vmatpush1.msra.mxu0 0.0
    %3866 = vmatprep.subr.mxu0 0.0
    %3867 = vmatpush1.msra.mxu0 0.0
    %3868 = vmatprep.subr.mxu0 0.0
    %3869 = vmatpush1.msra.mxu0 0.0
    %3870 = vmatprep.subr.mxu0 0.0
    %3871 = vmatpush1.msra.mxu0 0.0
    %3872 = vmatprep.subr.mxu0 0.0
    %3873 = vmatpush1.msra.mxu0 0.0
    %3874 = vmatprep.subr.mxu0 0.0
    %3875 = vmatpush1.msra.mxu0 0.0
    %3876 = vmatprep.subr.mxu0 0.0
    %3877 = vmatpush1.msra.mxu0 0.0
    %3878 = vmatprep.mubr.f32.mxu0 0.0
    %3879 = vmatmul.mubr.f32.gmra.mrb[0].mxu0 %v3812
    %v3880 = vpop.f32.mrb[0].mxu0
    %v3881 = vadd.f32 0.0, %v3880
    %v3882 = vpop.f32.mrb[0].mxu0
    %3883 = vdwg.mxu0
    %v3884 = vsel %vm269, %v3662, 0.0
    %v3885 = vsel %vm269, %v3735, 0.0
    %v3886 = vadd.f32 %v3884, %v3885
    %v3887 = vsel %vm269, %v3808, 0.0
    %v3888 = vadd.f32 %v3886, %v3887
    %v3889 = vsel %vm269, %v3881, 0.0
    %v3890 = vadd.f32 %v3888, %v3889
    %v3891 = vld [vmem:[%s10] sm:$0x1]
    %v3893 = vlaneseq
    %v3894 = vshrl.u32 %v3893, 7
    %v3895 = vsub.s32 0, %v3894
    %v3896 = vrot.slane %v3891, %v3895
    %v3898 = vadd.f32 %v2104, %v3896
    %v3899 = vadd.f32 %v3890, %v3896
    %v3900 = vadd.f32 %v170, %v3898
    %v3901 = vadd.f32 %v175, %v3899
    %v3902 = vld [vmem:[%s11] sm:$0x1]
    %v3903 = vld [vmem:[%s12] sm:$0x1]
    %v3904 = vsel %vm269, %v3900, 0.0
    %3905 = vadd.xlane.f32.xlu0 %v3904
    %v3906 = vpop.xlane.xlu0 %3905
    %v3907 = vsel %vm269, %v3901, 0.0
    %3908 = vadd.xlane.f32.xlu0 %v3907
    %v3909 = vpop.xlane.xlu0 %3908
    %v3910 = vrcp.pop 32.0
    %v3911 = vmul.f32 %v3906, %v3910
    %v3912 = vmul.f32 %v3909, %v3910
    %v3913 = vsub.f32 %v3900, %v3911
    %v3914 = vsub.f32 %v3901, %v3912
    %v3915 = vmul.f32 %v3913, %v3913
    %v3916 = vmul.f32 %v3914, %v3914
    %v3917 = vsel %vm269, %v3915, 0.0
    %3918 = vadd.xlane.f32.xlu0 %v3917
    %v3919 = vpop.xlane.xlu0 %3918
    %v3920 = vsel %vm269, %v3916, 0.0
    %3921 = vadd.xlane.f32.xlu0 %v3920
    %v3922 = vpop.xlane.xlu0 %3921
    %v3923 = vmul.f32 %v3919, %v3910
    %v3924 = vmul.f32 %v3922, %v3910
    %v3925 = vadd.f32 %v3923, 1e-05
    %v3926 = vadd.f32 %v3924, 1e-05
    %v3927 = vrsqrt.pop %v3925
    %v3928 = vrsqrt.pop %v3926
    %v3929 = vmul.f32 %v3913, %v3927
    %v3930 = vmul.f32 %v3914, %v3928
    %v3932 = vlaneseq
    %v3933 = vshrl.u32 %v3932, 7
    %v3934 = vsub.s32 0, %v3933
    %v3935 = vrot.slane %v3902, %v3934
    %v3937 = vmul.f32 %v3929, %v3935
    %v3938 = vmul.f32 %v3930, %v3935
    %v3940 = vlaneseq
    %v3941 = vshrl.u32 %v3940, 7
    %v3942 = vsub.s32 0, %v3941
    %v3943 = vrot.slane %v3903, %v3942
    %v3945 = vadd.f32 %v3937, %v3943
    %v3946 = vadd.f32 %v3938, %v3943
    %v3947 = vld [vmem:[%s13] sm:$0xff]
    %v3948 = vld [vmem:[%s13 + $0x8] sm:$0xff]
    %v3949 = vld [vmem:[%s13 + $0x10] sm:$0xff]
    %v3950 = vld [vmem:[%s13 + $0x18] sm:$0xff]
    %v3951 = vld [vmem:[%s14] sm:$0x1]
    %v3953 = vlaneseq
    %v3954 = vshrl.u32 %v3953, 7
    %v3955 = vsub.s32 0, %v3954
    %v3956 = vrot.slane %v3951, %v3955
    %v3959 = vsel %vm269, %v3945, 0
    %v3962 = vsel %vm269, %v3946, 0
    %3964 = vmatprep.subr.mxu0 0.0
    %3965 = vmatpush1.msra.mxu0 %v3947
    %3966 = vmatprep.subr.mxu0 0.0
    %3967 = vmatpush1.msra.mxu0 %v3948
    %3968 = vmatprep.subr.mxu0 0.0
    %3969 = vmatpush1.msra.mxu0 %v3949
    %3970 = vmatprep.subr.mxu0 0.0
    %3971 = vmatpush1.msra.mxu0 %v3950
    %3972 = vmatprep.subr.mxu0 0.0
    %3973 = vmatpush1.msra.mxu0 0.0
    %3974 = vmatprep.subr.mxu0 0.0
    %3975 = vmatpush1.msra.mxu0 0.0
    %3976 = vmatprep.subr.mxu0 0.0
    %3977 = vmatpush1.msra.mxu0 0.0
    %3978 = vmatprep.subr.mxu0 0.0
    %3979 = vmatpush1.msra.mxu0 0.0
    %3980 = vmatprep.subr.mxu0 0.0
    %3981 = vmatpush1.msra.mxu0 0.0
    %3982 = vmatprep.subr.mxu0 0.0
    %3983 = vmatpush1.msra.mxu0 0.0
    %3984 = vmatprep.subr.mxu0 0.0
    %3985 = vmatpush1.msra.mxu0 0.0
    %3986 = vmatprep.subr.mxu0 0.0
    %3987 = vmatpush1.msra.mxu0 0.0
    %3988 = vmatprep.subr.mxu0 0.0
    %3989 = vmatpush1.msra.mxu0 0.0
    %3990 = vmatprep.subr.mxu0 0.0
    %3991 = vmatpush1.msra.mxu0 0.0
    %3992 = vmatprep.subr.mxu0 0.0
    %3993 = vmatpush1.msra.mxu0 0.0
    %3994 = vmatprep.subr.mxu0 0.0
    %3995 = vmatpush1.msra.mxu0 0.0
    %3996 = vmatprep.subr.mxu0 0.0
    %3997 = vmatpush1.msra.mxu0 0.0
    %3998 = vmatprep.subr.mxu0 0.0
    %3999 = vmatpush1.msra.mxu0 0.0
    %4000 = vmatprep.subr.mxu0 0.0
    %4001 = vmatpush1.msra.mxu0 0.0
    %4002 = vmatprep.subr.mxu0 0.0
    %4003 = vmatpush1.msra.mxu0 0.0
    %4004 = vmatprep.subr.mxu0 0.0
    %4005 = vmatpush1.msra.mxu0 0.0
    %4006 = vmatprep.subr.mxu0 0.0
    %4007 = vmatpush1.msra.mxu0 0.0
    %4008 = vmatprep.subr.mxu0 0.0
    %4009 = vmatpush1.msra.mxu0 0.0
    %4010 = vmatprep.subr.mxu0 0.0
    %4011 = vmatpush1.msra.mxu0 0.0
    %4012 = vmatprep.subr.mxu0 0.0
    %4013 = vmatpush1.msra.mxu0 0.0
    %4014 = vmatprep.subr.mxu0 0.0
    %4015 = vmatpush1.msra.mxu0 0.0
    %4016 = vmatprep.subr.mxu0 0.0
    %4017 = vmatpush1.msra.mxu0 0.0
    %4018 = vmatprep.subr.mxu0 0.0
    %4019 = vmatpush1.msra.mxu0 0.0
    %4020 = vmatprep.subr.mxu0 0.0
    %4021 = vmatpush1.msra.mxu0 0.0
    %4022 = vmatprep.subr.mxu0 0.0
    %4023 = vmatpush1.msra.mxu0 0.0
    %4024 = vmatprep.subr.mxu0 0.0
    %4025 = vmatpush1.msra.mxu0 0.0
    %4026 = vmatprep.subr.mxu0 0.0
    %4027 = vmatpush1.msra.mxu0 0.0
    %4028 = vmatprep.mubr.f32.mxu0 0.0
    %4029 = vmatmul.mubr.f32.gmra.mrb[0].mxu0 %v3959
    %v4030 = vpop.f32.mrb[0].mxu0
    %v4031 = vadd.f32 %v3956, %v4030
    %v4032 = vpop.f32.mrb[0].mxu0
    %4033 = vmatprep.mubr.f32.mxu0 0.0
    %4034 = vmatmul.mubr.f32.gmra.mrb[0].mxu0 %v3962
    %v4035 = vpop.f32.mrb[0].mxu0
    %v4036 = vadd.f32 %v3956, %v4035
    %v4037 = vpop.f32.mrb[0].mxu0
    %4038 = vdwg.mxu0
    %v4039 = vmax.f32 %v4031, 0.0
    %v4040 = vmax.f32 %v4036, 0.0
    %v4041 = vld [vmem:[%s15] sm:$0xff]
    %v4042 = vld [vmem:[%s15 + $0x8] sm:$0xff]
    %v4043 = vld [vmem:[%s15 + $0x10] sm:$0xff]
    %v4044 = vld [vmem:[%s15 + $0x18] sm:$0xff]
    %v4045 = vld [vmem:[%s15 + $0x20] sm:$0xff]
    %v4046 = vld [vmem:[%s15 + $0x28] sm:$0xff]
    %v4047 = vld [vmem:[%s15 + $0x30] sm:$0xff]
    %v4048 = vld [vmem:[%s15 + $0x38] sm:$0xff]
    %v4049 = vld [vmem:[%s16] sm:$0x1]
    %v4051 = vlaneseq
    %v4052 = vshrl.u32 %v4051, 7
    %v4053 = vsub.s32 0, %v4052
    %v4054 = vrot.slane %v4049, %v4053
    %vm4056 = vcmask 523264
    %v4058 = vsel %vm4056, %v4039, 0
    %v4061 = vsel %vm4056, %v4040, 0
    %4063 = vmatprep.subr.mxu0 0.0
    %4064 = vmatpush1.msra.mxu0 %v4041
    %4065 = vmatprep.subr.mxu0 0.0
    %4066 = vmatpush1.msra.mxu0 %v4042
    %4067 = vmatprep.subr.mxu0 0.0
    %4068 = vmatpush1.msra.mxu0 %v4043
    %4069 = vmatprep.subr.mxu0 0.0
    %4070 = vmatpush1.msra.mxu0 %v4044
    %4071 = vmatprep.subr.mxu0 0.0
    %4072 = vmatpush1.msra.mxu0 %v4045
    %4073 = vmatprep.subr.mxu0 0.0
    %4074 = vmatpush1.msra.mxu0 %v4046
    %4075 = vmatprep.subr.mxu0 0.0
    %4076 = vmatpush1.msra.mxu0 %v4047
    %4077 = vmatprep.subr.mxu0 0.0
    %4078 = vmatpush1.msra.mxu0 %v4048
    %4079 = vmatprep.subr.mxu0 0.0
    %4080 = vmatpush1.msra.mxu0 0.0
    %4081 = vmatprep.subr.mxu0 0.0
    %4082 = vmatpush1.msra.mxu0 0.0
    %4083 = vmatprep.subr.mxu0 0.0
    %4084 = vmatpush1.msra.mxu0 0.0
    %4085 = vmatprep.subr.mxu0 0.0
    %4086 = vmatpush1.msra.mxu0 0.0
    %4087 = vmatprep.subr.mxu0 0.0
    %4088 = vmatpush1.msra.mxu0 0.0
    %4089 = vmatprep.subr.mxu0 0.0
    %4090 = vmatpush1.msra.mxu0 0.0
    %4091 = vmatprep.subr.mxu0 0.0
    %4092 = vmatpush1.msra.mxu0 0.0
    %4093 = vmatprep.subr.mxu0 0.0
    %4094 = vmatpush1.msra.mxu0 0.0
    %4095 = vmatprep.subr.mxu0 0.0
    %4096 = vmatpush1.msra.mxu0 0.0
    %4097 = vmatprep.subr.mxu0 0.0
    %4098 = vmatpush1.msra.mxu0 0.0
    %4099 = vmatprep.subr.mxu0 0.0
    %4100 = vmatpush1.msra.mxu0 0.0
    %4101 = vmatprep.subr.mxu0 0.0
    %4102 = vmatpush1.msra.mxu0 0.0
    %4103 = vmatprep.subr.mxu0 0.0
    %4104 = vmatpush1.msra.mxu0 0.0
    %4105 = vmatprep.subr.mxu0 0.0
    %4106 = vmatpush1.msra.mxu0 0.0
    %4107 = vmatprep.subr.mxu0 0.0
    %4108 = vmatpush1.msra.mxu0 0.0
    %4109 = vmatprep.subr.mxu0 0.0
    %4110 = vmatpush1.msra.mxu0 0.0
    %4111 = vmatprep.subr.mxu0 0.0
    %4112 = vmatpush1.msra.mxu0 0.0
    %4113 = vmatprep.subr.mxu0 0.0
    %4114 = vmatpush1.msra.mxu0 0.0
    %4115 = vmatprep.subr.mxu0 0.0
    %4116 = vmatpush1.msra.mxu0 0.0
    %4117 = vmatprep.subr.mxu0 0.0
    %4118 = vmatpush1.msra.mxu0 0.0
    %4119 = vmatprep.subr.mxu0 0.0
    %4120 = vmatpush1.msra.mxu0 0.0
    %4121 = vmatprep.subr.mxu0 0.0
    %4122 = vmatpush1.msra.mxu0 0.0
    %4123 = vmatprep.subr.mxu0 0.0
    %4124 = vmatpush1.msra.mxu0 0.0
    %4125 = vmatprep.subr.mxu0 0.0
    %4126 = vmatpush1.msra.mxu0 0.0
    %4127 = vmatprep.mubr.f32.mxu0 0.0
    %4128 = vmatmul.mubr.f32.gmra.mrb[0].mxu0 %v4058
    %v4129 = vpop.f32.mrb[0].mxu0
    %v4130 = vadd.f32 %v4054, %v4129
    %v4131 = vpop.f32.mrb[0].mxu0
    %4132 = vmatprep.mubr.f32.mxu0 0.0
    %4133 = vmatmul.mubr.f32.gmra.mrb[0].mxu0 %v4061
    %v4134 = vpop.f32.mrb[0].mxu0
    %v4135 = vadd.f32 %v4054, %v4134
    %v4136 = vpop.f32.mrb[0].mxu0
    %4137 = vdwg.mxu0
    %v4138 = vadd.f32 %v3945, %v4130
    %v4139 = vadd.f32 %v3946, %v4135
    %v4140 = vld [vmem:[%s17] sm:$0x1]
    %v4141 = vld [vmem:[%s18] sm:$0x1]
    %v4142 = vsel %vm269, %v4138, 0.0
    %4143 = vadd.xlane.f32.xlu0 %v4142
    %v4144 = vpop.xlane.xlu0 %4143
    %v4145 = vsel %vm269, %v4139, 0.0
    %4146 = vadd.xlane.f32.xlu0 %v4145
    %v4147 = vpop.xlane.xlu0 %4146
    %v4148 = vmul.f32 %v4144, %v3910
    %v4149 = vmul.f32 %v4147, %v3910
    %v4150 = vsub.f32 %v4138, %v4148
    %v4151 = vsub.f32 %v4139, %v4149
    %v4152 = vmul.f32 %v4150, %v4150
    %v4153 = vmul.f32 %v4151, %v4151
    %v4154 = vsel %vm269, %v4152, 0.0
    %4155 = vadd.xlane.f32.xlu0 %v4154
    %v4156 = vpop.xlane.xlu0 %4155
    %v4157 = vsel %vm269, %v4153, 0.0
    %4158 = vadd.xlane.f32.xlu0 %v4157
    %v4159 = vpop.xlane.xlu0 %4158
    %v4160 = vmul.f32 %v4156, %v3910
    %v4161 = vmul.f32 %v4159, %v3910
    %v4162 = vadd.f32 %v4160, 1e-05
    %v4163 = vadd.f32 %v4161, 1e-05
    %v4164 = vrsqrt.pop %v4162
    %v4165 = vrsqrt.pop %v4163
    %v4166 = vmul.f32 %v4150, %v4164
    %v4167 = vmul.f32 %v4151, %v4165
    %v4169 = vlaneseq
    %v4170 = vshrl.u32 %v4169, 7
    %v4171 = vsub.s32 0, %v4170
    %v4172 = vrot.slane %v4140, %v4171
    %v4174 = vmul.f32 %v4166, %v4172
    %v4175 = vmul.f32 %v4167, %v4172
    %v4177 = vlaneseq
    %v4178 = vshrl.u32 %v4177, 7
    %v4179 = vsub.s32 0, %v4178
    %v4180 = vrot.slane %v4141, %v4179
    %v4182 = vadd.f32 %v4174, %v4180
    %v4183 = vadd.f32 %v4175, %v4180
    %s4184 = scalar_lea.vmem %s3, 128
    %v4185 = vld [vmem:[%s4184] sm:$0xff]
    %v4186 = vld [vmem:[%s4184 + $0x8] sm:$0xff]
    %v4187 = vld [vmem:[%s4184 + $0x10] sm:$0xff]
    %v4188 = vld [vmem:[%s4184 + $0x18] sm:$0xff]
    %v4189 = vld [vmem:[%s4184 + $0x20] sm:$0xff]
    %v4190 = vld [vmem:[%s4184 + $0x28] sm:$0xff]
    %v4191 = vld [vmem:[%s4184 + $0x30] sm:$0xff]
    %v4192 = vld [vmem:[%s4184 + $0x38] sm:$0xff]
    %v4193 = vld [vmem:[%s4184 + $0x40] sm:$0xff]
    %v4194 = vld [vmem:[%s4184 + $0x48] sm:$0xff]
    %v4195 = vld [vmem:[%s4184 + $0x50] sm:$0xff]
    %v4196 = vld [vmem:[%s4184 + $0x58] sm:$0xff]
    %v4197 = vld [vmem:[%s4184 + $0x60] sm:$0xff]
    %v4198 = vld [vmem:[%s4184 + $0x68] sm:$0xff]
    %v4199 = vld [vmem:[%s4184 + $0x70] sm:$0xff]
    %v4200 = vld [vmem:[%s4184 + $0x78] sm:$0xff]
    %s4201 = scalar_lea.vmem %s5, 128
    %v4202 = vld [vmem:[%s4201] sm:$0xff]
    %v4203 = vld [vmem:[%s4201 + $0x8] sm:$0xff]
    %v4204 = vld [vmem:[%s4201 + $0x10] sm:$0xff]
    %v4205 = vld [vmem:[%s4201 + $0x18] sm:$0xff]
    %v4206 = vld [vmem:[%s4201 + $0x20] sm:$0xff]
    %v4207 = vld [vmem:[%s4201 + $0x28] sm:$0xff]
    %v4208 = vld [vmem:[%s4201 + $0x30] sm:$0xff]
    %v4209 = vld [vmem:[%s4201 + $0x38] sm:$0xff]
    %v4210 = vld [vmem:[%s4201 + $0x40] sm:$0xff]
    %v4211 = vld [vmem:[%s4201 + $0x48] sm:$0xff]
    %v4212 = vld [vmem:[%s4201 + $0x50] sm:$0xff]
    %v4213 = vld [vmem:[%s4201 + $0x58] sm:$0xff]
    %v4214 = vld [vmem:[%s4201 + $0x60] sm:$0xff]
    %v4215 = vld [vmem:[%s4201 + $0x68] sm:$0xff]
    %v4216 = vld [vmem:[%s4201 + $0x70] sm:$0xff]
    %v4217 = vld [vmem:[%s4201 + $0x78] sm:$0xff]
    %s4218 = scalar_lea.vmem %s7, 128
    %v4219 = vld [vmem:[%s4218] sm:$0xff]
    %v4220 = vld [vmem:[%s4218 + $0x8] sm:$0xff]
    %v4221 = vld [vmem:[%s4218 + $0x10] sm:$0xff]
    %v4222 = vld [vmem:[%s4218 + $0x18] sm:$0xff]
    %v4223 = vld [vmem:[%s4218 + $0x20] sm:$0xff]
    %v4224 = vld [vmem:[%s4218 + $0x28] sm:$0xff]
    %v4225 = vld [vmem:[%s4218 + $0x30] sm:$0xff]
    %v4226 = vld [vmem:[%s4218 + $0x38] sm:$0xff]
    %v4227 = vld [vmem:[%s4218 + $0x40] sm:$0xff]
    %v4228 = vld [vmem:[%s4218 + $0x48] sm:$0xff]
    %v4229 = vld [vmem:[%s4218 + $0x50] sm:$0xff]
    %v4230 = vld [vmem:[%s4218 + $0x58] sm:$0xff]
    %v4231 = vld [vmem:[%s4218 + $0x60] sm:$0xff]
    %v4232 = vld [vmem:[%s4218 + $0x68] sm:$0xff]
    %v4233 = vld [vmem:[%s4218 + $0x70] sm:$0xff]
    %v4234 = vld [vmem:[%s4218 + $0x78] sm:$0xff]
    %s4235 = scalar_lea.vmem %s4, 4
    %v4236 = vld [vmem:[%s4235] sm:$0x1]
    %v4237 = vld [vmem:[%s4235 + $0x1] sm:$0x1]
    %v4238 = vld [vmem:[%s4235 + $0x2] sm:$0x1]
    %v4239 = vld [vmem:[%s4235 + $0x3] sm:$0x1]
    %s4240 = scalar_lea.vmem %s6, 4
    %v4241 = vld [vmem:[%s4240] sm:$0x1]
    %v4242 = vld [vmem:[%s4240 + $0x1] sm:$0x1]
    %v4243 = vld [vmem:[%s4240 + $0x2] sm:$0x1]
    %v4244 = vld [vmem:[%s4240 + $0x3] sm:$0x1]
    %s4245 = scalar_lea.vmem %s8, 4
    %v4246 = vld [vmem:[%s4245] sm:$0x1]
    %v4247 = vld [vmem:[%s4245 + $0x1] sm:$0x1]
    %v4248 = vld [vmem:[%s4245 + $0x2] sm:$0x1]
    %v4249 = vld [vmem:[%s4245 + $0x3] sm:$0x1]
    %s4250 = scalar_lea.vmem %s9, 32
    %v4251 = vld [vmem:[%s4250] sm:$0xff]
    %v4252 = vld [vmem:[%s4250 + $0x8] sm:$0xff]
    %v4253 = vld [vmem:[%s4250 + $0x10] sm:$0xff]
    %v4254 = vld [vmem:[%s4250 + $0x18] sm:$0xff]
    %v4259 = vlaneseq
    %v4260 = vshrl.u32 %v4259, 7
    %v4261 = vsub.s32 0, %v4260
    %v4262 = vrot.slane %v4236, %v4261
    %v4263 = vlaneseq
    %v4264 = vshrl.u32 %v4263, 7
    %v4265 = vsub.s32 0, %v4264
    %v4266 = vrot.slane %v4237, %v4265
    %v4267 = vlaneseq
    %v4268 = vshrl.u32 %v4267, 7
    %v4269 = vsub.s32 0, %v4268
    %v4270 = vrot.slane %v4238, %v4269
    %v4271 = vlaneseq
    %v4272 = vshrl.u32 %v4271, 7
    %v4273 = vsub.s32 0, %v4272
    %v4274 = vrot.slane %v4239, %v4273
    %v4280 = vsel %vm269, %v4182, 0
    %4282 = vmatprep.subr.mxu0 0.0
    %4283 = vmatpush1.msra.mxu0 %v4185
    %4284 = vmatprep.subr.mxu0 0.0
    %4285 = vmatpush1.msra.mxu0 %v4186
    %4286 = vmatprep.subr.mxu0 0.0
    %4287 = vmatpush1.msra.mxu0 %v4187
    %4288 = vmatprep.subr.mxu0 0.0
    %4289 = vmatpush1.msra.mxu0 %v4188
    %4290 = vmatprep.subr.mxu0 0.0
    %4291 = vmatpush1.msra.mxu0 0.0
    %4292 = vmatprep.subr.mxu0 0.0
    %4293 = vmatpush1.msra.mxu0 0.0
    %4294 = vmatprep.subr.mxu0 0.0
    %4295 = vmatpush1.msra.mxu0 0.0
    %4296 = vmatprep.subr.mxu0 0.0
    %4297 = vmatpush1.msra.mxu0 0.0
    %4298 = vmatprep.subr.mxu0 0.0
    %4299 = vmatpush1.msra.mxu0 0.0
    %4300 = vmatprep.subr.mxu0 0.0
    %4301 = vmatpush1.msra.mxu0 0.0
    %4302 = vmatprep.subr.mxu0 0.0
    %4303 = vmatpush1.msra.mxu0 0.0
    %4304 = vmatprep.subr.mxu0 0.0
    %4305 = vmatpush1.msra.mxu0 0.0
    %4306 = vmatprep.subr.mxu0 0.0
    %4307 = vmatpush1.msra.mxu0 0.0
    %4308 = vmatprep.subr.mxu0 0.0
    %4309 = vmatpush1.msra.mxu0 0.0
    %4310 = vmatprep.subr.mxu0 0.0
    %4311 = vmatpush1.msra.mxu0 0.0
    %4312 = vmatprep.subr.mxu0 0.0
    %4313 = vmatpush1.msra.mxu0 0.0
    %4314 = vmatprep.subr.mxu0 0.0
    %4315 = vmatpush1.msra.mxu0 0.0
    %4316 = vmatprep.subr.mxu0 0.0
    %4317 = vmatpush1.msra.mxu0 0.0
    %4318 = vmatprep.subr.mxu0 0.0
    %4319 = vmatpush1.msra.mxu0 0.0
    %4320 = vmatprep.subr.mxu0 0.0
    %4321 = vmatpush1.msra.mxu0 0.0
    %4322 = vmatprep.subr.mxu0 0.0
    %4323 = vmatpush1.msra.mxu0 0.0
    %4324 = vmatprep.subr.mxu0 0.0
    %4325 = vmatpush1.msra.mxu0 0.0
    %4326 = vmatprep.subr.mxu0 0.0
    %4327 = vmatpush1.msra.mxu0 0.0
    %4328 = vmatprep.subr.mxu0 0.0
    %4329 = vmatpush1.msra.mxu0 0.0
    %4330 = vmatprep.subr.mxu0 0.0
    %4331 = vmatpush1.msra.mxu0 0.0
    %4332 = vmatprep.subr.mxu0 0.0
    %4333 = vmatpush1.msra.mxu0 0.0
    %4334 = vmatprep.subr.mxu0 0.0
    %4335 = vmatpush1.msra.mxu0 0.0
    %4336 = vmatprep.subr.mxu0 0.0
    %4337 = vmatpush1.msra.mxu0 0.0
    %4338 = vmatprep.subr.mxu0 0.0
    %4339 = vmatpush1.msra.mxu0 0.0
    %4340 = vmatprep.subr.mxu0 0.0
    %4341 = vmatpush1.msra.mxu0 0.0
    %4342 = vmatprep.subr.mxu0 0.0
    %4343 = vmatpush1.msra.mxu0 0.0
    %4344 = vmatprep.subr.mxu0 0.0
    %4345 = vmatpush1.msra.mxu0 0.0
    %4346 = vmatprep.mubr.f32.mxu0 0.0
    %4347 = vmatmul.mubr.f32.gmra.mrb[0].mxu0 %v4280
    %v4348 = vpop.f32.mrb[0].mxu0
    %v4349 = vadd.f32 %v4262, %v4348
    %v4350 = vpop.f32.mrb[0].mxu0
    %4351 = vdwg.mxu0
    %4352 = vmatprep.subr.mxu0 0.0
    %4353 = vmatpush1.msra.mxu0 %v4189
    %4354 = vmatprep.subr.mxu0 0.0
    %4355 = vmatpush1.msra.mxu0 %v4190
    %4356 = vmatprep.subr.mxu0 0.0
    %4357 = vmatpush1.msra.mxu0 %v4191
    %4358 = vmatprep.subr.mxu0 0.0
    %4359 = vmatpush1.msra.mxu0 %v4192
    %4360 = vmatprep.subr.mxu0 0.0
    %4361 = vmatpush1.msra.mxu0 0.0
    %4362 = vmatprep.subr.mxu0 0.0
    %4363 = vmatpush1.msra.mxu0 0.0
    %4364 = vmatprep.subr.mxu0 0.0
    %4365 = vmatpush1.msra.mxu0 0.0
    %4366 = vmatprep.subr.mxu0 0.0
    %4367 = vmatpush1.msra.mxu0 0.0
    %4368 = vmatprep.subr.mxu0 0.0
    %4369 = vmatpush1.msra.mxu0 0.0
    %4370 = vmatprep.subr.mxu0 0.0
    %4371 = vmatpush1.msra.mxu0 0.0
    %4372 = vmatprep.subr.mxu0 0.0
    %4373 = vmatpush1.msra.mxu0 0.0
    %4374 = vmatprep.subr.mxu0 0.0
    %4375 = vmatpush1.msra.mxu0 0.0
    %4376 = vmatprep.subr.mxu0 0.0
    %4377 = vmatpush1.msra.mxu0 0.0
    %4378 = vmatprep.subr.mxu0 0.0
    %4379 = vmatpush1.msra.mxu0 0.0
    %4380 = vmatprep.subr.mxu0 0.0
    %4381 = vmatpush1.msra.mxu0 0.0
    %4382 = vmatprep.subr.mxu0 0.0
    %4383 = vmatpush1.msra.mxu0 0.0
    %4384 = vmatprep.subr.mxu0 0.0
    %4385 = vmatpush1.msra.mxu0 0.0
    %4386 = vmatprep.subr.mxu0 0.0
    %4387 = vmatpush1.msra.mxu0 0.0
    %4388 = vmatprep.subr.mxu0 0.0
    %4389 = vmatpush1.msra.mxu0 0.0
    %4390 = vmatprep.subr.mxu0 0.0
    %4391 = vmatpush1.msra.mxu0 0.0
    %4392 = vmatprep.subr.mxu0 0.0
    %4393 = vmatpush1.msra.mxu0 0.0
    %4394 = vmatprep.subr.mxu0 0.0
    %4395 = vmatpush1.msra.mxu0 0.0
    %4396 = vmatprep.subr.mxu0 0.0
    %4397 = vmatpush1.msra.mxu0 0.0
    %4398 = vmatprep.subr.mxu0 0.0
    %4399 = vmatpush1.msra.mxu0 0.0
    %4400 = vmatprep.subr.mxu0 0.0
    %4401 = vmatpush1.msra.mxu0 0.0
    %4402 = vmatprep.subr.mxu0 0.0
    %4403 = vmatpush1.msra.mxu0 0.0
    %4404 = vmatprep.subr.mxu0 0.0
    %4405 = vmatpush1.msra.mxu0 0.0
    %4406 = vmatprep.subr.mxu0 0.0
    %4407 = vmatpush1.msra.mxu0 0.0
    %4408 = vmatprep.subr.mxu0 0.0
    %4409 = vmatpush1.msra.mxu0 0.0
    %4410 = vmatprep.subr.mxu0 0.0
    %4411 = vmatpush1.msra.mxu0 0.0
    %4412 = vmatprep.subr.mxu0 0.0
    %4413 = vmatpush1.msra.mxu0 0.0
    %4414 = vmatprep.subr.mxu0 0.0
    %4415 = vmatpush1.msra.mxu0 0.0
    %4416 = vmatprep.mubr.f32.mxu0 0.0
    %4417 = vmatmul.mubr.f32.gmra.mrb[0].mxu0 %v4280
    %v4418 = vpop.f32.mrb[0].mxu0
    %v4419 = vadd.f32 %v4266, %v4418
    %v4420 = vpop.f32.mrb[0].mxu0
    %4421 = vdwg.mxu0
    %4422 = vmatprep.subr.mxu0 0.0
    %4423 = vmatpush1.msra.mxu0 %v4193
    %4424 = vmatprep.subr.mxu0 0.0
    %4425 = vmatpush1.msra.mxu0 %v4194
    %4426 = vmatprep.subr.mxu0 0.0
    %4427 = vmatpush1.msra.mxu0 %v4195
    %4428 = vmatprep.subr.mxu0 0.0
    %4429 = vmatpush1.msra.mxu0 %v4196
    %4430 = vmatprep.subr.mxu0 0.0
    %4431 = vmatpush1.msra.mxu0 0.0
    %4432 = vmatprep.subr.mxu0 0.0
    %4433 = vmatpush1.msra.mxu0 0.0
    %4434 = vmatprep.subr.mxu0 0.0
    %4435 = vmatpush1.msra.mxu0 0.0
    %4436 = vmatprep.subr.mxu0 0.0
    %4437 = vmatpush1.msra.mxu0 0.0
    %4438 = vmatprep.subr.mxu0 0.0
    %4439 = vmatpush1.msra.mxu0 0.0
    %4440 = vmatprep.subr.mxu0 0.0
    %4441 = vmatpush1.msra.mxu0 0.0
    %4442 = vmatprep.subr.mxu0 0.0
    %4443 = vmatpush1.msra.mxu0 0.0
    %4444 = vmatprep.subr.mxu0 0.0
    %4445 = vmatpush1.msra.mxu0 0.0
    %4446 = vmatprep.subr.mxu0 0.0
    %4447 = vmatpush1.msra.mxu0 0.0
    %4448 = vmatprep.subr.mxu0 0.0
    %4449 = vmatpush1.msra.mxu0 0.0
    %4450 = vmatprep.subr.mxu0 0.0
    %4451 = vmatpush1.msra.mxu0 0.0
    %4452 = vmatprep.subr.mxu0 0.0
    %4453 = vmatpush1.msra.mxu0 0.0
    %4454 = vmatprep.subr.mxu0 0.0
    %4455 = vmatpush1.msra.mxu0 0.0
    %4456 = vmatprep.subr.mxu0 0.0
    %4457 = vmatpush1.msra.mxu0 0.0
    %4458 = vmatprep.subr.mxu0 0.0
    %4459 = vmatpush1.msra.mxu0 0.0
    %4460 = vmatprep.subr.mxu0 0.0
    %4461 = vmatpush1.msra.mxu0 0.0
    %4462 = vmatprep.subr.mxu0 0.0
    %4463 = vmatpush1.msra.mxu0 0.0
    %4464 = vmatprep.subr.mxu0 0.0
    %4465 = vmatpush1.msra.mxu0 0.0
    %4466 = vmatprep.subr.mxu0 0.0
    %4467 = vmatpush1.msra.mxu0 0.0
    %4468 = vmatprep.subr.mxu0 0.0
    %4469 = vmatpush1.msra.mxu0 0.0
    %4470 = vmatprep.subr.mxu0 0.0
    %4471 = vmatpush1.msra.mxu0 0.0
    %4472 = vmatprep.subr.mxu0 0.0
    %4473 = vmatpush1.msra.mxu0 0.0
    %4474 = vmatprep.subr.mxu0 0.0
    %4475 = vmatpush1.msra.mxu0 0.0
    %4476 = vmatprep.subr.mxu0 0.0
    %4477 = vmatpush1.msra.mxu0 0.0
    %4478 = vmatprep.subr.mxu0 0.0
    %4479 = vmatpush1.msra.mxu0 0.0
    %4480 = vmatprep.subr.mxu0 0.0
    %4481 = vmatpush1.msra.mxu0 0.0
    %4482 = vmatprep.subr.mxu0 0.0
    %4483 = vmatpush1.msra.mxu0 0.0
    %4484 = vmatprep.subr.mxu0 0.0
    %4485 = vmatpush1.msra.mxu0 0.0
    %4486 = vmatprep.mubr.f32.mxu0 0.0
    %4487 = vmatmul.mubr.f32.gmra.mrb[0].mxu0 %v4280
    %v4488 = vpop.f32.mrb[0].mxu0
    %v4489 = vadd.f32 %v4270, %v4488
    %v4490 = vpop.f32.mrb[0].mxu0
    %4491 = vdwg.mxu0
    %4492 = vmatprep.subr.mxu0 0.0
    %4493 = vmatpush1.msra.mxu0 %v4197
    %4494 = vmatprep.subr.mxu0 0.0
    %4495 = vmatpush1.msra.mxu0 %v4198
    %4496 = vmatprep.subr.mxu0 0.0
    %4497 = vmatpush1.msra.mxu0 %v4199
    %4498 = vmatprep.subr.mxu0 0.0
    %4499 = vmatpush1.msra.mxu0 %v4200
    %4500 = vmatprep.subr.mxu0 0.0
    %4501 = vmatpush1.msra.mxu0 0.0
    %4502 = vmatprep.subr.mxu0 0.0
    %4503 = vmatpush1.msra.mxu0 0.0
    %4504 = vmatprep.subr.mxu0 0.0
    %4505 = vmatpush1.msra.mxu0 0.0
    %4506 = vmatprep.subr.mxu0 0.0
    %4507 = vmatpush1.msra.mxu0 0.0
    %4508 = vmatprep.subr.mxu0 0.0
    %4509 = vmatpush1.msra.mxu0 0.0
    %4510 = vmatprep.subr.mxu0 0.0
    %4511 = vmatpush1.msra.mxu0 0.0
    %4512 = vmatprep.subr.mxu0 0.0
    %4513 = vmatpush1.msra.mxu0 0.0
    %4514 = vmatprep.subr.mxu0 0.0
    %4515 = vmatpush1.msra.mxu0 0.0
    %4516 = vmatprep.subr.mxu0 0.0
    %4517 = vmatpush1.msra.mxu0 0.0
    %4518 = vmatprep.subr.mxu0 0.0
    %4519 = vmatpush1.msra.mxu0 0.0
    %4520 = vmatprep.subr.mxu0 0.0
    %4521 = vmatpush1.msra.mxu0 0.0
    %4522 = vmatprep.subr.mxu0 0.0
    %4523 = vmatpush1.msra.mxu0 0.0
    %4524 = vmatprep.subr.mxu0 0.0
    %4525 = vmatpush1.msra.mxu0 0.0
    %4526 = vmatprep.subr.mxu0 0.0
    %4527 = vmatpush1.msra.mxu0 0.0
    %4528 = vmatprep.subr.mxu0 0.0
    %4529 = vmatpush1.msra.mxu0 0.0
    %4530 = vmatprep.subr.mxu0 0.0
    %4531 = vmatpush1.msra.mxu0 0.0
    %4532 = vmatprep.subr.mxu0 0.0
    %4533 = vmatpush1.msra.mxu0 0.0
    %4534 = vmatprep.subr.mxu0 0.0
    %4535 = vmatpush1.msra.mxu0 0.0
    %4536 = vmatprep.subr.mxu0 0.0
    %4537 = vmatpush1.msra.mxu0 0.0
    %4538 = vmatprep.subr.mxu0 0.0
    %4539 = vmatpush1.msra.mxu0 0.0
    %4540 = vmatprep.subr.mxu0 0.0
    %4541 = vmatpush1.msra.mxu0 0.0
    %4542 = vmatprep.subr.mxu0 0.0
    %4543 = vmatpush1.msra.mxu0 0.0
    %4544 = vmatprep.subr.mxu0 0.0
    %4545 = vmatpush1.msra.mxu0 0.0
    %4546 = vmatprep.subr.mxu0 0.0
    %4547 = vmatpush1.msra.mxu0 0.0
    %4548 = vmatprep.subr.mxu0 0.0
    %4549 = vmatpush1.msra.mxu0 0.0
    %4550 = vmatprep.subr.mxu0 0.0
    %4551 = vmatpush1.msra.mxu0 0.0
    %4552 = vmatprep.subr.mxu0 0.0
    %4553 = vmatpush1.msra.mxu0 0.0
    %4554 = vmatprep.subr.mxu0 0.0
    %4555 = vmatpush1.msra.mxu0 0.0
    %4556 = vmatprep.mubr.f32.mxu0 0.0
    %4557 = vmatmul.mubr.f32.gmra.mrb[0].mxu0 %v4280
    %v4558 = vpop.f32.mrb[0].mxu0
    %v4559 = vadd.f32 %v4274, %v4558
    %v4560 = vpop.f32.mrb[0].mxu0
    %4561 = vdwg.mxu0
    %v4566 = vlaneseq
    %v4567 = vshrl.u32 %v4566, 7
    %v4568 = vsub.s32 0, %v4567
    %v4569 = vrot.slane %v4241, %v4568
    %v4570 = vlaneseq
    %v4571 = vshrl.u32 %v4570, 7
    %v4572 = vsub.s32 0, %v4571
    %v4573 = vrot.slane %v4242, %v4572
    %v4574 = vlaneseq
    %v4575 = vshrl.u32 %v4574, 7
    %v4576 = vsub.s32 0, %v4575
    %v4577 = vrot.slane %v4243, %v4576
    %v4578 = vlaneseq
    %v4579 = vshrl.u32 %v4578, 7
    %v4580 = vsub.s32 0, %v4579
    %v4581 = vrot.slane %v4244, %v4580
    %4586 = vmatprep.subr.mxu0 0.0
    %4587 = vmatpush1.msra.mxu0 %v4202
    %4588 = vmatprep.subr.mxu0 0.0
    %4589 = vmatpush1.msra.mxu0 %v4203
    %4590 = vmatprep.subr.mxu0 0.0
    %4591 = vmatpush1.msra.mxu0 %v4204
    %4592 = vmatprep.subr.mxu0 0.0
    %4593 = vmatpush1.msra.mxu0 %v4205
    %4594 = vmatprep.subr.mxu0 0.0
    %4595 = vmatpush1.msra.mxu0 0.0
    %4596 = vmatprep.subr.mxu0 0.0
    %4597 = vmatpush1.msra.mxu0 0.0
    %4598 = vmatprep.subr.mxu0 0.0
    %4599 = vmatpush1.msra.mxu0 0.0
    %4600 = vmatprep.subr.mxu0 0.0
    %4601 = vmatpush1.msra.mxu0 0.0
    %4602 = vmatprep.subr.mxu0 0.0
    %4603 = vmatpush1.msra.mxu0 0.0
    %4604 = vmatprep.subr.mxu0 0.0
    %4605 = vmatpush1.msra.mxu0 0.0
    %4606 = vmatprep.subr.mxu0 0.0
    %4607 = vmatpush1.msra.mxu0 0.0
    %4608 = vmatprep.subr.mxu0 0.0
    %4609 = vmatpush1.msra.mxu0 0.0
    %4610 = vmatprep.subr.mxu0 0.0
    %4611 = vmatpush1.msra.mxu0 0.0
    %4612 = vmatprep.subr.mxu0 0.0
    %4613 = vmatpush1.msra.mxu0 0.0
    %4614 = vmatprep.subr.mxu0 0.0
    %4615 = vmatpush1.msra.mxu0 0.0
    %4616 = vmatprep.subr.mxu0 0.0
    %4617 = vmatpush1.msra.mxu0 0.0
    %4618 = vmatprep.subr.mxu0 0.0
    %4619 = vmatpush1.msra.mxu0 0.0
    %4620 = vmatprep.subr.mxu0 0.0
    %4621 = vmatpush1.msra.mxu0 0.0
    %4622 = vmatprep.subr.mxu0 0.0
    %4623 = vmatpush1.msra.mxu0 0.0
    %4624 = vmatprep.subr.mxu0 0.0
    %4625 = vmatpush1.msra.mxu0 0.0
    %4626 = vmatprep.subr.mxu0 0.0
    %4627 = vmatpush1.msra.mxu0 0.0
    %4628 = vmatprep.subr.mxu0 0.0
    %4629 = vmatpush1.msra.mxu0 0.0
    %4630 = vmatprep.subr.mxu0 0.0
    %4631 = vmatpush1.msra.mxu0 0.0
    %4632 = vmatprep.subr.mxu0 0.0
    %4633 = vmatpush1.msra.mxu0 0.0
    %4634 = vmatprep.subr.mxu0 0.0
    %4635 = vmatpush1.msra.mxu0 0.0
    %4636 = vmatprep.subr.mxu0 0.0
    %4637 = vmatpush1.msra.mxu0 0.0
    %4638 = vmatprep.subr.mxu0 0.0
    %4639 = vmatpush1.msra.mxu0 0.0
    %4640 = vmatprep.subr.mxu0 0.0
    %4641 = vmatpush1.msra.mxu0 0.0
    %4642 = vmatprep.subr.mxu0 0.0
    %4643 = vmatpush1.msra.mxu0 0.0
    %4644 = vmatprep.subr.mxu0 0.0
    %4645 = vmatpush1.msra.mxu0 0.0
    %4646 = vmatprep.subr.mxu0 0.0
    %4647 = vmatpush1.msra.mxu0 0.0
    %4648 = vmatprep.subr.mxu0 0.0
    %4649 = vmatpush1.msra.mxu0 0.0
    %4650 = vmatprep.mubr.f32.mxu0 0.0
    %4651 = vmatmul.mubr.f32.gmra.mrb[0].mxu0 %v4280
    %v4652 = vpop.f32.mrb[0].mxu0
    %v4653 = vadd.f32 %v4569, %v4652
    %v4654 = vpop.f32.mrb[0].mxu0
    %4655 = vdwg.mxu0
    %4656 = vmatprep.subr.mxu0 0.0
    %4657 = vmatpush1.msra.mxu0 %v4206
    %4658 = vmatprep.subr.mxu0 0.0
    %4659 = vmatpush1.msra.mxu0 %v4207
    %4660 = vmatprep.subr.mxu0 0.0
    %4661 = vmatpush1.msra.mxu0 %v4208
    %4662 = vmatprep.subr.mxu0 0.0
    %4663 = vmatpush1.msra.mxu0 %v4209
    %4664 = vmatprep.subr.mxu0 0.0
    %4665 = vmatpush1.msra.mxu0 0.0
    %4666 = vmatprep.subr.mxu0 0.0
    %4667 = vmatpush1.msra.mxu0 0.0
    %4668 = vmatprep.subr.mxu0 0.0
    %4669 = vmatpush1.msra.mxu0 0.0
    %4670 = vmatprep.subr.mxu0 0.0
    %4671 = vmatpush1.msra.mxu0 0.0
    %4672 = vmatprep.subr.mxu0 0.0
    %4673 = vmatpush1.msra.mxu0 0.0
    %4674 = vmatprep.subr.mxu0 0.0
    %4675 = vmatpush1.msra.mxu0 0.0
    %4676 = vmatprep.subr.mxu0 0.0
    %4677 = vmatpush1.msra.mxu0 0.0
    %4678 = vmatprep.subr.mxu0 0.0
    %4679 = vmatpush1.msra.mxu0 0.0
    %4680 = vmatprep.subr.mxu0 0.0
    %4681 = vmatpush1.msra.mxu0 0.0
    %4682 = vmatprep.subr.mxu0 0.0
    %4683 = vmatpush1.msra.mxu0 0.0
    %4684 = vmatprep.subr.mxu0 0.0
    %4685 = vmatpush1.msra.mxu0 0.0
    %4686 = vmatprep.subr.mxu0 0.0
    %4687 = vmatpush1.msra.mxu0 0.0
    %4688 = vmatprep.subr.mxu0 0.0
    %4689 = vmatpush1.msra.mxu0 0.0
    %4690 = vmatprep.subr.mxu0 0.0
    %4691 = vmatpush1.msra.mxu0 0.0
    %4692 = vmatprep.subr.mxu0 0.0
    %4693 = vmatpush1.msra.mxu0 0.0
    %4694 = vmatprep.subr.mxu0 0.0
    %4695 = vmatpush1.msra.mxu0 0.0
    %4696 = vmatprep.subr.mxu0 0.0
    %4697 = vmatpush1.msra.mxu0 0.0
    %4698 = vmatprep.subr.mxu0 0.0
    %4699 = vmatpush1.msra.mxu0 0.0
    %4700 = vmatprep.subr.mxu0 0.0
    %4701 = vmatpush1.msra.mxu0 0.0
    %4702 = vmatprep.subr.mxu0 0.0
    %4703 = vmatpush1.msra.mxu0 0.0
    %4704 = vmatprep.subr.mxu0 0.0
    %4705 = vmatpush1.msra.mxu0 0.0
    %4706 = vmatprep.subr.mxu0 0.0
    %4707 = vmatpush1.msra.mxu0 0.0
    %4708 = vmatprep.subr.mxu0 0.0
    %4709 = vmatpush1.msra.mxu0 0.0
    %4710 = vmatprep.subr.mxu0 0.0
    %4711 = vmatpush1.msra.mxu0 0.0
    %4712 = vmatprep.subr.mxu0 0.0
    %4713 = vmatpush1.msra.mxu0 0.0
    %4714 = vmatprep.subr.mxu0 0.0
    %4715 = vmatpush1.msra.mxu0 0.0
    %4716 = vmatprep.subr.mxu0 0.0
    %4717 = vmatpush1.msra.mxu0 0.0
    %4718 = vmatprep.subr.mxu0 0.0
    %4719 = vmatpush1.msra.mxu0 0.0
    %4720 = vmatprep.mubr.f32.mxu0 0.0
    %4721 = vmatmul.mubr.f32.gmra.mrb[0].mxu0 %v4280
    %v4722 = vpop.f32.mrb[0].mxu0
    %v4723 = vadd.f32 %v4573, %v4722
    %v4724 = vpop.f32.mrb[0].mxu0
    %4725 = vdwg.mxu0
    %4726 = vmatprep.subr.mxu0 0.0
    %4727 = vmatpush1.msra.mxu0 %v4210
    %4728 = vmatprep.subr.mxu0 0.0
    %4729 = vmatpush1.msra.mxu0 %v4211
    %4730 = vmatprep.subr.mxu0 0.0
    %4731 = vmatpush1.msra.mxu0 %v4212
    %4732 = vmatprep.subr.mxu0 0.0
    %4733 = vmatpush1.msra.mxu0 %v4213
    %4734 = vmatprep.subr.mxu0 0.0
    %4735 = vmatpush1.msra.mxu0 0.0
    %4736 = vmatprep.subr.mxu0 0.0
    %4737 = vmatpush1.msra.mxu0 0.0
    %4738 = vmatprep.subr.mxu0 0.0
    %4739 = vmatpush1.msra.mxu0 0.0
    %4740 = vmatprep.subr.mxu0 0.0
    %4741 = vmatpush1.msra.mxu0 0.0
    %4742 = vmatprep.subr.mxu0 0.0
    %4743 = vmatpush1.msra.mxu0 0.0
    %4744 = vmatprep.subr.mxu0 0.0
    %4745 = vmatpush1.msra.mxu0 0.0
    %4746 = vmatprep.subr.mxu0 0.0
    %4747 = vmatpush1.msra.mxu0 0.0
    %4748 = vmatprep.subr.mxu0 0.0
    %4749 = vmatpush1.msra.mxu0 0.0
    %4750 = vmatprep.subr.mxu0 0.0
    %4751 = vmatpush1.msra.mxu0 0.0
    %4752 = vmatprep.subr.mxu0 0.0
    %4753 = vmatpush1.msra.mxu0 0.0
    %4754 = vmatprep.subr.mxu0 0.0
    %4755 = vmatpush1.msra.mxu0 0.0
    %4756 = vmatprep.subr.mxu0 0.0
    %4757 = vmatpush1.msra.mxu0 0.0
    %4758 = vmatprep.subr.mxu0 0.0
    %4759 = vmatpush1.msra.mxu0 0.0
    %4760 = vmatprep.subr.mxu0 0.0
    %4761 = vmatpush1.msra.mxu0 0.0
    %4762 = vmatprep.subr.mxu0 0.0
    %4763 = vmatpush1.msra.mxu0 0.0
    %4764 = vmatprep.subr.mxu0 0.0
    %4765 = vmatpush1.msra.mxu0 0.0
    %4766 = vmatprep.subr.mxu0 0.0
    %4767 = vmatpush1.msra.mxu0 0.0
    %4768 = vmatprep.subr.mxu0 0.0
    %4769 = vmatpush1.msra.mxu0 0.0
    %4770 = vmatprep.subr.mxu0 0.0
    %4771 = vmatpush1.msra.mxu0 0.0
    %4772 = vmatprep.subr.mxu0 0.0
    %4773 = vmatpush1.msra.mxu0 0.0
    %4774 = vmatprep.subr.mxu0 0.0
    %4775 = vmatpush1.msra.mxu0 0.0
    %4776 = vmatprep.subr.mxu0 0.0
    %4777 = vmatpush1.msra.mxu0 0.0
    %4778 = vmatprep.subr.mxu0 0.0
    %4779 = vmatpush1.msra.mxu0 0.0
    %4780 = vmatprep.subr.mxu0 0.0
    %4781 = vmatpush1.msra.mxu0 0.0
    %4782 = vmatprep.subr.mxu0 0.0
    %4783 = vmatpush1.msra.mxu0 0.0
    %4784 = vmatprep.subr.mxu0 0.0
    %4785 = vmatpush1.msra.mxu0 0.0
    %4786 = vmatprep.subr.mxu0 0.0
    %4787 = vmatpush1.msra.mxu0 0.0
    %4788 = vmatprep.subr.mxu0 0.0
    %4789 = vmatpush1.msra.mxu0 0.0
    %4790 = vmatprep.mubr.f32.mxu0 0.0
    %4791 = vmatmul.mubr.f32.gmra.mrb[0].mxu0 %v4280
    %v4792 = vpop.f32.mrb[0].mxu0
    %v4793 = vadd.f32 %v4577, %v4792
    %v4794 = vpop.f32.mrb[0].mxu0
    %4795 = vdwg.mxu0
    %4796 = vmatprep.subr.mxu0 0.0
    %4797 = vmatpush1.msra.mxu0 %v4214
    %4798 = vmatprep.subr.mxu0 0.0
    %4799 = vmatpush1.msra.mxu0 %v4215
    %4800 = vmatprep.subr.mxu0 0.0
    %4801 = vmatpush1.msra.mxu0 %v4216
    %4802 = vmatprep.subr.mxu0 0.0
    %4803 = vmatpush1.msra.mxu0 %v4217
    %4804 = vmatprep.subr.mxu0 0.0
    %4805 = vmatpush1.msra.mxu0 0.0
    %4806 = vmatprep.subr.mxu0 0.0
    %4807 = vmatpush1.msra.mxu0 0.0
    %4808 = vmatprep.subr.mxu0 0.0
    %4809 = vmatpush1.msra.mxu0 0.0
    %4810 = vmatprep.subr.mxu0 0.0
    %4811 = vmatpush1.msra.mxu0 0.0
    %4812 = vmatprep.subr.mxu0 0.0
    %4813 = vmatpush1.msra.mxu0 0.0
    %4814 = vmatprep.subr.mxu0 0.0
    %4815 = vmatpush1.msra.mxu0 0.0
    %4816 = vmatprep.subr.mxu0 0.0
    %4817 = vmatpush1.msra.mxu0 0.0
    %4818 = vmatprep.subr.mxu0 0.0
    %4819 = vmatpush1.msra.mxu0 0.0
    %4820 = vmatprep.subr.mxu0 0.0
    %4821 = vmatpush1.msra.mxu0 0.0
    %4822 = vmatprep.subr.mxu0 0.0
    %4823 = vmatpush1.msra.mxu0 0.0
    %4824 = vmatprep.subr.mxu0 0.0
    %4825 = vmatpush1.msra.mxu0 0.0
    %4826 = vmatprep.subr.mxu0 0.0
    %4827 = vmatpush1.msra.mxu0 0.0
    %4828 = vmatprep.subr.mxu0 0.0
    %4829 = vmatpush1.msra.mxu0 0.0
    %4830 = vmatprep.subr.mxu0 0.0
    %4831 = vmatpush1.msra.mxu0 0.0
    %4832 = vmatprep.subr.mxu0 0.0
    %4833 = vmatpush1.msra.mxu0 0.0
    %4834 = vmatprep.subr.mxu0 0.0
    %4835 = vmatpush1.msra.mxu0 0.0
    %4836 = vmatprep.subr.mxu0 0.0
    %4837 = vmatpush1.msra.mxu0 0.0
    %4838 = vmatprep.subr.mxu0 0.0
    %4839 = vmatpush1.msra.mxu0 0.0
    %4840 = vmatprep.subr.mxu0 0.0
    %4841 = vmatpush1.msra.mxu0 0.0
    %4842 = vmatprep.subr.mxu0 0.0
    %4843 = vmatpush1.msra.mxu0 0.0
    %4844 = vmatprep.subr.mxu0 0.0
    %4845 = vmatpush1.msra.mxu0 0.0
    %4846 = vmatprep.subr.mxu0 0.0
    %4847 = vmatpush1.msra.mxu0 0.0
    %4848 = vmatprep.subr.mxu0 0.0
    %4849 = vmatpush1.msra.mxu0 0.0
    %4850 = vmatprep.subr.mxu0 0.0
    %4851 = vmatpush1.msra.mxu0 0.0
    %4852 = vmatprep.subr.mxu0 0.0
    %4853 = vmatpush1.msra.mxu0 0.0
    %4854 = vmatprep.subr.mxu0 0.0
    %4855 = vmatpush1.msra.mxu0 0.0
    %4856 = vmatprep.subr.mxu0 0.0
    %4857 = vmatpush1.msra.mxu0 0.0
    %4858 = vmatprep.subr.mxu0 0.0
    %4859 = vmatpush1.msra.mxu0 0.0
    %4860 = vmatprep.mubr.f32.mxu0 0.0
    %4861 = vmatmul.mubr.f32.gmra.mrb[0].mxu0 %v4280
    %v4862 = vpop.f32.mrb[0].mxu0
    %v4863 = vadd.f32 %v4581, %v4862
    %v4864 = vpop.f32.mrb[0].mxu0
    %4865 = vdwg.mxu0
    %v4870 = vlaneseq
    %v4871 = vshrl.u32 %v4870, 7
    %v4872 = vsub.s32 0, %v4871
    %v4873 = vrot.slane %v4246, %v4872
    %v4874 = vlaneseq
    %v4875 = vshrl.u32 %v4874, 7
    %v4876 = vsub.s32 0, %v4875
    %v4877 = vrot.slane %v4247, %v4876
    %v4878 = vlaneseq
    %v4879 = vshrl.u32 %v4878, 7
    %v4880 = vsub.s32 0, %v4879
    %v4881 = vrot.slane %v4248, %v4880
    %v4882 = vlaneseq
    %v4883 = vshrl.u32 %v4882, 7
    %v4884 = vsub.s32 0, %v4883
    %v4885 = vrot.slane %v4249, %v4884
    %4890 = vmatprep.subr.mxu0 0.0
    %4891 = vmatpush1.msra.mxu0 %v4219
    %4892 = vmatprep.subr.mxu0 0.0
    %4893 = vmatpush1.msra.mxu0 %v4220
    %4894 = vmatprep.subr.mxu0 0.0
    %4895 = vmatpush1.msra.mxu0 %v4221
    %4896 = vmatprep.subr.mxu0 0.0
    %4897 = vmatpush1.msra.mxu0 %v4222
    %4898 = vmatprep.subr.mxu0 0.0
    %4899 = vmatpush1.msra.mxu0 0.0
    %4900 = vmatprep.subr.mxu0 0.0
    %4901 = vmatpush1.msra.mxu0 0.0
    %4902 = vmatprep.subr.mxu0 0.0
    %4903 = vmatpush1.msra.mxu0 0.0
    %4904 = vmatprep.subr.mxu0 0.0
    %4905 = vmatpush1.msra.mxu0 0.0
    %4906 = vmatprep.subr.mxu0 0.0
    %4907 = vmatpush1.msra.mxu0 0.0
    %4908 = vmatprep.subr.mxu0 0.0
    %4909 = vmatpush1.msra.mxu0 0.0
    %4910 = vmatprep.subr.mxu0 0.0
    %4911 = vmatpush1.msra.mxu0 0.0
    %4912 = vmatprep.subr.mxu0 0.0
    %4913 = vmatpush1.msra.mxu0 0.0
    %4914 = vmatprep.subr.mxu0 0.0
    %4915 = vmatpush1.msra.mxu0 0.0
    %4916 = vmatprep.subr.mxu0 0.0
    %4917 = vmatpush1.msra.mxu0 0.0
    %4918 = vmatprep.subr.mxu0 0.0
    %4919 = vmatpush1.msra.mxu0 0.0
    %4920 = vmatprep.subr.mxu0 0.0
    %4921 = vmatpush1.msra.mxu0 0.0
    %4922 = vmatprep.subr.mxu0 0.0
    %4923 = vmatpush1.msra.mxu0 0.0
    %4924 = vmatprep.subr.mxu0 0.0
    %4925 = vmatpush1.msra.mxu0 0.0
    %4926 = vmatprep.subr.mxu0 0.0
    %4927 = vmatpush1.msra.mxu0 0.0
    %4928 = vmatprep.subr.mxu0 0.0
    %4929 = vmatpush1.msra.mxu0 0.0
    %4930 = vmatprep.subr.mxu0 0.0
    %4931 = vmatpush1.msra.mxu0 0.0
    %4932 = vmatprep.subr.mxu0 0.0
    %4933 = vmatpush1.msra.mxu0 0.0
    %4934 = vmatprep.subr.mxu0 0.0
    %4935 = vmatpush1.msra.mxu0 0.0
    %4936 = vmatprep.subr.mxu0 0.0
    %4937 = vmatpush1.msra.mxu0 0.0
    %4938 = vmatprep.subr.mxu0 0.0
    %4939 = vmatpush1.msra.mxu0 0.0
    %4940 = vmatprep.subr.mxu0 0.0
    %4941 = vmatpush1.msra.mxu0 0.0
    %4942 = vmatprep.subr.mxu0 0.0
    %4943 = vmatpush1.msra.mxu0 0.0
    %4944 = vmatprep.subr.mxu0 0.0
    %4945 = vmatpush1.msra.mxu0 0.0
    %4946 = vmatprep.subr.mxu0 0.0
    %4947 = vmatpush1.msra.mxu0 0.0
    %4948 = vmatprep.subr.mxu0 0.0
    %4949 = vmatpush1.msra.mxu0 0.0
    %4950 = vmatprep.subr.mxu0 0.0
    %4951 = vmatpush1.msra.mxu0 0.0
    %4952 = vmatprep.subr.mxu0 0.0
    %4953 = vmatpush1.msra.mxu0 0.0
    %4954 = vmatprep.mubr.f32.mxu0 0.0
    %4955 = vmatmul.mubr.f32.gmra.mrb[0].mxu0 %v4280
    %v4956 = vpop.f32.mrb[0].mxu0
    %v4957 = vadd.f32 %v4873, %v4956
    %v4958 = vpop.f32.mrb[0].mxu0
    %4959 = vdwg.mxu0
    %4960 = vmatprep.subr.mxu0 0.0
    %4961 = vmatpush1.msra.mxu0 %v4223
    %4962 = vmatprep.subr.mxu0 0.0
    %4963 = vmatpush1.msra.mxu0 %v4224
    %4964 = vmatprep.subr.mxu0 0.0
    %4965 = vmatpush1.msra.mxu0 %v4225
    %4966 = vmatprep.subr.mxu0 0.0
    %4967 = vmatpush1.msra.mxu0 %v4226
    %4968 = vmatprep.subr.mxu0 0.0
    %4969 = vmatpush1.msra.mxu0 0.0
    %4970 = vmatprep.subr.mxu0 0.0
    %4971 = vmatpush1.msra.mxu0 0.0
    %4972 = vmatprep.subr.mxu0 0.0
    %4973 = vmatpush1.msra.mxu0 0.0
    %4974 = vmatprep.subr.mxu0 0.0
    %4975 = vmatpush1.msra.mxu0 0.0
    %4976 = vmatprep.subr.mxu0 0.0
    %4977 = vmatpush1.msra.mxu0 0.0
    %4978 = vmatprep.subr.mxu0 0.0
    %4979 = vmatpush1.msra.mxu0 0.0
    %4980 = vmatprep.subr.mxu0 0.0
    %4981 = vmatpush1.msra.mxu0 0.0
    %4982 = vmatprep.subr.mxu0 0.0
    %4983 = vmatpush1.msra.mxu0 0.0
    %4984 = vmatprep.subr.mxu0 0.0
    %4985 = vmatpush1.msra.mxu0 0.0
    %4986 = vmatprep.subr.mxu0 0.0
    %4987 = vmatpush1.msra.mxu0 0.0
    %4988 = vmatprep.subr.mxu0 0.0
    %4989 = vmatpush1.msra.mxu0 0.0
    %4990 = vmatprep.subr.mxu0 0.0
    %4991 = vmatpush1.msra.mxu0 0.0
    %4992 = vmatprep.subr.mxu0 0.0
    %4993 = vmatpush1.msra.mxu0 0.0
    %4994 = vmatprep.subr.mxu0 0.0
    %4995 = vmatpush1.msra.mxu0 0.0
    %4996 = vmatprep.subr.mxu0 0.0
    %4997 = vmatpush1.msra.mxu0 0.0
    %4998 = vmatprep.subr.mxu0 0.0
    %4999 = vmatpush1.msra.mxu0 0.0
    %5000 = vmatprep.subr.mxu0 0.0
    %5001 = vmatpush1.msra.mxu0 0.0
    %5002 = vmatprep.subr.mxu0 0.0
    %5003 = vmatpush1.msra.mxu0 0.0
    %5004 = vmatprep.subr.mxu0 0.0
    %5005 = vmatpush1.msra.mxu0 0.0
    %5006 = vmatprep.subr.mxu0 0.0
    %5007 = vmatpush1.msra.mxu0 0.0
    %5008 = vmatprep.subr.mxu0 0.0
    %5009 = vmatpush1.msra.mxu0 0.0
    %5010 = vmatprep.subr.mxu0 0.0
    %5011 = vmatpush1.msra.mxu0 0.0
    %5012 = vmatprep.subr.mxu0 0.0
    %5013 = vmatpush1.msra.mxu0 0.0
    %5014 = vmatprep.subr.mxu0 0.0
    %5015 = vmatpush1.msra.mxu0 0.0
    %5016 = vmatprep.subr.mxu0 0.0
    %5017 = vmatpush1.msra.mxu0 0.0
    %5018 = vmatprep.subr.mxu0 0.0
    %5019 = vmatpush1.msra.mxu0 0.0
    %5020 = vmatprep.subr.mxu0 0.0
    %5021 = vmatpush1.msra.mxu0 0.0
    %5022 = vmatprep.subr.mxu0 0.0
    %5023 = vmatpush1.msra.mxu0 0.0
    %5024 = vmatprep.mubr.f32.mxu0 0.0
    %5025 = vmatmul.mubr.f32.gmra.mrb[0].mxu0 %v4280
    %v5026 = vpop.f32.mrb[0].mxu0
    %v5027 = vadd.f32 %v4877, %v5026
    %v5028 = vpop.f32.mrb[0].mxu0
    %5029 = vdwg.mxu0
    %5030 = vmatprep.subr.mxu0 0.0
    %5031 = vmatpush1.msra.mxu0 %v4227
    %5032 = vmatprep.subr.mxu0 0.0
    %5033 = vmatpush1.msra.mxu0 %v4228
    %5034 = vmatprep.subr.mxu0 0.0
    %5035 = vmatpush1.msra.mxu0 %v4229
    %5036 = vmatprep.subr.mxu0 0.0
    %5037 = vmatpush1.msra.mxu0 %v4230
    %5038 = vmatprep.subr.mxu0 0.0
    %5039 = vmatpush1.msra.mxu0 0.0
    %5040 = vmatprep.subr.mxu0 0.0
    %5041 = vmatpush1.msra.mxu0 0.0
    %5042 = vmatprep.subr.mxu0 0.0
    %5043 = vmatpush1.msra.mxu0 0.0
    %5044 = vmatprep.subr.mxu0 0.0
    %5045 = vmatpush1.msra.mxu0 0.0
    %5046 = vmatprep.subr.mxu0 0.0
    %5047 = vmatpush1.msra.mxu0 0.0
    %5048 = vmatprep.subr.mxu0 0.0
    %5049 = vmatpush1.msra.mxu0 0.0
    %5050 = vmatprep.subr.mxu0 0.0
    %5051 = vmatpush1.msra.mxu0 0.0
    %5052 = vmatprep.subr.mxu0 0.0
    %5053 = vmatpush1.msra.mxu0 0.0
    %5054 = vmatprep.subr.mxu0 0.0
    %5055 = vmatpush1.msra.mxu0 0.0
    %5056 = vmatprep.subr.mxu0 0.0
    %5057 = vmatpush1.msra.mxu0 0.0
    %5058 = vmatprep.subr.mxu0 0.0
    %5059 = vmatpush1.msra.mxu0 0.0
    %5060 = vmatprep.subr.mxu0 0.0
    %5061 = vmatpush1.msra.mxu0 0.0
    %5062 = vmatprep.subr.mxu0 0.0
    %5063 = vmatpush1.msra.mxu0 0.0
    %5064 = vmatprep.subr.mxu0 0.0
    %5065 = vmatpush1.msra.mxu0 0.0
    %5066 = vmatprep.subr.mxu0 0.0
    %5067 = vmatpush1.msra.mxu0 0.0
    %5068 = vmatprep.subr.mxu0 0.0
    %5069 = vmatpush1.msra.mxu0 0.0
    %5070 = vmatprep.subr.mxu0 0.0
    %5071 = vmatpush1.msra.mxu0 0.0
    %5072 = vmatprep.subr.mxu0 0.0
    %5073 = vmatpush1.msra.mxu0 0.0
    %5074 = vmatprep.subr.mxu0 0.0
    %5075 = vmatpush1.msra.mxu0 0.0
    %5076 = vmatprep.subr.mxu0 0.0
    %5077 = vmatpush1.msra.mxu0 0.0
    %5078 = vmatprep.subr.mxu0 0.0
    %5079 = vmatpush1.msra.mxu0 0.0
    %5080 = vmatprep.subr.mxu0 0.0
    %5081 = vmatpush1.msra.mxu0 0.0
    %5082 = vmatprep.subr.mxu0 0.0
    %5083 = vmatpush1.msra.mxu0 0.0
    %5084 = vmatprep.subr.mxu0 0.0
    %5085 = vmatpush1.msra.mxu0 0.0
    %5086 = vmatprep.subr.mxu0 0.0
    %5087 = vmatpush1.msra.mxu0 0.0
    %5088 = vmatprep.subr.mxu0 0.0
    %5089 = vmatpush1.msra.mxu0 0.0
    %5090 = vmatprep.subr.mxu0 0.0
    %5091 = vmatpush1.msra.mxu0 0.0
    %5092 = vmatprep.subr.mxu0 0.0
    %5093 = vmatpush1.msra.mxu0 0.0
    %5094 = vmatprep.mubr.f32.mxu0 0.0
    %5095 = vmatmul.mubr.f32.gmra.mrb[0].mxu0 %v4280
    %v5096 = vpop.f32.mrb[0].mxu0
    %v5097 = vadd.f32 %v4881, %v5096
    %v5098 = vpop.f32.mrb[0].mxu0
    %5099 = vdwg.mxu0
    %5100 = vmatprep.subr.mxu0 0.0
    %5101 = vmatpush1.msra.mxu0 %v4231
    %5102 = vmatprep.subr.mxu0 0.0
    %5103 = vmatpush1.msra.mxu0 %v4232
    %5104 = vmatprep.subr.mxu0 0.0
    %5105 = vmatpush1.msra.mxu0 %v4233
    %5106 = vmatprep.subr.mxu0 0.0
    %5107 = vmatpush1.msra.mxu0 %v4234
    %5108 = vmatprep.subr.mxu0 0.0
    %5109 = vmatpush1.msra.mxu0 0.0
    %5110 = vmatprep.subr.mxu0 0.0
    %5111 = vmatpush1.msra.mxu0 0.0
    %5112 = vmatprep.subr.mxu0 0.0
    %5113 = vmatpush1.msra.mxu0 0.0
    %5114 = vmatprep.subr.mxu0 0.0
    %5115 = vmatpush1.msra.mxu0 0.0
    %5116 = vmatprep.subr.mxu0 0.0
    %5117 = vmatpush1.msra.mxu0 0.0
    %5118 = vmatprep.subr.mxu0 0.0
    %5119 = vmatpush1.msra.mxu0 0.0
    %5120 = vmatprep.subr.mxu0 0.0
    %5121 = vmatpush1.msra.mxu0 0.0
    %5122 = vmatprep.subr.mxu0 0.0
    %5123 = vmatpush1.msra.mxu0 0.0
    %5124 = vmatprep.subr.mxu0 0.0
    %5125 = vmatpush1.msra.mxu0 0.0
    %5126 = vmatprep.subr.mxu0 0.0
    %5127 = vmatpush1.msra.mxu0 0.0
    %5128 = vmatprep.subr.mxu0 0.0
    %5129 = vmatpush1.msra.mxu0 0.0
    %5130 = vmatprep.subr.mxu0 0.0
    %5131 = vmatpush1.msra.mxu0 0.0
    %5132 = vmatprep.subr.mxu0 0.0
    %5133 = vmatpush1.msra.mxu0 0.0
    %5134 = vmatprep.subr.mxu0 0.0
    %5135 = vmatpush1.msra.mxu0 0.0
    %5136 = vmatprep.subr.mxu0 0.0
    %5137 = vmatpush1.msra.mxu0 0.0
    %5138 = vmatprep.subr.mxu0 0.0
    %5139 = vmatpush1.msra.mxu0 0.0
    %5140 = vmatprep.subr.mxu0 0.0
    %5141 = vmatpush1.msra.mxu0 0.0
    %5142 = vmatprep.subr.mxu0 0.0
    %5143 = vmatpush1.msra.mxu0 0.0
    %5144 = vmatprep.subr.mxu0 0.0
    %5145 = vmatpush1.msra.mxu0 0.0
    %5146 = vmatprep.subr.mxu0 0.0
    %5147 = vmatpush1.msra.mxu0 0.0
    %5148 = vmatprep.subr.mxu0 0.0
    %5149 = vmatpush1.msra.mxu0 0.0
    %5150 = vmatprep.subr.mxu0 0.0
    %5151 = vmatpush1.msra.mxu0 0.0
    %5152 = vmatprep.subr.mxu0 0.0
    %5153 = vmatpush1.msra.mxu0 0.0
    %5154 = vmatprep.subr.mxu0 0.0
    %5155 = vmatpush1.msra.mxu0 0.0
    %5156 = vmatprep.subr.mxu0 0.0
    %5157 = vmatpush1.msra.mxu0 0.0
    %5158 = vmatprep.subr.mxu0 0.0
    %5159 = vmatpush1.msra.mxu0 0.0
    %5160 = vmatprep.subr.mxu0 0.0
    %5161 = vmatpush1.msra.mxu0 0.0
    %5162 = vmatprep.subr.mxu0 0.0
    %5163 = vmatpush1.msra.mxu0 0.0
    %5164 = vmatprep.mubr.f32.mxu0 0.0
    %5165 = vmatmul.mubr.f32.gmra.mrb[0].mxu0 %v4280
    %v5166 = vpop.f32.mrb[0].mxu0
    %v5167 = vadd.f32 %v4885, %v5166
    %v5168 = vpop.f32.mrb[0].mxu0
    %5169 = vdwg.mxu0
    %v5171 = vsel %vm1165, %v4349, 0
    %v5174 = vsel %vm1165, %v4653, 0
    %5176 = vmatprep.subr.mxu0 0.0
    %5177 = vmatpush1.xpose.msra.mxu0 %v5174
    %5178 = vmatprep.subr.mxu0 0.0
    %5179 = vmatpush1.xpose.msra.mxu0 0.0
    %5180 = vmatprep.subr.mxu0 0.0
    %5181 = vmatpush1.xpose.msra.mxu0 0.0
    %5182 = vmatprep.subr.mxu0 0.0
    %5183 = vmatpush1.xpose.msra.mxu0 0.0
    %5184 = vmatprep.subr.mxu0 0.0
    %5185 = vmatpush1.xpose.msra.mxu0 0.0
    %5186 = vmatprep.subr.mxu0 0.0
    %5187 = vmatpush1.xpose.msra.mxu0 0.0
    %5188 = vmatprep.subr.mxu0 0.0
    %5189 = vmatpush1.xpose.msra.mxu0 0.0
    %5190 = vmatprep.subr.mxu0 0.0
    %5191 = vmatpush1.xpose.msra.mxu0 0.0
    %5192 = vmatprep.subr.mxu0 0.0
    %5193 = vmatpush1.xpose.msra.mxu0 0.0
    %5194 = vmatprep.subr.mxu0 0.0
    %5195 = vmatpush1.xpose.msra.mxu0 0.0
    %5196 = vmatprep.subr.mxu0 0.0
    %5197 = vmatpush1.xpose.msra.mxu0 0.0
    %5198 = vmatprep.subr.mxu0 0.0
    %5199 = vmatpush1.xpose.msra.mxu0 0.0
    %5200 = vmatprep.subr.mxu0 0.0
    %5201 = vmatpush1.xpose.msra.mxu0 0.0
    %5202 = vmatprep.subr.mxu0 0.0
    %5203 = vmatpush1.xpose.msra.mxu0 0.0
    %5204 = vmatprep.subr.mxu0 0.0
    %5205 = vmatpush1.xpose.msra.mxu0 0.0
    %5206 = vmatprep.subr.mxu0 0.0
    %5207 = vmatpush1.xpose.msra.mxu0 0.0
    %5208 = vmatprep.subr.mxu0 0.0
    %5209 = vmatpush1.xpose.msra.mxu0 0.0
    %5210 = vmatprep.subr.mxu0 0.0
    %5211 = vmatpush1.xpose.msra.mxu0 0.0
    %5212 = vmatprep.subr.mxu0 0.0
    %5213 = vmatpush1.xpose.msra.mxu0 0.0
    %5214 = vmatprep.subr.mxu0 0.0
    %5215 = vmatpush1.xpose.msra.mxu0 0.0
    %5216 = vmatprep.subr.mxu0 0.0
    %5217 = vmatpush1.xpose.msra.mxu0 0.0
    %5218 = vmatprep.subr.mxu0 0.0
    %5219 = vmatpush1.xpose.msra.mxu0 0.0
    %5220 = vmatprep.subr.mxu0 0.0
    %5221 = vmatpush1.xpose.msra.mxu0 0.0
    %5222 = vmatprep.subr.mxu0 0.0
    %5223 = vmatpush1.xpose.msra.mxu0 0.0
    %5224 = vmatprep.subr.mxu0 0.0
    %5225 = vmatpush1.xpose.msra.mxu0 0.0
    %5226 = vmatprep.subr.mxu0 0.0
    %5227 = vmatpush1.xpose.msra.mxu0 0.0
    %5228 = vmatprep.subr.mxu0 0.0
    %5229 = vmatpush1.xpose.msra.mxu0 0.0
    %5230 = vmatprep.subr.mxu0 0.0
    %5231 = vmatpush1.xpose.msra.mxu0 0.0
    %5232 = vmatprep.subr.mxu0 0.0
    %5233 = vmatpush1.xpose.msra.mxu0 0.0
    %5234 = vmatprep.subr.mxu0 0.0
    %5235 = vmatpush1.xpose.msra.mxu0 0.0
    %5236 = vmatprep.subr.mxu0 0.0
    %5237 = vmatpush1.xpose.msra.mxu0 0.0
    %5238 = vmatprep.subr.mxu0 0.0
    %5239 = vmatpush1.xpose.msra.mxu0 0.0
    %5240 = vmatprep.mubr.f32.mxu0 0.0
    %5241 = vmatmul.mubr.f32.gmra.mrb[0].mxu0 %v5171
    %v5242 = vpop.f32.mrb[0].mxu0
    %v5243 = vadd.f32 %v1164, %v5242
    %v5244 = vpop.f32.mrb[0].mxu0
    %5245 = vdwg.mxu0
    %v5247 = vsel %vm1165, %v4419, 0
    %v5250 = vsel %vm1165, %v4723, 0
    %5252 = vmatprep.subr.mxu0 0.0
    %5253 = vmatpush1.xpose.msra.mxu0 %v5250
    %5254 = vmatprep.subr.mxu0 0.0
    %5255 = vmatpush1.xpose.msra.mxu0 0.0
    %5256 = vmatprep.subr.mxu0 0.0
    %5257 = vmatpush1.xpose.msra.mxu0 0.0
    %5258 = vmatprep.subr.mxu0 0.0
    %5259 = vmatpush1.xpose.msra.mxu0 0.0
    %5260 = vmatprep.subr.mxu0 0.0
    %5261 = vmatpush1.xpose.msra.mxu0 0.0
    %5262 = vmatprep.subr.mxu0 0.0
    %5263 = vmatpush1.xpose.msra.mxu0 0.0
    %5264 = vmatprep.subr.mxu0 0.0
    %5265 = vmatpush1.xpose.msra.mxu0 0.0
    %5266 = vmatprep.subr.mxu0 0.0
    %5267 = vmatpush1.xpose.msra.mxu0 0.0
    %5268 = vmatprep.subr.mxu0 0.0
    %5269 = vmatpush1.xpose.msra.mxu0 0.0
    %5270 = vmatprep.subr.mxu0 0.0
    %5271 = vmatpush1.xpose.msra.mxu0 0.0
    %5272 = vmatprep.subr.mxu0 0.0
    %5273 = vmatpush1.xpose.msra.mxu0 0.0
    %5274 = vmatprep.subr.mxu0 0.0
    %5275 = vmatpush1.xpose.msra.mxu0 0.0
    %5276 = vmatprep.subr.mxu0 0.0
    %5277 = vmatpush1.xpose.msra.mxu0 0.0
    %5278 = vmatprep.subr.mxu0 0.0
    %5279 = vmatpush1.xpose.msra.mxu0 0.0
    %5280 = vmatprep.subr.mxu0 0.0
    %5281 = vmatpush1.xpose.msra.mxu0 0.0
    %5282 = vmatprep.subr.mxu0 0.0
    %5283 = vmatpush1.xpose.msra.mxu0 0.0
    %5284 = vmatprep.subr.mxu0 0.0
    %5285 = vmatpush1.xpose.msra.mxu0 0.0
    %5286 = vmatprep.subr.mxu0 0.0
    %5287 = vmatpush1.xpose.msra.mxu0 0.0
    %5288 = vmatprep.subr.mxu0 0.0
    %5289 = vmatpush1.xpose.msra.mxu0 0.0
    %5290 = vmatprep.subr.mxu0 0.0
    %5291 = vmatpush1.xpose.msra.mxu0 0.0
    %5292 = vmatprep.subr.mxu0 0.0
    %5293 = vmatpush1.xpose.msra.mxu0 0.0
    %5294 = vmatprep.subr.mxu0 0.0
    %5295 = vmatpush1.xpose.msra.mxu0 0.0
    %5296 = vmatprep.subr.mxu0 0.0
    %5297 = vmatpush1.xpose.msra.mxu0 0.0
    %5298 = vmatprep.subr.mxu0 0.0
    %5299 = vmatpush1.xpose.msra.mxu0 0.0
    %5300 = vmatprep.subr.mxu0 0.0
    %5301 = vmatpush1.xpose.msra.mxu0 0.0
    %5302 = vmatprep.subr.mxu0 0.0
    %5303 = vmatpush1.xpose.msra.mxu0 0.0
    %5304 = vmatprep.subr.mxu0 0.0
    %5305 = vmatpush1.xpose.msra.mxu0 0.0
    %5306 = vmatprep.subr.mxu0 0.0
    %5307 = vmatpush1.xpose.msra.mxu0 0.0
    %5308 = vmatprep.subr.mxu0 0.0
    %5309 = vmatpush1.xpose.msra.mxu0 0.0
    %5310 = vmatprep.subr.mxu0 0.0
    %5311 = vmatpush1.xpose.msra.mxu0 0.0
    %5312 = vmatprep.subr.mxu0 0.0
    %5313 = vmatpush1.xpose.msra.mxu0 0.0
    %5314 = vmatprep.subr.mxu0 0.0
    %5315 = vmatpush1.xpose.msra.mxu0 0.0
    %5316 = vmatprep.mubr.f32.mxu0 0.0
    %5317 = vmatmul.mubr.f32.gmra.mrb[0].mxu0 %v5247
    %v5318 = vpop.f32.mrb[0].mxu0
    %v5319 = vadd.f32 %v1164, %v5318
    %v5320 = vpop.f32.mrb[0].mxu0
    %5321 = vdwg.mxu0
    %v5323 = vsel %vm1165, %v4489, 0
    %v5326 = vsel %vm1165, %v4793, 0
    %5328 = vmatprep.subr.mxu0 0.0
    %5329 = vmatpush1.xpose.msra.mxu0 %v5326
    %5330 = vmatprep.subr.mxu0 0.0
    %5331 = vmatpush1.xpose.msra.mxu0 0.0
    %5332 = vmatprep.subr.mxu0 0.0
    %5333 = vmatpush1.xpose.msra.mxu0 0.0
    %5334 = vmatprep.subr.mxu0 0.0
    %5335 = vmatpush1.xpose.msra.mxu0 0.0
    %5336 = vmatprep.subr.mxu0 0.0
    %5337 = vmatpush1.xpose.msra.mxu0 0.0
    %5338 = vmatprep.subr.mxu0 0.0
    %5339 = vmatpush1.xpose.msra.mxu0 0.0
    %5340 = vmatprep.subr.mxu0 0.0
    %5341 = vmatpush1.xpose.msra.mxu0 0.0
    %5342 = vmatprep.subr.mxu0 0.0
    %5343 = vmatpush1.xpose.msra.mxu0 0.0
    %5344 = vmatprep.subr.mxu0 0.0
    %5345 = vmatpush1.xpose.msra.mxu0 0.0
    %5346 = vmatprep.subr.mxu0 0.0
    %5347 = vmatpush1.xpose.msra.mxu0 0.0
    %5348 = vmatprep.subr.mxu0 0.0
    %5349 = vmatpush1.xpose.msra.mxu0 0.0
    %5350 = vmatprep.subr.mxu0 0.0
    %5351 = vmatpush1.xpose.msra.mxu0 0.0
    %5352 = vmatprep.subr.mxu0 0.0
    %5353 = vmatpush1.xpose.msra.mxu0 0.0
    %5354 = vmatprep.subr.mxu0 0.0
    %5355 = vmatpush1.xpose.msra.mxu0 0.0
    %5356 = vmatprep.subr.mxu0 0.0
    %5357 = vmatpush1.xpose.msra.mxu0 0.0
    %5358 = vmatprep.subr.mxu0 0.0
    %5359 = vmatpush1.xpose.msra.mxu0 0.0
    %5360 = vmatprep.subr.mxu0 0.0
    %5361 = vmatpush1.xpose.msra.mxu0 0.0
    %5362 = vmatprep.subr.mxu0 0.0
    %5363 = vmatpush1.xpose.msra.mxu0 0.0
    %5364 = vmatprep.subr.mxu0 0.0
    %5365 = vmatpush1.xpose.msra.mxu0 0.0
    %5366 = vmatprep.subr.mxu0 0.0
    %5367 = vmatpush1.xpose.msra.mxu0 0.0
    %5368 = vmatprep.subr.mxu0 0.0
    %5369 = vmatpush1.xpose.msra.mxu0 0.0
    %5370 = vmatprep.subr.mxu0 0.0
    %5371 = vmatpush1.xpose.msra.mxu0 0.0
    %5372 = vmatprep.subr.mxu0 0.0
    %5373 = vmatpush1.xpose.msra.mxu0 0.0
    %5374 = vmatprep.subr.mxu0 0.0
    %5375 = vmatpush1.xpose.msra.mxu0 0.0
    %5376 = vmatprep.subr.mxu0 0.0
    %5377 = vmatpush1.xpose.msra.mxu0 0.0
    %5378 = vmatprep.subr.mxu0 0.0
    %5379 = vmatpush1.xpose.msra.mxu0 0.0
    %5380 = vmatprep.subr.mxu0 0.0
    %5381 = vmatpush1.xpose.msra.mxu0 0.0
    %5382 = vmatprep.subr.mxu0 0.0
    %5383 = vmatpush1.xpose.msra.mxu0 0.0
    %5384 = vmatprep.subr.mxu0 0.0
    %5385 = vmatpush1.xpose.msra.mxu0 0.0
    %5386 = vmatprep.subr.mxu0 0.0
    %5387 = vmatpush1.xpose.msra.mxu0 0.0
    %5388 = vmatprep.subr.mxu0 0.0
    %5389 = vmatpush1.xpose.msra.mxu0 0.0
    %5390 = vmatprep.subr.mxu0 0.0
    %5391 = vmatpush1.xpose.msra.mxu0 0.0
    %5392 = vmatprep.mubr.f32.mxu0 0.0
    %5393 = vmatmul.mubr.f32.gmra.mrb[0].mxu0 %v5323
    %v5394 = vpop.f32.mrb[0].mxu0
    %v5395 = vadd.f32 %v1164, %v5394
    %v5396 = vpop.f32.mrb[0].mxu0
    %5397 = vdwg.mxu0
    %v5399 = vsel %vm1165, %v4559, 0
    %v5402 = vsel %vm1165, %v4863, 0
    %5404 = vmatprep.subr.mxu0 0.0
    %5405 = vmatpush1.xpose.msra.mxu0 %v5402
    %5406 = vmatprep.subr.mxu0 0.0
    %5407 = vmatpush1.xpose.msra.mxu0 0.0
    %5408 = vmatprep.subr.mxu0 0.0
    %5409 = vmatpush1.xpose.msra.mxu0 0.0
    %5410 = vmatprep.subr.mxu0 0.0
    %5411 = vmatpush1.xpose.msra.mxu0 0.0
    %5412 = vmatprep.subr.mxu0 0.0
    %5413 = vmatpush1.xpose.msra.mxu0 0.0
    %5414 = vmatprep.subr.mxu0 0.0
    %5415 = vmatpush1.xpose.msra.mxu0 0.0
    %5416 = vmatprep.subr.mxu0 0.0
    %5417 = vmatpush1.xpose.msra.mxu0 0.0
    %5418 = vmatprep.subr.mxu0 0.0
    %5419 = vmatpush1.xpose.msra.mxu0 0.0
    %5420 = vmatprep.subr.mxu0 0.0
    %5421 = vmatpush1.xpose.msra.mxu0 0.0
    %5422 = vmatprep.subr.mxu0 0.0
    %5423 = vmatpush1.xpose.msra.mxu0 0.0
    %5424 = vmatprep.subr.mxu0 0.0
    %5425 = vmatpush1.xpose.msra.mxu0 0.0
    %5426 = vmatprep.subr.mxu0 0.0
    %5427 = vmatpush1.xpose.msra.mxu0 0.0
    %5428 = vmatprep.subr.mxu0 0.0
    %5429 = vmatpush1.xpose.msra.mxu0 0.0
    %5430 = vmatprep.subr.mxu0 0.0
    %5431 = vmatpush1.xpose.msra.mxu0 0.0
    %5432 = vmatprep.subr.mxu0 0.0
    %5433 = vmatpush1.xpose.msra.mxu0 0.0
    %5434 = vmatprep.subr.mxu0 0.0
    %5435 = vmatpush1.xpose.msra.mxu0 0.0
    %5436 = vmatprep.subr.mxu0 0.0
    %5437 = vmatpush1.xpose.msra.mxu0 0.0
    %5438 = vmatprep.subr.mxu0 0.0
    %5439 = vmatpush1.xpose.msra.mxu0 0.0
    %5440 = vmatprep.subr.mxu0 0.0
    %5441 = vmatpush1.xpose.msra.mxu0 0.0
    %5442 = vmatprep.subr.mxu0 0.0
    %5443 = vmatpush1.xpose.msra.mxu0 0.0
    %5444 = vmatprep.subr.mxu0 0.0
    %5445 = vmatpush1.xpose.msra.mxu0 0.0
    %5446 = vmatprep.subr.mxu0 0.0
    %5447 = vmatpush1.xpose.msra.mxu0 0.0
    %5448 = vmatprep.subr.mxu0 0.0
    %5449 = vmatpush1.xpose.msra.mxu0 0.0
    %5450 = vmatprep.subr.mxu0 0.0
    %5451 = vmatpush1.xpose.msra.mxu0 0.0
    %5452 = vmatprep.subr.mxu0 0.0
    %5453 = vmatpush1.xpose.msra.mxu0 0.0
    %5454 = vmatprep.subr.mxu0 0.0
    %5455 = vmatpush1.xpose.msra.mxu0 0.0
    %5456 = vmatprep.subr.mxu0 0.0
    %5457 = vmatpush1.xpose.msra.mxu0 0.0
    %5458 = vmatprep.subr.mxu0 0.0
    %5459 = vmatpush1.xpose.msra.mxu0 0.0
    %5460 = vmatprep.subr.mxu0 0.0
    %5461 = vmatpush1.xpose.msra.mxu0 0.0
    %5462 = vmatprep.subr.mxu0 0.0
    %5463 = vmatpush1.xpose.msra.mxu0 0.0
    %5464 = vmatprep.subr.mxu0 0.0
    %5465 = vmatpush1.xpose.msra.mxu0 0.0
    %5466 = vmatprep.subr.mxu0 0.0
    %5467 = vmatpush1.xpose.msra.mxu0 0.0
    %5468 = vmatprep.mubr.f32.mxu0 0.0
    %5469 = vmatmul.mubr.f32.gmra.mrb[0].mxu0 %v5399
    %v5470 = vpop.f32.mrb[0].mxu0
    %v5471 = vadd.f32 %v1164, %v5470
    %v5472 = vpop.f32.mrb[0].mxu0
    %5473 = vdwg.mxu0
    %v5474 = vsel %vm1165, %v5243, -inf
    %5475 = vmax.xlane.f32.xlu0 %v5474
    %v5476 = vpop.xlane.xlu0 %5475
    %v5477 = vsel %vm1165, %v5319, -inf
    %5478 = vmax.xlane.f32.xlu0 %v5477
    %v5479 = vpop.xlane.xlu0 %5478
    %v5480 = vsel %vm1165, %v5395, -inf
    %5481 = vmax.xlane.f32.xlu0 %v5480
    %v5482 = vpop.xlane.xlu0 %5481
    %v5483 = vsel %vm1165, %v5471, -inf
    %5484 = vmax.xlane.f32.xlu0 %v5483
    %v5485 = vpop.xlane.xlu0 %5484
    %v5486 = vsub.f32 %v5243, %v5476
    %v5487 = vsub.f32 %v5319, %v5479
    %v5488 = vsub.f32 %v5395, %v5482
    %v5489 = vsub.f32 %v5471, %v5485
    %v5490 = vmul.f32 %v5486, 1.442695
    %v5491 = vpow.pop %v5490
    %v5492 = vmul.f32 %v5487, 1.442695
    %v5493 = vpow.pop %v5492
    %v5494 = vmul.f32 %v5488, 1.442695
    %v5495 = vpow.pop %v5494
    %v5496 = vmul.f32 %v5489, 1.442695
    %v5497 = vpow.pop %v5496
    %v5498 = vsel %vm1165, %v5491, 0.0
    %5499 = vadd.xlane.f32.xlu0 %v5498
    %v5500 = vpop.xlane.xlu0 %5499
    %v5501 = vsel %vm1165, %v5493, 0.0
    %5502 = vadd.xlane.f32.xlu0 %v5501
    %v5503 = vpop.xlane.xlu0 %5502
    %v5504 = vsel %vm1165, %v5495, 0.0
    %5505 = vadd.xlane.f32.xlu0 %v5504
    %v5506 = vpop.xlane.xlu0 %5505
    %v5507 = vsel %vm1165, %v5497, 0.0
    %5508 = vadd.xlane.f32.xlu0 %v5507
    %v5509 = vpop.xlane.xlu0 %5508
    %v5510 = vrcp.pop %v5500
    %v5511 = vrcp.pop %v5503
    %v5512 = vrcp.pop %v5506
    %v5513 = vrcp.pop %v5509
    %v5514 = vmul.f32 %v5491, %v5510
    %v5515 = vmul.f32 %v5493, %v5511
    %v5516 = vmul.f32 %v5495, %v5512
    %v5517 = vmul.f32 %v5497, %v5513
    %v5519 = vsel %vm1165, %v5514, 0
    %5521 = vmatprep.subr.mxu0 0.0
    %5522 = vmatpush1.msra.mxu0 %v4957
    %5523 = vmatprep.subr.mxu0 0.0
    %5524 = vmatpush1.msra.mxu0 0.0
    %5525 = vmatprep.subr.mxu0 0.0
    %5526 = vmatpush1.msra.mxu0 0.0
    %5527 = vmatprep.subr.mxu0 0.0
    %5528 = vmatpush1.msra.mxu0 0.0
    %5529 = vmatprep.subr.mxu0 0.0
    %5530 = vmatpush1.msra.mxu0 0.0
    %5531 = vmatprep.subr.mxu0 0.0
    %5532 = vmatpush1.msra.mxu0 0.0
    %5533 = vmatprep.subr.mxu0 0.0
    %5534 = vmatpush1.msra.mxu0 0.0
    %5535 = vmatprep.subr.mxu0 0.0
    %5536 = vmatpush1.msra.mxu0 0.0
    %5537 = vmatprep.subr.mxu0 0.0
    %5538 = vmatpush1.msra.mxu0 0.0
    %5539 = vmatprep.subr.mxu0 0.0
    %5540 = vmatpush1.msra.mxu0 0.0
    %5541 = vmatprep.subr.mxu0 0.0
    %5542 = vmatpush1.msra.mxu0 0.0
    %5543 = vmatprep.subr.mxu0 0.0
    %5544 = vmatpush1.msra.mxu0 0.0
    %5545 = vmatprep.subr.mxu0 0.0
    %5546 = vmatpush1.msra.mxu0 0.0
    %5547 = vmatprep.subr.mxu0 0.0
    %5548 = vmatpush1.msra.mxu0 0.0
    %5549 = vmatprep.subr.mxu0 0.0
    %5550 = vmatpush1.msra.mxu0 0.0
    %5551 = vmatprep.subr.mxu0 0.0
    %5552 = vmatpush1.msra.mxu0 0.0
    %5553 = vmatprep.subr.mxu0 0.0
    %5554 = vmatpush1.msra.mxu0 0.0
    %5555 = vmatprep.subr.mxu0 0.0
    %5556 = vmatpush1.msra.mxu0 0.0
    %5557 = vmatprep.subr.mxu0 0.0
    %5558 = vmatpush1.msra.mxu0 0.0
    %5559 = vmatprep.subr.mxu0 0.0
    %5560 = vmatpush1.msra.mxu0 0.0
    %5561 = vmatprep.subr.mxu0 0.0
    %5562 = vmatpush1.msra.mxu0 0.0
    %5563 = vmatprep.subr.mxu0 0.0
    %5564 = vmatpush1.msra.mxu0 0.0
    %5565 = vmatprep.subr.mxu0 0.0
    %5566 = vmatpush1.msra.mxu0 0.0
    %5567 = vmatprep.subr.mxu0 0.0
    %5568 = vmatpush1.msra.mxu0 0.0
    %5569 = vmatprep.subr.mxu0 0.0
    %5570 = vmatpush1.msra.mxu0 0.0
    %5571 = vmatprep.subr.mxu0 0.0
    %5572 = vmatpush1.msra.mxu0 0.0
    %5573 = vmatprep.subr.mxu0 0.0
    %5574 = vmatpush1.msra.mxu0 0.0
    %5575 = vmatprep.subr.mxu0 0.0
    %5576 = vmatpush1.msra.mxu0 0.0
    %5577 = vmatprep.subr.mxu0 0.0
    %5578 = vmatpush1.msra.mxu0 0.0
    %5579 = vmatprep.subr.mxu0 0.0
    %5580 = vmatpush1.msra.mxu0 0.0
    %5581 = vmatprep.subr.mxu0 0.0
    %5582 = vmatpush1.msra.mxu0 0.0
    %5583 = vmatprep.subr.mxu0 0.0
    %5584 = vmatpush1.msra.mxu0 0.0
    %5585 = vmatprep.mubr.f32.mxu0 0.0
    %5586 = vmatmul.mubr.f32.gmra.mrb[0].mxu0 %v5519
    %v5587 = vpop.f32.mrb[0].mxu0
    %v5588 = vadd.f32 0.0, %v5587
    %v5589 = vpop.f32.mrb[0].mxu0
    %5590 = vdwg.mxu0
    %v5592 = vsel %vm1165, %v5515, 0
    %5594 = vmatprep.subr.mxu0 0.0
    %5595 = vmatpush1.msra.mxu0 %v5027
    %5596 = vmatprep.subr.mxu0 0.0
    %5597 = vmatpush1.msra.mxu0 0.0
    %5598 = vmatprep.subr.mxu0 0.0
    %5599 = vmatpush1.msra.mxu0 0.0
    %5600 = vmatprep.subr.mxu0 0.0
    %5601 = vmatpush1.msra.mxu0 0.0
    %5602 = vmatprep.subr.mxu0 0.0
    %5603 = vmatpush1.msra.mxu0 0.0
    %5604 = vmatprep.subr.mxu0 0.0
    %5605 = vmatpush1.msra.mxu0 0.0
    %5606 = vmatprep.subr.mxu0 0.0
    %5607 = vmatpush1.msra.mxu0 0.0
    %5608 = vmatprep.subr.mxu0 0.0
    %5609 = vmatpush1.msra.mxu0 0.0
    %5610 = vmatprep.subr.mxu0 0.0
    %5611 = vmatpush1.msra.mxu0 0.0
    %5612 = vmatprep.subr.mxu0 0.0
    %5613 = vmatpush1.msra.mxu0 0.0
    %5614 = vmatprep.subr.mxu0 0.0
    %5615 = vmatpush1.msra.mxu0 0.0
    %5616 = vmatprep.subr.mxu0 0.0
    %5617 = vmatpush1.msra.mxu0 0.0
    %5618 = vmatprep.subr.mxu0 0.0
    %5619 = vmatpush1.msra.mxu0 0.0
    %5620 = vmatprep.subr.mxu0 0.0
    %5621 = vmatpush1.msra.mxu0 0.0
    %5622 = vmatprep.subr.mxu0 0.0
    %5623 = vmatpush1.msra.mxu0 0.0
    %5624 = vmatprep.subr.mxu0 0.0
    %5625 = vmatpush1.msra.mxu0 0.0
    %5626 = vmatprep.subr.mxu0 0.0
    %5627 = vmatpush1.msra.mxu0 0.0
    %5628 = vmatprep.subr.mxu0 0.0
    %5629 = vmatpush1.msra.mxu0 0.0
    %5630 = vmatprep.subr.mxu0 0.0
    %5631 = vmatpush1.msra.mxu0 0.0
    %5632 = vmatprep.subr.mxu0 0.0
    %5633 = vmatpush1.msra.mxu0 0.0
    %5634 = vmatprep.subr.mxu0 0.0
    %5635 = vmatpush1.msra.mxu0 0.0
    %5636 = vmatprep.subr.mxu0 0.0
    %5637 = vmatpush1.msra.mxu0 0.0
    %5638 = vmatprep.subr.mxu0 0.0
    %5639 = vmatpush1.msra.mxu0 0.0
    %5640 = vmatprep.subr.mxu0 0.0
    %5641 = vmatpush1.msra.mxu0 0.0
    %5642 = vmatprep.subr.mxu0 0.0
    %5643 = vmatpush1.msra.mxu0 0.0
    %5644 = vmatprep.subr.mxu0 0.0
    %5645 = vmatpush1.msra.mxu0 0.0
    %5646 = vmatprep.subr.mxu0 0.0
    %5647 = vmatpush1.msra.mxu0 0.0
    %5648 = vmatprep.subr.mxu0 0.0
    %5649 = vmatpush1.msra.mxu0 0.0
    %5650 = vmatprep.subr.mxu0 0.0
    %5651 = vmatpush1.msra.mxu0 0.0
    %5652 = vmatprep.subr.mxu0 0.0
    %5653 = vmatpush1.msra.mxu0 0.0
    %5654 = vmatprep.subr.mxu0 0.0
    %5655 = vmatpush1.msra.mxu0 0.0
    %5656 = vmatprep.subr.mxu0 0.0
    %5657 = vmatpush1.msra.mxu0 0.0
    %5658 = vmatprep.mubr.f32.mxu0 0.0
    %5659 = vmatmul.mubr.f32.gmra.mrb[0].mxu0 %v5592
    %v5660 = vpop.f32.mrb[0].mxu0
    %v5661 = vadd.f32 0.0, %v5660
    %v5662 = vpop.f32.mrb[0].mxu0
    %5663 = vdwg.mxu0
    %v5665 = vsel %vm1165, %v5516, 0
    %5667 = vmatprep.subr.mxu0 0.0
    %5668 = vmatpush1.msra.mxu0 %v5097
    %5669 = vmatprep.subr.mxu0 0.0
    %5670 = vmatpush1.msra.mxu0 0.0
    %5671 = vmatprep.subr.mxu0 0.0
    %5672 = vmatpush1.msra.mxu0 0.0
    %5673 = vmatprep.subr.mxu0 0.0
    %5674 = vmatpush1.msra.mxu0 0.0
    %5675 = vmatprep.subr.mxu0 0.0
    %5676 = vmatpush1.msra.mxu0 0.0
    %5677 = vmatprep.subr.mxu0 0.0
    %5678 = vmatpush1.msra.mxu0 0.0
    %5679 = vmatprep.subr.mxu0 0.0
    %5680 = vmatpush1.msra.mxu0 0.0
    %5681 = vmatprep.subr.mxu0 0.0
    %5682 = vmatpush1.msra.mxu0 0.0
    %5683 = vmatprep.subr.mxu0 0.0
    %5684 = vmatpush1.msra.mxu0 0.0
    %5685 = vmatprep.subr.mxu0 0.0
    %5686 = vmatpush1.msra.mxu0 0.0
    %5687 = vmatprep.subr.mxu0 0.0
    %5688 = vmatpush1.msra.mxu0 0.0
    %5689 = vmatprep.subr.mxu0 0.0
    %5690 = vmatpush1.msra.mxu0 0.0
    %5691 = vmatprep.subr.mxu0 0.0
    %5692 = vmatpush1.msra.mxu0 0.0
    %5693 = vmatprep.subr.mxu0 0.0
    %5694 = vmatpush1.msra.mxu0 0.0
    %5695 = vmatprep.subr.mxu0 0.0
    %5696 = vmatpush1.msra.mxu0 0.0
    %5697 = vmatprep.subr.mxu0 0.0
    %5698 = vmatpush1.msra.mxu0 0.0
    %5699 = vmatprep.subr.mxu0 0.0
    %5700 = vmatpush1.msra.mxu0 0.0
    %5701 = vmatprep.subr.mxu0 0.0
    %5702 = vmatpush1.msra.mxu0 0.0
    %5703 = vmatprep.subr.mxu0 0.0
    %5704 = vmatpush1.msra.mxu0 0.0
    %5705 = vmatprep.subr.mxu0 0.0
    %5706 = vmatpush1.msra.mxu0 0.0
    %5707 = vmatprep.subr.mxu0 0.0
    %5708 = vmatpush1.msra.mxu0 0.0
    %5709 = vmatprep.subr.mxu0 0.0
    %5710 = vmatpush1.msra.mxu0 0.0
    %5711 = vmatprep.subr.mxu0 0.0
    %5712 = vmatpush1.msra.mxu0 0.0
    %5713 = vmatprep.subr.mxu0 0.0
    %5714 = vmatpush1.msra.mxu0 0.0
    %5715 = vmatprep.subr.mxu0 0.0
    %5716 = vmatpush1.msra.mxu0 0.0
    %5717 = vmatprep.subr.mxu0 0.0
    %5718 = vmatpush1.msra.mxu0 0.0
    %5719 = vmatprep.subr.mxu0 0.0
    %5720 = vmatpush1.msra.mxu0 0.0
    %5721 = vmatprep.subr.mxu0 0.0
    %5722 = vmatpush1.msra.mxu0 0.0
    %5723 = vmatprep.subr.mxu0 0.0
    %5724 = vmatpush1.msra.mxu0 0.0
    %5725 = vmatprep.subr.mxu0 0.0
    %5726 = vmatpush1.msra.mxu0 0.0
    %5727 = vmatprep.subr.mxu0 0.0
    %5728 = vmatpush1.msra.mxu0 0.0
    %5729 = vmatprep.subr.mxu0 0.0
    %5730 = vmatpush1.msra.mxu0 0.0
    %5731 = vmatprep.mubr.f32.mxu0 0.0
    %5732 = vmatmul.mubr.f32.gmra.mrb[0].mxu0 %v5665
    %v5733 = vpop.f32.mrb[0].mxu0
    %v5734 = vadd.f32 0.0, %v5733
    %v5735 = vpop.f32.mrb[0].mxu0
    %5736 = vdwg.mxu0
    %v5738 = vsel %vm1165, %v5517, 0
    %5740 = vmatprep.subr.mxu0 0.0
    %5741 = vmatpush1.msra.mxu0 %v5167
    %5742 = vmatprep.subr.mxu0 0.0
    %5743 = vmatpush1.msra.mxu0 0.0
    %5744 = vmatprep.subr.mxu0 0.0
    %5745 = vmatpush1.msra.mxu0 0.0
    %5746 = vmatprep.subr.mxu0 0.0
    %5747 = vmatpush1.msra.mxu0 0.0
    %5748 = vmatprep.subr.mxu0 0.0
    %5749 = vmatpush1.msra.mxu0 0.0
    %5750 = vmatprep.subr.mxu0 0.0
    %5751 = vmatpush1.msra.mxu0 0.0
    %5752 = vmatprep.subr.mxu0 0.0
    %5753 = vmatpush1.msra.mxu0 0.0
    %5754 = vmatprep.subr.mxu0 0.0
    %5755 = vmatpush1.msra.mxu0 0.0
    %5756 = vmatprep.subr.mxu0 0.0
    %5757 = vmatpush1.msra.mxu0 0.0
    %5758 = vmatprep.subr.mxu0 0.0
    %5759 = vmatpush1.msra.mxu0 0.0
    %5760 = vmatprep.subr.mxu0 0.0
    %5761 = vmatpush1.msra.mxu0 0.0
    %5762 = vmatprep.subr.mxu0 0.0
    %5763 = vmatpush1.msra.mxu0 0.0
    %5764 = vmatprep.subr.mxu0 0.0
    %5765 = vmatpush1.msra.mxu0 0.0
    %5766 = vmatprep.subr.mxu0 0.0
    %5767 = vmatpush1.msra.mxu0 0.0
    %5768 = vmatprep.subr.mxu0 0.0
    %5769 = vmatpush1.msra.mxu0 0.0
    %5770 = vmatprep.subr.mxu0 0.0
    %5771 = vmatpush1.msra.mxu0 0.0
    %5772 = vmatprep.subr.mxu0 0.0
    %5773 = vmatpush1.msra.mxu0 0.0
    %5774 = vmatprep.subr.mxu0 0.0
    %5775 = vmatpush1.msra.mxu0 0.0
    %5776 = vmatprep.subr.mxu0 0.0
    %5777 = vmatpush1.msra.mxu0 0.0
    %5778 = vmatprep.subr.mxu0 0.0
    %5779 = vmatpush1.msra.mxu0 0.0
    %5780 = vmatprep.subr.mxu0 0.0
    %5781 = vmatpush1.msra.mxu0 0.0
    %5782 = vmatprep.subr.mxu0 0.0
    %5783 = vmatpush1.msra.mxu0 0.0
    %5784 = vmatprep.subr.mxu0 0.0
    %5785 = vmatpush1.msra.mxu0 0.0
    %5786 = vmatprep.subr.mxu0 0.0
    %5787 = vmatpush1.msra.mxu0 0.0
    %5788 = vmatprep.subr.mxu0 0.0
    %5789 = vmatpush1.msra.mxu0 0.0
    %5790 = vmatprep.subr.mxu0 0.0
    %5791 = vmatpush1.msra.mxu0 0.0
    %5792 = vmatprep.subr.mxu0 0.0
    %5793 = vmatpush1.msra.mxu0 0.0
    %5794 = vmatprep.subr.mxu0 0.0
    %5795 = vmatpush1.msra.mxu0 0.0
    %5796 = vmatprep.subr.mxu0 0.0
    %5797 = vmatpush1.msra.mxu0 0.0
    %5798 = vmatprep.subr.mxu0 0.0
    %5799 = vmatpush1.msra.mxu0 0.0
    %5800 = vmatprep.subr.mxu0 0.0
    %5801 = vmatpush1.msra.mxu0 0.0
    %5802 = vmatprep.subr.mxu0 0.0
    %5803 = vmatpush1.msra.mxu0 0.0
    %5804 = vmatprep.mubr.f32.mxu0 0.0
    %5805 = vmatmul.mubr.f32.gmra.mrb[0].mxu0 %v5738
    %v5806 = vpop.f32.mrb[0].mxu0
    %v5807 = vadd.f32 0.0, %v5806
    %v5808 = vpop.f32.mrb[0].mxu0
    %5809 = vdwg.mxu0
    %v5811 = vsel %vm1165, %v5588, 0
    %5813 = vmatprep.subr.mxu0 0.0
    %5814 = vmatpush1.msra.mxu0 %v4251
    %5815 = vmatprep.subr.mxu0 0.0
    %5816 = vmatpush1.msra.mxu0 0.0
    %5817 = vmatprep.subr.mxu0 0.0
    %5818 = vmatpush1.msra.mxu0 0.0
    %5819 = vmatprep.subr.mxu0 0.0
    %5820 = vmatpush1.msra.mxu0 0.0
    %5821 = vmatprep.subr.mxu0 0.0
    %5822 = vmatpush1.msra.mxu0 0.0
    %5823 = vmatprep.subr.mxu0 0.0
    %5824 = vmatpush1.msra.mxu0 0.0
    %5825 = vmatprep.subr.mxu0 0.0
    %5826 = vmatpush1.msra.mxu0 0.0
    %5827 = vmatprep.subr.mxu0 0.0
    %5828 = vmatpush1.msra.mxu0 0.0
    %5829 = vmatprep.subr.mxu0 0.0
    %5830 = vmatpush1.msra.mxu0 0.0
    %5831 = vmatprep.subr.mxu0 0.0
    %5832 = vmatpush1.msra.mxu0 0.0
    %5833 = vmatprep.subr.mxu0 0.0
    %5834 = vmatpush1.msra.mxu0 0.0
    %5835 = vmatprep.subr.mxu0 0.0
    %5836 = vmatpush1.msra.mxu0 0.0
    %5837 = vmatprep.subr.mxu0 0.0
    %5838 = vmatpush1.msra.mxu0 0.0
    %5839 = vmatprep.subr.mxu0 0.0
    %5840 = vmatpush1.msra.mxu0 0.0
    %5841 = vmatprep.subr.mxu0 0.0
    %5842 = vmatpush1.msra.mxu0 0.0
    %5843 = vmatprep.subr.mxu0 0.0
    %5844 = vmatpush1.msra.mxu0 0.0
    %5845 = vmatprep.subr.mxu0 0.0
    %5846 = vmatpush1.msra.mxu0 0.0
    %5847 = vmatprep.subr.mxu0 0.0
    %5848 = vmatpush1.msra.mxu0 0.0
    %5849 = vmatprep.subr.mxu0 0.0
    %5850 = vmatpush1.msra.mxu0 0.0
    %5851 = vmatprep.subr.mxu0 0.0
    %5852 = vmatpush1.msra.mxu0 0.0
    %5853 = vmatprep.subr.mxu0 0.0
    %5854 = vmatpush1.msra.mxu0 0.0
    %5855 = vmatprep.subr.mxu0 0.0
    %5856 = vmatpush1.msra.mxu0 0.0
    %5857 = vmatprep.subr.mxu0 0.0
    %5858 = vmatpush1.msra.mxu0 0.0
    %5859 = vmatprep.subr.mxu0 0.0
    %5860 = vmatpush1.msra.mxu0 0.0
    %5861 = vmatprep.subr.mxu0 0.0
    %5862 = vmatpush1.msra.mxu0 0.0
    %5863 = vmatprep.subr.mxu0 0.0
    %5864 = vmatpush1.msra.mxu0 0.0
    %5865 = vmatprep.subr.mxu0 0.0
    %5866 = vmatpush1.msra.mxu0 0.0
    %5867 = vmatprep.subr.mxu0 0.0
    %5868 = vmatpush1.msra.mxu0 0.0
    %5869 = vmatprep.subr.mxu0 0.0
    %5870 = vmatpush1.msra.mxu0 0.0
    %5871 = vmatprep.subr.mxu0 0.0
    %5872 = vmatpush1.msra.mxu0 0.0
    %5873 = vmatprep.subr.mxu0 0.0
    %5874 = vmatpush1.msra.mxu0 0.0
    %5875 = vmatprep.subr.mxu0 0.0
    %5876 = vmatpush1.msra.mxu0 0.0
    %5877 = vmatprep.mubr.f32.mxu0 0.0
    %5878 = vmatmul.mubr.f32.gmra.mrb[0].mxu0 %v5811
    %v5879 = vpop.f32.mrb[0].mxu0
    %v5880 = vadd.f32 0.0, %v5879
    %v5881 = vpop.f32.mrb[0].mxu0
    %5882 = vdwg.mxu0
    %v5884 = vsel %vm1165, %v5661, 0
    %5886 = vmatprep.subr.mxu0 0.0
    %5887 = vmatpush1.msra.mxu0 %v4252
    %5888 = vmatprep.subr.mxu0 0.0
    %5889 = vmatpush1.msra.mxu0 0.0
    %5890 = vmatprep.subr.mxu0 0.0
    %5891 = vmatpush1.msra.mxu0 0.0
    %5892 = vmatprep.subr.mxu0 0.0
    %5893 = vmatpush1.msra.mxu0 0.0
    %5894 = vmatprep.subr.mxu0 0.0
    %5895 = vmatpush1.msra.mxu0 0.0
    %5896 = vmatprep.subr.mxu0 0.0
    %5897 = vmatpush1.msra.mxu0 0.0
    %5898 = vmatprep.subr.mxu0 0.0
    %5899 = vmatpush1.msra.mxu0 0.0
    %5900 = vmatprep.subr.mxu0 0.0
    %5901 = vmatpush1.msra.mxu0 0.0
    %5902 = vmatprep.subr.mxu0 0.0
    %5903 = vmatpush1.msra.mxu0 0.0
    %5904 = vmatprep.subr.mxu0 0.0
    %5905 = vmatpush1.msra.mxu0 0.0
    %5906 = vmatprep.subr.mxu0 0.0
    %5907 = vmatpush1.msra.mxu0 0.0
    %5908 = vmatprep.subr.mxu0 0.0
    %5909 = vmatpush1.msra.mxu0 0.0
    %5910 = vmatprep.subr.mxu0 0.0
    %5911 = vmatpush1.msra.mxu0 0.0
    %5912 = vmatprep.subr.mxu0 0.0
    %5913 = vmatpush1.msra.mxu0 0.0
    %5914 = vmatprep.subr.mxu0 0.0
    %5915 = vmatpush1.msra.mxu0 0.0
    %5916 = vmatprep.subr.mxu0 0.0
    %5917 = vmatpush1.msra.mxu0 0.0
    %5918 = vmatprep.subr.mxu0 0.0
    %5919 = vmatpush1.msra.mxu0 0.0
    %5920 = vmatprep.subr.mxu0 0.0
    %5921 = vmatpush1.msra.mxu0 0.0
    %5922 = vmatprep.subr.mxu0 0.0
    %5923 = vmatpush1.msra.mxu0 0.0
    %5924 = vmatprep.subr.mxu0 0.0
    %5925 = vmatpush1.msra.mxu0 0.0
    %5926 = vmatprep.subr.mxu0 0.0
    %5927 = vmatpush1.msra.mxu0 0.0
    %5928 = vmatprep.subr.mxu0 0.0
    %5929 = vmatpush1.msra.mxu0 0.0
    %5930 = vmatprep.subr.mxu0 0.0
    %5931 = vmatpush1.msra.mxu0 0.0
    %5932 = vmatprep.subr.mxu0 0.0
    %5933 = vmatpush1.msra.mxu0 0.0
    %5934 = vmatprep.subr.mxu0 0.0
    %5935 = vmatpush1.msra.mxu0 0.0
    %5936 = vmatprep.subr.mxu0 0.0
    %5937 = vmatpush1.msra.mxu0 0.0
    %5938 = vmatprep.subr.mxu0 0.0
    %5939 = vmatpush1.msra.mxu0 0.0
    %5940 = vmatprep.subr.mxu0 0.0
    %5941 = vmatpush1.msra.mxu0 0.0
    %5942 = vmatprep.subr.mxu0 0.0
    %5943 = vmatpush1.msra.mxu0 0.0
    %5944 = vmatprep.subr.mxu0 0.0
    %5945 = vmatpush1.msra.mxu0 0.0
    %5946 = vmatprep.subr.mxu0 0.0
    %5947 = vmatpush1.msra.mxu0 0.0
    %5948 = vmatprep.subr.mxu0 0.0
    %5949 = vmatpush1.msra.mxu0 0.0
    %5950 = vmatprep.mubr.f32.mxu0 0.0
    %5951 = vmatmul.mubr.f32.gmra.mrb[0].mxu0 %v5884
    %v5952 = vpop.f32.mrb[0].mxu0
    %v5953 = vadd.f32 0.0, %v5952
    %v5954 = vpop.f32.mrb[0].mxu0
    %5955 = vdwg.mxu0
    %v5957 = vsel %vm1165, %v5734, 0
    %5959 = vmatprep.subr.mxu0 0.0
    %5960 = vmatpush1.msra.mxu0 %v4253
    %5961 = vmatprep.subr.mxu0 0.0
    %5962 = vmatpush1.msra.mxu0 0.0
    %5963 = vmatprep.subr.mxu0 0.0
    %5964 = vmatpush1.msra.mxu0 0.0
    %5965 = vmatprep.subr.mxu0 0.0
    %5966 = vmatpush1.msra.mxu0 0.0
    %5967 = vmatprep.subr.mxu0 0.0
    %5968 = vmatpush1.msra.mxu0 0.0
    %5969 = vmatprep.subr.mxu0 0.0
    %5970 = vmatpush1.msra.mxu0 0.0
    %5971 = vmatprep.subr.mxu0 0.0
    %5972 = vmatpush1.msra.mxu0 0.0
    %5973 = vmatprep.subr.mxu0 0.0
    %5974 = vmatpush1.msra.mxu0 0.0
    %5975 = vmatprep.subr.mxu0 0.0
    %5976 = vmatpush1.msra.mxu0 0.0
    %5977 = vmatprep.subr.mxu0 0.0
    %5978 = vmatpush1.msra.mxu0 0.0
    %5979 = vmatprep.subr.mxu0 0.0
    %5980 = vmatpush1.msra.mxu0 0.0
    %5981 = vmatprep.subr.mxu0 0.0
    %5982 = vmatpush1.msra.mxu0 0.0
    %5983 = vmatprep.subr.mxu0 0.0
    %5984 = vmatpush1.msra.mxu0 0.0
    %5985 = vmatprep.subr.mxu0 0.0
    %5986 = vmatpush1.msra.mxu0 0.0
    %5987 = vmatprep.subr.mxu0 0.0
    %5988 = vmatpush1.msra.mxu0 0.0
    %5989 = vmatprep.subr.mxu0 0.0
    %5990 = vmatpush1.msra.mxu0 0.0
    %5991 = vmatprep.subr.mxu0 0.0
    %5992 = vmatpush1.msra.mxu0 0.0
    %5993 = vmatprep.subr.mxu0 0.0
    %5994 = vmatpush1.msra.mxu0 0.0
    %5995 = vmatprep.subr.mxu0 0.0
    %5996 = vmatpush1.msra.mxu0 0.0
    %5997 = vmatprep.subr.mxu0 0.0
    %5998 = vmatpush1.msra.mxu0 0.0
    %5999 = vmatprep.subr.mxu0 0.0
    %6000 = vmatpush1.msra.mxu0 0.0
    %6001 = vmatprep.subr.mxu0 0.0
    %6002 = vmatpush1.msra.mxu0 0.0
    %6003 = vmatprep.subr.mxu0 0.0
    %6004 = vmatpush1.msra.mxu0 0.0
    %6005 = vmatprep.subr.mxu0 0.0
    %6006 = vmatpush1.msra.mxu0 0.0
    %6007 = vmatprep.subr.mxu0 0.0
    %6008 = vmatpush1.msra.mxu0 0.0
    %6009 = vmatprep.subr.mxu0 0.0
    %6010 = vmatpush1.msra.mxu0 0.0
    %6011 = vmatprep.subr.mxu0 0.0
    %6012 = vmatpush1.msra.mxu0 0.0
    %6013 = vmatprep.subr.mxu0 0.0
    %6014 = vmatpush1.msra.mxu0 0.0
    %6015 = vmatprep.subr.mxu0 0.0
    %6016 = vmatpush1.msra.mxu0 0.0
    %6017 = vmatprep.subr.mxu0 0.0
    %6018 = vmatpush1.msra.mxu0 0.0
    %6019 = vmatprep.subr.mxu0 0.0
    %6020 = vmatpush1.msra.mxu0 0.0
    %6021 = vmatprep.subr.mxu0 0.0
    %6022 = vmatpush1.msra.mxu0 0.0
    %6023 = vmatprep.mubr.f32.mxu0 0.0
    %6024 = vmatmul.mubr.f32.gmra.mrb[0].mxu0 %v5957
    %v6025 = vpop.f32.mrb[0].mxu0
    %v6026 = vadd.f32 0.0, %v6025
    %v6027 = vpop.f32.mrb[0].mxu0
    %6028 = vdwg.mxu0
    %v6030 = vsel %vm1165, %v5807, 0
    %6032 = vmatprep.subr.mxu0 0.0
    %6033 = vmatpush1.msra.mxu0 %v4254
    %6034 = vmatprep.subr.mxu0 0.0
    %6035 = vmatpush1.msra.mxu0 0.0
    %6036 = vmatprep.subr.mxu0 0.0
    %6037 = vmatpush1.msra.mxu0 0.0
    %6038 = vmatprep.subr.mxu0 0.0
    %6039 = vmatpush1.msra.mxu0 0.0
    %6040 = vmatprep.subr.mxu0 0.0
    %6041 = vmatpush1.msra.mxu0 0.0
    %6042 = vmatprep.subr.mxu0 0.0
    %6043 = vmatpush1.msra.mxu0 0.0
    %6044 = vmatprep.subr.mxu0 0.0
    %6045 = vmatpush1.msra.mxu0 0.0
    %6046 = vmatprep.subr.mxu0 0.0
    %6047 = vmatpush1.msra.mxu0 0.0
    %6048 = vmatprep.subr.mxu0 0.0
    %6049 = vmatpush1.msra.mxu0 0.0
    %6050 = vmatprep.subr.mxu0 0.0
    %6051 = vmatpush1.msra.mxu0 0.0
    %6052 = vmatprep.subr.mxu0 0.0
    %6053 = vmatpush1.msra.mxu0 0.0
    %6054 = vmatprep.subr.mxu0 0.0
    %6055 = vmatpush1.msra.mxu0 0.0
    %6056 = vmatprep.subr.mxu0 0.0
    %6057 = vmatpush1.msra.mxu0 0.0
    %6058 = vmatprep.subr.mxu0 0.0
    %6059 = vmatpush1.msra.mxu0 0.0
    %6060 = vmatprep.subr.mxu0 0.0
    %6061 = vmatpush1.msra.mxu0 0.0
    %6062 = vmatprep.subr.mxu0 0.0
    %6063 = vmatpush1.msra.mxu0 0.0
    %6064 = vmatprep.subr.mxu0 0.0
    %6065 = vmatpush1.msra.mxu0 0.0
    %6066 = vmatprep.subr.mxu0 0.0
    %6067 = vmatpush1.msra.mxu0 0.0
    %6068 = vmatprep.subr.mxu0 0.0
    %6069 = vmatpush1.msra.mxu0 0.0
    %6070 = vmatprep.subr.mxu0 0.0
    %6071 = vmatpush1.msra.mxu0 0.0
    %6072 = vmatprep.subr.mxu0 0.0
    %6073 = vmatpush1.msra.mxu0 0.0
    %6074 = vmatprep.subr.mxu0 0.0
    %6075 = vmatpush1.msra.mxu0 0.0
    %6076 = vmatprep.subr.mxu0 0.0
    %6077 = vmatpush1.msra.mxu0 0.0
    %6078 = vmatprep.subr.mxu0 0.0
    %6079 = vmatpush1.msra.mxu0 0.0
    %6080 = vmatprep.subr.mxu0 0.0
    %6081 = vmatpush1.msra.mxu0 0.0
    %6082 = vmatprep.subr.mxu0 0.0
    %6083 = vmatpush1.msra.mxu0 0.0
    %6084 = vmatprep.subr.mxu0 0.0
    %6085 = vmatpush1.msra.mxu0 0.0
    %6086 = vmatprep.subr.mxu0 0.0
    %6087 = vmatpush1.msra.mxu0 0.0
    %6088 = vmatprep.subr.mxu0 0.0
    %6089 = vmatpush1.msra.mxu0 0.0
    %6090 = vmatprep.subr.mxu0 0.0
    %6091 = vmatpush1.msra.mxu0 0.0
    %6092 = vmatprep.subr.mxu0 0.0
    %6093 = vmatpush1.msra.mxu0 0.0
    %6094 = vmatprep.subr.mxu0 0.0
    %6095 = vmatpush1.msra.mxu0 0.0
    %6096 = vmatprep.mubr.f32.mxu0 0.0
    %6097 = vmatmul.mubr.f32.gmra.mrb[0].mxu0 %v6030
    %v6098 = vpop.f32.mrb[0].mxu0
    %v6099 = vadd.f32 0.0, %v6098
    %v6100 = vpop.f32.mrb[0].mxu0
    %6101 = vdwg.mxu0
    %v6102 = vsel %vm269, %v5880, 0.0
    %v6103 = vsel %vm269, %v5953, 0.0
    %v6104 = vadd.f32 %v6102, %v6103
    %v6105 = vsel %vm269, %v6026, 0.0
    %v6106 = vadd.f32 %v6104, %v6105
    %v6107 = vsel %vm269, %v6099, 0.0
    %v6108 = vadd.f32 %v6106, %v6107
    %v6110 = vsel %vm269, %v4183, 0
    %6112 = vmatprep.subr.mxu0 0.0
    %6113 = vmatpush1.msra.mxu0 %v4185
    %6114 = vmatprep.subr.mxu0 0.0
    %6115 = vmatpush1.msra.mxu0 %v4186
    %6116 = vmatprep.subr.mxu0 0.0
    %6117 = vmatpush1.msra.mxu0 %v4187
    %6118 = vmatprep.subr.mxu0 0.0
    %6119 = vmatpush1.msra.mxu0 %v4188
    %6120 = vmatprep.subr.mxu0 0.0
    %6121 = vmatpush1.msra.mxu0 0.0
    %6122 = vmatprep.subr.mxu0 0.0
    %6123 = vmatpush1.msra.mxu0 0.0
    %6124 = vmatprep.subr.mxu0 0.0
    %6125 = vmatpush1.msra.mxu0 0.0
    %6126 = vmatprep.subr.mxu0 0.0
    %6127 = vmatpush1.msra.mxu0 0.0
    %6128 = vmatprep.subr.mxu0 0.0
    %6129 = vmatpush1.msra.mxu0 0.0
    %6130 = vmatprep.subr.mxu0 0.0
    %6131 = vmatpush1.msra.mxu0 0.0
    %6132 = vmatprep.subr.mxu0 0.0
    %6133 = vmatpush1.msra.mxu0 0.0
    %6134 = vmatprep.subr.mxu0 0.0
    %6135 = vmatpush1.msra.mxu0 0.0
    %6136 = vmatprep.subr.mxu0 0.0
    %6137 = vmatpush1.msra.mxu0 0.0
    %6138 = vmatprep.subr.mxu0 0.0
    %6139 = vmatpush1.msra.mxu0 0.0
    %6140 = vmatprep.subr.mxu0 0.0
    %6141 = vmatpush1.msra.mxu0 0.0
    %6142 = vmatprep.subr.mxu0 0.0
    %6143 = vmatpush1.msra.mxu0 0.0
    %6144 = vmatprep.subr.mxu0 0.0
    %6145 = vmatpush1.msra.mxu0 0.0
    %6146 = vmatprep.subr.mxu0 0.0
    %6147 = vmatpush1.msra.mxu0 0.0
    %6148 = vmatprep.subr.mxu0 0.0
    %6149 = vmatpush1.msra.mxu0 0.0
    %6150 = vmatprep.subr.mxu0 0.0
    %6151 = vmatpush1.msra.mxu0 0.0
    %6152 = vmatprep.subr.mxu0 0.0
    %6153 = vmatpush1.msra.mxu0 0.0
    %6154 = vmatprep.subr.mxu0 0.0
    %6155 = vmatpush1.msra.mxu0 0.0
    %6156 = vmatprep.subr.mxu0 0.0
    %6157 = vmatpush1.msra.mxu0 0.0
    %6158 = vmatprep.subr.mxu0 0.0
    %6159 = vmatpush1.msra.mxu0 0.0
    %6160 = vmatprep.subr.mxu0 0.0
    %6161 = vmatpush1.msra.mxu0 0.0
    %6162 = vmatprep.subr.mxu0 0.0
    %6163 = vmatpush1.msra.mxu0 0.0
    %6164 = vmatprep.subr.mxu0 0.0
    %6165 = vmatpush1.msra.mxu0 0.0
    %6166 = vmatprep.subr.mxu0 0.0
    %6167 = vmatpush1.msra.mxu0 0.0
    %6168 = vmatprep.subr.mxu0 0.0
    %6169 = vmatpush1.msra.mxu0 0.0
    %6170 = vmatprep.subr.mxu0 0.0
    %6171 = vmatpush1.msra.mxu0 0.0
    %6172 = vmatprep.subr.mxu0 0.0
    %6173 = vmatpush1.msra.mxu0 0.0
    %6174 = vmatprep.subr.mxu0 0.0
    %6175 = vmatpush1.msra.mxu0 0.0
    %6176 = vmatprep.mubr.f32.mxu0 0.0
    %6177 = vmatmul.mubr.f32.gmra.mrb[0].mxu0 %v6110
    %v6178 = vpop.f32.mrb[0].mxu0
    %v6179 = vadd.f32 %v4262, %v6178
    %v6180 = vpop.f32.mrb[0].mxu0
    %6181 = vdwg.mxu0
    %6182 = vmatprep.subr.mxu0 0.0
    %6183 = vmatpush1.msra.mxu0 %v4189
    %6184 = vmatprep.subr.mxu0 0.0
    %6185 = vmatpush1.msra.mxu0 %v4190
    %6186 = vmatprep.subr.mxu0 0.0
    %6187 = vmatpush1.msra.mxu0 %v4191
    %6188 = vmatprep.subr.mxu0 0.0
    %6189 = vmatpush1.msra.mxu0 %v4192
    %6190 = vmatprep.subr.mxu0 0.0
    %6191 = vmatpush1.msra.mxu0 0.0
    %6192 = vmatprep.subr.mxu0 0.0
    %6193 = vmatpush1.msra.mxu0 0.0
    %6194 = vmatprep.subr.mxu0 0.0
    %6195 = vmatpush1.msra.mxu0 0.0
    %6196 = vmatprep.subr.mxu0 0.0
    %6197 = vmatpush1.msra.mxu0 0.0
    %6198 = vmatprep.subr.mxu0 0.0
    %6199 = vmatpush1.msra.mxu0 0.0
    %6200 = vmatprep.subr.mxu0 0.0
    %6201 = vmatpush1.msra.mxu0 0.0
    %6202 = vmatprep.subr.mxu0 0.0
    %6203 = vmatpush1.msra.mxu0 0.0
    %6204 = vmatprep.subr.mxu0 0.0
    %6205 = vmatpush1.msra.mxu0 0.0
    %6206 = vmatprep.subr.mxu0 0.0
    %6207 = vmatpush1.msra.mxu0 0.0
    %6208 = vmatprep.subr.mxu0 0.0
    %6209 = vmatpush1.msra.mxu0 0.0
    %6210 = vmatprep.subr.mxu0 0.0
    %6211 = vmatpush1.msra.mxu0 0.0
    %6212 = vmatprep.subr.mxu0 0.0
    %6213 = vmatpush1.msra.mxu0 0.0
    %6214 = vmatprep.subr.mxu0 0.0
    %6215 = vmatpush1.msra.mxu0 0.0
    %6216 = vmatprep.subr.mxu0 0.0
    %6217 = vmatpush1.msra.mxu0 0.0
    %6218 = vmatprep.subr.mxu0 0.0
    %6219 = vmatpush1.msra.mxu0 0.0
    %6220 = vmatprep.subr.mxu0 0.0
    %6221 = vmatpush1.msra.mxu0 0.0
    %6222 = vmatprep.subr.mxu0 0.0
    %6223 = vmatpush1.msra.mxu0 0.0
    %6224 = vmatprep.subr.mxu0 0.0
    %6225 = vmatpush1.msra.mxu0 0.0
    %6226 = vmatprep.subr.mxu0 0.0
    %6227 = vmatpush1.msra.mxu0 0.0
    %6228 = vmatprep.subr.mxu0 0.0
    %6229 = vmatpush1.msra.mxu0 0.0
    %6230 = vmatprep.subr.mxu0 0.0
    %6231 = vmatpush1.msra.mxu0 0.0
    %6232 = vmatprep.subr.mxu0 0.0
    %6233 = vmatpush1.msra.mxu0 0.0
    %6234 = vmatprep.subr.mxu0 0.0
    %6235 = vmatpush1.msra.mxu0 0.0
    %6236 = vmatprep.subr.mxu0 0.0
    %6237 = vmatpush1.msra.mxu0 0.0
    %6238 = vmatprep.subr.mxu0 0.0
    %6239 = vmatpush1.msra.mxu0 0.0
    %6240 = vmatprep.subr.mxu0 0.0
    %6241 = vmatpush1.msra.mxu0 0.0
    %6242 = vmatprep.subr.mxu0 0.0
    %6243 = vmatpush1.msra.mxu0 0.0
    %6244 = vmatprep.subr.mxu0 0.0
    %6245 = vmatpush1.msra.mxu0 0.0
    %6246 = vmatprep.mubr.f32.mxu0 0.0
    %6247 = vmatmul.mubr.f32.gmra.mrb[0].mxu0 %v6110
    %v6248 = vpop.f32.mrb[0].mxu0
    %v6249 = vadd.f32 %v4266, %v6248
    %v6250 = vpop.f32.mrb[0].mxu0
    %6251 = vdwg.mxu0
    %6252 = vmatprep.subr.mxu0 0.0
    %6253 = vmatpush1.msra.mxu0 %v4193
    %6254 = vmatprep.subr.mxu0 0.0
    %6255 = vmatpush1.msra.mxu0 %v4194
    %6256 = vmatprep.subr.mxu0 0.0
    %6257 = vmatpush1.msra.mxu0 %v4195
    %6258 = vmatprep.subr.mxu0 0.0
    %6259 = vmatpush1.msra.mxu0 %v4196
    %6260 = vmatprep.subr.mxu0 0.0
    %6261 = vmatpush1.msra.mxu0 0.0
    %6262 = vmatprep.subr.mxu0 0.0
    %6263 = vmatpush1.msra.mxu0 0.0
    %6264 = vmatprep.subr.mxu0 0.0
    %6265 = vmatpush1.msra.mxu0 0.0
    %6266 = vmatprep.subr.mxu0 0.0
    %6267 = vmatpush1.msra.mxu0 0.0
    %6268 = vmatprep.subr.mxu0 0.0
    %6269 = vmatpush1.msra.mxu0 0.0
    %6270 = vmatprep.subr.mxu0 0.0
    %6271 = vmatpush1.msra.mxu0 0.0
    %6272 = vmatprep.subr.mxu0 0.0
    %6273 = vmatpush1.msra.mxu0 0.0
    %6274 = vmatprep.subr.mxu0 0.0
    %6275 = vmatpush1.msra.mxu0 0.0
    %6276 = vmatprep.subr.mxu0 0.0
    %6277 = vmatpush1.msra.mxu0 0.0
    %6278 = vmatprep.subr.mxu0 0.0
    %6279 = vmatpush1.msra.mxu0 0.0
    %6280 = vmatprep.subr.mxu0 0.0
    %6281 = vmatpush1.msra.mxu0 0.0
    %6282 = vmatprep.subr.mxu0 0.0
    %6283 = vmatpush1.msra.mxu0 0.0
    %6284 = vmatprep.subr.mxu0 0.0
    %6285 = vmatpush1.msra.mxu0 0.0
    %6286 = vmatprep.subr.mxu0 0.0
    %6287 = vmatpush1.msra.mxu0 0.0
    %6288 = vmatprep.subr.mxu0 0.0
    %6289 = vmatpush1.msra.mxu0 0.0
    %6290 = vmatprep.subr.mxu0 0.0
    %6291 = vmatpush1.msra.mxu0 0.0
    %6292 = vmatprep.subr.mxu0 0.0
    %6293 = vmatpush1.msra.mxu0 0.0
    %6294 = vmatprep.subr.mxu0 0.0
    %6295 = vmatpush1.msra.mxu0 0.0
    %6296 = vmatprep.subr.mxu0 0.0
    %6297 = vmatpush1.msra.mxu0 0.0
    %6298 = vmatprep.subr.mxu0 0.0
    %6299 = vmatpush1.msra.mxu0 0.0
    %6300 = vmatprep.subr.mxu0 0.0
    %6301 = vmatpush1.msra.mxu0 0.0
    %6302 = vmatprep.subr.mxu0 0.0
    %6303 = vmatpush1.msra.mxu0 0.0
    %6304 = vmatprep.subr.mxu0 0.0
    %6305 = vmatpush1.msra.mxu0 0.0
    %6306 = vmatprep.subr.mxu0 0.0
    %6307 = vmatpush1.msra.mxu0 0.0
    %6308 = vmatprep.subr.mxu0 0.0
    %6309 = vmatpush1.msra.mxu0 0.0
    %6310 = vmatprep.subr.mxu0 0.0
    %6311 = vmatpush1.msra.mxu0 0.0
    %6312 = vmatprep.subr.mxu0 0.0
    %6313 = vmatpush1.msra.mxu0 0.0
    %6314 = vmatprep.subr.mxu0 0.0
    %6315 = vmatpush1.msra.mxu0 0.0
    %6316 = vmatprep.mubr.f32.mxu0 0.0
    %6317 = vmatmul.mubr.f32.gmra.mrb[0].mxu0 %v6110
    %v6318 = vpop.f32.mrb[0].mxu0
    %v6319 = vadd.f32 %v4270, %v6318
    %v6320 = vpop.f32.mrb[0].mxu0
    %6321 = vdwg.mxu0
    %6322 = vmatprep.subr.mxu0 0.0
    %6323 = vmatpush1.msra.mxu0 %v4197
    %6324 = vmatprep.subr.mxu0 0.0
    %6325 = vmatpush1.msra.mxu0 %v4198
    %6326 = vmatprep.subr.mxu0 0.0
    %6327 = vmatpush1.msra.mxu0 %v4199
    %6328 = vmatprep.subr.mxu0 0.0
    %6329 = vmatpush1.msra.mxu0 %v4200
    %6330 = vmatprep.subr.mxu0 0.0
    %6331 = vmatpush1.msra.mxu0 0.0
    %6332 = vmatprep.subr.mxu0 0.0
    %6333 = vmatpush1.msra.mxu0 0.0
    %6334 = vmatprep.subr.mxu0 0.0
    %6335 = vmatpush1.msra.mxu0 0.0
    %6336 = vmatprep.subr.mxu0 0.0
    %6337 = vmatpush1.msra.mxu0 0.0
    %6338 = vmatprep.subr.mxu0 0.0
    %6339 = vmatpush1.msra.mxu0 0.0
    %6340 = vmatprep.subr.mxu0 0.0
    %6341 = vmatpush1.msra.mxu0 0.0
    %6342 = vmatprep.subr.mxu0 0.0
    %6343 = vmatpush1.msra.mxu0 0.0
    %6344 = vmatprep.subr.mxu0 0.0
    %6345 = vmatpush1.msra.mxu0 0.0
    %6346 = vmatprep.subr.mxu0 0.0
    %6347 = vmatpush1.msra.mxu0 0.0
    %6348 = vmatprep.subr.mxu0 0.0
    %6349 = vmatpush1.msra.mxu0 0.0
    %6350 = vmatprep.subr.mxu0 0.0
    %6351 = vmatpush1.msra.mxu0 0.0
    %6352 = vmatprep.subr.mxu0 0.0
    %6353 = vmatpush1.msra.mxu0 0.0
    %6354 = vmatprep.subr.mxu0 0.0
    %6355 = vmatpush1.msra.mxu0 0.0
    %6356 = vmatprep.subr.mxu0 0.0
    %6357 = vmatpush1.msra.mxu0 0.0
    %6358 = vmatprep.subr.mxu0 0.0
    %6359 = vmatpush1.msra.mxu0 0.0
    %6360 = vmatprep.subr.mxu0 0.0
    %6361 = vmatpush1.msra.mxu0 0.0
    %6362 = vmatprep.subr.mxu0 0.0
    %6363 = vmatpush1.msra.mxu0 0.0
    %6364 = vmatprep.subr.mxu0 0.0
    %6365 = vmatpush1.msra.mxu0 0.0
    %6366 = vmatprep.subr.mxu0 0.0
    %6367 = vmatpush1.msra.mxu0 0.0
    %6368 = vmatprep.subr.mxu0 0.0
    %6369 = vmatpush1.msra.mxu0 0.0
    %6370 = vmatprep.subr.mxu0 0.0
    %6371 = vmatpush1.msra.mxu0 0.0
    %6372 = vmatprep.subr.mxu0 0.0
    %6373 = vmatpush1.msra.mxu0 0.0
    %6374 = vmatprep.subr.mxu0 0.0
    %6375 = vmatpush1.msra.mxu0 0.0
    %6376 = vmatprep.subr.mxu0 0.0
    %6377 = vmatpush1.msra.mxu0 0.0
    %6378 = vmatprep.subr.mxu0 0.0
    %6379 = vmatpush1.msra.mxu0 0.0
    %6380 = vmatprep.subr.mxu0 0.0
    %6381 = vmatpush1.msra.mxu0 0.0
    %6382 = vmatprep.subr.mxu0 0.0
    %6383 = vmatpush1.msra.mxu0 0.0
    %6384 = vmatprep.subr.mxu0 0.0
    %6385 = vmatpush1.msra.mxu0 0.0
    %6386 = vmatprep.mubr.f32.mxu0 0.0
    %6387 = vmatmul.mubr.f32.gmra.mrb[0].mxu0 %v6110
    %v6388 = vpop.f32.mrb[0].mxu0
    %v6389 = vadd.f32 %v4274, %v6388
    %v6390 = vpop.f32.mrb[0].mxu0
    %6391 = vdwg.mxu0
    %6392 = vmatprep.subr.mxu0 0.0
    %6393 = vmatpush1.msra.mxu0 %v4202
    %6394 = vmatprep.subr.mxu0 0.0
    %6395 = vmatpush1.msra.mxu0 %v4203
    %6396 = vmatprep.subr.mxu0 0.0
    %6397 = vmatpush1.msra.mxu0 %v4204
    %6398 = vmatprep.subr.mxu0 0.0
    %6399 = vmatpush1.msra.mxu0 %v4205
    %6400 = vmatprep.subr.mxu0 0.0
    %6401 = vmatpush1.msra.mxu0 0.0
    %6402 = vmatprep.subr.mxu0 0.0
    %6403 = vmatpush1.msra.mxu0 0.0
    %6404 = vmatprep.subr.mxu0 0.0
    %6405 = vmatpush1.msra.mxu0 0.0
    %6406 = vmatprep.subr.mxu0 0.0
    %6407 = vmatpush1.msra.mxu0 0.0
    %6408 = vmatprep.subr.mxu0 0.0
    %6409 = vmatpush1.msra.mxu0 0.0
    %6410 = vmatprep.subr.mxu0 0.0
    %6411 = vmatpush1.msra.mxu0 0.0
    %6412 = vmatprep.subr.mxu0 0.0
    %6413 = vmatpush1.msra.mxu0 0.0
    %6414 = vmatprep.subr.mxu0 0.0
    %6415 = vmatpush1.msra.mxu0 0.0
    %6416 = vmatprep.subr.mxu0 0.0
    %6417 = vmatpush1.msra.mxu0 0.0
    %6418 = vmatprep.subr.mxu0 0.0
    %6419 = vmatpush1.msra.mxu0 0.0
    %6420 = vmatprep.subr.mxu0 0.0
    %6421 = vmatpush1.msra.mxu0 0.0
    %6422 = vmatprep.subr.mxu0 0.0
    %6423 = vmatpush1.msra.mxu0 0.0
    %6424 = vmatprep.subr.mxu0 0.0
    %6425 = vmatpush1.msra.mxu0 0.0
    %6426 = vmatprep.subr.mxu0 0.0
    %6427 = vmatpush1.msra.mxu0 0.0
    %6428 = vmatprep.subr.mxu0 0.0
    %6429 = vmatpush1.msra.mxu0 0.0
    %6430 = vmatprep.subr.mxu0 0.0
    %6431 = vmatpush1.msra.mxu0 0.0
    %6432 = vmatprep.subr.mxu0 0.0
    %6433 = vmatpush1.msra.mxu0 0.0
    %6434 = vmatprep.subr.mxu0 0.0
    %6435 = vmatpush1.msra.mxu0 0.0
    %6436 = vmatprep.subr.mxu0 0.0
    %6437 = vmatpush1.msra.mxu0 0.0
    %6438 = vmatprep.subr.mxu0 0.0
    %6439 = vmatpush1.msra.mxu0 0.0
    %6440 = vmatprep.subr.mxu0 0.0
    %6441 = vmatpush1.msra.mxu0 0.0
    %6442 = vmatprep.subr.mxu0 0.0
    %6443 = vmatpush1.msra.mxu0 0.0
    %6444 = vmatprep.subr.mxu0 0.0
    %6445 = vmatpush1.msra.mxu0 0.0
    %6446 = vmatprep.subr.mxu0 0.0
    %6447 = vmatpush1.msra.mxu0 0.0
    %6448 = vmatprep.subr.mxu0 0.0
    %6449 = vmatpush1.msra.mxu0 0.0
    %6450 = vmatprep.subr.mxu0 0.0
    %6451 = vmatpush1.msra.mxu0 0.0
    %6452 = vmatprep.subr.mxu0 0.0
    %6453 = vmatpush1.msra.mxu0 0.0
    %6454 = vmatprep.subr.mxu0 0.0
    %6455 = vmatpush1.msra.mxu0 0.0
    %6456 = vmatprep.mubr.f32.mxu0 0.0
    %6457 = vmatmul.mubr.f32.gmra.mrb[0].mxu0 %v6110
    %v6458 = vpop.f32.mrb[0].mxu0
    %v6459 = vadd.f32 %v4569, %v6458
    %v6460 = vpop.f32.mrb[0].mxu0
    %6461 = vdwg.mxu0
    %6462 = vmatprep.subr.mxu0 0.0
    %6463 = vmatpush1.msra.mxu0 %v4206
    %6464 = vmatprep.subr.mxu0 0.0
    %6465 = vmatpush1.msra.mxu0 %v4207
    %6466 = vmatprep.subr.mxu0 0.0
    %6467 = vmatpush1.msra.mxu0 %v4208
    %6468 = vmatprep.subr.mxu0 0.0
    %6469 = vmatpush1.msra.mxu0 %v4209
    %6470 = vmatprep.subr.mxu0 0.0
    %6471 = vmatpush1.msra.mxu0 0.0
    %6472 = vmatprep.subr.mxu0 0.0
    %6473 = vmatpush1.msra.mxu0 0.0
    %6474 = vmatprep.subr.mxu0 0.0
    %6475 = vmatpush1.msra.mxu0 0.0
    %6476 = vmatprep.subr.mxu0 0.0
    %6477 = vmatpush1.msra.mxu0 0.0
    %6478 = vmatprep.subr.mxu0 0.0
    %6479 = vmatpush1.msra.mxu0 0.0
    %6480 = vmatprep.subr.mxu0 0.0
    %6481 = vmatpush1.msra.mxu0 0.0
    %6482 = vmatprep.subr.mxu0 0.0
    %6483 = vmatpush1.msra.mxu0 0.0
    %6484 = vmatprep.subr.mxu0 0.0
    %6485 = vmatpush1.msra.mxu0 0.0
    %6486 = vmatprep.subr.mxu0 0.0
    %6487 = vmatpush1.msra.mxu0 0.0
    %6488 = vmatprep.subr.mxu0 0.0
    %6489 = vmatpush1.msra.mxu0 0.0
    %6490 = vmatprep.subr.mxu0 0.0
    %6491 = vmatpush1.msra.mxu0 0.0
    %6492 = vmatprep.subr.mxu0 0.0
    %6493 = vmatpush1.msra.mxu0 0.0
    %6494 = vmatprep.subr.mxu0 0.0
    %6495 = vmatpush1.msra.mxu0 0.0
    %6496 = vmatprep.subr.mxu0 0.0
    %6497 = vmatpush1.msra.mxu0 0.0
    %6498 = vmatprep.subr.mxu0 0.0
    %6499 = vmatpush1.msra.mxu0 0.0
    %6500 = vmatprep.subr.mxu0 0.0
    %6501 = vmatpush1.msra.mxu0 0.0
    %6502 = vmatprep.subr.mxu0 0.0
    %6503 = vmatpush1.msra.mxu0 0.0
    %6504 = vmatprep.subr.mxu0 0.0
    %6505 = vmatpush1.msra.mxu0 0.0
    %6506 = vmatprep.subr.mxu0 0.0
    %6507 = vmatpush1.msra.mxu0 0.0
    %6508 = vmatprep.subr.mxu0 0.0
    %6509 = vmatpush1.msra.mxu0 0.0
    %6510 = vmatprep.subr.mxu0 0.0
    %6511 = vmatpush1.msra.mxu0 0.0
    %6512 = vmatprep.subr.mxu0 0.0
    %6513 = vmatpush1.msra.mxu0 0.0
    %6514 = vmatprep.subr.mxu0 0.0
    %6515 = vmatpush1.msra.mxu0 0.0
    %6516 = vmatprep.subr.mxu0 0.0
    %6517 = vmatpush1.msra.mxu0 0.0
    %6518 = vmatprep.subr.mxu0 0.0
    %6519 = vmatpush1.msra.mxu0 0.0
    %6520 = vmatprep.subr.mxu0 0.0
    %6521 = vmatpush1.msra.mxu0 0.0
    %6522 = vmatprep.subr.mxu0 0.0
    %6523 = vmatpush1.msra.mxu0 0.0
    %6524 = vmatprep.subr.mxu0 0.0
    %6525 = vmatpush1.msra.mxu0 0.0
    %6526 = vmatprep.mubr.f32.mxu0 0.0
    %6527 = vmatmul.mubr.f32.gmra.mrb[0].mxu0 %v6110
    %v6528 = vpop.f32.mrb[0].mxu0
    %v6529 = vadd.f32 %v4573, %v6528
    %v6530 = vpop.f32.mrb[0].mxu0
    %6531 = vdwg.mxu0
    %6532 = vmatprep.subr.mxu0 0.0
    %6533 = vmatpush1.msra.mxu0 %v4210
    %6534 = vmatprep.subr.mxu0 0.0
    %6535 = vmatpush1.msra.mxu0 %v4211
    %6536 = vmatprep.subr.mxu0 0.0
    %6537 = vmatpush1.msra.mxu0 %v4212
    %6538 = vmatprep.subr.mxu0 0.0
    %6539 = vmatpush1.msra.mxu0 %v4213
    %6540 = vmatprep.subr.mxu0 0.0
    %6541 = vmatpush1.msra.mxu0 0.0
    %6542 = vmatprep.subr.mxu0 0.0
    %6543 = vmatpush1.msra.mxu0 0.0
    %6544 = vmatprep.subr.mxu0 0.0
    %6545 = vmatpush1.msra.mxu0 0.0
    %6546 = vmatprep.subr.mxu0 0.0
    %6547 = vmatpush1.msra.mxu0 0.0
    %6548 = vmatprep.subr.mxu0 0.0
    %6549 = vmatpush1.msra.mxu0 0.0
    %6550 = vmatprep.subr.mxu0 0.0
    %6551 = vmatpush1.msra.mxu0 0.0
    %6552 = vmatprep.subr.mxu0 0.0
    %6553 = vmatpush1.msra.mxu0 0.0
    %6554 = vmatprep.subr.mxu0 0.0
    %6555 = vmatpush1.msra.mxu0 0.0
    %6556 = vmatprep.subr.mxu0 0.0
    %6557 = vmatpush1.msra.mxu0 0.0
    %6558 = vmatprep.subr.mxu0 0.0
    %6559 = vmatpush1.msra.mxu0 0.0
    %6560 = vmatprep.subr.mxu0 0.0
    %6561 = vmatpush1.msra.mxu0 0.0
    %6562 = vmatprep.subr.mxu0 0.0
    %6563 = vmatpush1.msra.mxu0 0.0
    %6564 = vmatprep.subr.mxu0 0.0
    %6565 = vmatpush1.msra.mxu0 0.0
    %6566 = vmatprep.subr.mxu0 0.0
    %6567 = vmatpush1.msra.mxu0 0.0
    %6568 = vmatprep.subr.mxu0 0.0
    %6569 = vmatpush1.msra.mxu0 0.0
    %6570 = vmatprep.subr.mxu0 0.0
    %6571 = vmatpush1.msra.mxu0 0.0
    %6572 = vmatprep.subr.mxu0 0.0
    %6573 = vmatpush1.msra.mxu0 0.0
    %6574 = vmatprep.subr.mxu0 0.0
    %6575 = vmatpush1.msra.mxu0 0.0
    %6576 = vmatprep.subr.mxu0 0.0
    %6577 = vmatpush1.msra.mxu0 0.0
    %6578 = vmatprep.subr.mxu0 0.0
    %6579 = vmatpush1.msra.mxu0 0.0
    %6580 = vmatprep.subr.mxu0 0.0
    %6581 = vmatpush1.msra.mxu0 0.0
    %6582 = vmatprep.subr.mxu0 0.0
    %6583 = vmatpush1.msra.mxu0 0.0
    %6584 = vmatprep.subr.mxu0 0.0
    %6585 = vmatpush1.msra.mxu0 0.0
    %6586 = vmatprep.subr.mxu0 0.0
    %6587 = vmatpush1.msra.mxu0 0.0
    %6588 = vmatprep.subr.mxu0 0.0
    %6589 = vmatpush1.msra.mxu0 0.0
    %6590 = vmatprep.subr.mxu0 0.0
    %6591 = vmatpush1.msra.mxu0 0.0
    %6592 = vmatprep.subr.mxu0 0.0
    %6593 = vmatpush1.msra.mxu0 0.0
    %6594 = vmatprep.subr.mxu0 0.0
    %6595 = vmatpush1.msra.mxu0 0.0
    %6596 = vmatprep.mubr.f32.mxu0 0.0
    %6597 = vmatmul.mubr.f32.gmra.mrb[0].mxu0 %v6110
    %v6598 = vpop.f32.mrb[0].mxu0
    %v6599 = vadd.f32 %v4577, %v6598
    %v6600 = vpop.f32.mrb[0].mxu0
    %6601 = vdwg.mxu0
    %6602 = vmatprep.subr.mxu0 0.0
    %6603 = vmatpush1.msra.mxu0 %v4214
    %6604 = vmatprep.subr.mxu0 0.0
    %6605 = vmatpush1.msra.mxu0 %v4215
    %6606 = vmatprep.subr.mxu0 0.0
    %6607 = vmatpush1.msra.mxu0 %v4216
    %6608 = vmatprep.subr.mxu0 0.0
    %6609 = vmatpush1.msra.mxu0 %v4217
    %6610 = vmatprep.subr.mxu0 0.0
    %6611 = vmatpush1.msra.mxu0 0.0
    %6612 = vmatprep.subr.mxu0 0.0
    %6613 = vmatpush1.msra.mxu0 0.0
    %6614 = vmatprep.subr.mxu0 0.0
    %6615 = vmatpush1.msra.mxu0 0.0
    %6616 = vmatprep.subr.mxu0 0.0
    %6617 = vmatpush1.msra.mxu0 0.0
    %6618 = vmatprep.subr.mxu0 0.0
    %6619 = vmatpush1.msra.mxu0 0.0
    %6620 = vmatprep.subr.mxu0 0.0
    %6621 = vmatpush1.msra.mxu0 0.0
    %6622 = vmatprep.subr.mxu0 0.0
    %6623 = vmatpush1.msra.mxu0 0.0
    %6624 = vmatprep.subr.mxu0 0.0
    %6625 = vmatpush1.msra.mxu0 0.0
    %6626 = vmatprep.subr.mxu0 0.0
    %6627 = vmatpush1.msra.mxu0 0.0
    %6628 = vmatprep.subr.mxu0 0.0
    %6629 = vmatpush1.msra.mxu0 0.0
    %6630 = vmatprep.subr.mxu0 0.0
    %6631 = vmatpush1.msra.mxu0 0.0
    %6632 = vmatprep.subr.mxu0 0.0
    %6633 = vmatpush1.msra.mxu0 0.0
    %6634 = vmatprep.subr.mxu0 0.0
    %6635 = vmatpush1.msra.mxu0 0.0
    %6636 = vmatprep.subr.mxu0 0.0
    %6637 = vmatpush1.msra.mxu0 0.0
    %6638 = vmatprep.subr.mxu0 0.0
    %6639 = vmatpush1.msra.mxu0 0.0
    %6640 = vmatprep.subr.mxu0 0.0
    %6641 = vmatpush1.msra.mxu0 0.0
    %6642 = vmatprep.subr.mxu0 0.0
    %6643 = vmatpush1.msra.mxu0 0.0
    %6644 = vmatprep.subr.mxu0 0.0
    %6645 = vmatpush1.msra.mxu0 0.0
    %6646 = vmatprep.subr.mxu0 0.0
    %6647 = vmatpush1.msra.mxu0 0.0
    %6648 = vmatprep.subr.mxu0 0.0
    %6649 = vmatpush1.msra.mxu0 0.0
    %6650 = vmatprep.subr.mxu0 0.0
    %6651 = vmatpush1.msra.mxu0 0.0
    %6652 = vmatprep.subr.mxu0 0.0
    %6653 = vmatpush1.msra.mxu0 0.0
    %6654 = vmatprep.subr.mxu0 0.0
    %6655 = vmatpush1.msra.mxu0 0.0
    %6656 = vmatprep.subr.mxu0 0.0
    %6657 = vmatpush1.msra.mxu0 0.0
    %6658 = vmatprep.subr.mxu0 0.0
    %6659 = vmatpush1.msra.mxu0 0.0
    %6660 = vmatprep.subr.mxu0 0.0
    %6661 = vmatpush1.msra.mxu0 0.0
    %6662 = vmatprep.subr.mxu0 0.0
    %6663 = vmatpush1.msra.mxu0 0.0
    %6664 = vmatprep.subr.mxu0 0.0
    %6665 = vmatpush1.msra.mxu0 0.0
    %6666 = vmatprep.mubr.f32.mxu0 0.0
    %6667 = vmatmul.mubr.f32.gmra.mrb[0].mxu0 %v6110
    %v6668 = vpop.f32.mrb[0].mxu0
    %v6669 = vadd.f32 %v4581, %v6668
    %v6670 = vpop.f32.mrb[0].mxu0
    %6671 = vdwg.mxu0
    %6672 = vmatprep.subr.mxu0 0.0
    %6673 = vmatpush1.msra.mxu0 %v4219
    %6674 = vmatprep.subr.mxu0 0.0
    %6675 = vmatpush1.msra.mxu0 %v4220
    %6676 = vmatprep.subr.mxu0 0.0
    %6677 = vmatpush1.msra.mxu0 %v4221
    %6678 = vmatprep.subr.mxu0 0.0
    %6679 = vmatpush1.msra.mxu0 %v4222
    %6680 = vmatprep.subr.mxu0 0.0
    %6681 = vmatpush1.msra.mxu0 0.0
    %6682 = vmatprep.subr.mxu0 0.0
    %6683 = vmatpush1.msra.mxu0 0.0
    %6684 = vmatprep.subr.mxu0 0.0
    %6685 = vmatpush1.msra.mxu0 0.0
    %6686 = vmatprep.subr.mxu0 0.0
    %6687 = vmatpush1.msra.mxu0 0.0
    %6688 = vmatprep.subr.mxu0 0.0
    %6689 = vmatpush1.msra.mxu0 0.0
    %6690 = vmatprep.subr.mxu0 0.0
    %6691 = vmatpush1.msra.mxu0 0.0
    %6692 = vmatprep.subr.mxu0 0.0
    %6693 = vmatpush1.msra.mxu0 0.0
    %6694 = vmatprep.subr.mxu0 0.0
    %6695 = vmatpush1.msra.mxu0 0.0
    %6696 = vmatprep.subr.mxu0 0.0
    %6697 = vmatpush1.msra.mxu0 0.0
    %6698 = vmatprep.subr.mxu0 0.0
    %6699 = vmatpush1.msra.mxu0 0.0
    %6700 = vmatprep.subr.mxu0 0.0
    %6701 = vmatpush1.msra.mxu0 0.0
    %6702 = vmatprep.subr.mxu0 0.0
    %6703 = vmatpush1.msra.mxu0 0.0
    %6704 = vmatprep.subr.mxu0 0.0
    %6705 = vmatpush1.msra.mxu0 0.0
    %6706 = vmatprep.subr.mxu0 0.0
    %6707 = vmatpush1.msra.mxu0 0.0
    %6708 = vmatprep.subr.mxu0 0.0
    %6709 = vmatpush1.msra.mxu0 0.0
    %6710 = vmatprep.subr.mxu0 0.0
    %6711 = vmatpush1.msra.mxu0 0.0
    %6712 = vmatprep.subr.mxu0 0.0
    %6713 = vmatpush1.msra.mxu0 0.0
    %6714 = vmatprep.subr.mxu0 0.0
    %6715 = vmatpush1.msra.mxu0 0.0
    %6716 = vmatprep.subr.mxu0 0.0
    %6717 = vmatpush1.msra.mxu0 0.0
    %6718 = vmatprep.subr.mxu0 0.0
    %6719 = vmatpush1.msra.mxu0 0.0
    %6720 = vmatprep.subr.mxu0 0.0
    %6721 = vmatpush1.msra.mxu0 0.0
    %6722 = vmatprep.subr.mxu0 0.0
    %6723 = vmatpush1.msra.mxu0 0.0
    %6724 = vmatprep.subr.mxu0 0.0
    %6725 = vmatpush1.msra.mxu0 0.0
    %6726 = vmatprep.subr.mxu0 0.0
    %6727 = vmatpush1.msra.mxu0 0.0
    %6728 = vmatprep.subr.mxu0 0.0
    %6729 = vmatpush1.msra.mxu0 0.0
    %6730 = vmatprep.subr.mxu0 0.0
    %6731 = vmatpush1.msra.mxu0 0.0
    %6732 = vmatprep.subr.mxu0 0.0
    %6733 = vmatpush1.msra.mxu0 0.0
    %6734 = vmatprep.subr.mxu0 0.0
    %6735 = vmatpush1.msra.mxu0 0.0
    %6736 = vmatprep.mubr.f32.mxu0 0.0
    %6737 = vmatmul.mubr.f32.gmra.mrb[0].mxu0 %v6110
    %v6738 = vpop.f32.mrb[0].mxu0
    %v6739 = vadd.f32 %v4873, %v6738
    %v6740 = vpop.f32.mrb[0].mxu0
    %6741 = vdwg.mxu0
    %6742 = vmatprep.subr.mxu0 0.0
    %6743 = vmatpush1.msra.mxu0 %v4223
    %6744 = vmatprep.subr.mxu0 0.0
    %6745 = vmatpush1.msra.mxu0 %v4224
    %6746 = vmatprep.subr.mxu0 0.0
    %6747 = vmatpush1.msra.mxu0 %v4225
    %6748 = vmatprep.subr.mxu0 0.0
    %6749 = vmatpush1.msra.mxu0 %v4226
    %6750 = vmatprep.subr.mxu0 0.0
    %6751 = vmatpush1.msra.mxu0 0.0
    %6752 = vmatprep.subr.mxu0 0.0
    %6753 = vmatpush1.msra.mxu0 0.0
    %6754 = vmatprep.subr.mxu0 0.0
    %6755 = vmatpush1.msra.mxu0 0.0
    %6756 = vmatprep.subr.mxu0 0.0
    %6757 = vmatpush1.msra.mxu0 0.0
    %6758 = vmatprep.subr.mxu0 0.0
    %6759 = vmatpush1.msra.mxu0 0.0
    %6760 = vmatprep.subr.mxu0 0.0
    %6761 = vmatpush1.msra.mxu0 0.0
    %6762 = vmatprep.subr.mxu0 0.0
    %6763 = vmatpush1.msra.mxu0 0.0
    %6764 = vmatprep.subr.mxu0 0.0
    %6765 = vmatpush1.msra.mxu0 0.0
    %6766 = vmatprep.subr.mxu0 0.0
    %6767 = vmatpush1.msra.mxu0 0.0
    %6768 = vmatprep.subr.mxu0 0.0
    %6769 = vmatpush1.msra.mxu0 0.0
    %6770 = vmatprep.subr.mxu0 0.0
    %6771 = vmatpush1.msra.mxu0 0.0
    %6772 = vmatprep.subr.mxu0 0.0
    %6773 = vmatpush1.msra.mxu0 0.0
    %6774 = vmatprep.subr.mxu0 0.0
    %6775 = vmatpush1.msra.mxu0 0.0
    %6776 = vmatprep.subr.mxu0 0.0
    %6777 = vmatpush1.msra.mxu0 0.0
    %6778 = vmatprep.subr.mxu0 0.0
    %6779 = vmatpush1.msra.mxu0 0.0
    %6780 = vmatprep.subr.mxu0 0.0
    %6781 = vmatpush1.msra.mxu0 0.0
    %6782 = vmatprep.subr.mxu0 0.0
    %6783 = vmatpush1.msra.mxu0 0.0
    %6784 = vmatprep.subr.mxu0 0.0
    %6785 = vmatpush1.msra.mxu0 0.0
    %6786 = vmatprep.subr.mxu0 0.0
    %6787 = vmatpush1.msra.mxu0 0.0
    %6788 = vmatprep.subr.mxu0 0.0
    %6789 = vmatpush1.msra.mxu0 0.0
    %6790 = vmatprep.subr.mxu0 0.0
    %6791 = vmatpush1.msra.mxu0 0.0
    %6792 = vmatprep.subr.mxu0 0.0
    %6793 = vmatpush1.msra.mxu0 0.0
    %6794 = vmatprep.subr.mxu0 0.0
    %6795 = vmatpush1.msra.mxu0 0.0
    %6796 = vmatprep.subr.mxu0 0.0
    %6797 = vmatpush1.msra.mxu0 0.0
    %6798 = vmatprep.subr.mxu0 0.0
    %6799 = vmatpush1.msra.mxu0 0.0
    %6800 = vmatprep.subr.mxu0 0.0
    %6801 = vmatpush1.msra.mxu0 0.0
    %6802 = vmatprep.subr.mxu0 0.0
    %6803 = vmatpush1.msra.mxu0 0.0
    %6804 = vmatprep.subr.mxu0 0.0
    %6805 = vmatpush1.msra.mxu0 0.0
    %6806 = vmatprep.mubr.f32.mxu0 0.0
    %6807 = vmatmul.mubr.f32.gmra.mrb[0].mxu0 %v6110
    %v6808 = vpop.f32.mrb[0].mxu0
    %v6809 = vadd.f32 %v4877, %v6808
    %v6810 = vpop.f32.mrb[0].mxu0
    %6811 = vdwg.mxu0
    %6812 = vmatprep.subr.mxu0 0.0
    %6813 = vmatpush1.msra.mxu0 %v4227
    %6814 = vmatprep.subr.mxu0 0.0
    %6815 = vmatpush1.msra.mxu0 %v4228
    %6816 = vmatprep.subr.mxu0 0.0
    %6817 = vmatpush1.msra.mxu0 %v4229
    %6818 = vmatprep.subr.mxu0 0.0
    %6819 = vmatpush1.msra.mxu0 %v4230
    %6820 = vmatprep.subr.mxu0 0.0
    %6821 = vmatpush1.msra.mxu0 0.0
    %6822 = vmatprep.subr.mxu0 0.0
    %6823 = vmatpush1.msra.mxu0 0.0
    %6824 = vmatprep.subr.mxu0 0.0
    %6825 = vmatpush1.msra.mxu0 0.0
    %6826 = vmatprep.subr.mxu0 0.0
    %6827 = vmatpush1.msra.mxu0 0.0
    %6828 = vmatprep.subr.mxu0 0.0
    %6829 = vmatpush1.msra.mxu0 0.0
    %6830 = vmatprep.subr.mxu0 0.0
    %6831 = vmatpush1.msra.mxu0 0.0
    %6832 = vmatprep.subr.mxu0 0.0
    %6833 = vmatpush1.msra.mxu0 0.0
    %6834 = vmatprep.subr.mxu0 0.0
    %6835 = vmatpush1.msra.mxu0 0.0
    %6836 = vmatprep.subr.mxu0 0.0
    %6837 = vmatpush1.msra.mxu0 0.0
    %6838 = vmatprep.subr.mxu0 0.0
    %6839 = vmatpush1.msra.mxu0 0.0
    %6840 = vmatprep.subr.mxu0 0.0
    %6841 = vmatpush1.msra.mxu0 0.0
    %6842 = vmatprep.subr.mxu0 0.0
    %6843 = vmatpush1.msra.mxu0 0.0
    %6844 = vmatprep.subr.mxu0 0.0
    %6845 = vmatpush1.msra.mxu0 0.0
    %6846 = vmatprep.subr.mxu0 0.0
    %6847 = vmatpush1.msra.mxu0 0.0
    %6848 = vmatprep.subr.mxu0 0.0
    %6849 = vmatpush1.msra.mxu0 0.0
    %6850 = vmatprep.subr.mxu0 0.0
    %6851 = vmatpush1.msra.mxu0 0.0
    %6852 = vmatprep.subr.mxu0 0.0
    %6853 = vmatpush1.msra.mxu0 0.0
    %6854 = vmatprep.subr.mxu0 0.0
    %6855 = vmatpush1.msra.mxu0 0.0
    %6856 = vmatprep.subr.mxu0 0.0
    %6857 = vmatpush1.msra.mxu0 0.0
    %6858 = vmatprep.subr.mxu0 0.0
    %6859 = vmatpush1.msra.mxu0 0.0
    %6860 = vmatprep.subr.mxu0 0.0
    %6861 = vmatpush1.msra.mxu0 0.0
    %6862 = vmatprep.subr.mxu0 0.0
    %6863 = vmatpush1.msra.mxu0 0.0
    %6864 = vmatprep.subr.mxu0 0.0
    %6865 = vmatpush1.msra.mxu0 0.0
    %6866 = vmatprep.subr.mxu0 0.0
    %6867 = vmatpush1.msra.mxu0 0.0
    %6868 = vmatprep.subr.mxu0 0.0
    %6869 = vmatpush1.msra.mxu0 0.0
    %6870 = vmatprep.subr.mxu0 0.0
    %6871 = vmatpush1.msra.mxu0 0.0
    %6872 = vmatprep.subr.mxu0 0.0
    %6873 = vmatpush1.msra.mxu0 0.0
    %6874 = vmatprep.subr.mxu0 0.0
    %6875 = vmatpush1.msra.mxu0 0.0
    %6876 = vmatprep.mubr.f32.mxu0 0.0
    %6877 = vmatmul.mubr.f32.gmra.mrb[0].mxu0 %v6110
    %v6878 = vpop.f32.mrb[0].mxu0
    %v6879 = vadd.f32 %v4881, %v6878
    %v6880 = vpop.f32.mrb[0].mxu0
    %6881 = vdwg.mxu0
    %6882 = vmatprep.subr.mxu0 0.0
    %6883 = vmatpush1.msra.mxu0 %v4231
    %6884 = vmatprep.subr.mxu0 0.0
    %6885 = vmatpush1.msra.mxu0 %v4232
    %6886 = vmatprep.subr.mxu0 0.0
    %6887 = vmatpush1.msra.mxu0 %v4233
    %6888 = vmatprep.subr.mxu0 0.0
    %6889 = vmatpush1.msra.mxu0 %v4234
    %6890 = vmatprep.subr.mxu0 0.0
    %6891 = vmatpush1.msra.mxu0 0.0
    %6892 = vmatprep.subr.mxu0 0.0
    %6893 = vmatpush1.msra.mxu0 0.0
    %6894 = vmatprep.subr.mxu0 0.0
    %6895 = vmatpush1.msra.mxu0 0.0
    %6896 = vmatprep.subr.mxu0 0.0
    %6897 = vmatpush1.msra.mxu0 0.0
    %6898 = vmatprep.subr.mxu0 0.0
    %6899 = vmatpush1.msra.mxu0 0.0
    %6900 = vmatprep.subr.mxu0 0.0
    %6901 = vmatpush1.msra.mxu0 0.0
    %6902 = vmatprep.subr.mxu0 0.0
    %6903 = vmatpush1.msra.mxu0 0.0
    %6904 = vmatprep.subr.mxu0 0.0
    %6905 = vmatpush1.msra.mxu0 0.0
    %6906 = vmatprep.subr.mxu0 0.0
    %6907 = vmatpush1.msra.mxu0 0.0
    %6908 = vmatprep.subr.mxu0 0.0
    %6909 = vmatpush1.msra.mxu0 0.0
    %6910 = vmatprep.subr.mxu0 0.0
    %6911 = vmatpush1.msra.mxu0 0.0
    %6912 = vmatprep.subr.mxu0 0.0
    %6913 = vmatpush1.msra.mxu0 0.0
    %6914 = vmatprep.subr.mxu0 0.0
    %6915 = vmatpush1.msra.mxu0 0.0
    %6916 = vmatprep.subr.mxu0 0.0
    %6917 = vmatpush1.msra.mxu0 0.0
    %6918 = vmatprep.subr.mxu0 0.0
    %6919 = vmatpush1.msra.mxu0 0.0
    %6920 = vmatprep.subr.mxu0 0.0
    %6921 = vmatpush1.msra.mxu0 0.0
    %6922 = vmatprep.subr.mxu0 0.0
    %6923 = vmatpush1.msra.mxu0 0.0
    %6924 = vmatprep.subr.mxu0 0.0
    %6925 = vmatpush1.msra.mxu0 0.0
    %6926 = vmatprep.subr.mxu0 0.0
    %6927 = vmatpush1.msra.mxu0 0.0
    %6928 = vmatprep.subr.mxu0 0.0
    %6929 = vmatpush1.msra.mxu0 0.0
    %6930 = vmatprep.subr.mxu0 0.0
    %6931 = vmatpush1.msra.mxu0 0.0
    %6932 = vmatprep.subr.mxu0 0.0
    %6933 = vmatpush1.msra.mxu0 0.0
    %6934 = vmatprep.subr.mxu0 0.0
    %6935 = vmatpush1.msra.mxu0 0.0
    %6936 = vmatprep.subr.mxu0 0.0
    %6937 = vmatpush1.msra.mxu0 0.0
    %6938 = vmatprep.subr.mxu0 0.0
    %6939 = vmatpush1.msra.mxu0 0.0
    %6940 = vmatprep.subr.mxu0 0.0
    %6941 = vmatpush1.msra.mxu0 0.0
    %6942 = vmatprep.subr.mxu0 0.0
    %6943 = vmatpush1.msra.mxu0 0.0
    %6944 = vmatprep.subr.mxu0 0.0
    %6945 = vmatpush1.msra.mxu0 0.0
    %6946 = vmatprep.mubr.f32.mxu0 0.0
    %6947 = vmatmul.mubr.f32.gmra.mrb[0].mxu0 %v6110
    %v6948 = vpop.f32.mrb[0].mxu0
    %v6949 = vadd.f32 %v4885, %v6948
    %v6950 = vpop.f32.mrb[0].mxu0
    %6951 = vdwg.mxu0
    %v6953 = vsel %vm1165, %v6179, 0
    %v6956 = vsel %vm1165, %v6459, 0
    %6958 = vmatprep.subr.mxu0 0.0
    %6959 = vmatpush1.xpose.msra.mxu0 %v6956
    %6960 = vmatprep.subr.mxu0 0.0
    %6961 = vmatpush1.xpose.msra.mxu0 0.0
    %6962 = vmatprep.subr.mxu0 0.0
    %6963 = vmatpush1.xpose.msra.mxu0 0.0
    %6964 = vmatprep.subr.mxu0 0.0
    %6965 = vmatpush1.xpose.msra.mxu0 0.0
    %6966 = vmatprep.subr.mxu0 0.0
    %6967 = vmatpush1.xpose.msra.mxu0 0.0
    %6968 = vmatprep.subr.mxu0 0.0
    %6969 = vmatpush1.xpose.msra.mxu0 0.0
    %6970 = vmatprep.subr.mxu0 0.0
    %6971 = vmatpush1.xpose.msra.mxu0 0.0
    %6972 = vmatprep.subr.mxu0 0.0
    %6973 = vmatpush1.xpose.msra.mxu0 0.0
    %6974 = vmatprep.subr.mxu0 0.0
    %6975 = vmatpush1.xpose.msra.mxu0 0.0
    %6976 = vmatprep.subr.mxu0 0.0
    %6977 = vmatpush1.xpose.msra.mxu0 0.0
    %6978 = vmatprep.subr.mxu0 0.0
    %6979 = vmatpush1.xpose.msra.mxu0 0.0
    %6980 = vmatprep.subr.mxu0 0.0
    %6981 = vmatpush1.xpose.msra.mxu0 0.0
    %6982 = vmatprep.subr.mxu0 0.0
    %6983 = vmatpush1.xpose.msra.mxu0 0.0
    %6984 = vmatprep.subr.mxu0 0.0
    %6985 = vmatpush1.xpose.msra.mxu0 0.0
    %6986 = vmatprep.subr.mxu0 0.0
    %6987 = vmatpush1.xpose.msra.mxu0 0.0
    %6988 = vmatprep.subr.mxu0 0.0
    %6989 = vmatpush1.xpose.msra.mxu0 0.0
    %6990 = vmatprep.subr.mxu0 0.0
    %6991 = vmatpush1.xpose.msra.mxu0 0.0
    %6992 = vmatprep.subr.mxu0 0.0
    %6993 = vmatpush1.xpose.msra.mxu0 0.0
    %6994 = vmatprep.subr.mxu0 0.0
    %6995 = vmatpush1.xpose.msra.mxu0 0.0
    %6996 = vmatprep.subr.mxu0 0.0
    %6997 = vmatpush1.xpose.msra.mxu0 0.0
    %6998 = vmatprep.subr.mxu0 0.0
    %6999 = vmatpush1.xpose.msra.mxu0 0.0
    %7000 = vmatprep.subr.mxu0 0.0
    %7001 = vmatpush1.xpose.msra.mxu0 0.0
    %7002 = vmatprep.subr.mxu0 0.0
    %7003 = vmatpush1.xpose.msra.mxu0 0.0
    %7004 = vmatprep.subr.mxu0 0.0
    %7005 = vmatpush1.xpose.msra.mxu0 0.0
    %7006 = vmatprep.subr.mxu0 0.0
    %7007 = vmatpush1.xpose.msra.mxu0 0.0
    %7008 = vmatprep.subr.mxu0 0.0
    %7009 = vmatpush1.xpose.msra.mxu0 0.0
    %7010 = vmatprep.subr.mxu0 0.0
    %7011 = vmatpush1.xpose.msra.mxu0 0.0
    %7012 = vmatprep.subr.mxu0 0.0
    %7013 = vmatpush1.xpose.msra.mxu0 0.0
    %7014 = vmatprep.subr.mxu0 0.0
    %7015 = vmatpush1.xpose.msra.mxu0 0.0
    %7016 = vmatprep.subr.mxu0 0.0
    %7017 = vmatpush1.xpose.msra.mxu0 0.0
    %7018 = vmatprep.subr.mxu0 0.0
    %7019 = vmatpush1.xpose.msra.mxu0 0.0
    %7020 = vmatprep.subr.mxu0 0.0
    %7021 = vmatpush1.xpose.msra.mxu0 0.0
    %7022 = vmatprep.mubr.f32.mxu0 0.0
    %7023 = vmatmul.mubr.f32.gmra.mrb[0].mxu0 %v6953
    %v7024 = vpop.f32.mrb[0].mxu0
    %v7025 = vadd.f32 %v2951, %v7024
    %v7026 = vpop.f32.mrb[0].mxu0
    %7027 = vdwg.mxu0
    %v7029 = vsel %vm1165, %v6249, 0
    %v7032 = vsel %vm1165, %v6529, 0
    %7034 = vmatprep.subr.mxu0 0.0
    %7035 = vmatpush1.xpose.msra.mxu0 %v7032
    %7036 = vmatprep.subr.mxu0 0.0
    %7037 = vmatpush1.xpose.msra.mxu0 0.0
    %7038 = vmatprep.subr.mxu0 0.0
    %7039 = vmatpush1.xpose.msra.mxu0 0.0
    %7040 = vmatprep.subr.mxu0 0.0
    %7041 = vmatpush1.xpose.msra.mxu0 0.0
    %7042 = vmatprep.subr.mxu0 0.0
    %7043 = vmatpush1.xpose.msra.mxu0 0.0
    %7044 = vmatprep.subr.mxu0 0.0
    %7045 = vmatpush1.xpose.msra.mxu0 0.0
    %7046 = vmatprep.subr.mxu0 0.0
    %7047 = vmatpush1.xpose.msra.mxu0 0.0
    %7048 = vmatprep.subr.mxu0 0.0
    %7049 = vmatpush1.xpose.msra.mxu0 0.0
    %7050 = vmatprep.subr.mxu0 0.0
    %7051 = vmatpush1.xpose.msra.mxu0 0.0
    %7052 = vmatprep.subr.mxu0 0.0
    %7053 = vmatpush1.xpose.msra.mxu0 0.0
    %7054 = vmatprep.subr.mxu0 0.0
    %7055 = vmatpush1.xpose.msra.mxu0 0.0
    %7056 = vmatprep.subr.mxu0 0.0
    %7057 = vmatpush1.xpose.msra.mxu0 0.0
    %7058 = vmatprep.subr.mxu0 0.0
    %7059 = vmatpush1.xpose.msra.mxu0 0.0
    %7060 = vmatprep.subr.mxu0 0.0
    %7061 = vmatpush1.xpose.msra.mxu0 0.0
    %7062 = vmatprep.subr.mxu0 0.0
    %7063 = vmatpush1.xpose.msra.mxu0 0.0
    %7064 = vmatprep.subr.mxu0 0.0
    %7065 = vmatpush1.xpose.msra.mxu0 0.0
    %7066 = vmatprep.subr.mxu0 0.0
    %7067 = vmatpush1.xpose.msra.mxu0 0.0
    %7068 = vmatprep.subr.mxu0 0.0
    %7069 = vmatpush1.xpose.msra.mxu0 0.0
    %7070 = vmatprep.subr.mxu0 0.0
    %7071 = vmatpush1.xpose.msra.mxu0 0.0
    %7072 = vmatprep.subr.mxu0 0.0
    %7073 = vmatpush1.xpose.msra.mxu0 0.0
    %7074 = vmatprep.subr.mxu0 0.0
    %7075 = vmatpush1.xpose.msra.mxu0 0.0
    %7076 = vmatprep.subr.mxu0 0.0
    %7077 = vmatpush1.xpose.msra.mxu0 0.0
    %7078 = vmatprep.subr.mxu0 0.0
    %7079 = vmatpush1.xpose.msra.mxu0 0.0
    %7080 = vmatprep.subr.mxu0 0.0
    %7081 = vmatpush1.xpose.msra.mxu0 0.0
    %7082 = vmatprep.subr.mxu0 0.0
    %7083 = vmatpush1.xpose.msra.mxu0 0.0
    %7084 = vmatprep.subr.mxu0 0.0
    %7085 = vmatpush1.xpose.msra.mxu0 0.0
    %7086 = vmatprep.subr.mxu0 0.0
    %7087 = vmatpush1.xpose.msra.mxu0 0.0
    %7088 = vmatprep.subr.mxu0 0.0
    %7089 = vmatpush1.xpose.msra.mxu0 0.0
    %7090 = vmatprep.subr.mxu0 0.0
    %7091 = vmatpush1.xpose.msra.mxu0 0.0
    %7092 = vmatprep.subr.mxu0 0.0
    %7093 = vmatpush1.xpose.msra.mxu0 0.0
    %7094 = vmatprep.subr.mxu0 0.0
    %7095 = vmatpush1.xpose.msra.mxu0 0.0
    %7096 = vmatprep.subr.mxu0 0.0
    %7097 = vmatpush1.xpose.msra.mxu0 0.0
    %7098 = vmatprep.mubr.f32.mxu0 0.0
    %7099 = vmatmul.mubr.f32.gmra.mrb[0].mxu0 %v7029
    %v7100 = vpop.f32.mrb[0].mxu0
    %v7101 = vadd.f32 %v2951, %v7100
    %v7102 = vpop.f32.mrb[0].mxu0
    %7103 = vdwg.mxu0
    %v7105 = vsel %vm1165, %v6319, 0
    %v7108 = vsel %vm1165, %v6599, 0
    %7110 = vmatprep.subr.mxu0 0.0
    %7111 = vmatpush1.xpose.msra.mxu0 %v7108
    %7112 = vmatprep.subr.mxu0 0.0
    %7113 = vmatpush1.xpose.msra.mxu0 0.0
    %7114 = vmatprep.subr.mxu0 0.0
    %7115 = vmatpush1.xpose.msra.mxu0 0.0
    %7116 = vmatprep.subr.mxu0 0.0
    %7117 = vmatpush1.xpose.msra.mxu0 0.0
    %7118 = vmatprep.subr.mxu0 0.0
    %7119 = vmatpush1.xpose.msra.mxu0 0.0
    %7120 = vmatprep.subr.mxu0 0.0
    %7121 = vmatpush1.xpose.msra.mxu0 0.0
    %7122 = vmatprep.subr.mxu0 0.0
    %7123 = vmatpush1.xpose.msra.mxu0 0.0
    %7124 = vmatprep.subr.mxu0 0.0
    %7125 = vmatpush1.xpose.msra.mxu0 0.0
    %7126 = vmatprep.subr.mxu0 0.0
    %7127 = vmatpush1.xpose.msra.mxu0 0.0
    %7128 = vmatprep.subr.mxu0 0.0
    %7129 = vmatpush1.xpose.msra.mxu0 0.0
    %7130 = vmatprep.subr.mxu0 0.0
    %7131 = vmatpush1.xpose.msra.mxu0 0.0
    %7132 = vmatprep.subr.mxu0 0.0
    %7133 = vmatpush1.xpose.msra.mxu0 0.0
    %7134 = vmatprep.subr.mxu0 0.0
    %7135 = vmatpush1.xpose.msra.mxu0 0.0
    %7136 = vmatprep.subr.mxu0 0.0
    %7137 = vmatpush1.xpose.msra.mxu0 0.0
    %7138 = vmatprep.subr.mxu0 0.0
    %7139 = vmatpush1.xpose.msra.mxu0 0.0
    %7140 = vmatprep.subr.mxu0 0.0
    %7141 = vmatpush1.xpose.msra.mxu0 0.0
    %7142 = vmatprep.subr.mxu0 0.0
    %7143 = vmatpush1.xpose.msra.mxu0 0.0
    %7144 = vmatprep.subr.mxu0 0.0
    %7145 = vmatpush1.xpose.msra.mxu0 0.0
    %7146 = vmatprep.subr.mxu0 0.0
    %7147 = vmatpush1.xpose.msra.mxu0 0.0
    %7148 = vmatprep.subr.mxu0 0.0
    %7149 = vmatpush1.xpose.msra.mxu0 0.0
    %7150 = vmatprep.subr.mxu0 0.0
    %7151 = vmatpush1.xpose.msra.mxu0 0.0
    %7152 = vmatprep.subr.mxu0 0.0
    %7153 = vmatpush1.xpose.msra.mxu0 0.0
    %7154 = vmatprep.subr.mxu0 0.0
    %7155 = vmatpush1.xpose.msra.mxu0 0.0
    %7156 = vmatprep.subr.mxu0 0.0
    %7157 = vmatpush1.xpose.msra.mxu0 0.0
    %7158 = vmatprep.subr.mxu0 0.0
    %7159 = vmatpush1.xpose.msra.mxu0 0.0
    %7160 = vmatprep.subr.mxu0 0.0
    %7161 = vmatpush1.xpose.msra.mxu0 0.0
    %7162 = vmatprep.subr.mxu0 0.0
    %7163 = vmatpush1.xpose.msra.mxu0 0.0
    %7164 = vmatprep.subr.mxu0 0.0
    %7165 = vmatpush1.xpose.msra.mxu0 0.0
    %7166 = vmatprep.subr.mxu0 0.0
    %7167 = vmatpush1.xpose.msra.mxu0 0.0
    %7168 = vmatprep.subr.mxu0 0.0
    %7169 = vmatpush1.xpose.msra.mxu0 0.0
    %7170 = vmatprep.subr.mxu0 0.0
    %7171 = vmatpush1.xpose.msra.mxu0 0.0
    %7172 = vmatprep.subr.mxu0 0.0
    %7173 = vmatpush1.xpose.msra.mxu0 0.0
    %7174 = vmatprep.mubr.f32.mxu0 0.0
    %7175 = vmatmul.mubr.f32.gmra.mrb[0].mxu0 %v7105
    %v7176 = vpop.f32.mrb[0].mxu0
    %v7177 = vadd.f32 %v2951, %v7176
    %v7178 = vpop.f32.mrb[0].mxu0
    %7179 = vdwg.mxu0
    %v7181 = vsel %vm1165, %v6389, 0
    %v7184 = vsel %vm1165, %v6669, 0
    %7186 = vmatprep.subr.mxu0 0.0
    %7187 = vmatpush1.xpose.msra.mxu0 %v7184
    %7188 = vmatprep.subr.mxu0 0.0
    %7189 = vmatpush1.xpose.msra.mxu0 0.0
    %7190 = vmatprep.subr.mxu0 0.0
    %7191 = vmatpush1.xpose.msra.mxu0 0.0
    %7192 = vmatprep.subr.mxu0 0.0
    %7193 = vmatpush1.xpose.msra.mxu0 0.0
    %7194 = vmatprep.subr.mxu0 0.0
    %7195 = vmatpush1.xpose.msra.mxu0 0.0
    %7196 = vmatprep.subr.mxu0 0.0
    %7197 = vmatpush1.xpose.msra.mxu0 0.0
    %7198 = vmatprep.subr.mxu0 0.0
    %7199 = vmatpush1.xpose.msra.mxu0 0.0
    %7200 = vmatprep.subr.mxu0 0.0
    %7201 = vmatpush1.xpose.msra.mxu0 0.0
    %7202 = vmatprep.subr.mxu0 0.0
    %7203 = vmatpush1.xpose.msra.mxu0 0.0
    %7204 = vmatprep.subr.mxu0 0.0
    %7205 = vmatpush1.xpose.msra.mxu0 0.0
    %7206 = vmatprep.subr.mxu0 0.0
    %7207 = vmatpush1.xpose.msra.mxu0 0.0
    %7208 = vmatprep.subr.mxu0 0.0
    %7209 = vmatpush1.xpose.msra.mxu0 0.0
    %7210 = vmatprep.subr.mxu0 0.0
    %7211 = vmatpush1.xpose.msra.mxu0 0.0
    %7212 = vmatprep.subr.mxu0 0.0
    %7213 = vmatpush1.xpose.msra.mxu0 0.0
    %7214 = vmatprep.subr.mxu0 0.0
    %7215 = vmatpush1.xpose.msra.mxu0 0.0
    %7216 = vmatprep.subr.mxu0 0.0
    %7217 = vmatpush1.xpose.msra.mxu0 0.0
    %7218 = vmatprep.subr.mxu0 0.0
    %7219 = vmatpush1.xpose.msra.mxu0 0.0
    %7220 = vmatprep.subr.mxu0 0.0
    %7221 = vmatpush1.xpose.msra.mxu0 0.0
    %7222 = vmatprep.subr.mxu0 0.0
    %7223 = vmatpush1.xpose.msra.mxu0 0.0
    %7224 = vmatprep.subr.mxu0 0.0
    %7225 = vmatpush1.xpose.msra.mxu0 0.0
    %7226 = vmatprep.subr.mxu0 0.0
    %7227 = vmatpush1.xpose.msra.mxu0 0.0
    %7228 = vmatprep.subr.mxu0 0.0
    %7229 = vmatpush1.xpose.msra.mxu0 0.0
    %7230 = vmatprep.subr.mxu0 0.0
    %7231 = vmatpush1.xpose.msra.mxu0 0.0
    %7232 = vmatprep.subr.mxu0 0.0
    %7233 = vmatpush1.xpose.msra.mxu0 0.0
    %7234 = vmatprep.subr.mxu0 0.0
    %7235 = vmatpush1.xpose.msra.mxu0 0.0
    %7236 = vmatprep.subr.mxu0 0.0
    %7237 = vmatpush1.xpose.msra.mxu0 0.0
    %7238 = vmatprep.subr.mxu0 0.0
    %7239 = vmatpush1.xpose.msra.mxu0 0.0
    %7240 = vmatprep.subr.mxu0 0.0
    %7241 = vmatpush1.xpose.msra.mxu0 0.0
    %7242 = vmatprep.subr.mxu0 0.0
    %7243 = vmatpush1.xpose.msra.mxu0 0.0
    %7244 = vmatprep.subr.mxu0 0.0
    %7245 = vmatpush1.xpose.msra.mxu0 0.0
    %7246 = vmatprep.subr.mxu0 0.0
    %7247 = vmatpush1.xpose.msra.mxu0 0.0
    %7248 = vmatprep.subr.mxu0 0.0
    %7249 = vmatpush1.xpose.msra.mxu0 0.0
    %7250 = vmatprep.mubr.f32.mxu0 0.0
    %7251 = vmatmul.mubr.f32.gmra.mrb[0].mxu0 %v7181
    %v7252 = vpop.f32.mrb[0].mxu0
    %v7253 = vadd.f32 %v2951, %v7252
    %v7254 = vpop.f32.mrb[0].mxu0
    %7255 = vdwg.mxu0
    %v7256 = vsel %vm1165, %v7025, -inf
    %7257 = vmax.xlane.f32.xlu0 %v7256
    %v7258 = vpop.xlane.xlu0 %7257
    %v7259 = vsel %vm1165, %v7101, -inf
    %7260 = vmax.xlane.f32.xlu0 %v7259
    %v7261 = vpop.xlane.xlu0 %7260
    %v7262 = vsel %vm1165, %v7177, -inf
    %7263 = vmax.xlane.f32.xlu0 %v7262
    %v7264 = vpop.xlane.xlu0 %7263
    %v7265 = vsel %vm1165, %v7253, -inf
    %7266 = vmax.xlane.f32.xlu0 %v7265
    %v7267 = vpop.xlane.xlu0 %7266
    %v7268 = vsub.f32 %v7025, %v7258
    %v7269 = vsub.f32 %v7101, %v7261
    %v7270 = vsub.f32 %v7177, %v7264
    %v7271 = vsub.f32 %v7253, %v7267
    %v7272 = vmul.f32 %v7268, 1.442695
    %v7273 = vpow.pop %v7272
    %v7274 = vmul.f32 %v7269, 1.442695
    %v7275 = vpow.pop %v7274
    %v7276 = vmul.f32 %v7270, 1.442695
    %v7277 = vpow.pop %v7276
    %v7278 = vmul.f32 %v7271, 1.442695
    %v7279 = vpow.pop %v7278
    %v7280 = vsel %vm1165, %v7273, 0.0
    %7281 = vadd.xlane.f32.xlu0 %v7280
    %v7282 = vpop.xlane.xlu0 %7281
    %v7283 = vsel %vm1165, %v7275, 0.0
    %7284 = vadd.xlane.f32.xlu0 %v7283
    %v7285 = vpop.xlane.xlu0 %7284
    %v7286 = vsel %vm1165, %v7277, 0.0
    %7287 = vadd.xlane.f32.xlu0 %v7286
    %v7288 = vpop.xlane.xlu0 %7287
    %v7289 = vsel %vm1165, %v7279, 0.0
    %7290 = vadd.xlane.f32.xlu0 %v7289
    %v7291 = vpop.xlane.xlu0 %7290
    %v7292 = vrcp.pop %v7282
    %v7293 = vrcp.pop %v7285
    %v7294 = vrcp.pop %v7288
    %v7295 = vrcp.pop %v7291
    %v7296 = vmul.f32 %v7273, %v7292
    %v7297 = vmul.f32 %v7275, %v7293
    %v7298 = vmul.f32 %v7277, %v7294
    %v7299 = vmul.f32 %v7279, %v7295
    %v7301 = vsel %vm1165, %v7296, 0
    %7303 = vmatprep.subr.mxu0 0.0
    %7304 = vmatpush1.msra.mxu0 %v6739
    %7305 = vmatprep.subr.mxu0 0.0
    %7306 = vmatpush1.msra.mxu0 0.0
    %7307 = vmatprep.subr.mxu0 0.0
    %7308 = vmatpush1.msra.mxu0 0.0
    %7309 = vmatprep.subr.mxu0 0.0
    %7310 = vmatpush1.msra.mxu0 0.0
    %7311 = vmatprep.subr.mxu0 0.0
    %7312 = vmatpush1.msra.mxu0 0.0
    %7313 = vmatprep.subr.mxu0 0.0
    %7314 = vmatpush1.msra.mxu0 0.0
    %7315 = vmatprep.subr.mxu0 0.0
    %7316 = vmatpush1.msra.mxu0 0.0
    %7317 = vmatprep.subr.mxu0 0.0
    %7318 = vmatpush1.msra.mxu0 0.0
    %7319 = vmatprep.subr.mxu0 0.0
    %7320 = vmatpush1.msra.mxu0 0.0
    %7321 = vmatprep.subr.mxu0 0.0
    %7322 = vmatpush1.msra.mxu0 0.0
    %7323 = vmatprep.subr.mxu0 0.0
    %7324 = vmatpush1.msra.mxu0 0.0
    %7325 = vmatprep.subr.mxu0 0.0
    %7326 = vmatpush1.msra.mxu0 0.0
    %7327 = vmatprep.subr.mxu0 0.0
    %7328 = vmatpush1.msra.mxu0 0.0
    %7329 = vmatprep.subr.mxu0 0.0
    %7330 = vmatpush1.msra.mxu0 0.0
    %7331 = vmatprep.subr.mxu0 0.0
    %7332 = vmatpush1.msra.mxu0 0.0
    %7333 = vmatprep.subr.mxu0 0.0
    %7334 = vmatpush1.msra.mxu0 0.0
    %7335 = vmatprep.subr.mxu0 0.0
    %7336 = vmatpush1.msra.mxu0 0.0
    %7337 = vmatprep.subr.mxu0 0.0
    %7338 = vmatpush1.msra.mxu0 0.0
    %7339 = vmatprep.subr.mxu0 0.0
    %7340 = vmatpush1.msra.mxu0 0.0
    %7341 = vmatprep.subr.mxu0 0.0
    %7342 = vmatpush1.msra.mxu0 0.0
    %7343 = vmatprep.subr.mxu0 0.0
    %7344 = vmatpush1.msra.mxu0 0.0
    %7345 = vmatprep.subr.mxu0 0.0
    %7346 = vmatpush1.msra.mxu0 0.0
    %7347 = vmatprep.subr.mxu0 0.0
    %7348 = vmatpush1.msra.mxu0 0.0
    %7349 = vmatprep.subr.mxu0 0.0
    %7350 = vmatpush1.msra.mxu0 0.0
    %7351 = vmatprep.subr.mxu0 0.0
    %7352 = vmatpush1.msra.mxu0 0.0
    %7353 = vmatprep.subr.mxu0 0.0
    %7354 = vmatpush1.msra.mxu0 0.0
    %7355 = vmatprep.subr.mxu0 0.0
    %7356 = vmatpush1.msra.mxu0 0.0
    %7357 = vmatprep.subr.mxu0 0.0
    %7358 = vmatpush1.msra.mxu0 0.0
    %7359 = vmatprep.subr.mxu0 0.0
    %7360 = vmatpush1.msra.mxu0 0.0
    %7361 = vmatprep.subr.mxu0 0.0
    %7362 = vmatpush1.msra.mxu0 0.0
    %7363 = vmatprep.subr.mxu0 0.0
    %7364 = vmatpush1.msra.mxu0 0.0
    %7365 = vmatprep.subr.mxu0 0.0
    %7366 = vmatpush1.msra.mxu0 0.0
    %7367 = vmatprep.mubr.f32.mxu0 0.0
    %7368 = vmatmul.mubr.f32.gmra.mrb[0].mxu0 %v7301
    %v7369 = vpop.f32.mrb[0].mxu0
    %v7370 = vadd.f32 0.0, %v7369
    %v7371 = vpop.f32.mrb[0].mxu0
    %7372 = vdwg.mxu0
    %v7374 = vsel %vm1165, %v7297, 0
    %7376 = vmatprep.subr.mxu0 0.0
    %7377 = vmatpush1.msra.mxu0 %v6809
    %7378 = vmatprep.subr.mxu0 0.0
    %7379 = vmatpush1.msra.mxu0 0.0
    %7380 = vmatprep.subr.mxu0 0.0
    %7381 = vmatpush1.msra.mxu0 0.0
    %7382 = vmatprep.subr.mxu0 0.0
    %7383 = vmatpush1.msra.mxu0 0.0
    %7384 = vmatprep.subr.mxu0 0.0
    %7385 = vmatpush1.msra.mxu0 0.0
    %7386 = vmatprep.subr.mxu0 0.0
    %7387 = vmatpush1.msra.mxu0 0.0
    %7388 = vmatprep.subr.mxu0 0.0
    %7389 = vmatpush1.msra.mxu0 0.0
    %7390 = vmatprep.subr.mxu0 0.0
    %7391 = vmatpush1.msra.mxu0 0.0
    %7392 = vmatprep.subr.mxu0 0.0
    %7393 = vmatpush1.msra.mxu0 0.0
    %7394 = vmatprep.subr.mxu0 0.0
    %7395 = vmatpush1.msra.mxu0 0.0
    %7396 = vmatprep.subr.mxu0 0.0
    %7397 = vmatpush1.msra.mxu0 0.0
    %7398 = vmatprep.subr.mxu0 0.0
    %7399 = vmatpush1.msra.mxu0 0.0
    %7400 = vmatprep.subr.mxu0 0.0
    %7401 = vmatpush1.msra.mxu0 0.0
    %7402 = vmatprep.subr.mxu0 0.0
    %7403 = vmatpush1.msra.mxu0 0.0
    %7404 = vmatprep.subr.mxu0 0.0
    %7405 = vmatpush1.msra.mxu0 0.0
    %7406 = vmatprep.subr.mxu0 0.0
    %7407 = vmatpush1.msra.mxu0 0.0
    %7408 = vmatprep.subr.mxu0 0.0
    %7409 = vmatpush1.msra.mxu0 0.0
    %7410 = vmatprep.subr.mxu0 0.0
    %7411 = vmatpush1.msra.mxu0 0.0
    %7412 = vmatprep.subr.mxu0 0.0
    %7413 = vmatpush1.msra.mxu0 0.0
    %7414 = vmatprep.subr.mxu0 0.0
    %7415 = vmatpush1.msra.mxu0 0.0
    %7416 = vmatprep.subr.mxu0 0.0
    %7417 = vmatpush1.msra.mxu0 0.0
    %7418 = vmatprep.subr.mxu0 0.0
    %7419 = vmatpush1.msra.mxu0 0.0
    %7420 = vmatprep.subr.mxu0 0.0
    %7421 = vmatpush1.msra.mxu0 0.0
    %7422 = vmatprep.subr.mxu0 0.0
    %7423 = vmatpush1.msra.mxu0 0.0
    %7424 = vmatprep.subr.mxu0 0.0
    %7425 = vmatpush1.msra.mxu0 0.0
    %7426 = vmatprep.subr.mxu0 0.0
    %7427 = vmatpush1.msra.mxu0 0.0
    %7428 = vmatprep.subr.mxu0 0.0
    %7429 = vmatpush1.msra.mxu0 0.0
    %7430 = vmatprep.subr.mxu0 0.0
    %7431 = vmatpush1.msra.mxu0 0.0
    %7432 = vmatprep.subr.mxu0 0.0
    %7433 = vmatpush1.msra.mxu0 0.0
    %7434 = vmatprep.subr.mxu0 0.0
    %7435 = vmatpush1.msra.mxu0 0.0
    %7436 = vmatprep.subr.mxu0 0.0
    %7437 = vmatpush1.msra.mxu0 0.0
    %7438 = vmatprep.subr.mxu0 0.0
    %7439 = vmatpush1.msra.mxu0 0.0
    %7440 = vmatprep.mubr.f32.mxu0 0.0
    %7441 = vmatmul.mubr.f32.gmra.mrb[0].mxu0 %v7374
    %v7442 = vpop.f32.mrb[0].mxu0
    %v7443 = vadd.f32 0.0, %v7442
    %v7444 = vpop.f32.mrb[0].mxu0
    %7445 = vdwg.mxu0
    %v7447 = vsel %vm1165, %v7298, 0
    %7449 = vmatprep.subr.mxu0 0.0
    %7450 = vmatpush1.msra.mxu0 %v6879
    %7451 = vmatprep.subr.mxu0 0.0
    %7452 = vmatpush1.msra.mxu0 0.0
    %7453 = vmatprep.subr.mxu0 0.0
    %7454 = vmatpush1.msra.mxu0 0.0
    %7455 = vmatprep.subr.mxu0 0.0
    %7456 = vmatpush1.msra.mxu0 0.0
    %7457 = vmatprep.subr.mxu0 0.0
    %7458 = vmatpush1.msra.mxu0 0.0
    %7459 = vmatprep.subr.mxu0 0.0
    %7460 = vmatpush1.msra.mxu0 0.0
    %7461 = vmatprep.subr.mxu0 0.0
    %7462 = vmatpush1.msra.mxu0 0.0
    %7463 = vmatprep.subr.mxu0 0.0
    %7464 = vmatpush1.msra.mxu0 0.0
    %7465 = vmatprep.subr.mxu0 0.0
    %7466 = vmatpush1.msra.mxu0 0.0
    %7467 = vmatprep.subr.mxu0 0.0
    %7468 = vmatpush1.msra.mxu0 0.0
    %7469 = vmatprep.subr.mxu0 0.0
    %7470 = vmatpush1.msra.mxu0 0.0
    %7471 = vmatprep.subr.mxu0 0.0
    %7472 = vmatpush1.msra.mxu0 0.0
    %7473 = vmatprep.subr.mxu0 0.0
    %7474 = vmatpush1.msra.mxu0 0.0
    %7475 = vmatprep.subr.mxu0 0.0
    %7476 = vmatpush1.msra.mxu0 0.0
    %7477 = vmatprep.subr.mxu0 0.0
    %7478 = vmatpush1.msra.mxu0 0.0
    %7479 = vmatprep.subr.mxu0 0.0
    %7480 = vmatpush1.msra.mxu0 0.0
    %7481 = vmatprep.subr.mxu0 0.0
    %7482 = vmatpush1.msra.mxu0 0.0
    %7483 = vmatprep.subr.mxu0 0.0
    %7484 = vmatpush1.msra.mxu0 0.0
    %7485 = vmatprep.subr.mxu0 0.0
    %7486 = vmatpush1.msra.mxu0 0.0
    %7487 = vmatprep.subr.mxu0 0.0
    %7488 = vmatpush1.msra.mxu0 0.0
    %7489 = vmatprep.subr.mxu0 0.0
    %7490 = vmatpush1.msra.mxu0 0.0
    %7491 = vmatprep.subr.mxu0 0.0
    %7492 = vmatpush1.msra.mxu0 0.0
    %7493 = vmatprep.subr.mxu0 0.0
    %7494 = vmatpush1.msra.mxu0 0.0
    %7495 = vmatprep.subr.mxu0 0.0
    %7496 = vmatpush1.msra.mxu0 0.0
    %7497 = vmatprep.subr.mxu0 0.0
    %7498 = vmatpush1.msra.mxu0 0.0
    %7499 = vmatprep.subr.mxu0 0.0
    %7500 = vmatpush1.msra.mxu0 0.0
    %7501 = vmatprep.subr.mxu0 0.0
    %7502 = vmatpush1.msra.mxu0 0.0
    %7503 = vmatprep.subr.mxu0 0.0
    %7504 = vmatpush1.msra.mxu0 0.0
    %7505 = vmatprep.subr.mxu0 0.0
    %7506 = vmatpush1.msra.mxu0 0.0
    %7507 = vmatprep.subr.mxu0 0.0
    %7508 = vmatpush1.msra.mxu0 0.0
    %7509 = vmatprep.subr.mxu0 0.0
    %7510 = vmatpush1.msra.mxu0 0.0
    %7511 = vmatprep.subr.mxu0 0.0
    %7512 = vmatpush1.msra.mxu0 0.0
    %7513 = vmatprep.mubr.f32.mxu0 0.0
    %7514 = vmatmul.mubr.f32.gmra.mrb[0].mxu0 %v7447
    %v7515 = vpop.f32.mrb[0].mxu0
    %v7516 = vadd.f32 0.0, %v7515
    %v7517 = vpop.f32.mrb[0].mxu0
    %7518 = vdwg.mxu0
    %v7520 = vsel %vm1165, %v7299, 0
    %7522 = vmatprep.subr.mxu0 0.0
    %7523 = vmatpush1.msra.mxu0 %v6949
    %7524 = vmatprep.subr.mxu0 0.0
    %7525 = vmatpush1.msra.mxu0 0.0
    %7526 = vmatprep.subr.mxu0 0.0
    %7527 = vmatpush1.msra.mxu0 0.0
    %7528 = vmatprep.subr.mxu0 0.0
    %7529 = vmatpush1.msra.mxu0 0.0
    %7530 = vmatprep.subr.mxu0 0.0
    %7531 = vmatpush1.msra.mxu0 0.0
    %7532 = vmatprep.subr.mxu0 0.0
    %7533 = vmatpush1.msra.mxu0 0.0
    %7534 = vmatprep.subr.mxu0 0.0
    %7535 = vmatpush1.msra.mxu0 0.0
    %7536 = vmatprep.subr.mxu0 0.0
    %7537 = vmatpush1.msra.mxu0 0.0
    %7538 = vmatprep.subr.mxu0 0.0
    %7539 = vmatpush1.msra.mxu0 0.0
    %7540 = vmatprep.subr.mxu0 0.0
    %7541 = vmatpush1.msra.mxu0 0.0
    %7542 = vmatprep.subr.mxu0 0.0
    %7543 = vmatpush1.msra.mxu0 0.0
    %7544 = vmatprep.subr.mxu0 0.0
    %7545 = vmatpush1.msra.mxu0 0.0
    %7546 = vmatprep.subr.mxu0 0.0
    %7547 = vmatpush1.msra.mxu0 0.0
    %7548 = vmatprep.subr.mxu0 0.0
    %7549 = vmatpush1.msra.mxu0 0.0
    %7550 = vmatprep.subr.mxu0 0.0
    %7551 = vmatpush1.msra.mxu0 0.0
    %7552 = vmatprep.subr.mxu0 0.0
    %7553 = vmatpush1.msra.mxu0 0.0
    %7554 = vmatprep.subr.mxu0 0.0
    %7555 = vmatpush1.msra.mxu0 0.0
    %7556 = vmatprep.subr.mxu0 0.0
    %7557 = vmatpush1.msra.mxu0 0.0
    %7558 = vmatprep.subr.mxu0 0.0
    %7559 = vmatpush1.msra.mxu0 0.0
    %7560 = vmatprep.subr.mxu0 0.0
    %7561 = vmatpush1.msra.mxu0 0.0
    %7562 = vmatprep.subr.mxu0 0.0
    %7563 = vmatpush1.msra.mxu0 0.0
    %7564 = vmatprep.subr.mxu0 0.0
    %7565 = vmatpush1.msra.mxu0 0.0
    %7566 = vmatprep.subr.mxu0 0.0
    %7567 = vmatpush1.msra.mxu0 0.0
    %7568 = vmatprep.subr.mxu0 0.0
    %7569 = vmatpush1.msra.mxu0 0.0
    %7570 = vmatprep.subr.mxu0 0.0
    %7571 = vmatpush1.msra.mxu0 0.0
    %7572 = vmatprep.subr.mxu0 0.0
    %7573 = vmatpush1.msra.mxu0 0.0
    %7574 = vmatprep.subr.mxu0 0.0
    %7575 = vmatpush1.msra.mxu0 0.0
    %7576 = vmatprep.subr.mxu0 0.0
    %7577 = vmatpush1.msra.mxu0 0.0
    %7578 = vmatprep.subr.mxu0 0.0
    %7579 = vmatpush1.msra.mxu0 0.0
    %7580 = vmatprep.subr.mxu0 0.0
    %7581 = vmatpush1.msra.mxu0 0.0
    %7582 = vmatprep.subr.mxu0 0.0
    %7583 = vmatpush1.msra.mxu0 0.0
    %7584 = vmatprep.subr.mxu0 0.0
    %7585 = vmatpush1.msra.mxu0 0.0
    %7586 = vmatprep.mubr.f32.mxu0 0.0
    %7587 = vmatmul.mubr.f32.gmra.mrb[0].mxu0 %v7520
    %v7588 = vpop.f32.mrb[0].mxu0
    %v7589 = vadd.f32 0.0, %v7588
    %v7590 = vpop.f32.mrb[0].mxu0
    %7591 = vdwg.mxu0
    %v7593 = vsel %vm1165, %v7370, 0
    %7595 = vmatprep.subr.mxu0 0.0
    %7596 = vmatpush1.msra.mxu0 %v4251
    %7597 = vmatprep.subr.mxu0 0.0
    %7598 = vmatpush1.msra.mxu0 0.0
    %7599 = vmatprep.subr.mxu0 0.0
    %7600 = vmatpush1.msra.mxu0 0.0
    %7601 = vmatprep.subr.mxu0 0.0
    %7602 = vmatpush1.msra.mxu0 0.0
    %7603 = vmatprep.subr.mxu0 0.0
    %7604 = vmatpush1.msra.mxu0 0.0
    %7605 = vmatprep.subr.mxu0 0.0
    %7606 = vmatpush1.msra.mxu0 0.0
    %7607 = vmatprep.subr.mxu0 0.0
    %7608 = vmatpush1.msra.mxu0 0.0
    %7609 = vmatprep.subr.mxu0 0.0
    %7610 = vmatpush1.msra.mxu0 0.0
    %7611 = vmatprep.subr.mxu0 0.0
    %7612 = vmatpush1.msra.mxu0 0.0
    %7613 = vmatprep.subr.mxu0 0.0
    %7614 = vmatpush1.msra.mxu0 0.0
    %7615 = vmatprep.subr.mxu0 0.0
    %7616 = vmatpush1.msra.mxu0 0.0
    %7617 = vmatprep.subr.mxu0 0.0
    %7618 = vmatpush1.msra.mxu0 0.0
    %7619 = vmatprep.subr.mxu0 0.0
    %7620 = vmatpush1.msra.mxu0 0.0
    %7621 = vmatprep.subr.mxu0 0.0
    %7622 = vmatpush1.msra.mxu0 0.0
    %7623 = vmatprep.subr.mxu0 0.0
    %7624 = vmatpush1.msra.mxu0 0.0
    %7625 = vmatprep.subr.mxu0 0.0
    %7626 = vmatpush1.msra.mxu0 0.0
    %7627 = vmatprep.subr.mxu0 0.0
    %7628 = vmatpush1.msra.mxu0 0.0
    %7629 = vmatprep.subr.mxu0 0.0
    %7630 = vmatpush1.msra.mxu0 0.0
    %7631 = vmatprep.subr.mxu0 0.0
    %7632 = vmatpush1.msra.mxu0 0.0
    %7633 = vmatprep.subr.mxu0 0.0
    %7634 = vmatpush1.msra.mxu0 0.0
    %7635 = vmatprep.subr.mxu0 0.0
    %7636 = vmatpush1.msra.mxu0 0.0
    %7637 = vmatprep.subr.mxu0 0.0
    %7638 = vmatpush1.msra.mxu0 0.0
    %7639 = vmatprep.subr.mxu0 0.0
    %7640 = vmatpush1.msra.mxu0 0.0
    %7641 = vmatprep.subr.mxu0 0.0
    %7642 = vmatpush1.msra.mxu0 0.0
    %7643 = vmatprep.subr.mxu0 0.0
    %7644 = vmatpush1.msra.mxu0 0.0
    %7645 = vmatprep.subr.mxu0 0.0
    %7646 = vmatpush1.msra.mxu0 0.0
    %7647 = vmatprep.subr.mxu0 0.0
    %7648 = vmatpush1.msra.mxu0 0.0
    %7649 = vmatprep.subr.mxu0 0.0
    %7650 = vmatpush1.msra.mxu0 0.0
    %7651 = vmatprep.subr.mxu0 0.0
    %7652 = vmatpush1.msra.mxu0 0.0
    %7653 = vmatprep.subr.mxu0 0.0
    %7654 = vmatpush1.msra.mxu0 0.0
    %7655 = vmatprep.subr.mxu0 0.0
    %7656 = vmatpush1.msra.mxu0 0.0
    %7657 = vmatprep.subr.mxu0 0.0
    %7658 = vmatpush1.msra.mxu0 0.0
    %7659 = vmatprep.mubr.f32.mxu0 0.0
    %7660 = vmatmul.mubr.f32.gmra.mrb[0].mxu0 %v7593
    %v7661 = vpop.f32.mrb[0].mxu0
    %v7662 = vadd.f32 0.0, %v7661
    %v7663 = vpop.f32.mrb[0].mxu0
    %7664 = vdwg.mxu0
    %v7666 = vsel %vm1165, %v7443, 0
    %7668 = vmatprep.subr.mxu0 0.0
    %7669 = vmatpush1.msra.mxu0 %v4252
    %7670 = vmatprep.subr.mxu0 0.0
    %7671 = vmatpush1.msra.mxu0 0.0
    %7672 = vmatprep.subr.mxu0 0.0
    %7673 = vmatpush1.msra.mxu0 0.0
    %7674 = vmatprep.subr.mxu0 0.0
    %7675 = vmatpush1.msra.mxu0 0.0
    %7676 = vmatprep.subr.mxu0 0.0
    %7677 = vmatpush1.msra.mxu0 0.0
    %7678 = vmatprep.subr.mxu0 0.0
    %7679 = vmatpush1.msra.mxu0 0.0
    %7680 = vmatprep.subr.mxu0 0.0
    %7681 = vmatpush1.msra.mxu0 0.0
    %7682 = vmatprep.subr.mxu0 0.0
    %7683 = vmatpush1.msra.mxu0 0.0
    %7684 = vmatprep.subr.mxu0 0.0
    %7685 = vmatpush1.msra.mxu0 0.0
    %7686 = vmatprep.subr.mxu0 0.0
    %7687 = vmatpush1.msra.mxu0 0.0
    %7688 = vmatprep.subr.mxu0 0.0
    %7689 = vmatpush1.msra.mxu0 0.0
    %7690 = vmatprep.subr.mxu0 0.0
    %7691 = vmatpush1.msra.mxu0 0.0
    %7692 = vmatprep.subr.mxu0 0.0
    %7693 = vmatpush1.msra.mxu0 0.0
    %7694 = vmatprep.subr.mxu0 0.0
    %7695 = vmatpush1.msra.mxu0 0.0
    %7696 = vmatprep.subr.mxu0 0.0
    %7697 = vmatpush1.msra.mxu0 0.0
    %7698 = vmatprep.subr.mxu0 0.0
    %7699 = vmatpush1.msra.mxu0 0.0
    %7700 = vmatprep.subr.mxu0 0.0
    %7701 = vmatpush1.msra.mxu0 0.0
    %7702 = vmatprep.subr.mxu0 0.0
    %7703 = vmatpush1.msra.mxu0 0.0
    %7704 = vmatprep.subr.mxu0 0.0
    %7705 = vmatpush1.msra.mxu0 0.0
    %7706 = vmatprep.subr.mxu0 0.0
    %7707 = vmatpush1.msra.mxu0 0.0
    %7708 = vmatprep.subr.mxu0 0.0
    %7709 = vmatpush1.msra.mxu0 0.0
    %7710 = vmatprep.subr.mxu0 0.0
    %7711 = vmatpush1.msra.mxu0 0.0
    %7712 = vmatprep.subr.mxu0 0.0
    %7713 = vmatpush1.msra.mxu0 0.0
    %7714 = vmatprep.subr.mxu0 0.0
    %7715 = vmatpush1.msra.mxu0 0.0
    %7716 = vmatprep.subr.mxu0 0.0
    %7717 = vmatpush1.msra.mxu0 0.0
    %7718 = vmatprep.subr.mxu0 0.0
    %7719 = vmatpush1.msra.mxu0 0.0
    %7720 = vmatprep.subr.mxu0 0.0
    %7721 = vmatpush1.msra.mxu0 0.0
    %7722 = vmatprep.subr.mxu0 0.0
    %7723 = vmatpush1.msra.mxu0 0.0
    %7724 = vmatprep.subr.mxu0 0.0
    %7725 = vmatpush1.msra.mxu0 0.0
    %7726 = vmatprep.subr.mxu0 0.0
    %7727 = vmatpush1.msra.mxu0 0.0
    %7728 = vmatprep.subr.mxu0 0.0
    %7729 = vmatpush1.msra.mxu0 0.0
    %7730 = vmatprep.subr.mxu0 0.0
    %7731 = vmatpush1.msra.mxu0 0.0
    %7732 = vmatprep.mubr.f32.mxu0 0.0
    %7733 = vmatmul.mubr.f32.gmra.mrb[0].mxu0 %v7666
    %v7734 = vpop.f32.mrb[0].mxu0
    %v7735 = vadd.f32 0.0, %v7734
    %v7736 = vpop.f32.mrb[0].mxu0
    %7737 = vdwg.mxu0
    %v7739 = vsel %vm1165, %v7516, 0
    %7741 = vmatprep.subr.mxu0 0.0
    %7742 = vmatpush1.msra.mxu0 %v4253
    %7743 = vmatprep.subr.mxu0 0.0
    %7744 = vmatpush1.msra.mxu0 0.0
    %7745 = vmatprep.subr.mxu0 0.0
    %7746 = vmatpush1.msra.mxu0 0.0
    %7747 = vmatprep.subr.mxu0 0.0
    %7748 = vmatpush1.msra.mxu0 0.0
    %7749 = vmatprep.subr.mxu0 0.0
    %7750 = vmatpush1.msra.mxu0 0.0
    %7751 = vmatprep.subr.mxu0 0.0
    %7752 = vmatpush1.msra.mxu0 0.0
    %7753 = vmatprep.subr.mxu0 0.0
    %7754 = vmatpush1.msra.mxu0 0.0
    %7755 = vmatprep.subr.mxu0 0.0
    %7756 = vmatpush1.msra.mxu0 0.0
    %7757 = vmatprep.subr.mxu0 0.0
    %7758 = vmatpush1.msra.mxu0 0.0
    %7759 = vmatprep.subr.mxu0 0.0
    %7760 = vmatpush1.msra.mxu0 0.0
    %7761 = vmatprep.subr.mxu0 0.0
    %7762 = vmatpush1.msra.mxu0 0.0
    %7763 = vmatprep.subr.mxu0 0.0
    %7764 = vmatpush1.msra.mxu0 0.0
    %7765 = vmatprep.subr.mxu0 0.0
    %7766 = vmatpush1.msra.mxu0 0.0
    %7767 = vmatprep.subr.mxu0 0.0
    %7768 = vmatpush1.msra.mxu0 0.0
    %7769 = vmatprep.subr.mxu0 0.0
    %7770 = vmatpush1.msra.mxu0 0.0
    %7771 = vmatprep.subr.mxu0 0.0
    %7772 = vmatpush1.msra.mxu0 0.0
    %7773 = vmatprep.subr.mxu0 0.0
    %7774 = vmatpush1.msra.mxu0 0.0
    %7775 = vmatprep.subr.mxu0 0.0
    %7776 = vmatpush1.msra.mxu0 0.0
    %7777 = vmatprep.subr.mxu0 0.0
    %7778 = vmatpush1.msra.mxu0 0.0
    %7779 = vmatprep.subr.mxu0 0.0
    %7780 = vmatpush1.msra.mxu0 0.0
    %7781 = vmatprep.subr.mxu0 0.0
    %7782 = vmatpush1.msra.mxu0 0.0
    %7783 = vmatprep.subr.mxu0 0.0
    %7784 = vmatpush1.msra.mxu0 0.0
    %7785 = vmatprep.subr.mxu0 0.0
    %7786 = vmatpush1.msra.mxu0 0.0
    %7787 = vmatprep.subr.mxu0 0.0
    %7788 = vmatpush1.msra.mxu0 0.0
    %7789 = vmatprep.subr.mxu0 0.0
    %7790 = vmatpush1.msra.mxu0 0.0
    %7791 = vmatprep.subr.mxu0 0.0
    %7792 = vmatpush1.msra.mxu0 0.0
    %7793 = vmatprep.subr.mxu0 0.0
    %7794 = vmatpush1.msra.mxu0 0.0
    %7795 = vmatprep.subr.mxu0 0.0
    %7796 = vmatpush1.msra.mxu0 0.0
    %7797 = vmatprep.subr.mxu0 0.0
    %7798 = vmatpush1.msra.mxu0 0.0
    %7799 = vmatprep.subr.mxu0 0.0
    %7800 = vmatpush1.msra.mxu0 0.0
    %7801 = vmatprep.subr.mxu0 0.0
    %7802 = vmatpush1.msra.mxu0 0.0
    %7803 = vmatprep.subr.mxu0 0.0
    %7804 = vmatpush1.msra.mxu0 0.0
    %7805 = vmatprep.mubr.f32.mxu0 0.0
    %7806 = vmatmul.mubr.f32.gmra.mrb[0].mxu0 %v7739
    %v7807 = vpop.f32.mrb[0].mxu0
    %v7808 = vadd.f32 0.0, %v7807
    %v7809 = vpop.f32.mrb[0].mxu0
    %7810 = vdwg.mxu0
    %v7812 = vsel %vm1165, %v7589, 0
    %7814 = vmatprep.subr.mxu0 0.0
    %7815 = vmatpush1.msra.mxu0 %v4254
    %7816 = vmatprep.subr.mxu0 0.0
    %7817 = vmatpush1.msra.mxu0 0.0
    %7818 = vmatprep.subr.mxu0 0.0
    %7819 = vmatpush1.msra.mxu0 0.0
    %7820 = vmatprep.subr.mxu0 0.0
    %7821 = vmatpush1.msra.mxu0 0.0
    %7822 = vmatprep.subr.mxu0 0.0
    %7823 = vmatpush1.msra.mxu0 0.0
    %7824 = vmatprep.subr.mxu0 0.0
    %7825 = vmatpush1.msra.mxu0 0.0
    %7826 = vmatprep.subr.mxu0 0.0
    %7827 = vmatpush1.msra.mxu0 0.0
    %7828 = vmatprep.subr.mxu0 0.0
    %7829 = vmatpush1.msra.mxu0 0.0
    %7830 = vmatprep.subr.mxu0 0.0
    %7831 = vmatpush1.msra.mxu0 0.0
    %7832 = vmatprep.subr.mxu0 0.0
    %7833 = vmatpush1.msra.mxu0 0.0
    %7834 = vmatprep.subr.mxu0 0.0
    %7835 = vmatpush1.msra.mxu0 0.0
    %7836 = vmatprep.subr.mxu0 0.0
    %7837 = vmatpush1.msra.mxu0 0.0
    %7838 = vmatprep.subr.mxu0 0.0
    %7839 = vmatpush1.msra.mxu0 0.0
    %7840 = vmatprep.subr.mxu0 0.0
    %7841 = vmatpush1.msra.mxu0 0.0
    %7842 = vmatprep.subr.mxu0 0.0
    %7843 = vmatpush1.msra.mxu0 0.0
    %7844 = vmatprep.subr.mxu0 0.0
    %7845 = vmatpush1.msra.mxu0 0.0
    %7846 = vmatprep.subr.mxu0 0.0
    %7847 = vmatpush1.msra.mxu0 0.0
    %7848 = vmatprep.subr.mxu0 0.0
    %7849 = vmatpush1.msra.mxu0 0.0
    %7850 = vmatprep.subr.mxu0 0.0
    %7851 = vmatpush1.msra.mxu0 0.0
    %7852 = vmatprep.subr.mxu0 0.0
    %7853 = vmatpush1.msra.mxu0 0.0
    %7854 = vmatprep.subr.mxu0 0.0
    %7855 = vmatpush1.msra.mxu0 0.0
    %7856 = vmatprep.subr.mxu0 0.0
    %7857 = vmatpush1.msra.mxu0 0.0
    %7858 = vmatprep.subr.mxu0 0.0
    %7859 = vmatpush1.msra.mxu0 0.0
    %7860 = vmatprep.subr.mxu0 0.0
    %7861 = vmatpush1.msra.mxu0 0.0
    %7862 = vmatprep.subr.mxu0 0.0
    %7863 = vmatpush1.msra.mxu0 0.0
    %7864 = vmatprep.subr.mxu0 0.0
    %7865 = vmatpush1.msra.mxu0 0.0
    %7866 = vmatprep.subr.mxu0 0.0
    %7867 = vmatpush1.msra.mxu0 0.0
    %7868 = vmatprep.subr.mxu0 0.0
    %7869 = vmatpush1.msra.mxu0 0.0
    %7870 = vmatprep.subr.mxu0 0.0
    %7871 = vmatpush1.msra.mxu0 0.0
    %7872 = vmatprep.subr.mxu0 0.0
    %7873 = vmatpush1.msra.mxu0 0.0
    %7874 = vmatprep.subr.mxu0 0.0
    %7875 = vmatpush1.msra.mxu0 0.0
    %7876 = vmatprep.subr.mxu0 0.0
    %7877 = vmatpush1.msra.mxu0 0.0
    %7878 = vmatprep.mubr.f32.mxu0 0.0
    %7879 = vmatmul.mubr.f32.gmra.mrb[0].mxu0 %v7812
    %v7880 = vpop.f32.mrb[0].mxu0
    %v7881 = vadd.f32 0.0, %v7880
    %v7882 = vpop.f32.mrb[0].mxu0
    %7883 = vdwg.mxu0
    %v7884 = vsel %vm269, %v7662, 0.0
    %v7885 = vsel %vm269, %v7735, 0.0
    %v7886 = vadd.f32 %v7884, %v7885
    %v7887 = vsel %vm269, %v7808, 0.0
    %v7888 = vadd.f32 %v7886, %v7887
    %v7889 = vsel %vm269, %v7881, 0.0
    %v7890 = vadd.f32 %v7888, %v7889
    %s7891 = scalar_lea.vmem %s10, 1
    %v7892 = vld [vmem:[%s7891] sm:$0x1]
    %v7894 = vlaneseq
    %v7895 = vshrl.u32 %v7894, 7
    %v7896 = vsub.s32 0, %v7895
    %v7897 = vrot.slane %v7892, %v7896
    %v7899 = vadd.f32 %v6108, %v7897
    %v7900 = vadd.f32 %v7890, %v7897
    %v7901 = vadd.f32 %v4182, %v7899
    %v7902 = vadd.f32 %v4183, %v7900
    %s7903 = scalar_lea.vmem %s11, 1
    %v7904 = vld [vmem:[%s7903] sm:$0x1]
    %s7905 = scalar_lea.vmem %s12, 1
    %v7906 = vld [vmem:[%s7905] sm:$0x1]
    %v7907 = vsel %vm269, %v7901, 0.0
    %7908 = vadd.xlane.f32.xlu0 %v7907
    %v7909 = vpop.xlane.xlu0 %7908
    %v7910 = vsel %vm269, %v7902, 0.0
    %7911 = vadd.xlane.f32.xlu0 %v7910
    %v7912 = vpop.xlane.xlu0 %7911
    %v7913 = vmul.f32 %v7909, %v3910
    %v7914 = vmul.f32 %v7912, %v3910
    %v7915 = vsub.f32 %v7901, %v7913
    %v7916 = vsub.f32 %v7902, %v7914
    %v7917 = vmul.f32 %v7915, %v7915
    %v7918 = vmul.f32 %v7916, %v7916
    %v7919 = vsel %vm269, %v7917, 0.0
    %7920 = vadd.xlane.f32.xlu0 %v7919
    %v7921 = vpop.xlane.xlu0 %7920
    %v7922 = vsel %vm269, %v7918, 0.0
    %7923 = vadd.xlane.f32.xlu0 %v7922
    %v7924 = vpop.xlane.xlu0 %7923
    %v7925 = vmul.f32 %v7921, %v3910
    %v7926 = vmul.f32 %v7924, %v3910
    %v7927 = vadd.f32 %v7925, 1e-05
    %v7928 = vadd.f32 %v7926, 1e-05
    %v7929 = vrsqrt.pop %v7927
    %v7930 = vrsqrt.pop %v7928
    %v7931 = vmul.f32 %v7915, %v7929
    %v7932 = vmul.f32 %v7916, %v7930
    %v7934 = vlaneseq
    %v7935 = vshrl.u32 %v7934, 7
    %v7936 = vsub.s32 0, %v7935
    %v7937 = vrot.slane %v7904, %v7936
    %v7939 = vmul.f32 %v7931, %v7937
    %v7940 = vmul.f32 %v7932, %v7937
    %v7942 = vlaneseq
    %v7943 = vshrl.u32 %v7942, 7
    %v7944 = vsub.s32 0, %v7943
    %v7945 = vrot.slane %v7906, %v7944
    %v7947 = vadd.f32 %v7939, %v7945
    %v7948 = vadd.f32 %v7940, %v7945
    %s7949 = scalar_lea.vmem %s13, 32
    %v7950 = vld [vmem:[%s7949] sm:$0xff]
    %v7951 = vld [vmem:[%s7949 + $0x8] sm:$0xff]
    %v7952 = vld [vmem:[%s7949 + $0x10] sm:$0xff]
    %v7953 = vld [vmem:[%s7949 + $0x18] sm:$0xff]
    %s7954 = scalar_lea.vmem %s14, 1
    %v7955 = vld [vmem:[%s7954] sm:$0x1]
    %v7957 = vlaneseq
    %v7958 = vshrl.u32 %v7957, 7
    %v7959 = vsub.s32 0, %v7958
    %v7960 = vrot.slane %v7955, %v7959
    %v7963 = vsel %vm269, %v7947, 0
    %v7966 = vsel %vm269, %v7948, 0
    %7968 = vmatprep.subr.mxu0 0.0
    %7969 = vmatpush1.msra.mxu0 %v7950
    %7970 = vmatprep.subr.mxu0 0.0
    %7971 = vmatpush1.msra.mxu0 %v7951
    %7972 = vmatprep.subr.mxu0 0.0
    %7973 = vmatpush1.msra.mxu0 %v7952
    %7974 = vmatprep.subr.mxu0 0.0
    %7975 = vmatpush1.msra.mxu0 %v7953
    %7976 = vmatprep.subr.mxu0 0.0
    %7977 = vmatpush1.msra.mxu0 0.0
    %7978 = vmatprep.subr.mxu0 0.0
    %7979 = vmatpush1.msra.mxu0 0.0
    %7980 = vmatprep.subr.mxu0 0.0
    %7981 = vmatpush1.msra.mxu0 0.0
    %7982 = vmatprep.subr.mxu0 0.0
    %7983 = vmatpush1.msra.mxu0 0.0
    %7984 = vmatprep.subr.mxu0 0.0
    %7985 = vmatpush1.msra.mxu0 0.0
    %7986 = vmatprep.subr.mxu0 0.0
    %7987 = vmatpush1.msra.mxu0 0.0
    %7988 = vmatprep.subr.mxu0 0.0
    %7989 = vmatpush1.msra.mxu0 0.0
    %7990 = vmatprep.subr.mxu0 0.0
    %7991 = vmatpush1.msra.mxu0 0.0
    %7992 = vmatprep.subr.mxu0 0.0
    %7993 = vmatpush1.msra.mxu0 0.0
    %7994 = vmatprep.subr.mxu0 0.0
    %7995 = vmatpush1.msra.mxu0 0.0
    %7996 = vmatprep.subr.mxu0 0.0
    %7997 = vmatpush1.msra.mxu0 0.0
    %7998 = vmatprep.subr.mxu0 0.0
    %7999 = vmatpush1.msra.mxu0 0.0
    %8000 = vmatprep.subr.mxu0 0.0
    %8001 = vmatpush1.msra.mxu0 0.0
    %8002 = vmatprep.subr.mxu0 0.0
    %8003 = vmatpush1.msra.mxu0 0.0
    %8004 = vmatprep.subr.mxu0 0.0
    %8005 = vmatpush1.msra.mxu0 0.0
    %8006 = vmatprep.subr.mxu0 0.0
    %8007 = vmatpush1.msra.mxu0 0.0
    %8008 = vmatprep.subr.mxu0 0.0
    %8009 = vmatpush1.msra.mxu0 0.0
    %8010 = vmatprep.subr.mxu0 0.0
    %8011 = vmatpush1.msra.mxu0 0.0
    %8012 = vmatprep.subr.mxu0 0.0
    %8013 = vmatpush1.msra.mxu0 0.0
    %8014 = vmatprep.subr.mxu0 0.0
    %8015 = vmatpush1.msra.mxu0 0.0
    %8016 = vmatprep.subr.mxu0 0.0
    %8017 = vmatpush1.msra.mxu0 0.0
    %8018 = vmatprep.subr.mxu0 0.0
    %8019 = vmatpush1.msra.mxu0 0.0
    %8020 = vmatprep.subr.mxu0 0.0
    %8021 = vmatpush1.msra.mxu0 0.0
    %8022 = vmatprep.subr.mxu0 0.0
    %8023 = vmatpush1.msra.mxu0 0.0
    %8024 = vmatprep.subr.mxu0 0.0
    %8025 = vmatpush1.msra.mxu0 0.0
    %8026 = vmatprep.subr.mxu0 0.0
    %8027 = vmatpush1.msra.mxu0 0.0
    %8028 = vmatprep.subr.mxu0 0.0
    %8029 = vmatpush1.msra.mxu0 0.0
    %8030 = vmatprep.subr.mxu0 0.0
    %8031 = vmatpush1.msra.mxu0 0.0
    %8032 = vmatprep.mubr.f32.mxu0 0.0
    %8033 = vmatmul.mubr.f32.gmra.mrb[0].mxu0 %v7963
    %v8034 = vpop.f32.mrb[0].mxu0
    %v8035 = vadd.f32 %v7960, %v8034
    %v8036 = vpop.f32.mrb[0].mxu0
    %8037 = vmatprep.mubr.f32.mxu0 0.0
    %8038 = vmatmul.mubr.f32.gmra.mrb[0].mxu0 %v7966
    %v8039 = vpop.f32.mrb[0].mxu0
    %v8040 = vadd.f32 %v7960, %v8039
    %v8041 = vpop.f32.mrb[0].mxu0
    %8042 = vdwg.mxu0
    %v8043 = vmax.f32 %v8035, 0.0
    %v8044 = vmax.f32 %v8040, 0.0
    %s8045 = scalar_lea.vmem %s15, 64
    %v8046 = vld [vmem:[%s8045] sm:$0xff]
    %v8047 = vld [vmem:[%s8045 + $0x8] sm:$0xff]
    %v8048 = vld [vmem:[%s8045 + $0x10] sm:$0xff]
    %v8049 = vld [vmem:[%s8045 + $0x18] sm:$0xff]
    %v8050 = vld [vmem:[%s8045 + $0x20] sm:$0xff]
    %v8051 = vld [vmem:[%s8045 + $0x28] sm:$0xff]
    %v8052 = vld [vmem:[%s8045 + $0x30] sm:$0xff]
    %v8053 = vld [vmem:[%s8045 + $0x38] sm:$0xff]
    %s8054 = scalar_lea.vmem %s16, 1
    %v8055 = vld [vmem:[%s8054] sm:$0x1]
    %v8057 = vlaneseq
    %v8058 = vshrl.u32 %v8057, 7
    %v8059 = vsub.s32 0, %v8058
    %v8060 = vrot.slane %v8055, %v8059
    %v8063 = vsel %vm4056, %v8043, 0
    %v8066 = vsel %vm4056, %v8044, 0
    %8068 = vmatprep.subr.mxu0 0.0
    %8069 = vmatpush1.msra.mxu0 %v8046
    %8070 = vmatprep.subr.mxu0 0.0
    %8071 = vmatpush1.msra.mxu0 %v8047
    %8072 = vmatprep.subr.mxu0 0.0
    %8073 = vmatpush1.msra.mxu0 %v8048
    %8074 = vmatprep.subr.mxu0 0.0
    %8075 = vmatpush1.msra.mxu0 %v8049
    %8076 = vmatprep.subr.mxu0 0.0
    %8077 = vmatpush1.msra.mxu0 %v8050
    %8078 = vmatprep.subr.mxu0 0.0
    %8079 = vmatpush1.msra.mxu0 %v8051
    %8080 = vmatprep.subr.mxu0 0.0
    %8081 = vmatpush1.msra.mxu0 %v8052
    %8082 = vmatprep.subr.mxu0 0.0
    %8083 = vmatpush1.msra.mxu0 %v8053
    %8084 = vmatprep.subr.mxu0 0.0
    %8085 = vmatpush1.msra.mxu0 0.0
    %8086 = vmatprep.subr.mxu0 0.0
    %8087 = vmatpush1.msra.mxu0 0.0
    %8088 = vmatprep.subr.mxu0 0.0
    %8089 = vmatpush1.msra.mxu0 0.0
    %8090 = vmatprep.subr.mxu0 0.0
    %8091 = vmatpush1.msra.mxu0 0.0
    %8092 = vmatprep.subr.mxu0 0.0
    %8093 = vmatpush1.msra.mxu0 0.0
    %8094 = vmatprep.subr.mxu0 0.0
    %8095 = vmatpush1.msra.mxu0 0.0
    %8096 = vmatprep.subr.mxu0 0.0
    %8097 = vmatpush1.msra.mxu0 0.0
    %8098 = vmatprep.subr.mxu0 0.0
    %8099 = vmatpush1.msra.mxu0 0.0
    %8100 = vmatprep.subr.mxu0 0.0
    %8101 = vmatpush1.msra.mxu0 0.0
    %8102 = vmatprep.subr.mxu0 0.0
    %8103 = vmatpush1.msra.mxu0 0.0
    %8104 = vmatprep.subr.mxu0 0.0
    %8105 = vmatpush1.msra.mxu0 0.0
    %8106 = vmatprep.subr.mxu0 0.0
    %8107 = vmatpush1.msra.mxu0 0.0
    %8108 = vmatprep.subr.mxu0 0.0
    %8109 = vmatpush1.msra.mxu0 0.0
    %8110 = vmatprep.subr.mxu0 0.0
    %8111 = vmatpush1.msra.mxu0 0.0
    %8112 = vmatprep.subr.mxu0 0.0
    %8113 = vmatpush1.msra.mxu0 0.0
    %8114 = vmatprep.subr.mxu0 0.0
    %8115 = vmatpush1.msra.mxu0 0.0
    %8116 = vmatprep.subr.mxu0 0.0
    %8117 = vmatpush1.msra.mxu0 0.0
    %8118 = vmatprep.subr.mxu0 0.0
    %8119 = vmatpush1.msra.mxu0 0.0
    %8120 = vmatprep.subr.mxu0 0.0
    %8121 = vmatpush1.msra.mxu0 0.0
    %8122 = vmatprep.subr.mxu0 0.0
    %8123 = vmatpush1.msra.mxu0 0.0
    %8124 = vmatprep.subr.mxu0 0.0
    %8125 = vmatpush1.msra.mxu0 0.0
    %8126 = vmatprep.subr.mxu0 0.0
    %8127 = vmatpush1.msra.mxu0 0.0
    %8128 = vmatprep.subr.mxu0 0.0
    %8129 = vmatpush1.msra.mxu0 0.0
    %8130 = vmatprep.subr.mxu0 0.0
    %8131 = vmatpush1.msra.mxu0 0.0
    %8132 = vmatprep.mubr.f32.mxu0 0.0
    %8133 = vmatmul.mubr.f32.gmra.mrb[0].mxu0 %v8063
    %v8134 = vpop.f32.mrb[0].mxu0
    %v8135 = vadd.f32 %v8060, %v8134
    %v8136 = vpop.f32.mrb[0].mxu0
    %8137 = vmatprep.mubr.f32.mxu0 0.0
    %8138 = vmatmul.mubr.f32.gmra.mrb[0].mxu0 %v8066
    %v8139 = vpop.f32.mrb[0].mxu0
    %v8140 = vadd.f32 %v8060, %v8139
    %v8141 = vpop.f32.mrb[0].mxu0
    %8142 = vdwg.mxu0
    %v8143 = vadd.f32 %v7947, %v8135
    %v8144 = vadd.f32 %v7948, %v8140
    %s8145 = scalar_lea.vmem %s17, 1
    %v8146 = vld [vmem:[%s8145] sm:$0x1]
    %s8147 = scalar_lea.vmem %s18, 1
    %v8148 = vld [vmem:[%s8147] sm:$0x1]
    %v8149 = vsel %vm269, %v8143, 0.0
    %8150 = vadd.xlane.f32.xlu0 %v8149
    %v8151 = vpop.xlane.xlu0 %8150
    %v8152 = vsel %vm269, %v8144, 0.0
    %8153 = vadd.xlane.f32.xlu0 %v8152
    %v8154 = vpop.xlane.xlu0 %8153
    %v8155 = vmul.f32 %v8151, %v3910
    %v8156 = vmul.f32 %v8154, %v3910
    %v8157 = vsub.f32 %v8143, %v8155
    %v8158 = vsub.f32 %v8144, %v8156
    %v8159 = vmul.f32 %v8157, %v8157
    %v8160 = vmul.f32 %v8158, %v8158
    %v8161 = vsel %vm269, %v8159, 0.0
    %8162 = vadd.xlane.f32.xlu0 %v8161
    %v8163 = vpop.xlane.xlu0 %8162
    %v8164 = vsel %vm269, %v8160, 0.0
    %8165 = vadd.xlane.f32.xlu0 %v8164
    %v8166 = vpop.xlane.xlu0 %8165
    %v8167 = vmul.f32 %v8163, %v3910
    %v8168 = vmul.f32 %v8166, %v3910
    %v8169 = vadd.f32 %v8167, 1e-05
    %v8170 = vadd.f32 %v8168, 1e-05
    %v8171 = vrsqrt.pop %v8169
    %v8172 = vrsqrt.pop %v8170
    %v8173 = vmul.f32 %v8157, %v8171
    %v8174 = vmul.f32 %v8158, %v8172
    %v8176 = vlaneseq
    %v8177 = vshrl.u32 %v8176, 7
    %v8178 = vsub.s32 0, %v8177
    %v8179 = vrot.slane %v8146, %v8178
    %v8181 = vmul.f32 %v8173, %v8179
    %v8182 = vmul.f32 %v8174, %v8179
    %v8184 = vlaneseq
    %v8185 = vshrl.u32 %v8184, 7
    %v8186 = vsub.s32 0, %v8185
    %v8187 = vrot.slane %v8148, %v8186
    %v8189 = vadd.f32 %v8181, %v8187
    %v8190 = vadd.f32 %v8182, %v8187
    %v8191 = vld [vmem:[%s19] sm:$0xff]
    %v8192 = vld [vmem:[%s19 + $0x8] sm:$0xff]
    %v8193 = vld [vmem:[%s19 + $0x10] sm:$0xff]
    %v8194 = vld [vmem:[%s19 + $0x18] sm:$0xff]
    %v8195 = vld [vmem:[%s20] sm:$0x1]
    %v8197 = vlaneseq
    %v8198 = vshrl.u32 %v8197, 7
    %v8199 = vsub.s32 0, %v8198
    %v8200 = vrot.slane %v8195, %v8199
    %v8203 = vsel %vm269, %v8189, 0
    %v8206 = vsel %vm269, %v8190, 0
    %8208 = vmatprep.subr.mxu0 0.0
    %8209 = vmatpush1.msra.mxu0 %v8191
    %8210 = vmatprep.subr.mxu0 0.0
    %8211 = vmatpush1.msra.mxu0 %v8192
    %8212 = vmatprep.subr.mxu0 0.0
    %8213 = vmatpush1.msra.mxu0 %v8193
    %8214 = vmatprep.subr.mxu0 0.0
    %8215 = vmatpush1.msra.mxu0 %v8194
    %8216 = vmatprep.subr.mxu0 0.0
    %8217 = vmatpush1.msra.mxu0 0.0
    %8218 = vmatprep.subr.mxu0 0.0
    %8219 = vmatpush1.msra.mxu0 0.0
    %8220 = vmatprep.subr.mxu0 0.0
    %8221 = vmatpush1.msra.mxu0 0.0
    %8222 = vmatprep.subr.mxu0 0.0
    %8223 = vmatpush1.msra.mxu0 0.0
    %8224 = vmatprep.subr.mxu0 0.0
    %8225 = vmatpush1.msra.mxu0 0.0
    %8226 = vmatprep.subr.mxu0 0.0
    %8227 = vmatpush1.msra.mxu0 0.0
    %8228 = vmatprep.subr.mxu0 0.0
    %8229 = vmatpush1.msra.mxu0 0.0
    %8230 = vmatprep.subr.mxu0 0.0
    %8231 = vmatpush1.msra.mxu0 0.0
    %8232 = vmatprep.subr.mxu0 0.0
    %8233 = vmatpush1.msra.mxu0 0.0
    %8234 = vmatprep.subr.mxu0 0.0
    %8235 = vmatpush1.msra.mxu0 0.0
    %8236 = vmatprep.subr.mxu0 0.0
    %8237 = vmatpush1.msra.mxu0 0.0
    %8238 = vmatprep.subr.mxu0 0.0
    %8239 = vmatpush1.msra.mxu0 0.0
    %8240 = vmatprep.subr.mxu0 0.0
    %8241 = vmatpush1.msra.mxu0 0.0
    %8242 = vmatprep.subr.mxu0 0.0
    %8243 = vmatpush1.msra.mxu0 0.0
    %8244 = vmatprep.subr.mxu0 0.0
    %8245 = vmatpush1.msra.mxu0 0.0
    %8246 = vmatprep.subr.mxu0 0.0
    %8247 = vmatpush1.msra.mxu0 0.0
    %8248 = vmatprep.subr.mxu0 0.0
    %8249 = vmatpush1.msra.mxu0 0.0
    %8250 = vmatprep.subr.mxu0 0.0
    %8251 = vmatpush1.msra.mxu0 0.0
    %8252 = vmatprep.subr.mxu0 0.0
    %8253 = vmatpush1.msra.mxu0 0.0
    %8254 = vmatprep.subr.mxu0 0.0
    %8255 = vmatpush1.msra.mxu0 0.0
    %8256 = vmatprep.subr.mxu0 0.0
    %8257 = vmatpush1.msra.mxu0 0.0
    %8258 = vmatprep.subr.mxu0 0.0
    %8259 = vmatpush1.msra.mxu0 0.0
    %8260 = vmatprep.subr.mxu0 0.0
    %8261 = vmatpush1.msra.mxu0 0.0
    %8262 = vmatprep.subr.mxu0 0.0
    %8263 = vmatpush1.msra.mxu0 0.0
    %8264 = vmatprep.subr.mxu0 0.0
    %8265 = vmatpush1.msra.mxu0 0.0
    %8266 = vmatprep.subr.mxu0 0.0
    %8267 = vmatpush1.msra.mxu0 0.0
    %8268 = vmatprep.subr.mxu0 0.0
    %8269 = vmatpush1.msra.mxu0 0.0
    %8270 = vmatprep.subr.mxu0 0.0
    %8271 = vmatpush1.msra.mxu0 0.0
    %8272 = vmatprep.mubr.f32.mxu0 0.0
    %8273 = vmatmul.mubr.f32.gmra.mrb[0].mxu0 %v8203
    %v8274 = vpop.f32.mrb[0].mxu0
    %v8275 = vadd.f32 %v8200, %v8274
    %v8276 = vpop.f32.mrb[0].mxu0
    %8277 = vmatprep.mubr.f32.mxu0 0.0
    %8278 = vmatmul.mubr.f32.gmra.mrb[0].mxu0 %v8206
    %v8279 = vpop.f32.mrb[0].mxu0
    %v8280 = vadd.f32 %v8200, %v8279
    %v8281 = vpop.f32.mrb[0].mxu0
    %8282 = vdwg.mxu0
    %v8283 = vtanh.pop %v8275
    %v8284 = vtanh.pop %v8280
    %8285 = vst.msk [vmem:[#allocation2] sm:$0xff] %vm269, %v8283
    %8286 = vst.msk [vmem:[#allocation2 + $0x8] sm:$0xff] %vm269, %v8284
    // Predicated region
    $region86: #{classifier_forward.1} parent=1 // pred_check
      _
    $region87: #{classifier_forward.1} parent=1 // pred_check_branch
      %8288 = sbr.rel (0) target = $region89
    $region88: #{classifier_forward.1} parent=1 // pred_region
      %s8290 = ssub.s32 256, 256
      %8291 = vsyncadd [#allocation3], %s8290
      %s8292 = sshll.u32 [#allocation2], 4
      %s8293 = int_to_ptr.vmem [resolvable:$true] %s8292
      %8298 = dma.vmem_to_hbm [thread:$0]  %s8293, 256, %s21, [#allocation3], 128, 128, 8
    $region89: #{classifier_forward.1} parent=1 // pred_fallthru
      _
    // Predicated region
    $region90: #{classifier_forward.1} parent=1 // pred_check
      _
    $region91: #{classifier_forward.1} parent=1 // pred_check_branch
      %8300 = sbr.rel (0) target = $region93
    $region92: #{classifier_forward.1} parent=1 // pred_region
      %8301 = dma.done [#allocation3], 256
    $region93: #{classifier_forward.1} parent=1 // pred_fallthru
      _
    %8302 = vsyncpa [#allocation3], 1

</llo_original>
